<compile_context>
chip_gen: v5e
topology: v5e:2x2
jax: 0.10.0
libtpu: 0.0.40
codegen_flags: <defaults>
</compile_context>

<pallas_src>
import functools

import jax
import jax.numpy as jnp
from jax.experimental import pallas as pl
from jax.experimental.pallas import tpu as pltpu


def _round_up(x, m):
    return ((x + m - 1) // m) * m


# ------------------------------ fused Pallas kernel ------------------------------

def _fused_kernel(xz_ref, xr_ref, wh_ref, bh_ref, wm_ref, bm_ref,
                  wt_ref, bt_ref, o_ref,
                  buf_a, buf_b, patches, tail_ref,
                  *, H, W, nf, n_mid, n_stack):
    Wp = W + 2
    base = (-(Wp + 1)) % 128          # leading pad so the valid region starts 128-aligned
    p0 = base + Wp + 1                # flat index of padded pixel (1, 1); multiple of 128
    L = H * Wp                        # compute-slab length (lane axis)

    f32 = jnp.float32
    bf16 = jnp.bfloat16

    # Column-validity mask over the compute slab: slab position p maps to padded
    # column (p + 1) % Wp; valid image columns are 1..W.  (Hoisted, reused by all layers.)
    col = (jax.lax.broadcasted_iota(jnp.int32, (1, L), 1) + 1) % Wp
    mask = jnp.logical_and(col >= 1, col <= W).astype(bf16)       # (1, L)

    # Zero the ping-pong activation buffers (their padding region must read 0)
    # and the fused tail accumulator; re-done every grid step (per batch element).
    buf_a[...] = jnp.zeros_like(buf_a)
    buf_b[...] = jnp.zeros_like(buf_b)
    tail_ref[...] = jnp.zeros_like(tail_ref)

    def conv_crelu(src_ref, cin, w_flat, bias, dst_ref, tail_w):
        # im2col: pack the 9 shifted views into one (9*cin, L) matrix in VMEM.
        for t in range(9):
            i, j = divmod(t, 3)
            s = base + i * Wp + j
            patches[t * cin:(t + 1) * cin, :] = src_ref[0:cin, s:s + L]
        k = 9 * cin
        acc = jax.lax.dot_general(                       # (nf, L), f32 accumulation
            w_flat, patches[0:k, :],
            dimension_numbers=(((1,), (0,)), ((), ())),
            preferred_element_type=f32)
        acc = acc + bias                                 # (nf, 1) broadcast, f32
        pos = jnp.maximum(acc, 0.0).astype(bf16) * mask  # CReLU halves, pad cols zeroed
        neg = jnp.maximum(-acc, 0.0).astype(bf16) * mask
        dst_ref[0:nf, p0:p0 + L] = pos
        dst_ref[nf:2 * nf, p0:p0 + L] = neg
        if tail_w is not None:                           # fused 1x1 tail contribution
            wt_pos, wt_neg = tail_w
            c = jax.lax.dot_general(wt_pos, pos,
                                    dimension_numbers=(((1,), (0,)), ((), ())),
                                    preferred_element_type=f32)
            c = c + jax.lax.dot_general(wt_neg, neg,
                                        dimension_numbers=(((1,), (0,)), ((), ())),
                                        preferred_element_type=f32)
            tail_ref[...] = tail_ref[...] + c

    stack_start = (n_mid + 1) - n_stack                  # first depth index in the stack

    def tail_w_for(d):
        if d < stack_start:
            return None
        l = d - stack_start
        return (wt_ref[l, :, 0:nf], wt_ref[l, :, nf:2 * nf])

    # Head conv (3 -> nf, CReLU): x -> buf_a
    conv_crelu(xz_ref, 3, wh_ref[...], bh_ref[...], buf_a, tail_w_for(0))
    # Mid convs (2*nf -> nf, CReLU), ping-pong between buf_a / buf_b
    src, dst = buf_a, buf_b
    for m in range(n_mid):
        conv_crelu(src, 2 * nf, wm_ref[m], bm_ref[m], dst, tail_w_for(m + 1))
        src, dst = dst, src

    # ---- fused epilogue: tail bias + PixelShuffle(2) + bilinear x2 residual + clamp ----
    tail = tail_ref[...] + bt_ref[...]                   # (12, L) f32; channels permuted so
                                                         # rows 3k..3k+2 = sub-pixel (i,j)=k
    xr = xr_ref[...]                                     # (3, L_buf) f32, edge-padded input

    # Separable align_corners=False x2 weights (0.25 / 0.75) on a replicate-padded input.
    taps = {0: ((-1, 0.25), (0, 0.75)), 1: ((0, 0.75), (1, 0.25))}
    for i in range(2):
        for j in range(2):
            up = jnp.zeros((3, L), f32)
            for (dr, wr) in taps[i]:
                for (dc, wc) in taps[j]:
                    s = p0 + dr * Wp + dc
                    up = up + (wr * wc) * xr[:, s:s + L]
            k = i * 2 + j
            res = tail[3 * k:3 * k + 3, :]
            o_ref[k] = jnp.clip(res + up, 0.0, 1.0)


# ---------------------------------- wrapper ----------------------------------

def anime4k_forward(params, x_nchw):
    N, C, H, W = x_nchw.shape
    assert C == 3
    nf = params["head"][0].shape[0]
    n_mid = len(params["mid"])
    n_stack = params["tail"][0].shape[1] // (2 * nf)

    Wp = W + 2
    base = (-(Wp + 1)) % 128
    L = H * Wp
    L_buf = _round_up(base + (H + 2) * Wp + 2, 128)

    f32, bf16 = jnp.float32, jnp.bfloat16
    x = x_nchw.astype(f32)

    # Flattened, padded input copies: zero-padded (conv path, bf16) and
    # edge-padded (bilinear residual path, f32). Both tiny (3 channels).
    def flat_pad(xp, dtype):
        flat = xp.reshape(N, 3, (H + 2) * Wp).astype(dtype)
        return jnp.pad(flat, ((0, 0), (0, 0), (base, L_buf - base - (H + 2) * Wp)))

    xz = flat_pad(jnp.pad(x, ((0, 0), (0, 0), (1, 1), (1, 1))), bf16)
    xr = flat_pad(jnp.pad(x, ((0, 0), (0, 0), (1, 1), (1, 1)), mode="edge"), f32)

    # Weights: OIHW -> (O, kh*kw*I) flat (tap-major, channel-minor), bf16 for the MXU.
    def prep_w(w):
        o, i, kh, kw = w.shape
        return jnp.transpose(w, (0, 2, 3, 1)).reshape(o, kh * kw * i).astype(bf16)

    wh, bh = params["head"]
    wh = prep_w(wh)
    bh = bh.reshape(nf, 1).astype(f32)
    wm = jnp.stack([prep_w(w) for (w, _) in params["mid"]])            # (n_mid, nf, 9*2nf)
    bm = jnp.stack([b.reshape(nf, 1) for (_, b) in params["mid"]]).astype(f32)

    # Tail 1x1 conv: permute output channels so PixelShuffle becomes a contiguous
    # 3-row slice (new k = (i*2+j)*3 + c  <-  old c*4 + i*2 + j); split per stacked layer.
    wt, bt = params["tail"]
    perm = jnp.array([(k % 3) * 4 + (k // 3) for k in range(12)], jnp.int32)
    wt_p = wt[perm, :, 0, 0]                                            # (12, 2*nf*n_stack)
    bt_p = bt[perm].reshape(12, 1).astype(f32)
    wt_s = wt_p.reshape(12, n_stack, 2 * nf).transpose(1, 0, 2).astype(bf16)

    kern = functools.partial(_fused_kernel, H=H, W=W, nf=nf,
                             n_mid=n_mid, n_stack=n_stack)

    out_raw = pl.pallas_call(
        kern,
        out_shape=jax.ShapeDtypeStruct((N, 4, 3, L), jnp.float32),
        grid=(N,),
        in_specs=[
            pl.BlockSpec((None, 3, L_buf), lambda n: (n, 0, 0)),        # x (zero-padded, bf16)
            pl.BlockSpec((None, 3, L_buf), lambda n: (n, 0, 0)),        # x (edge-padded, f32)
            pl.BlockSpec((nf, 9 * 3), lambda n: (0, 0)),                # head weight
            pl.BlockSpec((nf, 1), lambda n: (0, 0)),                    # head bias
            pl.BlockSpec((n_mid, nf, 9 * 2 * nf), lambda n: (0, 0, 0)),  # mid weights
            pl.BlockSpec((n_mid, nf, 1), lambda n: (0, 0, 0)),          # mid biases
            pl.BlockSpec((n_stack, 12, 2 * nf), lambda n: (0, 0, 0)),   # tail weight (split)
            pl.BlockSpec((12, 1), lambda n: (0, 0)),                    # tail bias (permuted)
        ],
        out_specs=pl.BlockSpec((None, 4, 3, L), lambda n: (n, 0, 0, 0)),
        scratch_shapes=[
            pltpu.VMEM((2 * nf, L_buf), jnp.bfloat16),                  # activation ping
            pltpu.VMEM((2 * nf, L_buf), jnp.bfloat16),                  # activation pong
            pltpu.VMEM((9 * 2 * nf, L), jnp.bfloat16),                  # im2col patches
            pltpu.VMEM((12, L), jnp.float32),                           # fused tail accumulator
        ],
        compiler_params=pltpu.CompilerParams(
            dimension_semantics=("parallel",)),
    )(xz, xr, wh, bh, wm, bm, wt_s, bt_p)

    # TODO(synk): for real resolutions add a 'parallel' spatial grid axis with a
    # 7-pixel recompute halo (receptive field of the fused 7-conv stack) and an
    # explicit per-generation vmem_limit_bytes (v7x: 64 MiB physical); at this
    # toy size a single spatial tile per batch element is used.

    # Final layout fix-up (one cheap XLA pass): strip the width padding and
    # interleave the 2x2 PixelShuffle sub-images into NCHW.
    raw = out_raw.reshape(N, 2, 2, 3, H, Wp)[..., :W]
    y = raw.transpose(0, 3, 4, 1, 5, 2).reshape(N, 3, 2 * H, 2 * W)
    return y


# ------------------------------ parameter init ------------------------------

def init_params(key, num_feat=12, block_depth=7, stack_n=5):
    keys = jax.random.split(key, 2 * (block_depth + 1))

    def conv_init(kw_, kb_, cout, cin, k):
        fan_in = cin * k * k
        w = jax.random.normal(kw_, (cout, cin, k, k), jnp.float32) / jnp.sqrt(
            jnp.float32(fan_in))
        b = jax.random.normal(kb_, (cout,), jnp.float32) * 0.05
        return w, b

    params = {}
    params["head"] = conv_init(keys[0], keys[1], num_feat, 3, 3)
    mids = []
    for d in range(block_depth - 1):
        mids.append(conv_init(keys[2 + 2 * d], keys[3 + 2 * d],
                              num_feat, 2 * num_feat, 3))
    params["mid"] = mids
    params["tail"] = conv_init(keys[2 * block_depth], keys[2 * block_depth + 1],
                               12, 2 * num_feat * stack_n, 1)
    return params


# ------------------------- pure-JAX reference (f32) -------------------------

def _reference_forward(params, x_nchw):
    x = x_nchw.astype(jnp.float32)
    n_stack = params["tail"][0].shape[1] // (2 * params["head"][0].shape[0])

    def conv(inp, w, b, pad):
        y = jax.lax.conv_general_dilated(
            inp, w, window_strides=(1, 1), padding=((pad, pad), (pad, pad)),
            dimension_numbers=("NCHW", "OIHW", "NCHW"))
        return y + b[None, :, None, None]

    def crelu(y):
        return jnp.concatenate([jnp.maximum(y, 0.0), jnp.maximum(-y, 0.0)], axis=1)

    wh, bh = params["head"]
    out = crelu(conv(x, wh, bh, 1))
    depth = [out]
    for (w, b) in params["mid"]:
        out = crelu(conv(out, w, b, 1))
        depth.append(out)
    cat = jnp.concatenate([depth[i] for i in range(-n_stack, 0)], axis=1)
    wt, bt = params["tail"]
    out = conv(cat, wt, bt, 0)                          # (N, 12, H, W)

    N, _, H, W = x.shape
    out = out.reshape(N, 3, 2, 2, H, W).transpose(0, 1, 4, 2, 5, 3)
    out = out.reshape(N, 3, 2 * H, 2 * W)               # PixelShuffle(2)

    def up2_idx(size):
        o = jnp.arange(2 * size, dtype=jnp.float32)
        src = jnp.maximum((o + 0.5) / 2.0 - 0.5, 0.0)
        i0 = jnp.floor(src).astype(jnp.int32)
        frac = src - i0.astype(jnp.float32)
        i0 = jnp.minimum(i0, size - 1)
        i1 = jnp.minimum(i0 + 1, size - 1)
        return i0, i1, frac

    h0, h1, hf = up2_idx(H)
    up = (x[:, :, h0, :] * (1.0 - hf)[None, None, :, None]
          + x[:, :, h1, :] * hf[None, None, :, None])
    w0, w1, wf = up2_idx(W)
    up = (up[:, :, :, w0] * (1.0 - wf)[None, None, None, :]
          + up[:, :, :, w1] * wf[None, None, None, :])
    return jnp.clip(out + up, 0.0, 1.0)


# ------------------------------------ main ------------------------------------

if __name__ == "__main__":
    key = jax.random.PRNGKey(0)
    kp, kx = jax.random.split(key)
    params = init_params(kp)
    x = jax.random.uniform(kx, (2, 3, 16, 16), jnp.float32)   # NCHW, like PyTorch

    fwd = jax.jit(anime4k_forward)
    y = fwd(params, x)
    jax.block_until_ready(y)
    assert y.shape == (2, 3, 32, 32), y.shape
    assert y.dtype == jnp.float32

    # Sanity check against the f32 reference (kernel runs bf16 matmuls with f32
    # accumulation, so allow a loose but bug-catching tolerance).
    y_ref = jax.jit(_reference_forward)(params, x)
    jax.block_until_ready(y_ref)
    max_err = float(jnp.max(jnp.abs(y - y_ref)))
    assert max_err < 0.1, f"max |pallas - reference| = {max_err}"

    print("KERNEL_OK")
</pallas_src>

<mosaic_0001>
module attributes {stable_mosaic.version = 11 : i64} {
  func.func @_fused_kernel(%arg0: i32, %arg1: memref<1x3x512xbf16, #tpu.memory_space<vmem>>, %arg2: memref<1x3x512xf32, #tpu.memory_space<vmem>>, %arg3: memref<12x27xbf16, #tpu.memory_space<vmem>>, %arg4: memref<12x1xf32, #tpu.memory_space<vmem>>, %arg5: memref<6x12x216xbf16, #tpu.memory_space<vmem>>, %arg6: memref<6x12x1xf32, #tpu.memory_space<vmem>>, %arg7: memref<5x12x24xbf16, #tpu.memory_space<vmem>>, %arg8: memref<12x1xf32, #tpu.memory_space<vmem>>, %arg9: memref<1x4x3x288xf32, #tpu.memory_space<vmem>>, %arg10: memref<24x512xbf16, #tpu.memory_space<vmem>>, %arg11: memref<24x512xbf16, #tpu.memory_space<vmem>>, %arg12: memref<216x288xbf16, #tpu.memory_space<vmem>>, %arg13: memref<12x288xf32, #tpu.memory_space<vmem>>) attributes {dimension_semantics = [#tpu.dimension_semantics<parallel>], iteration_bounds = array<i64: 2>, scalar_prefetch = 0 : i64, scratch_operands = 4 : i64, tpu.core_type = #tpu.core_type<tc>, window_params = [{transform_indices = @transform_0, window_bounds = array<i64: 1, 3, 512>}, {transform_indices = @transform_1, window_bounds = array<i64: 1, 3, 512>}, {pipeline_mode = #tpu.pipeline_mode<synchronous>, transform_indices = @transform_2, window_bounds = array<i64: 12, 27>}, {pipeline_mode = #tpu.pipeline_mode<synchronous>, transform_indices = @transform_3, window_bounds = array<i64: 12, 1>}, {pipeline_mode = #tpu.pipeline_mode<synchronous>, transform_indices = @transform_4, window_bounds = array<i64: 6, 12, 216>}, {pipeline_mode = #tpu.pipeline_mode<synchronous>, transform_indices = @transform_5, window_bounds = array<i64: 6, 12, 1>}, {pipeline_mode = #tpu.pipeline_mode<synchronous>, transform_indices = @transform_6, window_bounds = array<i64: 5, 12, 24>}, {pipeline_mode = #tpu.pipeline_mode<synchronous>, transform_indices = @transform_7, window_bounds = array<i64: 12, 1>}, {transform_indices = @transform_8, window_bounds = array<i64: 1, 4, 3, 288>}]} {
    %0 = tpu.iota {dimensions = array<i32: 1>} : vector<1x288xi32>
    %c1_i32 = arith.constant 1 : i32
    %1 = vector.broadcast %c1_i32 : i32 to vector<1x288xi32>
    %2 = arith.addi %0, %1 : vector<1x288xi32>
    %c18_i32 = arith.constant 18 : i32
    %c0_i32 = arith.constant 0 : i32
    %3 = arith.cmpi eq, %c18_i32, %c0_i32 : i32
    %c1_i32_0 = arith.constant 1 : i32
    %4 = arith.select %3, %c1_i32_0, %c18_i32 : i32
    %5 = vector.broadcast %4 : i32 to vector<1x288xi32>
    %6 = arith.remsi %2, %5 : vector<1x288xi32>
    %c0_i32_1 = arith.constant 0 : i32
    %7 = vector.broadcast %c0_i32_1 : i32 to vector<1x288xi32>
    %8 = arith.cmpi ne, %6, %7 : vector<1x288xi32>
    %c0_i32_2 = arith.constant 0 : i32
    %9 = vector.broadcast %c0_i32_2 : i32 to vector<1x288xi32>
    %10 = arith.cmpi slt, %6, %9 : vector<1x288xi32>
    %c0_i32_3 = arith.constant 0 : i32
    %11 = arith.cmpi slt, %4, %c0_i32_3 : i32
    %12 = vector.broadcast %11 : i1 to vector<1x288xi1>
    %13 = vector.broadcast %12 : vector<1x288xi1> to vector<1x288xi1>
    %14 = arith.xori %10, %13 : vector<1x288xi1>
    %15 = arith.andi %14, %8 : vector<1x288xi1>
    %16 = vector.broadcast %4 : i32 to vector<1x288xi32>
    %17 = arith.addi %6, %16 : vector<1x288xi32>
    %18 = arith.select %15, %17, %6 : vector<1x288xi1>, vector<1x288xi32>
    %c1_i32_4 = arith.constant 1 : i32
    %19 = vector.broadcast %c1_i32_4 : i32 to vector<1x288xi32>
    %20 = arith.cmpi sge, %18, %19 : vector<1x288xi32>
    %c16_i32 = arith.constant 16 : i32
    %21 = vector.broadcast %c16_i32 : i32 to vector<1x288xi32>
    %22 = arith.cmpi sle, %18, %21 : vector<1x288xi32>
    %23 = arith.andi %20, %22 : vector<1x288xi1>
    %24 = arith.extui %23 : vector<1x288xi1> to vector<1x288xi32>
    %25 = arith.sitofp %24 : vector<1x288xi32> to vector<1x288xf32>
    %26 = arith.truncf %25 : vector<1x288xf32> to vector<1x288xbf16>
    %cst = arith.constant 0.000000e+00 : bf16
    %27 = vector.broadcast %cst : bf16 to vector<24x512xbf16>
    %c0 = arith.constant 0 : index
    %c0_5 = arith.constant 0 : index
    %28 = vector.load %arg10[%c0, %c0_5] : memref<24x512xbf16, #tpu.memory_space<vmem>>, vector<24x512xbf16>
    tpu.vector_store %arg10[%c0, %c0_5], %27 {strides = array<i32>} : memref<24x512xbf16, #tpu.memory_space<vmem>>, vector<24x512xbf16>,
    %cst_6 = arith.constant 0.000000e+00 : bf16
    %29 = vector.broadcast %cst_6 : bf16 to vector<24x512xbf16>
    %c0_7 = arith.constant 0 : index
    %c0_8 = arith.constant 0 : index
    %30 = vector.load %arg11[%c0_7, %c0_8] : memref<24x512xbf16, #tpu.memory_space<vmem>>, vector<24x512xbf16>
    tpu.vector_store %arg11[%c0_7, %c0_8], %29 {strides = array<i32>} : memref<24x512xbf16, #tpu.memory_space<vmem>>, vector<24x512xbf16>,
    %cst_9 = arith.constant 0.000000e+00 : f32
    %31 = vector.broadcast %cst_9 : f32 to vector<12x288xf32>
    %c0_10 = arith.constant 0 : index
    %c0_11 = arith.constant 0 : index
    %32 = vector.load %arg13[%c0_10, %c0_11] : memref<12x288xf32, #tpu.memory_space<vmem>>, vector<12x288xf32>
    tpu.vector_store %arg13[%c0_10, %c0_11], %31 {strides = array<i32>} : memref<12x288xf32, #tpu.memory_space<vmem>>, vector<12x288xf32>,
    %c0_12 = arith.constant 0 : index
    %c0_13 = arith.constant 0 : index
    %33 = vector.load %arg3[%c0_12, %c0_13] : memref<12x27xbf16, #tpu.memory_space<vmem>>, vector<12x27xbf16>
    %c0_14 = arith.constant 0 : index
    %c0_15 = arith.constant 0 : index
    %34 = vector.load %arg4[%c0_14, %c0_15] : memref<12x1xf32, #tpu.memory_space<vmem>>, vector<12x1xf32>
    %c0_16 = arith.constant 0 : index
    %c0_17 = arith.constant 0 : index
    %c109 = arith.constant 109 : index
    %35 = vector.load %arg1[%c0_16, %c0_17, %c109] : memref<1x3x512xbf16, #tpu.memory_space<vmem>>, vector<1x3x288xbf16>
    %36 = vector.shape_cast %35 : vector<1x3x288xbf16> to vector<3x288xbf16>
    %c0_18 = arith.constant 0 : index
    %c0_19 = arith.constant 0 : index
    %37 = vector.load %arg12[%c0_18, %c0_19] : memref<216x288xbf16, #tpu.memory_space<vmem>>, vector<3x288xbf16>
    tpu.vector_store %arg12[%c0_18, %c0_19], %36 {strides = array<i32>} : memref<216x288xbf16, #tpu.memory_space<vmem>>, vector<3x288xbf16>,
    %c0_20 = arith.constant 0 : index
    %c0_21 = arith.constant 0 : index
    %c110 = arith.constant 110 : index
    %38 = vector.load %arg1[%c0_20, %c0_21, %c110] : memref<1x3x512xbf16, #tpu.memory_space<vmem>>, vector<1x3x288xbf16>
    %39 = vector.shape_cast %38 : vector<1x3x288xbf16> to vector<3x288xbf16>
    %c3 = arith.constant 3 : index
    %c0_22 = arith.constant 0 : index
    %40 = vector.load %arg12[%c3, %c0_22] : memref<216x288xbf16, #tpu.memory_space<vmem>>, vector<3x288xbf16>
    tpu.vector_store %arg12[%c3, %c0_22], %39 {strides = array<i32>} : memref<216x288xbf16, #tpu.memory_space<vmem>>, vector<3x288xbf16>,
    %c0_23 = arith.constant 0 : index
    %c0_24 = arith.constant 0 : index
    %c111 = arith.constant 111 : index
    %41 = vector.load %arg1[%c0_23, %c0_24, %c111] : memref<1x3x512xbf16, #tpu.memory_space<vmem>>, vector<1x3x288xbf16>
    %42 = vector.shape_cast %41 : vector<1x3x288xbf16> to vector<3x288xbf16>
    %c6 = arith.constant 6 : index
    %c0_25 = arith.constant 0 : index
    %43 = vector.load %arg12[%c6, %c0_25] : memref<216x288xbf16, #tpu.memory_space<vmem>>, vector<3x288xbf16>
    tpu.vector_store %arg12[%c6, %c0_25], %42 {strides = array<i32>} : memref<216x288xbf16, #tpu.memory_space<vmem>>, vector<3x288xbf16>,
    %c0_26 = arith.constant 0 : index
    %c0_27 = arith.constant 0 : index
    %c127 = arith.constant 127 : index
    %44 = vector.load %arg1[%c0_26, %c0_27, %c127] : memref<1x3x512xbf16, #tpu.memory_space<vmem>>, vector<1x3x288xbf16>
    %45 = vector.shape_cast %44 : vector<1x3x288xbf16> to vector<3x288xbf16>
    %c9 = arith.constant 9 : index
    %c0_28 = arith.constant 0 : index
    %46 = vector.load %arg12[%c9, %c0_28] : memref<216x288xbf16, #tpu.memory_space<vmem>>, vector<3x288xbf16>
    tpu.vector_store %arg12[%c9, %c0_28], %45 {strides = array<i32>} : memref<216x288xbf16, #tpu.memory_space<vmem>>, vector<3x288xbf16>,
    %c0_29 = arith.constant 0 : index
    %c0_30 = arith.constant 0 : index
    %c128 = arith.constant 128 : index
    %47 = vector.load %arg1[%c0_29, %c0_30, %c128] : memref<1x3x512xbf16, #tpu.memory_space<vmem>>, vector<1x3x288xbf16>
    %48 = vector.shape_cast %47 : vector<1x3x288xbf16> to vector<3x288xbf16>
    %c12 = arith.constant 12 : index
    %c0_31 = arith.constant 0 : index
    %49 = vector.load %arg12[%c12, %c0_31] : memref<216x288xbf16, #tpu.memory_space<vmem>>, vector<3x288xbf16>
    tpu.vector_store %arg12[%c12, %c0_31], %48 {strides = array<i32>} : memref<216x288xbf16, #tpu.memory_space<vmem>>, vector<3x288xbf16>,
    %c0_32 = arith.constant 0 : index
    %c0_33 = arith.constant 0 : index
    %c129 = arith.constant 129 : index
    %50 = vector.load %arg1[%c0_32, %c0_33, %c129] : memref<1x3x512xbf16, #tpu.memory_space<vmem>>, vector<1x3x288xbf16>
    %51 = vector.shape_cast %50 : vector<1x3x288xbf16> to vector<3x288xbf16>
    %c15 = arith.constant 15 : index
    %c0_34 = arith.constant 0 : index
    %52 = vector.load %arg12[%c15, %c0_34] : memref<216x288xbf16, #tpu.memory_space<vmem>>, vector<3x288xbf16>
    tpu.vector_store %arg12[%c15, %c0_34], %51 {strides = array<i32>} : memref<216x288xbf16, #tpu.memory_space<vmem>>, vector<3x288xbf16>,
    %c0_35 = arith.constant 0 : index
    %c0_36 = arith.constant 0 : index
    %c145 = arith.constant 145 : index
    %53 = vector.load %arg1[%c0_35, %c0_36, %c145] : memref<1x3x512xbf16, #tpu.memory_space<vmem>>, vector<1x3x288xbf16>
    %54 = vector.shape_cast %53 : vector<1x3x288xbf16> to vector<3x288xbf16>
    %c18 = arith.constant 18 : index
    %c0_37 = arith.constant 0 : index
    %55 = vector.load %arg12[%c18, %c0_37] : memref<216x288xbf16, #tpu.memory_space<vmem>>, vector<3x288xbf16>
    tpu.vector_store %arg12[%c18, %c0_37], %54 {strides = array<i32>} : memref<216x288xbf16, #tpu.memory_space<vmem>>, vector<3x288xbf16>,
    %c0_38 = arith.constant 0 : index
    %c0_39 = arith.constant 0 : index
    %c146 = arith.constant 146 : index
    %56 = vector.load %arg1[%c0_38, %c0_39, %c146] : memref<1x3x512xbf16, #tpu.memory_space<vmem>>, vector<1x3x288xbf16>
    %57 = vector.shape_cast %56 : vector<1x3x288xbf16> to vector<3x288xbf16>
    %c21 = arith.constant 21 : index
    %c0_40 = arith.constant 0 : index
    %58 = vector.load %arg12[%c21, %c0_40] : memref<216x288xbf16, #tpu.memory_space<vmem>>, vector<3x288xbf16>
    tpu.vector_store %arg12[%c21, %c0_40], %57 {strides = array<i32>} : memref<216x288xbf16, #tpu.memory_space<vmem>>, vector<3x288xbf16>,
    %c0_41 = arith.constant 0 : index
    %c0_42 = arith.constant 0 : index
    %c147 = arith.constant 147 : index
    %59 = vector.load %arg1[%c0_41, %c0_42, %c147] : memref<1x3x512xbf16, #tpu.memory_space<vmem>>, vector<1x3x288xbf16>
    %60 = vector.shape_cast %59 : vector<1x3x288xbf16> to vector<3x288xbf16>
    %c24 = arith.constant 24 : index
    %c0_43 = arith.constant 0 : index
    %61 = vector.load %arg12[%c24, %c0_43] : memref<216x288xbf16, #tpu.memory_space<vmem>>, vector<3x288xbf16>
    tpu.vector_store %arg12[%c24, %c0_43], %60 {strides = array<i32>} : memref<216x288xbf16, #tpu.memory_space<vmem>>, vector<3x288xbf16>,
    %c0_44 = arith.constant 0 : index
    %c0_45 = arith.constant 0 : index
    %62 = vector.load %arg12[%c0_44, %c0_45] : memref<216x288xbf16, #tpu.memory_space<vmem>>, vector<27x288xbf16>
    %cst_46 = arith.constant dense<0.000000e+00> : vector<12x288xf32>
    %63 = tpu.matmul %33, %62, %cst_46 {dimension_numbers = #tpu.dot_dimension_numbers<[1], [0], [0], [1], [0, 0, 1, 1], [], []>} : vector<12x27xbf16>, vector<27x288xbf16>, vector<12x288xf32> -> vector<12x288xf32>
    %64 = vector.broadcast %34 : vector<12x1xf32> to vector<12x288xf32>
    %65 = arith.addf %63, %64 : vector<12x288xf32>
    %cst_47 = arith.constant 0.000000e+00 : f32
    %66 = vector.broadcast %cst_47 : f32 to vector<12x288xf32>
    %67 = arith.maximumf %65, %66 : vector<12x288xf32>
    %68 = arith.truncf %67 : vector<12x288xf32> to vector<12x288xbf16>
    %69 = vector.broadcast %26 : vector<1x288xbf16> to vector<12x288xbf16>
    %70 = arith.mulf %68, %69 : vector<12x288xbf16>
    %cst_48 = arith.constant 0.000000e+00 : f32
    %71 = vector.broadcast %cst_48 : f32 to vector<12x288xf32>
    %72 = arith.subf %71, %65 : vector<12x288xf32>
    %cst_49 = arith.constant 0.000000e+00 : f32
    %73 = vector.broadcast %cst_49 : f32 to vector<12x288xf32>
    %74 = arith.maximumf %72, %73 : vector<12x288xf32>
    %75 = arith.truncf %74 : vector<12x288xf32> to vector<12x288xbf16>
    %76 = vector.broadcast %26 : vector<1x288xbf16> to vector<12x288xbf16>
    %77 = arith.mulf %75, %76 : vector<12x288xbf16>
    %c0_50 = arith.constant 0 : index
    %c128_51 = arith.constant 128 : index
    %78 = vector.load %arg10[%c0_50, %c128_51] : memref<24x512xbf16, #tpu.memory_space<vmem>>, vector<12x288xbf16>
    tpu.vector_store %arg10[%c0_50, %c128_51], %70 {strides = array<i32>} : memref<24x512xbf16, #tpu.memory_space<vmem>>, vector<12x288xbf16>,
    %c12_52 = arith.constant 12 : index
    %c128_53 = arith.constant 128 : index
    %79 = vector.load %arg10[%c12_52, %c128_53] : memref<24x512xbf16, #tpu.memory_space<vmem>>, vector<12x288xbf16>
    tpu.vector_store %arg10[%c12_52, %c128_53], %77 {strides = array<i32>} : memref<24x512xbf16, #tpu.memory_space<vmem>>, vector<12x288xbf16>,
    %c0_54 = arith.constant 0 : index
    %c0_55 = arith.constant 0 : index
    %c0_56 = arith.constant 0 : index
    %80 = vector.load %arg5[%c0_54, %c0_55, %c0_56] : memref<6x12x216xbf16, #tpu.memory_space<vmem>>, vector<1x12x216xbf16>
    %81 = vector.shape_cast %80 : vector<1x12x216xbf16> to vector<12x216xbf16>
    %c0_57 = arith.constant 0 : index
    %c0_58 = arith.constant 0 : index
    %c0_59 = arith.constant 0 : index
    %82 = vector.load %arg6[%c0_57, %c0_58, %c0_59] : memref<6x12x1xf32, #tpu.memory_space<vmem>>, vector<1x12x1xf32>
    %83 = vector.shape_cast %82 : vector<1x12x1xf32> to vector<12x1xf32>
    %c0_60 = arith.constant 0 : index
    %c109_61 = arith.constant 109 : index
    %84 = vector.load %arg10[%c0_60, %c109_61] : memref<24x512xbf16, #tpu.memory_space<vmem>>, vector<24x288xbf16>
    %c0_62 = arith.constant 0 : index
    %c0_63 = arith.constant 0 : index
    %85 = vector.load %arg12[%c0_62, %c0_63] : memref<216x288xbf16, #tpu.memory_space<vmem>>, vector<24x288xbf16>
    tpu.vector_store %arg12[%c0_62, %c0_63], %84 {strides = array<i32>} : memref<216x288xbf16, #tpu.memory_space<vmem>>, vector<24x288xbf16>,
    %c0_64 = arith.constant 0 : index
    %c110_65 = arith.constant 110 : index
    %86 = vector.load %arg10[%c0_64, %c110_65] : memref<24x512xbf16, #tpu.memory_space<vmem>>, vector<24x288xbf16>
    %c24_66 = arith.constant 24 : index
    %c0_67 = arith.constant 0 : index
    %87 = vector.load %arg12[%c24_66, %c0_67] : memref<216x288xbf16, #tpu.memory_space<vmem>>, vector<24x288xbf16>
    tpu.vector_store %arg12[%c24_66, %c0_67], %86 {strides = array<i32>} : memref<216x288xbf16, #tpu.memory_space<vmem>>, vector<24x288xbf16>,
    %c0_68 = arith.constant 0 : index
    %c111_69 = arith.constant 111 : index
    %88 = vector.load %arg10[%c0_68, %c111_69] : memref<24x512xbf16, #tpu.memory_space<vmem>>, vector<24x288xbf16>
    %c48 = arith.constant 48 : index
    %c0_70 = arith.constant 0 : index
    %89 = vector.load %arg12[%c48, %c0_70] : memref<216x288xbf16, #tpu.memory_space<vmem>>, vector<24x288xbf16>
    tpu.vector_store %arg12[%c48, %c0_70], %88 {strides = array<i32>} : memref<216x288xbf16, #tpu.memory_space<vmem>>, vector<24x288xbf16>,
    %c0_71 = arith.constant 0 : index
    %c127_72 = arith.constant 127 : index
    %90 = vector.load %arg10[%c0_71, %c127_72] : memref<24x512xbf16, #tpu.memory_space<vmem>>, vector<24x288xbf16>
    %c72 = arith.constant 72 : index
    %c0_73 = arith.constant 0 : index
    %91 = vector.load %arg12[%c72, %c0_73] : memref<216x288xbf16, #tpu.memory_space<vmem>>, vector<24x288xbf16>
    tpu.vector_store %arg12[%c72, %c0_73], %90 {strides = array<i32>} : memref<216x288xbf16, #tpu.memory_space<vmem>>, vector<24x288xbf16>,
    %c0_74 = arith.constant 0 : index
    %c128_75 = arith.constant 128 : index
    %92 = vector.load %arg10[%c0_74, %c128_75] : memref<24x512xbf16, #tpu.memory_space<vmem>>, vector<24x288xbf16>
    %c96 = arith.constant 96 : index
    %c0_76 = arith.constant 0 : index
    %93 = vector.load %arg12[%c96, %c0_76] : memref<216x288xbf16, #tpu.memory_space<vmem>>, vector<24x288xbf16>
    tpu.vector_store %arg12[%c96, %c0_76], %92 {strides = array<i32>} : memref<216x288xbf16, #tpu.memory_space<vmem>>, vector<24x288xbf16>,
    %c0_77 = arith.constant 0 : index
    %c129_78 = arith.constant 129 : index
    %94 = vector.load %arg10[%c0_77, %c129_78] : memref<24x512xbf16, #tpu.memory_space<vmem>>, vector<24x288xbf16>
    %c120 = arith.constant 120 : index
    %c0_79 = arith.constant 0 : index
    %95 = vector.load %arg12[%c120, %c0_79] : memref<216x288xbf16, #tpu.memory_space<vmem>>, vector<24x288xbf16>
    tpu.vector_store %arg12[%c120, %c0_79], %94 {strides = array<i32>} : memref<216x288xbf16, #tpu.memory_space<vmem>>, vector<24x288xbf16>,
    %c0_80 = arith.constant 0 : index
    %c145_81 = arith.constant 145 : index
    %96 = vector.load %arg10[%c0_80, %c145_81] : memref<24x512xbf16, #tpu.memory_space<vmem>>, vector<24x288xbf16>
    %c144 = arith.constant 144 : index
    %c0_82 = arith.constant 0 : index
    %97 = vector.load %arg12[%c144, %c0_82] : memref<216x288xbf16, #tpu.memory_space<vmem>>, vector<24x288xbf16>
    tpu.vector_store %arg12[%c144, %c0_82], %96 {strides = array<i32>} : memref<216x288xbf16, #tpu.memory_space<vmem>>, vector<24x288xbf16>,
    %c0_83 = arith.constant 0 : index
    %c146_84 = arith.constant 146 : index
    %98 = vector.load %arg10[%c0_83, %c146_84] : memref<24x512xbf16, #tpu.memory_space<vmem>>, vector<24x288xbf16>
    %c168 = arith.constant 168 : index
    %c0_85 = arith.constant 0 : index
    %99 = vector.load %arg12[%c168, %c0_85] : memref<216x288xbf16, #tpu.memory_space<vmem>>, vector<24x288xbf16>
    tpu.vector_store %arg12[%c168, %c0_85], %98 {strides = array<i32>} : memref<216x288xbf16, #tpu.memory_space<vmem>>, vector<24x288xbf16>,
    %c0_86 = arith.constant 0 : index
    %c147_87 = arith.constant 147 : index
    %100 = vector.load %arg10[%c0_86, %c147_87] : memref<24x512xbf16, #tpu.memory_space<vmem>>, vector<24x288xbf16>
    %c192 = arith.constant 192 : index
    %c0_88 = arith.constant 0 : index
    %101 = vector.load %arg12[%c192, %c0_88] : memref<216x288xbf16, #tpu.memory_space<vmem>>, vector<24x288xbf16>
    tpu.vector_store %arg12[%c192, %c0_88], %100 {strides = array<i32>} : memref<216x288xbf16, #tpu.memory_space<vmem>>, vector<24x288xbf16>,
    %c0_89 = arith.constant 0 : index
    %c0_90 = arith.constant 0 : index
    %102 = vector.load %arg12[%c0_89, %c0_90] : memref<216x288xbf16, #tpu.memory_space<vmem>>, vector<216x288xbf16>
    %cst_91 = arith.constant dense<0.000000e+00> : vector<12x288xf32>
    %103 = tpu.matmul %81, %102, %cst_91 {dimension_numbers = #tpu.dot_dimension_numbers<[1], [0], [0], [1], [0, 0, 1, 1], [], []>} : vector<12x216xbf16>, vector<216x288xbf16>, vector<12x288xf32> -> vector<12x288xf32>
    %104 = vector.broadcast %83 : vector<12x1xf32> to vector<12x288xf32>
    %105 = arith.addf %103, %104 : vector<12x288xf32>
    %cst_92 = arith.constant 0.000000e+00 : f32
    %106 = vector.broadcast %cst_92 : f32 to vector<12x288xf32>
    %107 = arith.maximumf %105, %106 : vector<12x288xf32>
    %108 = arith.truncf %107 : vector<12x288xf32> to vector<12x288xbf16>
    %109 = vector.broadcast %26 : vector<1x288xbf16> to vector<12x288xbf16>
    %110 = arith.mulf %108, %109 : vector<12x288xbf16>
    %cst_93 = arith.constant 0.000000e+00 : f32
    %111 = vector.broadcast %cst_93 : f32 to vector<12x288xf32>
    %112 = arith.subf %111, %105 : vector<12x288xf32>
    %cst_94 = arith.constant 0.000000e+00 : f32
    %113 = vector.broadcast %cst_94 : f32 to vector<12x288xf32>
    %114 = arith.maximumf %112, %113 : vector<12x288xf32>
    %115 = arith.truncf %114 : vector<12x288xf32> to vector<12x288xbf16>
    %116 = vector.broadcast %26 : vector<1x288xbf16> to vector<12x288xbf16>
    %117 = arith.mulf %115, %116 : vector<12x288xbf16>
    %c0_95 = arith.constant 0 : index
    %c128_96 = arith.constant 128 : index
    %118 = vector.load %arg11[%c0_95, %c128_96] : memref<24x512xbf16, #tpu.memory_space<vmem>>, vector<12x288xbf16>
    tpu.vector_store %arg11[%c0_95, %c128_96], %110 {strides = array<i32>} : memref<24x512xbf16, #tpu.memory_space<vmem>>, vector<12x288xbf16>,
    %c12_97 = arith.constant 12 : index
    %c128_98 = arith.constant 128 : index
    %119 = vector.load %arg11[%c12_97, %c128_98] : memref<24x512xbf16, #tpu.memory_space<vmem>>, vector<12x288xbf16>
    tpu.vector_store %arg11[%c12_97, %c128_98], %117 {strides = array<i32>} : memref<24x512xbf16, #tpu.memory_space<vmem>>, vector<12x288xbf16>,
    %c1 = arith.constant 1 : index
    %c0_99 = arith.constant 0 : index
    %c0_100 = arith.constant 0 : index
    %120 = vector.load %arg5[%c1, %c0_99, %c0_100] : memref<6x12x216xbf16, #tpu.memory_space<vmem>>, vector<1x12x216xbf16>
    %121 = vector.shape_cast %120 : vector<1x12x216xbf16> to vector<12x216xbf16>
    %c1_101 = arith.constant 1 : index
    %c0_102 = arith.constant 0 : index
    %c0_103 = arith.constant 0 : index
    %122 = vector.load %arg6[%c1_101, %c0_102, %c0_103] : memref<6x12x1xf32, #tpu.memory_space<vmem>>, vector<1x12x1xf32>
    %123 = vector.shape_cast %122 : vector<1x12x1xf32> to vector<12x1xf32>
    %c0_104 = arith.constant 0 : index
    %c0_105 = arith.constant 0 : index
    %c0_106 = arith.constant 0 : index
    %124 = vector.load %arg7[%c0_104, %c0_105, %c0_106] : memref<5x12x24xbf16, #tpu.memory_space<vmem>>, vector<1x12x12xbf16>
    %125 = vector.shape_cast %124 : vector<1x12x12xbf16> to vector<12x12xbf16>
    %c0_107 = arith.constant 0 : index
    %c0_108 = arith.constant 0 : index
    %c12_109 = arith.constant 12 : index
    %126 = vector.load %arg7[%c0_107, %c0_108, %c12_109] : memref<5x12x24xbf16, #tpu.memory_space<vmem>>, vector<1x12x12xbf16>
    %127 = vector.shape_cast %126 : vector<1x12x12xbf16> to vector<12x12xbf16>
    %c0_110 = arith.constant 0 : index
    %c109_111 = arith.constant 109 : index
    %128 = vector.load %arg11[%c0_110, %c109_111] : memref<24x512xbf16, #tpu.memory_space<vmem>>, vector<24x288xbf16>
    %c0_112 = arith.constant 0 : index
    %c0_113 = arith.constant 0 : index
    %129 = vector.load %arg12[%c0_112, %c0_113] : memref<216x288xbf16, #tpu.memory_space<vmem>>, vector<24x288xbf16>
    tpu.vector_store %arg12[%c0_112, %c0_113], %128 {strides = array<i32>} : memref<216x288xbf16, #tpu.memory_space<vmem>>, vector<24x288xbf16>,
    %c0_114 = arith.constant 0 : index
    %c110_115 = arith.constant 110 : index
    %130 = vector.load %arg11[%c0_114, %c110_115] : memref<24x512xbf16, #tpu.memory_space<vmem>>, vector<24x288xbf16>
    %c24_116 = arith.constant 24 : index
    %c0_117 = arith.constant 0 : index
    %131 = vector.load %arg12[%c24_116, %c0_117] : memref<216x288xbf16, #tpu.memory_space<vmem>>, vector<24x288xbf16>
    tpu.vector_store %arg12[%c24_116, %c0_117], %130 {strides = array<i32>} : memref<216x288xbf16, #tpu.memory_space<vmem>>, vector<24x288xbf16>,
    %c0_118 = arith.constant 0 : index
    %c111_119 = arith.constant 111 : index
    %132 = vector.load %arg11[%c0_118, %c111_119] : memref<24x512xbf16, #tpu.memory_space<vmem>>, vector<24x288xbf16>
    %c48_120 = arith.constant 48 : index
    %c0_121 = arith.constant 0 : index
    %133 = vector.load %arg12[%c48_120, %c0_121] : memref<216x288xbf16, #tpu.memory_space<vmem>>, vector<24x288xbf16>
    tpu.vector_store %arg12[%c48_120, %c0_121], %132 {strides = array<i32>} : memref<216x288xbf16, #tpu.memory_space<vmem>>, vector<24x288xbf16>,
    %c0_122 = arith.constant 0 : index
    %c127_123 = arith.constant 127 : index
    %134 = vector.load %arg11[%c0_122, %c127_123] : memref<24x512xbf16, #tpu.memory_space<vmem>>, vector<24x288xbf16>
    %c72_124 = arith.constant 72 : index
    %c0_125 = arith.constant 0 : index
    %135 = vector.load %arg12[%c72_124, %c0_125] : memref<216x288xbf16, #tpu.memory_space<vmem>>, vector<24x288xbf16>
    tpu.vector_store %arg12[%c72_124, %c0_125], %134 {strides = array<i32>} : memref<216x288xbf16, #tpu.memory_space<vmem>>, vector<24x288xbf16>,
    %c0_126 = arith.constant 0 : index
    %c128_127 = arith.constant 128 : index
    %136 = vector.load %arg11[%c0_126, %c128_127] : memref<24x512xbf16, #tpu.memory_space<vmem>>, vector<24x288xbf16>
    %c96_128 = arith.constant 96 : index
    %c0_129 = arith.constant 0 : index
    %137 = vector.load %arg12[%c96_128, %c0_129] : memref<216x288xbf16, #tpu.memory_space<vmem>>, vector<24x288xbf16>
    tpu.vector_store %arg12[%c96_128, %c0_129], %136 {strides = array<i32>} : memref<216x288xbf16, #tpu.memory_space<vmem>>, vector<24x288xbf16>,
    %c0_130 = arith.constant 0 : index
    %c129_131 = arith.constant 129 : index
    %138 = vector.load %arg11[%c0_130, %c129_131] : memref<24x512xbf16, #tpu.memory_space<vmem>>, vector<24x288xbf16>
    %c120_132 = arith.constant 120 : index
    %c0_133 = arith.constant 0 : index
    %139 = vector.load %arg12[%c120_132, %c0_133] : memref<216x288xbf16, #tpu.memory_space<vmem>>, vector<24x288xbf16>
    tpu.vector_store %arg12[%c120_132, %c0_133], %138 {strides = array<i32>} : memref<216x288xbf16, #tpu.memory_space<vmem>>, vector<24x288xbf16>,
    %c0_134 = arith.constant 0 : index
    %c145_135 = arith.constant 145 : index
    %140 = vector.load %arg11[%c0_134, %c145_135] : memref<24x512xbf16, #tpu.memory_space<vmem>>, vector<24x288xbf16>
    %c144_136 = arith.constant 144 : index
    %c0_137 = arith.constant 0 : index
    %141 = vector.load %arg12[%c144_136, %c0_137] : memref<216x288xbf16, #tpu.memory_space<vmem>>, vector<24x288xbf16>
    tpu.vector_store %arg12[%c144_136, %c0_137], %140 {strides = array<i32>} : memref<216x288xbf16, #tpu.memory_space<vmem>>, vector<24x288xbf16>,
    %c0_138 = arith.constant 0 : index
    %c146_139 = arith.constant 146 : index
    %142 = vector.load %arg11[%c0_138, %c146_139] : memref<24x512xbf16, #tpu.memory_space<vmem>>, vector<24x288xbf16>
    %c168_140 = arith.constant 168 : index
    %c0_141 = arith.constant 0 : index
    %143 = vector.load %arg12[%c168_140, %c0_141] : memref<216x288xbf16, #tpu.memory_space<vmem>>, vector<24x288xbf16>
    tpu.vector_store %arg12[%c168_140, %c0_141], %142 {strides = array<i32>} : memref<216x288xbf16, #tpu.memory_space<vmem>>, vector<24x288xbf16>,
    %c0_142 = arith.constant 0 : index
    %c147_143 = arith.constant 147 : index
    %144 = vector.load %arg11[%c0_142, %c147_143] : memref<24x512xbf16, #tpu.memory_space<vmem>>, vector<24x288xbf16>
    %c192_144 = arith.constant 192 : index
    %c0_145 = arith.constant 0 : index
    %145 = vector.load %arg12[%c192_144, %c0_145] : memref<216x288xbf16, #tpu.memory_space<vmem>>, vector<24x288xbf16>
    tpu.vector_store %arg12[%c192_144, %c0_145], %144 {strides = array<i32>} : memref<216x288xbf16, #tpu.memory_space<vmem>>, vector<24x288xbf16>,
    %c0_146 = arith.constant 0 : index
    %c0_147 = arith.constant 0 : index
    %146 = vector.load %arg12[%c0_146, %c0_147] : memref<216x288xbf16, #tpu.memory_space<vmem>>, vector<216x288xbf16>
    %cst_148 = arith.constant dense<0.000000e+00> : vector<12x288xf32>
    %147 = tpu.matmul %121, %146, %cst_148 {dimension_numbers = #tpu.dot_dimension_numbers<[1], [0], [0], [1], [0, 0, 1, 1], [], []>} : vector<12x216xbf16>, vector<216x288xbf16>, vector<12x288xf32> -> vector<12x288xf32>
    %148 = vector.broadcast %123 : vector<12x1xf32> to vector<12x288xf32>
    %149 = arith.addf %147, %148 : vector<12x288xf32>
    %cst_149 = arith.constant 0.000000e+00 : f32
    %150 = vector.broadcast %cst_149 : f32 to vector<12x288xf32>
    %151 = arith.maximumf %149, %150 : vector<12x288xf32>
    %152 = arith.truncf %151 : vector<12x288xf32> to vector<12x288xbf16>
    %153 = vector.broadcast %26 : vector<1x288xbf16> to vector<12x288xbf16>
    %154 = arith.mulf %152, %153 : vector<12x288xbf16>
    %cst_150 = arith.constant 0.000000e+00 : f32
    %155 = vector.broadcast %cst_150 : f32 to vector<12x288xf32>
    %156 = arith.subf %155, %149 : vector<12x288xf32>
    %cst_151 = arith.constant 0.000000e+00 : f32
    %157 = vector.broadcast %cst_151 : f32 to vector<12x288xf32>
    %158 = arith.maximumf %156, %157 : vector<12x288xf32>
    %159 = arith.truncf %158 : vector<12x288xf32> to vector<12x288xbf16>
    %160 = vector.broadcast %26 : vector<1x288xbf16> to vector<12x288xbf16>
    %161 = arith.mulf %159, %160 : vector<12x288xbf16>
    %c0_152 = arith.constant 0 : index
    %c128_153 = arith.constant 128 : index
    %162 = vector.load %arg10[%c0_152, %c128_153] : memref<24x512xbf16, #tpu.memory_space<vmem>>, vector<12x288xbf16>
    tpu.vector_store %arg10[%c0_152, %c128_153], %154 {strides = array<i32>} : memref<24x512xbf16, #tpu.memory_space<vmem>>, vector<12x288xbf16>,
    %c12_154 = arith.constant 12 : index
    %c128_155 = arith.constant 128 : index
    %163 = vector.load %arg10[%c12_154, %c128_155] : memref<24x512xbf16, #tpu.memory_space<vmem>>, vector<12x288xbf16>
    tpu.vector_store %arg10[%c12_154, %c128_155], %161 {strides = array<i32>} : memref<24x512xbf16, #tpu.memory_space<vmem>>, vector<12x288xbf16>,
    %cst_156 = arith.constant dense<0.000000e+00> : vector<12x288xf32>
    %164 = tpu.matmul %125, %154, %cst_156 {dimension_numbers = #tpu.dot_dimension_numbers<[1], [0], [0], [1], [0, 0, 1, 1], [], []>} : vector<12x12xbf16>, vector<12x288xbf16>, vector<12x288xf32> -> vector<12x288xf32>
    %cst_157 = arith.constant dense<0.000000e+00> : vector<12x288xf32>
    %165 = tpu.matmul %127, %161, %cst_157 {dimension_numbers = #tpu.dot_dimension_numbers<[1], [0], [0], [1], [0, 0, 1, 1], [], []>} : vector<12x12xbf16>, vector<12x288xbf16>, vector<12x288xf32> -> vector<12x288xf32>
    %166 = arith.addf %164, %165 : vector<12x288xf32>
    %c0_158 = arith.constant 0 : index
    %c0_159 = arith.constant 0 : index
    %167 = vector.load %arg13[%c0_158, %c0_159] : memref<12x288xf32, #tpu.memory_space<vmem>>, vector<12x288xf32>
    %168 = arith.addf %167, %166 : vector<12x288xf32>
    %c0_160 = arith.constant 0 : index
    %c0_161 = arith.constant 0 : index
    %169 = vector.load %arg13[%c0_160, %c0_161] : memref<12x288xf32, #tpu.memory_space<vmem>>, vector<12x288xf32>
    tpu.vector_store %arg13[%c0_160, %c0_161], %168 {strides = array<i32>} : memref<12x288xf32, #tpu.memory_space<vmem>>, vector<12x288xf32>,
    %c2 = arith.constant 2 : index
    %c0_162 = arith.constant 0 : index
    %c0_163 = arith.constant 0 : index
    %170 = vector.load %arg5[%c2, %c0_162, %c0_163] : memref<6x12x216xbf16, #tpu.memory_space<vmem>>, vector<1x12x216xbf16>
    %171 = vector.shape_cast %170 : vector<1x12x216xbf16> to vector<12x216xbf16>
    %c2_164 = arith.constant 2 : index
    %c0_165 = arith.constant 0 : index
    %c0_166 = arith.constant 0 : index
    %172 = vector.load %arg6[%c2_164, %c0_165, %c0_166] : memref<6x12x1xf32, #tpu.memory_space<vmem>>, vector<1x12x1xf32>
    %173 = vector.shape_cast %172 : vector<1x12x1xf32> to vector<12x1xf32>
    %c1_167 = arith.constant 1 : index
    %c0_168 = arith.constant 0 : index
    %c0_169 = arith.constant 0 : index
    %174 = vector.load %arg7[%c1_167, %c0_168, %c0_169] : memref<5x12x24xbf16, #tpu.memory_space<vmem>>, vector<1x12x12xbf16>
    %175 = vector.shape_cast %174 : vector<1x12x12xbf16> to vector<12x12xbf16>
    %c1_170 = arith.constant 1 : index
    %c0_171 = arith.constant 0 : index
    %c12_172 = arith.constant 12 : index
    %176 = vector.load %arg7[%c1_170, %c0_171, %c12_172] : memref<5x12x24xbf16, #tpu.memory_space<vmem>>, vector<1x12x12xbf16>
    %177 = vector.shape_cast %176 : vector<1x12x12xbf16> to vector<12x12xbf16>
    %c0_173 = arith.constant 0 : index
    %c109_174 = arith.constant 109 : index
    %178 = vector.load %arg10[%c0_173, %c109_174] : memref<24x512xbf16, #tpu.memory_space<vmem>>, vector<24x288xbf16>
    %c0_175 = arith.constant 0 : index
    %c0_176 = arith.constant 0 : index
    %179 = vector.load %arg12[%c0_175, %c0_176] : memref<216x288xbf16, #tpu.memory_space<vmem>>, vector<24x288xbf16>
    tpu.vector_store %arg12[%c0_175, %c0_176], %178 {strides = array<i32>} : memref<216x288xbf16, #tpu.memory_space<vmem>>, vector<24x288xbf16>,
    %c0_177 = arith.constant 0 : index
    %c110_178 = arith.constant 110 : index
    %180 = vector.load %arg10[%c0_177, %c110_178] : memref<24x512xbf16, #tpu.memory_space<vmem>>, vector<24x288xbf16>
    %c24_179 = arith.constant 24 : index
    %c0_180 = arith.constant 0 : index
    %181 = vector.load %arg12[%c24_179, %c0_180] : memref<216x288xbf16, #tpu.memory_space<vmem>>, vector<24x288xbf16>
    tpu.vector_store %arg12[%c24_179, %c0_180], %180 {strides = array<i32>} : memref<216x288xbf16, #tpu.memory_space<vmem>>, vector<24x288xbf16>,
    %c0_181 = arith.constant 0 : index
    %c111_182 = arith.constant 111 : index
    %182 = vector.load %arg10[%c0_181, %c111_182] : memref<24x512xbf16, #tpu.memory_space<vmem>>, vector<24x288xbf16>
    %c48_183 = arith.constant 48 : index
    %c0_184 = arith.constant 0 : index
    %183 = vector.load %arg12[%c48_183, %c0_184] : memref<216x288xbf16, #tpu.memory_space<vmem>>, vector<24x288xbf16>
    tpu.vector_store %arg12[%c48_183, %c0_184], %182 {strides = array<i32>} : memref<216x288xbf16, #tpu.memory_space<vmem>>, vector<24x288xbf16>,
    %c0_185 = arith.constant 0 : index
    %c127_186 = arith.constant 127 : index
    %184 = vector.load %arg10[%c0_185, %c127_186] : memref<24x512xbf16, #tpu.memory_space<vmem>>, vector<24x288xbf16>
    %c72_187 = arith.constant 72 : index
    %c0_188 = arith.constant 0 : index
    %185 = vector.load %arg12[%c72_187, %c0_188] : memref<216x288xbf16, #tpu.memory_space<vmem>>, vector<24x288xbf16>
    tpu.vector_store %arg12[%c72_187, %c0_188], %184 {strides = array<i32>} : memref<216x288xbf16, #tpu.memory_space<vmem>>, vector<24x288xbf16>,
    %c0_189 = arith.constant 0 : index
    %c128_190 = arith.constant 128 : index
    %186 = vector.load %arg10[%c0_189, %c128_190] : memref<24x512xbf16, #tpu.memory_space<vmem>>, vector<24x288xbf16>
    %c96_191 = arith.constant 96 : index
    %c0_192 = arith.constant 0 : index
    %187 = vector.load %arg12[%c96_191, %c0_192] : memref<216x288xbf16, #tpu.memory_space<vmem>>, vector<24x288xbf16>
    tpu.vector_store %arg12[%c96_191, %c0_192], %186 {strides = array<i32>} : memref<216x288xbf16, #tpu.memory_space<vmem>>, vector<24x288xbf16>,
    %c0_193 = arith.constant 0 : index
    %c129_194 = arith.constant 129 : index
    %188 = vector.load %arg10[%c0_193, %c129_194] : memref<24x512xbf16, #tpu.memory_space<vmem>>, vector<24x288xbf16>
    %c120_195 = arith.constant 120 : index
    %c0_196 = arith.constant 0 : index
    %189 = vector.load %arg12[%c120_195, %c0_196] : memref<216x288xbf16, #tpu.memory_space<vmem>>, vector<24x288xbf16>
    tpu.vector_store %arg12[%c120_195, %c0_196], %188 {strides = array<i32>} : memref<216x288xbf16, #tpu.memory_space<vmem>>, vector<24x288xbf16>,
    %c0_197 = arith.constant 0 : index
    %c145_198 = arith.constant 145 : index
    %190 = vector.load %arg10[%c0_197, %c145_198] : memref<24x512xbf16, #tpu.memory_space<vmem>>, vector<24x288xbf16>
    %c144_199 = arith.constant 144 : index
    %c0_200 = arith.constant 0 : index
    %191 = vector.load %arg12[%c144_199, %c0_200] : memref<216x288xbf16, #tpu.memory_space<vmem>>, vector<24x288xbf16>
    tpu.vector_store %arg12[%c144_199, %c0_200], %190 {strides = array<i32>} : memref<216x288xbf16, #tpu.memory_space<vmem>>, vector<24x288xbf16>,
    %c0_201 = arith.constant 0 : index
    %c146_202 = arith.constant 146 : index
    %192 = vector.load %arg10[%c0_201, %c146_202] : memref<24x512xbf16, #tpu.memory_space<vmem>>, vector<24x288xbf16>
    %c168_203 = arith.constant 168 : index
    %c0_204 = arith.constant 0 : index
    %193 = vector.load %arg12[%c168_203, %c0_204] : memref<216x288xbf16, #tpu.memory_space<vmem>>, vector<24x288xbf16>
    tpu.vector_store %arg12[%c168_203, %c0_204], %192 {strides = array<i32>} : memref<216x288xbf16, #tpu.memory_space<vmem>>, vector<24x288xbf16>,
    %c0_205 = arith.constant 0 : index
    %c147_206 = arith.constant 147 : index
    %194 = vector.load %arg10[%c0_205, %c147_206] : memref<24x512xbf16, #tpu.memory_space<vmem>>, vector<24x288xbf16>
    %c192_207 = arith.constant 192 : index
    %c0_208 = arith.constant 0 : index
    %195 = vector.load %arg12[%c192_207, %c0_208] : memref<216x288xbf16, #tpu.memory_space<vmem>>, vector<24x288xbf16>
    tpu.vector_store %arg12[%c192_207, %c0_208], %194 {strides = array<i32>} : memref<216x288xbf16, #tpu.memory_space<vmem>>, vector<24x288xbf16>,
    %c0_209 = arith.constant 0 : index
    %c0_210 = arith.constant 0 : index
    %196 = vector.load %arg12[%c0_209, %c0_210] : memref<216x288xbf16, #tpu.memory_space<vmem>>, vector<216x288xbf16>
    %cst_211 = arith.constant dense<0.000000e+00> : vector<12x288xf32>
    %197 = tpu.matmul %171, %196, %cst_211 {dimension_numbers = #tpu.dot_dimension_numbers<[1], [0], [0], [1], [0, 0, 1, 1], [], []>} : vector<12x216xbf16>, vector<216x288xbf16>, vector<12x288xf32> -> vector<12x288xf32>
    %198 = vector.broadcast %173 : vector<12x1xf32> to vector<12x288xf32>
    %199 = arith.addf %197, %198 : vector<12x288xf32>
    %cst_212 = arith.constant 0.000000e+00 : f32
    %200 = vector.broadcast %cst_212 : f32 to vector<12x288xf32>
    %201 = arith.maximumf %199, %200 : vector<12x288xf32>
    %202 = arith.truncf %201 : vector<12x288xf32> to vector<12x288xbf16>
    %203 = vector.broadcast %26 : vector<1x288xbf16> to vector<12x288xbf16>
    %204 = arith.mulf %202, %203 : vector<12x288xbf16>
    %cst_213 = arith.constant 0.000000e+00 : f32
    %205 = vector.broadcast %cst_213 : f32 to vector<12x288xf32>
    %206 = arith.subf %205, %199 : vector<12x288xf32>
    %cst_214 = arith.constant 0.000000e+00 : f32
    %207 = vector.broadcast %cst_214 : f32 to vector<12x288xf32>
    %208 = arith.maximumf %206, %207 : vector<12x288xf32>
    %209 = arith.truncf %208 : vector<12x288xf32> to vector<12x288xbf16>
    %210 = vector.broadcast %26 : vector<1x288xbf16> to vector<12x288xbf16>
    %211 = arith.mulf %209, %210 : vector<12x288xbf16>
    %c0_215 = arith.constant 0 : index
    %c128_216 = arith.constant 128 : index
    %212 = vector.load %arg11[%c0_215, %c128_216] : memref<24x512xbf16, #tpu.memory_space<vmem>>, vector<12x288xbf16>
    tpu.vector_store %arg11[%c0_215, %c128_216], %204 {strides = array<i32>} : memref<24x512xbf16, #tpu.memory_space<vmem>>, vector<12x288xbf16>,
    %c12_217 = arith.constant 12 : index
    %c128_218 = arith.constant 128 : index
    %213 = vector.load %arg11[%c12_217, %c128_218] : memref<24x512xbf16, #tpu.memory_space<vmem>>, vector<12x288xbf16>
    tpu.vector_store %arg11[%c12_217, %c128_218], %211 {strides = array<i32>} : memref<24x512xbf16, #tpu.memory_space<vmem>>, vector<12x288xbf16>,
    %cst_219 = arith.constant dense<0.000000e+00> : vector<12x288xf32>
    %214 = tpu.matmul %175, %204, %cst_219 {dimension_numbers = #tpu.dot_dimension_numbers<[1], [0], [0], [1], [0, 0, 1, 1], [], []>} : vector<12x12xbf16>, vector<12x288xbf16>, vector<12x288xf32> -> vector<12x288xf32>
    %cst_220 = arith.constant dense<0.000000e+00> : vector<12x288xf32>
    %215 = tpu.matmul %177, %211, %cst_220 {dimension_numbers = #tpu.dot_dimension_numbers<[1], [0], [0], [1], [0, 0, 1, 1], [], []>} : vector<12x12xbf16>, vector<12x288xbf16>, vector<12x288xf32> -> vector<12x288xf32>
    %216 = arith.addf %214, %215 : vector<12x288xf32>
    %c0_221 = arith.constant 0 : index
    %c0_222 = arith.constant 0 : index
    %217 = vector.load %arg13[%c0_221, %c0_222] : memref<12x288xf32, #tpu.memory_space<vmem>>, vector<12x288xf32>
    %218 = arith.addf %217, %216 : vector<12x288xf32>
    %c0_223 = arith.constant 0 : index
    %c0_224 = arith.constant 0 : index
    %219 = vector.load %arg13[%c0_223, %c0_224] : memref<12x288xf32, #tpu.memory_space<vmem>>, vector<12x288xf32>
    tpu.vector_store %arg13[%c0_223, %c0_224], %218 {strides = array<i32>} : memref<12x288xf32, #tpu.memory_space<vmem>>, vector<12x288xf32>,
    %c3_225 = arith.constant 3 : index
    %c0_226 = arith.constant 0 : index
    %c0_227 = arith.constant 0 : index
    %220 = vector.load %arg5[%c3_225, %c0_226, %c0_227] : memref<6x12x216xbf16, #tpu.memory_space<vmem>>, vector<1x12x216xbf16>
    %221 = vector.shape_cast %220 : vector<1x12x216xbf16> to vector<12x216xbf16>
    %c3_228 = arith.constant 3 : index
    %c0_229 = arith.constant 0 : index
    %c0_230 = arith.constant 0 : index
    %222 = vector.load %arg6[%c3_228, %c0_229, %c0_230] : memref<6x12x1xf32, #tpu.memory_space<vmem>>, vector<1x12x1xf32>
    %223 = vector.shape_cast %222 : vector<1x12x1xf32> to vector<12x1xf32>
    %c2_231 = arith.constant 2 : index
    %c0_232 = arith.constant 0 : index
    %c0_233 = arith.constant 0 : index
    %224 = vector.load %arg7[%c2_231, %c0_232, %c0_233] : memref<5x12x24xbf16, #tpu.memory_space<vmem>>, vector<1x12x12xbf16>
    %225 = vector.shape_cast %224 : vector<1x12x12xbf16> to vector<12x12xbf16>
    %c2_234 = arith.constant 2 : index
    %c0_235 = arith.constant 0 : index
    %c12_236 = arith.constant 12 : index
    %226 = vector.load %arg7[%c2_234, %c0_235, %c12_236] : memref<5x12x24xbf16, #tpu.memory_space<vmem>>, vector<1x12x12xbf16>
    %227 = vector.shape_cast %226 : vector<1x12x12xbf16> to vector<12x12xbf16>
    %c0_237 = arith.constant 0 : index
    %c109_238 = arith.constant 109 : index
    %228 = vector.load %arg11[%c0_237, %c109_238] : memref<24x512xbf16, #tpu.memory_space<vmem>>, vector<24x288xbf16>
    %c0_239 = arith.constant 0 : index
    %c0_240 = arith.constant 0 : index
    %229 = vector.load %arg12[%c0_239, %c0_240] : memref<216x288xbf16, #tpu.memory_space<vmem>>, vector<24x288xbf16>
    tpu.vector_store %arg12[%c0_239, %c0_240], %228 {strides = array<i32>} : memref<216x288xbf16, #tpu.memory_space<vmem>>, vector<24x288xbf16>,
    %c0_241 = arith.constant 0 : index
    %c110_242 = arith.constant 110 : index
    %230 = vector.load %arg11[%c0_241, %c110_242] : memref<24x512xbf16, #tpu.memory_space<vmem>>, vector<24x288xbf16>
    %c24_243 = arith.constant 24 : index
    %c0_244 = arith.constant 0 : index
    %231 = vector.load %arg12[%c24_243, %c0_244] : memref<216x288xbf16, #tpu.memory_space<vmem>>, vector<24x288xbf16>
    tpu.vector_store %arg12[%c24_243, %c0_244], %230 {strides = array<i32>} : memref<216x288xbf16, #tpu.memory_space<vmem>>, vector<24x288xbf16>,
    %c0_245 = arith.constant 0 : index
    %c111_246 = arith.constant 111 : index
    %232 = vector.load %arg11[%c0_245, %c111_246] : memref<24x512xbf16, #tpu.memory_space<vmem>>, vector<24x288xbf16>
    %c48_247 = arith.constant 48 : index
    %c0_248 = arith.constant 0 : index
    %233 = vector.load %arg12[%c48_247, %c0_248] : memref<216x288xbf16, #tpu.memory_space<vmem>>, vector<24x288xbf16>
    tpu.vector_store %arg12[%c48_247, %c0_248], %232 {strides = array<i32>} : memref<216x288xbf16, #tpu.memory_space<vmem>>, vector<24x288xbf16>,
    %c0_249 = arith.constant 0 : index
    %c127_250 = arith.constant 127 : index
    %234 = vector.load %arg11[%c0_249, %c127_250] : memref<24x512xbf16, #tpu.memory_space<vmem>>, vector<24x288xbf16>
    %c72_251 = arith.constant 72 : index
    %c0_252 = arith.constant 0 : index
    %235 = vector.load %arg12[%c72_251, %c0_252] : memref<216x288xbf16, #tpu.memory_space<vmem>>, vector<24x288xbf16>
    tpu.vector_store %arg12[%c72_251, %c0_252], %234 {strides = array<i32>} : memref<216x288xbf16, #tpu.memory_space<vmem>>, vector<24x288xbf16>,
    %c0_253 = arith.constant 0 : index
    %c128_254 = arith.constant 128 : index
    %236 = vector.load %arg11[%c0_253, %c128_254] : memref<24x512xbf16, #tpu.memory_space<vmem>>, vector<24x288xbf16>
    %c96_255 = arith.constant 96 : index
    %c0_256 = arith.constant 0 : index
    %237 = vector.load %arg12[%c96_255, %c0_256] : memref<216x288xbf16, #tpu.memory_space<vmem>>, vector<24x288xbf16>
    tpu.vector_store %arg12[%c96_255, %c0_256], %236 {strides = array<i32>} : memref<216x288xbf16, #tpu.memory_space<vmem>>, vector<24x288xbf16>,
    %c0_257 = arith.constant 0 : index
    %c129_258 = arith.constant 129 : index
    %238 = vector.load %arg11[%c0_257, %c129_258] : memref<24x512xbf16, #tpu.memory_space<vmem>>, vector<24x288xbf16>
    %c120_259 = arith.constant 120 : index
    %c0_260 = arith.constant 0 : index
    %239 = vector.load %arg12[%c120_259, %c0_260] : memref<216x288xbf16, #tpu.memory_space<vmem>>, vector<24x288xbf16>
    tpu.vector_store %arg12[%c120_259, %c0_260], %238 {strides = array<i32>} : memref<216x288xbf16, #tpu.memory_space<vmem>>, vector<24x288xbf16>,
    %c0_261 = arith.constant 0 : index
    %c145_262 = arith.constant 145 : index
    %240 = vector.load %arg11[%c0_261, %c145_262] : memref<24x512xbf16, #tpu.memory_space<vmem>>, vector<24x288xbf16>
    %c144_263 = arith.constant 144 : index
    %c0_264 = arith.constant 0 : index
    %241 = vector.load %arg12[%c144_263, %c0_264] : memref<216x288xbf16, #tpu.memory_space<vmem>>, vector<24x288xbf16>
    tpu.vector_store %arg12[%c144_263, %c0_264], %240 {strides = array<i32>} : memref<216x288xbf16, #tpu.memory_space<vmem>>, vector<24x288xbf16>,
    %c0_265 = arith.constant 0 : index
    %c146_266 = arith.constant 146 : index
    %242 = vector.load %arg11[%c0_265, %c146_266] : memref<24x512xbf16, #tpu.memory_space<vmem>>, vector<24x288xbf16>
    %c168_267 = arith.constant 168 : index
    %c0_268 = arith.constant 0 : index
    %243 = vector.load %arg12[%c168_267, %c0_268] : memref<216x288xbf16, #tpu.memory_space<vmem>>, vector<24x288xbf16>
    tpu.vector_store %arg12[%c168_267, %c0_268], %242 {strides = array<i32>} : memref<216x288xbf16, #tpu.memory_space<vmem>>, vector<24x288xbf16>,
    %c0_269 = arith.constant 0 : index
    %c147_270 = arith.constant 147 : index
    %244 = vector.load %arg11[%c0_269, %c147_270] : memref<24x512xbf16, #tpu.memory_space<vmem>>, vector<24x288xbf16>
    %c192_271 = arith.constant 192 : index
    %c0_272 = arith.constant 0 : index
    %245 = vector.load %arg12[%c192_271, %c0_272] : memref<216x288xbf16, #tpu.memory_space<vmem>>, vector<24x288xbf16>
    tpu.vector_store %arg12[%c192_271, %c0_272], %244 {strides = array<i32>} : memref<216x288xbf16, #tpu.memory_space<vmem>>, vector<24x288xbf16>,
    %c0_273 = arith.constant 0 : index
    %c0_274 = arith.constant 0 : index
    %246 = vector.load %arg12[%c0_273, %c0_274] : memref<216x288xbf16, #tpu.memory_space<vmem>>, vector<216x288xbf16>
    %cst_275 = arith.constant dense<0.000000e+00> : vector<12x288xf32>
    %247 = tpu.matmul %221, %246, %cst_275 {dimension_numbers = #tpu.dot_dimension_numbers<[1], [0], [0], [1], [0, 0, 1, 1], [], []>} : vector<12x216xbf16>, vector<216x288xbf16>, vector<12x288xf32> -> vector<12x288xf32>
    %248 = vector.broadcast %223 : vector<12x1xf32> to vector<12x288xf32>
    %249 = arith.addf %247, %248 : vector<12x288xf32>
    %cst_276 = arith.constant 0.000000e+00 : f32
    %250 = vector.broadcast %cst_276 : f32 to vector<12x288xf32>
    %251 = arith.maximumf %249, %250 : vector<12x288xf32>
    %252 = arith.truncf %251 : vector<12x288xf32> to vector<12x288xbf16>
    %253 = vector.broadcast %26 : vector<1x288xbf16> to vector<12x288xbf16>
    %254 = arith.mulf %252, %253 : vector<12x288xbf16>
    %cst_277 = arith.constant 0.000000e+00 : f32
    %255 = vector.broadcast %cst_277 : f32 to vector<12x288xf32>
    %256 = arith.subf %255, %249 : vector<12x288xf32>
    %cst_278 = arith.constant 0.000000e+00 : f32
    %257 = vector.broadcast %cst_278 : f32 to vector<12x288xf32>
    %258 = arith.maximumf %256, %257 : vector<12x288xf32>
    %259 = arith.truncf %258 : vector<12x288xf32> to vector<12x288xbf16>
    %260 = vector.broadcast %26 : vector<1x288xbf16> to vector<12x288xbf16>
    %261 = arith.mulf %259, %260 : vector<12x288xbf16>
    %c0_279 = arith.constant 0 : index
    %c128_280 = arith.constant 128 : index
    %262 = vector.load %arg10[%c0_279, %c128_280] : memref<24x512xbf16, #tpu.memory_space<vmem>>, vector<12x288xbf16>
    tpu.vector_store %arg10[%c0_279, %c128_280], %254 {strides = array<i32>} : memref<24x512xbf16, #tpu.memory_space<vmem>>, vector<12x288xbf16>,
    %c12_281 = arith.constant 12 : index
    %c128_282 = arith.constant 128 : index
    %263 = vector.load %arg10[%c12_281, %c128_282] : memref<24x512xbf16, #tpu.memory_space<vmem>>, vector<12x288xbf16>
    tpu.vector_store %arg10[%c12_281, %c128_282], %261 {strides = array<i32>} : memref<24x512xbf16, #tpu.memory_space<vmem>>, vector<12x288xbf16>,
    %cst_283 = arith.constant dense<0.000000e+00> : vector<12x288xf32>
    %264 = tpu.matmul %225, %254, %cst_283 {dimension_numbers = #tpu.dot_dimension_numbers<[1], [0], [0], [1], [0, 0, 1, 1], [], []>} : vector<12x12xbf16>, vector<12x288xbf16>, vector<12x288xf32> -> vector<12x288xf32>
    %cst_284 = arith.constant dense<0.000000e+00> : vector<12x288xf32>
    %265 = tpu.matmul %227, %261, %cst_284 {dimension_numbers = #tpu.dot_dimension_numbers<[1], [0], [0], [1], [0, 0, 1, 1], [], []>} : vector<12x12xbf16>, vector<12x288xbf16>, vector<12x288xf32> -> vector<12x288xf32>
    %266 = arith.addf %264, %265 : vector<12x288xf32>
    %c0_285 = arith.constant 0 : index
    %c0_286 = arith.constant 0 : index
    %267 = vector.load %arg13[%c0_285, %c0_286] : memref<12x288xf32, #tpu.memory_space<vmem>>, vector<12x288xf32>
    %268 = arith.addf %267, %266 : vector<12x288xf32>
    %c0_287 = arith.constant 0 : index
    %c0_288 = arith.constant 0 : index
    %269 = vector.load %arg13[%c0_287, %c0_288] : memref<12x288xf32, #tpu.memory_space<vmem>>, vector<12x288xf32>
    tpu.vector_store %arg13[%c0_287, %c0_288], %268 {strides = array<i32>} : memref<12x288xf32, #tpu.memory_space<vmem>>, vector<12x288xf32>,
    %c4 = arith.constant 4 : index
    %c0_289 = arith.constant 0 : index
    %c0_290 = arith.constant 0 : index
    %270 = vector.load %arg5[%c4, %c0_289, %c0_290] : memref<6x12x216xbf16, #tpu.memory_space<vmem>>, vector<1x12x216xbf16>
    %271 = vector.shape_cast %270 : vector<1x12x216xbf16> to vector<12x216xbf16>
    %c4_291 = arith.constant 4 : index
    %c0_292 = arith.constant 0 : index
    %c0_293 = arith.constant 0 : index
    %272 = vector.load %arg6[%c4_291, %c0_292, %c0_293] : memref<6x12x1xf32, #tpu.memory_space<vmem>>, vector<1x12x1xf32>
    %273 = vector.shape_cast %272 : vector<1x12x1xf32> to vector<12x1xf32>
    %c3_294 = arith.constant 3 : index
    %c0_295 = arith.constant 0 : index
    %c0_296 = arith.constant 0 : index
    %274 = vector.load %arg7[%c3_294, %c0_295, %c0_296] : memref<5x12x24xbf16, #tpu.memory_space<vmem>>, vector<1x12x12xbf16>
    %275 = vector.shape_cast %274 : vector<1x12x12xbf16> to vector<12x12xbf16>
    %c3_297 = arith.constant 3 : index
    %c0_298 = arith.constant 0 : index
    %c12_299 = arith.constant 12 : index
    %276 = vector.load %arg7[%c3_297, %c0_298, %c12_299] : memref<5x12x24xbf16, #tpu.memory_space<vmem>>, vector<1x12x12xbf16>
    %277 = vector.shape_cast %276 : vector<1x12x12xbf16> to vector<12x12xbf16>
    %c0_300 = arith.constant 0 : index
    %c109_301 = arith.constant 109 : index
    %278 = vector.load %arg10[%c0_300, %c109_301] : memref<24x512xbf16, #tpu.memory_space<vmem>>, vector<24x288xbf16>
    %c0_302 = arith.constant 0 : index
    %c0_303 = arith.constant 0 : index
    %279 = vector.load %arg12[%c0_302, %c0_303] : memref<216x288xbf16, #tpu.memory_space<vmem>>, vector<24x288xbf16>
    tpu.vector_store %arg12[%c0_302, %c0_303], %278 {strides = array<i32>} : memref<216x288xbf16, #tpu.memory_space<vmem>>, vector<24x288xbf16>,
    %c0_304 = arith.constant 0 : index
    %c110_305 = arith.constant 110 : index
    %280 = vector.load %arg10[%c0_304, %c110_305] : memref<24x512xbf16, #tpu.memory_space<vmem>>, vector<24x288xbf16>
    %c24_306 = arith.constant 24 : index
    %c0_307 = arith.constant 0 : index
    %281 = vector.load %arg12[%c24_306, %c0_307] : memref<216x288xbf16, #tpu.memory_space<vmem>>, vector<24x288xbf16>
    tpu.vector_store %arg12[%c24_306, %c0_307], %280 {strides = array<i32>} : memref<216x288xbf16, #tpu.memory_space<vmem>>, vector<24x288xbf16>,
    %c0_308 = arith.constant 0 : index
    %c111_309 = arith.constant 111 : index
    %282 = vector.load %arg10[%c0_308, %c111_309] : memref<24x512xbf16, #tpu.memory_space<vmem>>, vector<24x288xbf16>
    %c48_310 = arith.constant 48 : index
    %c0_311 = arith.constant 0 : index
    %283 = vector.load %arg12[%c48_310, %c0_311] : memref<216x288xbf16, #tpu.memory_space<vmem>>, vector<24x288xbf16>
    tpu.vector_store %arg12[%c48_310, %c0_311], %282 {strides = array<i32>} : memref<216x288xbf16, #tpu.memory_space<vmem>>, vector<24x288xbf16>,
    %c0_312 = arith.constant 0 : index
    %c127_313 = arith.constant 127 : index
    %284 = vector.load %arg10[%c0_312, %c127_313] : memref<24x512xbf16, #tpu.memory_space<vmem>>, vector<24x288xbf16>
    %c72_314 = arith.constant 72 : index
    %c0_315 = arith.constant 0 : index
    %285 = vector.load %arg12[%c72_314, %c0_315] : memref<216x288xbf16, #tpu.memory_space<vmem>>, vector<24x288xbf16>
    tpu.vector_store %arg12[%c72_314, %c0_315], %284 {strides = array<i32>} : memref<216x288xbf16, #tpu.memory_space<vmem>>, vector<24x288xbf16>,
    %c0_316 = arith.constant 0 : index
    %c128_317 = arith.constant 128 : index
    %286 = vector.load %arg10[%c0_316, %c128_317] : memref<24x512xbf16, #tpu.memory_space<vmem>>, vector<24x288xbf16>
    %c96_318 = arith.constant 96 : index
    %c0_319 = arith.constant 0 : index
    %287 = vector.load %arg12[%c96_318, %c0_319] : memref<216x288xbf16, #tpu.memory_space<vmem>>, vector<24x288xbf16>
    tpu.vector_store %arg12[%c96_318, %c0_319], %286 {strides = array<i32>} : memref<216x288xbf16, #tpu.memory_space<vmem>>, vector<24x288xbf16>,
    %c0_320 = arith.constant 0 : index
    %c129_321 = arith.constant 129 : index
    %288 = vector.load %arg10[%c0_320, %c129_321] : memref<24x512xbf16, #tpu.memory_space<vmem>>, vector<24x288xbf16>
    %c120_322 = arith.constant 120 : index
    %c0_323 = arith.constant 0 : index
    %289 = vector.load %arg12[%c120_322, %c0_323] : memref<216x288xbf16, #tpu.memory_space<vmem>>, vector<24x288xbf16>
    tpu.vector_store %arg12[%c120_322, %c0_323], %288 {strides = array<i32>} : memref<216x288xbf16, #tpu.memory_space<vmem>>, vector<24x288xbf16>,
    %c0_324 = arith.constant 0 : index
    %c145_325 = arith.constant 145 : index
    %290 = vector.load %arg10[%c0_324, %c145_325] : memref<24x512xbf16, #tpu.memory_space<vmem>>, vector<24x288xbf16>
    %c144_326 = arith.constant 144 : index
    %c0_327 = arith.constant 0 : index
    %291 = vector.load %arg12[%c144_326, %c0_327] : memref<216x288xbf16, #tpu.memory_space<vmem>>, vector<24x288xbf16>
    tpu.vector_store %arg12[%c144_326, %c0_327], %290 {strides = array<i32>} : memref<216x288xbf16, #tpu.memory_space<vmem>>, vector<24x288xbf16>,
    %c0_328 = arith.constant 0 : index
    %c146_329 = arith.constant 146 : index
    %292 = vector.load %arg10[%c0_328, %c146_329] : memref<24x512xbf16, #tpu.memory_space<vmem>>, vector<24x288xbf16>
    %c168_330 = arith.constant 168 : index
    %c0_331 = arith.constant 0 : index
    %293 = vector.load %arg12[%c168_330, %c0_331] : memref<216x288xbf16, #tpu.memory_space<vmem>>, vector<24x288xbf16>
    tpu.vector_store %arg12[%c168_330, %c0_331], %292 {strides = array<i32>} : memref<216x288xbf16, #tpu.memory_space<vmem>>, vector<24x288xbf16>,
    %c0_332 = arith.constant 0 : index
    %c147_333 = arith.constant 147 : index
    %294 = vector.load %arg10[%c0_332, %c147_333] : memref<24x512xbf16, #tpu.memory_space<vmem>>, vector<24x288xbf16>
    %c192_334 = arith.constant 192 : index
    %c0_335 = arith.constant 0 : index
    %295 = vector.load %arg12[%c192_334, %c0_335] : memref<216x288xbf16, #tpu.memory_space<vmem>>, vector<24x288xbf16>
    tpu.vector_store %arg12[%c192_334, %c0_335], %294 {strides = array<i32>} : memref<216x288xbf16, #tpu.memory_space<vmem>>, vector<24x288xbf16>,
    %c0_336 = arith.constant 0 : index
    %c0_337 = arith.constant 0 : index
    %296 = vector.load %arg12[%c0_336, %c0_337] : memref<216x288xbf16, #tpu.memory_space<vmem>>, vector<216x288xbf16>
    %cst_338 = arith.constant dense<0.000000e+00> : vector<12x288xf32>
    %297 = tpu.matmul %271, %296, %cst_338 {dimension_numbers = #tpu.dot_dimension_numbers<[1], [0], [0], [1], [0, 0, 1, 1], [], []>} : vector<12x216xbf16>, vector<216x288xbf16>, vector<12x288xf32> -> vector<12x288xf32>
    %298 = vector.broadcast %273 : vector<12x1xf32> to vector<12x288xf32>
    %299 = arith.addf %297, %298 : vector<12x288xf32>
    %cst_339 = arith.constant 0.000000e+00 : f32
    %300 = vector.broadcast %cst_339 : f32 to vector<12x288xf32>
    %301 = arith.maximumf %299, %300 : vector<12x288xf32>
    %302 = arith.truncf %301 : vector<12x288xf32> to vector<12x288xbf16>
    %303 = vector.broadcast %26 : vector<1x288xbf16> to vector<12x288xbf16>
    %304 = arith.mulf %302, %303 : vector<12x288xbf16>
    %cst_340 = arith.constant 0.000000e+00 : f32
    %305 = vector.broadcast %cst_340 : f32 to vector<12x288xf32>
    %306 = arith.subf %305, %299 : vector<12x288xf32>
    %cst_341 = arith.constant 0.000000e+00 : f32
    %307 = vector.broadcast %cst_341 : f32 to vector<12x288xf32>
    %308 = arith.maximumf %306, %307 : vector<12x288xf32>
    %309 = arith.truncf %308 : vector<12x288xf32> to vector<12x288xbf16>
    %310 = vector.broadcast %26 : vector<1x288xbf16> to vector<12x288xbf16>
    %311 = arith.mulf %309, %310 : vector<12x288xbf16>
    %c0_342 = arith.constant 0 : index
    %c128_343 = arith.constant 128 : index
    %312 = vector.load %arg11[%c0_342, %c128_343] : memref<24x512xbf16, #tpu.memory_space<vmem>>, vector<12x288xbf16>
    tpu.vector_store %arg11[%c0_342, %c128_343], %304 {strides = array<i32>} : memref<24x512xbf16, #tpu.memory_space<vmem>>, vector<12x288xbf16>,
    %c12_344 = arith.constant 12 : index
    %c128_345 = arith.constant 128 : index
    %313 = vector.load %arg11[%c12_344, %c128_345] : memref<24x512xbf16, #tpu.memory_space<vmem>>, vector<12x288xbf16>
    tpu.vector_store %arg11[%c12_344, %c128_345], %311 {strides = array<i32>} : memref<24x512xbf16, #tpu.memory_space<vmem>>, vector<12x288xbf16>,
    %cst_346 = arith.constant dense<0.000000e+00> : vector<12x288xf32>
    %314 = tpu.matmul %275, %304, %cst_346 {dimension_numbers = #tpu.dot_dimension_numbers<[1], [0], [0], [1], [0, 0, 1, 1], [], []>} : vector<12x12xbf16>, vector<12x288xbf16>, vector<12x288xf32> -> vector<12x288xf32>
    %cst_347 = arith.constant dense<0.000000e+00> : vector<12x288xf32>
    %315 = tpu.matmul %277, %311, %cst_347 {dimension_numbers = #tpu.dot_dimension_numbers<[1], [0], [0], [1], [0, 0, 1, 1], [], []>} : vector<12x12xbf16>, vector<12x288xbf16>, vector<12x288xf32> -> vector<12x288xf32>
    %316 = arith.addf %314, %315 : vector<12x288xf32>
    %c0_348 = arith.constant 0 : index
    %c0_349 = arith.constant 0 : index
    %317 = vector.load %arg13[%c0_348, %c0_349] : memref<12x288xf32, #tpu.memory_space<vmem>>, vector<12x288xf32>
    %318 = arith.addf %317, %316 : vector<12x288xf32>
    %c0_350 = arith.constant 0 : index
    %c0_351 = arith.constant 0 : index
    %319 = vector.load %arg13[%c0_350, %c0_351] : memref<12x288xf32, #tpu.memory_space<vmem>>, vector<12x288xf32>
    tpu.vector_store %arg13[%c0_350, %c0_351], %318 {strides = array<i32>} : memref<12x288xf32, #tpu.memory_space<vmem>>, vector<12x288xf32>,
    %c5 = arith.constant 5 : index
    %c0_352 = arith.constant 0 : index
    %c0_353 = arith.constant 0 : index
    %320 = vector.load %arg5[%c5, %c0_352, %c0_353] : memref<6x12x216xbf16, #tpu.memory_space<vmem>>, vector<1x12x216xbf16>
    %321 = vector.shape_cast %320 : vector<1x12x216xbf16> to vector<12x216xbf16>
    %c5_354 = arith.constant 5 : index
    %c0_355 = arith.constant 0 : index
    %c0_356 = arith.constant 0 : index
    %322 = vector.load %arg6[%c5_354, %c0_355, %c0_356] : memref<6x12x1xf32, #tpu.memory_space<vmem>>, vector<1x12x1xf32>
    %323 = vector.shape_cast %322 : vector<1x12x1xf32> to vector<12x1xf32>
    %c4_357 = arith.constant 4 : index
    %c0_358 = arith.constant 0 : index
    %c0_359 = arith.constant 0 : index
    %324 = vector.load %arg7[%c4_357, %c0_358, %c0_359] : memref<5x12x24xbf16, #tpu.memory_space<vmem>>, vector<1x12x12xbf16>
    %325 = vector.shape_cast %324 : vector<1x12x12xbf16> to vector<12x12xbf16>
    %c4_360 = arith.constant 4 : index
    %c0_361 = arith.constant 0 : index
    %c12_362 = arith.constant 12 : index
    %326 = vector.load %arg7[%c4_360, %c0_361, %c12_362] : memref<5x12x24xbf16, #tpu.memory_space<vmem>>, vector<1x12x12xbf16>
    %327 = vector.shape_cast %326 : vector<1x12x12xbf16> to vector<12x12xbf16>
    %c0_363 = arith.constant 0 : index
    %c109_364 = arith.constant 109 : index
    %328 = vector.load %arg11[%c0_363, %c109_364] : memref<24x512xbf16, #tpu.memory_space<vmem>>, vector<24x288xbf16>
    %c0_365 = arith.constant 0 : index
    %c0_366 = arith.constant 0 : index
    %329 = vector.load %arg12[%c0_365, %c0_366] : memref<216x288xbf16, #tpu.memory_space<vmem>>, vector<24x288xbf16>
    tpu.vector_store %arg12[%c0_365, %c0_366], %328 {strides = array<i32>} : memref<216x288xbf16, #tpu.memory_space<vmem>>, vector<24x288xbf16>,
    %c0_367 = arith.constant 0 : index
    %c110_368 = arith.constant 110 : index
    %330 = vector.load %arg11[%c0_367, %c110_368] : memref<24x512xbf16, #tpu.memory_space<vmem>>, vector<24x288xbf16>
    %c24_369 = arith.constant 24 : index
    %c0_370 = arith.constant 0 : index
    %331 = vector.load %arg12[%c24_369, %c0_370] : memref<216x288xbf16, #tpu.memory_space<vmem>>, vector<24x288xbf16>
    tpu.vector_store %arg12[%c24_369, %c0_370], %330 {strides = array<i32>} : memref<216x288xbf16, #tpu.memory_space<vmem>>, vector<24x288xbf16>,
    %c0_371 = arith.constant 0 : index
    %c111_372 = arith.constant 111 : index
    %332 = vector.load %arg11[%c0_371, %c111_372] : memref<24x512xbf16, #tpu.memory_space<vmem>>, vector<24x288xbf16>
    %c48_373 = arith.constant 48 : index
    %c0_374 = arith.constant 0 : index
    %333 = vector.load %arg12[%c48_373, %c0_374] : memref<216x288xbf16, #tpu.memory_space<vmem>>, vector<24x288xbf16>
    tpu.vector_store %arg12[%c48_373, %c0_374], %332 {strides = array<i32>} : memref<216x288xbf16, #tpu.memory_space<vmem>>, vector<24x288xbf16>,
    %c0_375 = arith.constant 0 : index
    %c127_376 = arith.constant 127 : index
    %334 = vector.load %arg11[%c0_375, %c127_376] : memref<24x512xbf16, #tpu.memory_space<vmem>>, vector<24x288xbf16>
    %c72_377 = arith.constant 72 : index
    %c0_378 = arith.constant 0 : index
    %335 = vector.load %arg12[%c72_377, %c0_378] : memref<216x288xbf16, #tpu.memory_space<vmem>>, vector<24x288xbf16>
    tpu.vector_store %arg12[%c72_377, %c0_378], %334 {strides = array<i32>} : memref<216x288xbf16, #tpu.memory_space<vmem>>, vector<24x288xbf16>,
    %c0_379 = arith.constant 0 : index
    %c128_380 = arith.constant 128 : index
    %336 = vector.load %arg11[%c0_379, %c128_380] : memref<24x512xbf16, #tpu.memory_space<vmem>>, vector<24x288xbf16>
    %c96_381 = arith.constant 96 : index
    %c0_382 = arith.constant 0 : index
    %337 = vector.load %arg12[%c96_381, %c0_382] : memref<216x288xbf16, #tpu.memory_space<vmem>>, vector<24x288xbf16>
    tpu.vector_store %arg12[%c96_381, %c0_382], %336 {strides = array<i32>} : memref<216x288xbf16, #tpu.memory_space<vmem>>, vector<24x288xbf16>,
    %c0_383 = arith.constant 0 : index
    %c129_384 = arith.constant 129 : index
    %338 = vector.load %arg11[%c0_383, %c129_384] : memref<24x512xbf16, #tpu.memory_space<vmem>>, vector<24x288xbf16>
    %c120_385 = arith.constant 120 : index
    %c0_386 = arith.constant 0 : index
    %339 = vector.load %arg12[%c120_385, %c0_386] : memref<216x288xbf16, #tpu.memory_space<vmem>>, vector<24x288xbf16>
    tpu.vector_store %arg12[%c120_385, %c0_386], %338 {strides = array<i32>} : memref<216x288xbf16, #tpu.memory_space<vmem>>, vector<24x288xbf16>,
    %c0_387 = arith.constant 0 : index
    %c145_388 = arith.constant 145 : index
    %340 = vector.load %arg11[%c0_387, %c145_388] : memref<24x512xbf16, #tpu.memory_space<vmem>>, vector<24x288xbf16>
    %c144_389 = arith.constant 144 : index
    %c0_390 = arith.constant 0 : index
    %341 = vector.load %arg12[%c144_389, %c0_390] : memref<216x288xbf16, #tpu.memory_space<vmem>>, vector<24x288xbf16>
    tpu.vector_store %arg12[%c144_389, %c0_390], %340 {strides = array<i32>} : memref<216x288xbf16, #tpu.memory_space<vmem>>, vector<24x288xbf16>,
    %c0_391 = arith.constant 0 : index
    %c146_392 = arith.constant 146 : index
    %342 = vector.load %arg11[%c0_391, %c146_392] : memref<24x512xbf16, #tpu.memory_space<vmem>>, vector<24x288xbf16>
    %c168_393 = arith.constant 168 : index
    %c0_394 = arith.constant 0 : index
    %343 = vector.load %arg12[%c168_393, %c0_394] : memref<216x288xbf16, #tpu.memory_space<vmem>>, vector<24x288xbf16>
    tpu.vector_store %arg12[%c168_393, %c0_394], %342 {strides = array<i32>} : memref<216x288xbf16, #tpu.memory_space<vmem>>, vector<24x288xbf16>,
    %c0_395 = arith.constant 0 : index
    %c147_396 = arith.constant 147 : index
    %344 = vector.load %arg11[%c0_395, %c147_396] : memref<24x512xbf16, #tpu.memory_space<vmem>>, vector<24x288xbf16>
    %c192_397 = arith.constant 192 : index
    %c0_398 = arith.constant 0 : index
    %345 = vector.load %arg12[%c192_397, %c0_398] : memref<216x288xbf16, #tpu.memory_space<vmem>>, vector<24x288xbf16>
    tpu.vector_store %arg12[%c192_397, %c0_398], %344 {strides = array<i32>} : memref<216x288xbf16, #tpu.memory_space<vmem>>, vector<24x288xbf16>,
    %c0_399 = arith.constant 0 : index
    %c0_400 = arith.constant 0 : index
    %346 = vector.load %arg12[%c0_399, %c0_400] : memref<216x288xbf16, #tpu.memory_space<vmem>>, vector<216x288xbf16>
    %cst_401 = arith.constant dense<0.000000e+00> : vector<12x288xf32>
    %347 = tpu.matmul %321, %346, %cst_401 {dimension_numbers = #tpu.dot_dimension_numbers<[1], [0], [0], [1], [0, 0, 1, 1], [], []>} : vector<12x216xbf16>, vector<216x288xbf16>, vector<12x288xf32> -> vector<12x288xf32>
    %348 = vector.broadcast %323 : vector<12x1xf32> to vector<12x288xf32>
    %349 = arith.addf %347, %348 : vector<12x288xf32>
    %cst_402 = arith.constant 0.000000e+00 : f32
    %350 = vector.broadcast %cst_402 : f32 to vector<12x288xf32>
    %351 = arith.maximumf %349, %350 : vector<12x288xf32>
    %352 = arith.truncf %351 : vector<12x288xf32> to vector<12x288xbf16>
    %353 = vector.broadcast %26 : vector<1x288xbf16> to vector<12x288xbf16>
    %354 = arith.mulf %352, %353 : vector<12x288xbf16>
    %cst_403 = arith.constant 0.000000e+00 : f32
    %355 = vector.broadcast %cst_403 : f32 to vector<12x288xf32>
    %356 = arith.subf %355, %349 : vector<12x288xf32>
    %cst_404 = arith.constant 0.000000e+00 : f32
    %357 = vector.broadcast %cst_404 : f32 to vector<12x288xf32>
    %358 = arith.maximumf %356, %357 : vector<12x288xf32>
    %359 = arith.truncf %358 : vector<12x288xf32> to vector<12x288xbf16>
    %360 = vector.broadcast %26 : vector<1x288xbf16> to vector<12x288xbf16>
    %361 = arith.mulf %359, %360 : vector<12x288xbf16>
    %c0_405 = arith.constant 0 : index
    %c128_406 = arith.constant 128 : index
    %362 = vector.load %arg10[%c0_405, %c128_406] : memref<24x512xbf16, #tpu.memory_space<vmem>>, vector<12x288xbf16>
    tpu.vector_store %arg10[%c0_405, %c128_406], %354 {strides = array<i32>} : memref<24x512xbf16, #tpu.memory_space<vmem>>, vector<12x288xbf16>,
    %c12_407 = arith.constant 12 : index
    %c128_408 = arith.constant 128 : index
    %363 = vector.load %arg10[%c12_407, %c128_408] : memref<24x512xbf16, #tpu.memory_space<vmem>>, vector<12x288xbf16>
    tpu.vector_store %arg10[%c12_407, %c128_408], %361 {strides = array<i32>} : memref<24x512xbf16, #tpu.memory_space<vmem>>, vector<12x288xbf16>,
    %cst_409 = arith.constant dense<0.000000e+00> : vector<12x288xf32>
    %364 = tpu.matmul %325, %354, %cst_409 {dimension_numbers = #tpu.dot_dimension_numbers<[1], [0], [0], [1], [0, 0, 1, 1], [], []>} : vector<12x12xbf16>, vector<12x288xbf16>, vector<12x288xf32> -> vector<12x288xf32>
    %cst_410 = arith.constant dense<0.000000e+00> : vector<12x288xf32>
    %365 = tpu.matmul %327, %361, %cst_410 {dimension_numbers = #tpu.dot_dimension_numbers<[1], [0], [0], [1], [0, 0, 1, 1], [], []>} : vector<12x12xbf16>, vector<12x288xbf16>, vector<12x288xf32> -> vector<12x288xf32>
    %366 = arith.addf %364, %365 : vector<12x288xf32>
    %c0_411 = arith.constant 0 : index
    %c0_412 = arith.constant 0 : index
    %367 = vector.load %arg13[%c0_411, %c0_412] : memref<12x288xf32, #tpu.memory_space<vmem>>, vector<12x288xf32>
    %368 = arith.addf %367, %366 : vector<12x288xf32>
    %c0_413 = arith.constant 0 : index
    %c0_414 = arith.constant 0 : index
    %369 = vector.load %arg13[%c0_413, %c0_414] : memref<12x288xf32, #tpu.memory_space<vmem>>, vector<12x288xf32>
    tpu.vector_store %arg13[%c0_413, %c0_414], %368 {strides = array<i32>} : memref<12x288xf32, #tpu.memory_space<vmem>>, vector<12x288xf32>,
    %c0_415 = arith.constant 0 : index
    %c0_416 = arith.constant 0 : index
    %370 = vector.load %arg13[%c0_415, %c0_416] : memref<12x288xf32, #tpu.memory_space<vmem>>, vector<12x288xf32>
    %c0_417 = arith.constant 0 : index
    %c0_418 = arith.constant 0 : index
    %371 = vector.load %arg8[%c0_417, %c0_418] : memref<12x1xf32, #tpu.memory_space<vmem>>, vector<12x1xf32>
    %372 = vector.broadcast %371 : vector<12x1xf32> to vector<12x288xf32>
    %373 = arith.addf %370, %372 : vector<12x288xf32>
    %c0_419 = arith.constant 0 : index
    %c0_420 = arith.constant 0 : index
    %c0_421 = arith.constant 0 : index
    %374 = vector.load %arg2[%c0_419, %c0_420, %c0_421] : memref<1x3x512xf32, #tpu.memory_space<vmem>>, vector<1x3x512xf32>
    %375 = vector.shape_cast %374 : vector<1x3x512xf32> to vector<3x512xf32>
    %cst_422 = arith.constant 0.000000e+00 : f32
    %376 = vector.broadcast %cst_422 : f32 to vector<3x288xf32>
    %377 = vector.extract_strided_slice %375 {offsets = [0, 109], sizes = [3, 288], strides = [1, 1]} : vector<3x512xf32> to vector<3x288xf32>
    %cst_423 = arith.constant 6.250000e-02 : f32
    %378 = vector.broadcast %cst_423 : f32 to vector<3x288xf32>
    %379 = arith.mulf %378, %377 : vector<3x288xf32>
    %380 = arith.addf %376, %379 : vector<3x288xf32>
    %381 = vector.extract_strided_slice %375 {offsets = [0, 110], sizes = [3, 288], strides = [1, 1]} : vector<3x512xf32> to vector<3x288xf32>
    %cst_424 = arith.constant 1.875000e-01 : f32
    %382 = vector.broadcast %cst_424 : f32 to vector<3x288xf32>
    %383 = arith.mulf %382, %381 : vector<3x288xf32>
    %384 = arith.addf %380, %383 : vector<3x288xf32>
    %385 = vector.extract_strided_slice %375 {offsets = [0, 127], sizes = [3, 288], strides = [1, 1]} : vector<3x512xf32> to vector<3x288xf32>
    %cst_425 = arith.constant 1.875000e-01 : f32
    %386 = vector.broadcast %cst_425 : f32 to vector<3x288xf32>
    %387 = arith.mulf %386, %385 : vector<3x288xf32>
    %388 = arith.addf %384, %387 : vector<3x288xf32>
    %389 = vector.extract_strided_slice %375 {offsets = [0, 128], sizes = [3, 288], strides = [1, 1]} : vector<3x512xf32> to vector<3x288xf32>
    %cst_426 = arith.constant 5.625000e-01 : f32
    %390 = vector.broadcast %cst_426 : f32 to vector<3x288xf32>
    %391 = arith.mulf %390, %389 : vector<3x288xf32>
    %392 = arith.addf %388, %391 : vector<3x288xf32>
    %393 = vector.extract_strided_slice %373 {offsets = [0, 0], sizes = [3, 288], strides = [1, 1]} : vector<12x288xf32> to vector<3x288xf32>
    %394 = arith.addf %393, %392 : vector<3x288xf32>
    %cst_427 = arith.constant 0.000000e+00 : f32
    %cst_428 = arith.constant 1.000000e+00 : f32
    %395 = vector.broadcast %cst_427 : f32 to vector<3x288xf32>
    %396 = arith.maximumf %395, %394 : vector<3x288xf32>
    %397 = vector.broadcast %cst_428 : f32 to vector<3x288xf32>
    %398 = arith.minimumf %397, %396 : vector<3x288xf32>
    %c0_429 = arith.constant 0 : index
    %c0_430 = arith.constant 0 : index
    %c0_431 = arith.constant 0 : index
    %c0_432 = arith.constant 0 : index
    %399 = vector.load %arg9[%c0_429, %c0_430, %c0_431, %c0_432] : memref<1x4x3x288xf32, #tpu.memory_space<vmem>>, vector<1x1x3x288xf32>
    %400 = vector.shape_cast %399 : vector<1x1x3x288xf32> to vector<3x288xf32>
    %401 = vector.shape_cast %398 : vector<3x288xf32> to vector<1x1x3x288xf32>
    tpu.vector_store %arg9[%c0_429, %c0_430, %c0_431, %c0_432], %401 {strides = array<i32>} : memref<1x4x3x288xf32, #tpu.memory_space<vmem>>, vector<1x1x3x288xf32>,
    %cst_433 = arith.constant 0.000000e+00 : f32
    %402 = vector.broadcast %cst_433 : f32 to vector<3x288xf32>
    %403 = vector.extract_strided_slice %375 {offsets = [0, 110], sizes = [3, 288], strides = [1, 1]} : vector<3x512xf32> to vector<3x288xf32>
    %cst_434 = arith.constant 1.875000e-01 : f32
    %404 = vector.broadcast %cst_434 : f32 to vector<3x288xf32>
    %405 = arith.mulf %404, %403 : vector<3x288xf32>
    %406 = arith.addf %402, %405 : vector<3x288xf32>
    %407 = vector.extract_strided_slice %375 {offsets = [0, 111], sizes = [3, 288], strides = [1, 1]} : vector<3x512xf32> to vector<3x288xf32>
    %cst_435 = arith.constant 6.250000e-02 : f32
    %408 = vector.broadcast %cst_435 : f32 to vector<3x288xf32>
    %409 = arith.mulf %408, %407 : vector<3x288xf32>
    %410 = arith.addf %406, %409 : vector<3x288xf32>
    %411 = vector.extract_strided_slice %375 {offsets = [0, 128], sizes = [3, 288], strides = [1, 1]} : vector<3x512xf32> to vector<3x288xf32>
    %cst_436 = arith.constant 5.625000e-01 : f32
    %412 = vector.broadcast %cst_436 : f32 to vector<3x288xf32>
    %413 = arith.mulf %412, %411 : vector<3x288xf32>
    %414 = arith.addf %410, %413 : vector<3x288xf32>
    %415 = vector.extract_strided_slice %375 {offsets = [0, 129], sizes = [3, 288], strides = [1, 1]} : vector<3x512xf32> to vector<3x288xf32>
    %cst_437 = arith.constant 1.875000e-01 : f32
    %416 = vector.broadcast %cst_437 : f32 to vector<3x288xf32>
    %417 = arith.mulf %416, %415 : vector<3x288xf32>
    %418 = arith.addf %414, %417 : vector<3x288xf32>
    %419 = vector.extract_strided_slice %373 {offsets = [3, 0], sizes = [3, 288], strides = [1, 1]} : vector<12x288xf32> to vector<3x288xf32>
    %420 = arith.addf %419, %418 : vector<3x288xf32>
    %cst_438 = arith.constant 0.000000e+00 : f32
    %cst_439 = arith.constant 1.000000e+00 : f32
    %421 = vector.broadcast %cst_438 : f32 to vector<3x288xf32>
    %422 = arith.maximumf %421, %420 : vector<3x288xf32>
    %423 = vector.broadcast %cst_439 : f32 to vector<3x288xf32>
    %424 = arith.minimumf %423, %422 : vector<3x288xf32>
    %c0_440 = arith.constant 0 : index
    %c1_441 = arith.constant 1 : index
    %c0_442 = arith.constant 0 : index
    %c0_443 = arith.constant 0 : index
    %425 = vector.load %arg9[%c0_440, %c1_441, %c0_442, %c0_443] : memref<1x4x3x288xf32, #tpu.memory_space<vmem>>, vector<1x1x3x288xf32>
    %426 = vector.shape_cast %425 : vector<1x1x3x288xf32> to vector<3x288xf32>
    %427 = vector.shape_cast %424 : vector<3x288xf32> to vector<1x1x3x288xf32>
    tpu.vector_store %arg9[%c0_440, %c1_441, %c0_442, %c0_443], %427 {strides = array<i32>} : memref<1x4x3x288xf32, #tpu.memory_space<vmem>>, vector<1x1x3x288xf32>,
    %cst_444 = arith.constant 0.000000e+00 : f32
    %428 = vector.broadcast %cst_444 : f32 to vector<3x288xf32>
    %429 = vector.extract_strided_slice %375 {offsets = [0, 127], sizes = [3, 288], strides = [1, 1]} : vector<3x512xf32> to vector<3x288xf32>
    %cst_445 = arith.constant 1.875000e-01 : f32
    %430 = vector.broadcast %cst_445 : f32 to vector<3x288xf32>
    %431 = arith.mulf %430, %429 : vector<3x288xf32>
    %432 = arith.addf %428, %431 : vector<3x288xf32>
    %433 = vector.extract_strided_slice %375 {offsets = [0, 128], sizes = [3, 288], strides = [1, 1]} : vector<3x512xf32> to vector<3x288xf32>
    %cst_446 = arith.constant 5.625000e-01 : f32
    %434 = vector.broadcast %cst_446 : f32 to vector<3x288xf32>
    %435 = arith.mulf %434, %433 : vector<3x288xf32>
    %436 = arith.addf %432, %435 : vector<3x288xf32>
    %437 = vector.extract_strided_slice %375 {offsets = [0, 145], sizes = [3, 288], strides = [1, 1]} : vector<3x512xf32> to vector<3x288xf32>
    %cst_447 = arith.constant 6.250000e-02 : f32
    %438 = vector.broadcast %cst_447 : f32 to vector<3x288xf32>
    %439 = arith.mulf %438, %437 : vector<3x288xf32>
    %440 = arith.addf %436, %439 : vector<3x288xf32>
    %441 = vector.extract_strided_slice %375 {offsets = [0, 146], sizes = [3, 288], strides = [1, 1]} : vector<3x512xf32> to vector<3x288xf32>
    %cst_448 = arith.constant 1.875000e-01 : f32
    %442 = vector.broadcast %cst_448 : f32 to vector<3x288xf32>
    %443 = arith.mulf %442, %441 : vector<3x288xf32>
    %444 = arith.addf %440, %443 : vector<3x288xf32>
    %445 = vector.extract_strided_slice %373 {offsets = [6, 0], sizes = [3, 288], strides = [1, 1]} : vector<12x288xf32> to vector<3x288xf32>
    %446 = arith.addf %445, %444 : vector<3x288xf32>
    %cst_449 = arith.constant 0.000000e+00 : f32
    %cst_450 = arith.constant 1.000000e+00 : f32
    %447 = vector.broadcast %cst_449 : f32 to vector<3x288xf32>
    %448 = arith.maximumf %447, %446 : vector<3x288xf32>
    %449 = vector.broadcast %cst_450 : f32 to vector<3x288xf32>
    %450 = arith.minimumf %449, %448 : vector<3x288xf32>
    %c0_451 = arith.constant 0 : index
    %c2_452 = arith.constant 2 : index
    %c0_453 = arith.constant 0 : index
    %c0_454 = arith.constant 0 : index
    %451 = vector.load %arg9[%c0_451, %c2_452, %c0_453, %c0_454] : memref<1x4x3x288xf32, #tpu.memory_space<vmem>>, vector<1x1x3x288xf32>
    %452 = vector.shape_cast %451 : vector<1x1x3x288xf32> to vector<3x288xf32>
    %453 = vector.shape_cast %450 : vector<3x288xf32> to vector<1x1x3x288xf32>
    tpu.vector_store %arg9[%c0_451, %c2_452, %c0_453, %c0_454], %453 {strides = array<i32>} : memref<1x4x3x288xf32, #tpu.memory_space<vmem>>, vector<1x1x3x288xf32>,
    %cst_455 = arith.constant 0.000000e+00 : f32
    %454 = vector.broadcast %cst_455 : f32 to vector<3x288xf32>
    %455 = vector.extract_strided_slice %375 {offsets = [0, 128], sizes = [3, 288], strides = [1, 1]} : vector<3x512xf32> to vector<3x288xf32>
    %cst_456 = arith.constant 5.625000e-01 : f32
    %456 = vector.broadcast %cst_456 : f32 to vector<3x288xf32>
    %457 = arith.mulf %456, %455 : vector<3x288xf32>
    %458 = arith.addf %454, %457 : vector<3x288xf32>
    %459 = vector.extract_strided_slice %375 {offsets = [0, 129], sizes = [3, 288], strides = [1, 1]} : vector<3x512xf32> to vector<3x288xf32>
    %cst_457 = arith.constant 1.875000e-01 : f32
    %460 = vector.broadcast %cst_457 : f32 to vector<3x288xf32>
    %461 = arith.mulf %460, %459 : vector<3x288xf32>
    %462 = arith.addf %458, %461 : vector<3x288xf32>
    %463 = vector.extract_strided_slice %375 {offsets = [0, 146], sizes = [3, 288], strides = [1, 1]} : vector<3x512xf32> to vector<3x288xf32>
    %cst_458 = arith.constant 1.875000e-01 : f32
    %464 = vector.broadcast %cst_458 : f32 to vector<3x288xf32>
    %465 = arith.mulf %464, %463 : vector<3x288xf32>
    %466 = arith.addf %462, %465 : vector<3x288xf32>
    %467 = vector.extract_strided_slice %375 {offsets = [0, 147], sizes = [3, 288], strides = [1, 1]} : vector<3x512xf32> to vector<3x288xf32>
    %cst_459 = arith.constant 6.250000e-02 : f32
    %468 = vector.broadcast %cst_459 : f32 to vector<3x288xf32>
    %469 = arith.mulf %468, %467 : vector<3x288xf32>
    %470 = arith.addf %466, %469 : vector<3x288xf32>
    %471 = vector.extract_strided_slice %373 {offsets = [9, 0], sizes = [3, 288], strides = [1, 1]} : vector<12x288xf32> to vector<3x288xf32>
    %472 = arith.addf %471, %470 : vector<3x288xf32>
    %cst_460 = arith.constant 0.000000e+00 : f32
    %cst_461 = arith.constant 1.000000e+00 : f32
    %473 = vector.broadcast %cst_460 : f32 to vector<3x288xf32>
    %474 = arith.maximumf %473, %472 : vector<3x288xf32>
    %475 = vector.broadcast %cst_461 : f32 to vector<3x288xf32>
    %476 = arith.minimumf %475, %474 : vector<3x288xf32>
    %c0_462 = arith.constant 0 : index
    %c3_463 = arith.constant 3 : index
    %c0_464 = arith.constant 0 : index
    %c0_465 = arith.constant 0 : index
    %477 = vector.load %arg9[%c0_462, %c3_463, %c0_464, %c0_465] : memref<1x4x3x288xf32, #tpu.memory_space<vmem>>, vector<1x1x3x288xf32>
    %478 = vector.shape_cast %477 : vector<1x1x3x288xf32> to vector<3x288xf32>
    %479 = vector.shape_cast %476 : vector<3x288xf32> to vector<1x1x3x288xf32>
    tpu.vector_store %arg9[%c0_462, %c3_463, %c0_464, %c0_465], %479 {strides = array<i32>} : memref<1x4x3x288xf32, #tpu.memory_space<vmem>>, vector<1x1x3x288xf32>,
    return
  }
  func.func @transform_0(%arg0: i32) -> (i32, i32, i32) {
    %c0_i32 = arith.constant 0 : i32
    %c0_i32_0 = arith.constant 0 : i32
    %c0_i32_1 = arith.constant 0 : i32
    return %arg0, %c0_i32, %c0_i32_0 : i32, i32, i32
  }
  func.func @transform_1(%arg0: i32) -> (i32, i32, i32) {
    %c0_i32 = arith.constant 0 : i32
    %c0_i32_0 = arith.constant 0 : i32
    %c0_i32_1 = arith.constant 0 : i32
    return %arg0, %c0_i32, %c0_i32_0 : i32, i32, i32
  }
  func.func @transform_2(%arg0: i32) -> (i32, i32) {
    %c0_i32 = arith.constant 0 : i32
    %c0_i32_0 = arith.constant 0 : i32
    %c0_i32_1 = arith.constant 0 : i32
    return %c0_i32, %c0_i32_0 : i32, i32
  }
  func.func @transform_3(%arg0: i32) -> (i32, i32) {
    %c0_i32 = arith.constant 0 : i32
    %c0_i32_0 = arith.constant 0 : i32
    %c0_i32_1 = arith.constant 0 : i32
    return %c0_i32, %c0_i32_0 : i32, i32
  }
  func.func @transform_4(%arg0: i32) -> (i32, i32, i32) {
    %c0_i32 = arith.constant 0 : i32
    %c0_i32_0 = arith.constant 0 : i32
    %c0_i32_1 = arith.constant 0 : i32
    %c0_i32_2 = arith.constant 0 : i32
    return %c0_i32, %c0_i32_0, %c0_i32_1 : i32, i32, i32
  }
  func.func @transform_5(%arg0: i32) -> (i32, i32, i32) {
    %c0_i32 = arith.constant 0 : i32
    %c0_i32_0 = arith.constant 0 : i32
    %c0_i32_1 = arith.constant 0 : i32
    %c0_i32_2 = arith.constant 0 : i32
    return %c0_i32, %c0_i32_0, %c0_i32_1 : i32, i32, i32
  }
  func.func @transform_6(%arg0: i32) -> (i32, i32, i32) {
    %c0_i32 = arith.constant 0 : i32
    %c0_i32_0 = arith.constant 0 : i32
    %c0_i32_1 = arith.constant 0 : i32
    %c0_i32_2 = arith.constant 0 : i32
    return %c0_i32, %c0_i32_0, %c0_i32_1 : i32, i32, i32
  }
  func.func @transform_7(%arg0: i32) -> (i32, i32) {
    %c0_i32 = arith.constant 0 : i32
    %c0_i32_0 = arith.constant 0 : i32
    %c0_i32_1 = arith.constant 0 : i32
    return %c0_i32, %c0_i32_0 : i32, i32
  }
  func.func @transform_8(%arg0: i32) -> (i32, i32, i32, i32) {
    %c0_i32 = arith.constant 0 : i32
    %c0_i32_0 = arith.constant 0 : i32
    %c0_i32_1 = arith.constant 0 : i32
    %c0_i32_2 = arith.constant 0 : i32
    return %arg0, %c0_i32, %c0_i32_0, %c0_i32_1 : i32, i32, i32, i32
  }
}

</mosaic_0001>

<llo_original>
// kernel: anime4k_forward.1
$region0: #{anime4k_forward.1}
  #allocation0 [shape = 'u32[]', space=smem, size = 0x4, offset = 0x4, fixed_abs, tag = 'smem constant byte address 0x4 - core index']
  #allocation1 [shape = 'u32[72,128]{1,0:T(1,128)}', space=vmem, size = 0x9000, scoped, tag = 'internal scratch']
  #allocation2 [shape = 'bf16[24,512]{1,0:T(8,128)(2,1)}', space=vmem, size = 0x6000, scoped, tag = 'scratch operand']
  #allocation3 [shape = 'bf16[24,512]{1,0:T(8,128)(2,1)}', space=vmem, size = 0x6000, scoped, tag = 'scratch operand']
  #allocation4 [shape = 'bf16[216,288]{1,0:T(8,128)(2,1)}', space=vmem, size = 0x28800, scoped, tag = 'scratch operand']
  #allocation5 [shape = 'f32[12,288]{1,0:T(8,128)}', space=vmem, size = 0x6000, scoped, tag = 'scratch operand']
  %s0 = inlined_call_operand.vmem [shape: bf16[2,3,512], index: 0, kind: input, shape index: {}]
  %s1 = inlined_call_operand.vmem [shape: f32[2,3,512], index: 1, kind: input, shape index: {}]
  %s2 = inlined_call_operand.vmem [shape: bf16[12,27], index: 2, kind: input, shape index: {}]
  %s3 = inlined_call_operand.vmem [shape: f32[12,1], index: 3, kind: input, shape index: {}]
  %s4 = inlined_call_operand.vmem [shape: bf16[6,12,216], index: 4, kind: input, shape index: {}]
  %s5 = inlined_call_operand.vmem [shape: f32[6,12,1], index: 5, kind: input, shape index: {}]
  %s6 = inlined_call_operand.vmem [shape: bf16[5,12,24], index: 6, kind: input, shape index: {}]
  %s7 = inlined_call_operand.vmem [shape: f32[12,1], index: 7, kind: input, shape index: {}]
  %s8 = inlined_call_operand.vmem [shape: f32[2,4,3,288], index: 8, kind: output, shape index: {}]
  %s9 = sld [smem:[#allocation0]]
  $region65: #{anime4k_forward.1} parent=0
    _
  %s11 = ssub.s32 1, %s9
  %s12 = scalar_select 0, %s11, %s9
  loop: start=0, step=1, limit=4
  $region2: #{anime4k_forward.1} parent=0 // loop_pre_header
    _
  $region3: #{anime4k_forward.1} parent=0 // loop_header
    %s14 = sphi 0, %s18
    %p15 = scmp.ge.s32.totalorder %s14, 4
    %s24 = sphi 0, %s26
    %s27 = sphi 0, %s24
    %s28 = sphi 0, %s27
    %s44 = sphi 0, %s28
    %s50 = sphi 0, %s52
    %s53 = sphi 0, %s50
    %s54 = sphi 0, %s53
    %s70 = sphi 0, %s54
    %s74 = sphi 0, %s74
    %s76 = sphi 0, %s74
    %s77 = sphi 0, %s76
    %s91 = sphi 0, %s77
    %s95 = sphi 0, %s95
    %s97 = sphi 0, %s95
    %s98 = sphi 0, %s97
    %s112 = sphi 0, %s98
    %s116 = sphi 0, %s116
    %s118 = sphi 0, %s116
    %s119 = sphi 0, %s118
    %s133 = sphi 0, %s119
    %s137 = sphi 0, %s137
    %s139 = sphi 0, %s137
    %s140 = sphi 0, %s139
    %s154 = sphi 0, %s140
    %s158 = sphi 0, %s158
    %s160 = sphi 0, %s158
    %s161 = sphi 0, %s160
    %s175 = sphi 0, %s161
    %s179 = sphi 0, %s179
    %s181 = sphi 0, %s179
    %s182 = sphi 0, %s181
    %s196 = sphi 0, %s182
    %s202 = sphi 0, %s204
    %s205 = sphi 0, %s202
    %s206 = sphi 0, %s205
    %s222 = sphi 0, %s206
  $region4: #{anime4k_forward.1} parent=0 // loop_header_branch
    %17 = sbr.rel (%p15) target = $region8
  $region5: #{anime4k_forward.1} parent=0 // loop_body
    %s19 = ssub.s32 %s14, 1
    %s20 = ssub.s32 %s14, 2
    %s21 = sadd.s32 %s14, 1
    %s22 = ssub.s32 %s14, %s21
    %p23 = scmp.eq.s32.totalorder %s22, 0
    %s25 = sadd.s32 %s24, 1
    %s26 = scalar_select %p23, %s24, %s25
    %p29 = pneg %p23
    %p30 = scmp.eq.s32.totalorder %s14, 1
    %p31 = por %p29, %p30
    %p32 = scmp.ne.s32.totalorder %s24, %s27
    %p33 = scmp.eq.s32.totalorder %s14, 0
    %p34 = por %p32, %p33
    %p35 = scmp.ne.s32.totalorder %s24, %s27
    %p36 = scmp.eq.s32.totalorder %s19, 1
    %p37 = por %p35, %p36
    %p38 = scmp.ne.s32.totalorder %s27, %s28
    %p39 = scmp.eq.s32.totalorder %s19, 0
    %p40 = por %p38, %p39
    %p41 = scmp.ne.s32.totalorder %s27, %s28
    %p42 = scmp.eq.s32.totalorder %s20, 1
    %p43 = por %p41, %p42
    %p45 = scmp.ne.s32.totalorder %s28, %s44
    %p46 = scmp.eq.s32.totalorder %s20, 0
    %p47 = por %p45, %p46
    %s48 = ssub.s32 %s14, %s21
    %p49 = scmp.eq.s32.totalorder %s48, 0
    %s51 = sadd.s32 %s50, 1
    %s52 = scalar_select %p49, %s50, %s51
    %p55 = pneg %p49
    %p56 = scmp.eq.s32.totalorder %s14, 1
    %p57 = por %p55, %p56
    %p58 = scmp.ne.s32.totalorder %s50, %s53
    %p59 = scmp.eq.s32.totalorder %s14, 0
    %p60 = por %p58, %p59
    %p61 = scmp.ne.s32.totalorder %s50, %s53
    %p62 = scmp.eq.s32.totalorder %s19, 1
    %p63 = por %p61, %p62
    %p64 = scmp.ne.s32.totalorder %s53, %s54
    %p65 = scmp.eq.s32.totalorder %s19, 0
    %p66 = por %p64, %p65
    %p67 = scmp.ne.s32.totalorder %s53, %s54
    %p68 = scmp.eq.s32.totalorder %s20, 1
    %p69 = por %p67, %p68
    %p71 = scmp.ne.s32.totalorder %s54, %s70
    %p72 = scmp.eq.s32.totalorder %s20, 0
    %p73 = por %p71, %p72
    %s75 = sadd.s32 %s74, 1
    %p78 = scmp.eq.s32.totalorder %s14, 1
    %p79 = scmp.ne.s32.totalorder %s74, %s76
    %p80 = scmp.eq.s32.totalorder %s14, 0
    %p81 = por %p79, %p80
    %p82 = scmp.ne.s32.totalorder %s74, %s76
    %p83 = scmp.eq.s32.totalorder %s19, 1
    %p84 = por %p82, %p83
    %p85 = scmp.ne.s32.totalorder %s76, %s77
    %p86 = scmp.eq.s32.totalorder %s19, 0
    %p87 = por %p85, %p86
    %p88 = scmp.ne.s32.totalorder %s76, %s77
    %p89 = scmp.eq.s32.totalorder %s20, 1
    %p90 = por %p88, %p89
    %p92 = scmp.ne.s32.totalorder %s77, %s91
    %p93 = scmp.eq.s32.totalorder %s20, 0
    %p94 = por %p92, %p93
    %s96 = sadd.s32 %s95, 1
    %p99 = scmp.eq.s32.totalorder %s14, 1
    %p100 = scmp.ne.s32.totalorder %s95, %s97
    %p101 = scmp.eq.s32.totalorder %s14, 0
    %p102 = por %p100, %p101
    %p103 = scmp.ne.s32.totalorder %s95, %s97
    %p104 = scmp.eq.s32.totalorder %s19, 1
    %p105 = por %p103, %p104
    %p106 = scmp.ne.s32.totalorder %s97, %s98
    %p107 = scmp.eq.s32.totalorder %s19, 0
    %p108 = por %p106, %p107
    %p109 = scmp.ne.s32.totalorder %s97, %s98
    %p110 = scmp.eq.s32.totalorder %s20, 1
    %p111 = por %p109, %p110
    %p113 = scmp.ne.s32.totalorder %s98, %s112
    %p114 = scmp.eq.s32.totalorder %s20, 0
    %p115 = por %p113, %p114
    %s117 = sadd.s32 %s116, 1
    %p120 = scmp.eq.s32.totalorder %s14, 1
    %p121 = scmp.ne.s32.totalorder %s116, %s118
    %p122 = scmp.eq.s32.totalorder %s14, 0
    %p123 = por %p121, %p122
    %p124 = scmp.ne.s32.totalorder %s116, %s118
    %p125 = scmp.eq.s32.totalorder %s19, 1
    %p126 = por %p124, %p125
    %p127 = scmp.ne.s32.totalorder %s118, %s119
    %p128 = scmp.eq.s32.totalorder %s19, 0
    %p129 = por %p127, %p128
    %p130 = scmp.ne.s32.totalorder %s118, %s119
    %p131 = scmp.eq.s32.totalorder %s20, 1
    %p132 = por %p130, %p131
    %p134 = scmp.ne.s32.totalorder %s119, %s133
    %p135 = scmp.eq.s32.totalorder %s20, 0
    %p136 = por %p134, %p135
    %s138 = sadd.s32 %s137, 1
    %p141 = scmp.eq.s32.totalorder %s14, 1
    %p142 = scmp.ne.s32.totalorder %s137, %s139
    %p143 = scmp.eq.s32.totalorder %s14, 0
    %p144 = por %p142, %p143
    %p145 = scmp.ne.s32.totalorder %s137, %s139
    %p146 = scmp.eq.s32.totalorder %s19, 1
    %p147 = por %p145, %p146
    %p148 = scmp.ne.s32.totalorder %s139, %s140
    %p149 = scmp.eq.s32.totalorder %s19, 0
    %p150 = por %p148, %p149
    %p151 = scmp.ne.s32.totalorder %s139, %s140
    %p152 = scmp.eq.s32.totalorder %s20, 1
    %p153 = por %p151, %p152
    %p155 = scmp.ne.s32.totalorder %s140, %s154
    %p156 = scmp.eq.s32.totalorder %s20, 0
    %p157 = por %p155, %p156
    %s159 = sadd.s32 %s158, 1
    %p162 = scmp.eq.s32.totalorder %s14, 1
    %p163 = scmp.ne.s32.totalorder %s158, %s160
    %p164 = scmp.eq.s32.totalorder %s14, 0
    %p165 = por %p163, %p164
    %p166 = scmp.ne.s32.totalorder %s158, %s160
    %p167 = scmp.eq.s32.totalorder %s19, 1
    %p168 = por %p166, %p167
    %p169 = scmp.ne.s32.totalorder %s160, %s161
    %p170 = scmp.eq.s32.totalorder %s19, 0
    %p171 = por %p169, %p170
    %p172 = scmp.ne.s32.totalorder %s160, %s161
    %p173 = scmp.eq.s32.totalorder %s20, 1
    %p174 = por %p172, %p173
    %p176 = scmp.ne.s32.totalorder %s161, %s175
    %p177 = scmp.eq.s32.totalorder %s20, 0
    %p178 = por %p176, %p177
    %s180 = sadd.s32 %s179, 1
    %p183 = scmp.eq.s32.totalorder %s14, 1
    %p184 = scmp.ne.s32.totalorder %s179, %s181
    %p185 = scmp.eq.s32.totalorder %s14, 0
    %p186 = por %p184, %p185
    %p187 = scmp.ne.s32.totalorder %s179, %s181
    %p188 = scmp.eq.s32.totalorder %s19, 1
    %p189 = por %p187, %p188
    %p190 = scmp.ne.s32.totalorder %s181, %s182
    %p191 = scmp.eq.s32.totalorder %s19, 0
    %p192 = por %p190, %p191
    %p193 = scmp.ne.s32.totalorder %s181, %s182
    %p194 = scmp.eq.s32.totalorder %s20, 1
    %p195 = por %p193, %p194
    %p197 = scmp.ne.s32.totalorder %s182, %s196
    %p198 = scmp.eq.s32.totalorder %s20, 0
    %p199 = por %p197, %p198
    %s200 = ssub.s32 %s14, %s21
    %p201 = scmp.eq.s32.totalorder %s200, 0
    %s203 = sadd.s32 %s202, 1
    %s204 = scalar_select %p201, %s202, %s203
    %p207 = pneg %p201
    %p208 = scmp.eq.s32.totalorder %s14, 1
    %p209 = por %p207, %p208
    %p210 = scmp.ne.s32.totalorder %s202, %s205
    %p211 = scmp.eq.s32.totalorder %s14, 0
    %p212 = por %p210, %p211
    %p213 = scmp.ne.s32.totalorder %s202, %s205
    %p214 = scmp.eq.s32.totalorder %s19, 1
    %p215 = por %p213, %p214
    %p216 = scmp.ne.s32.totalorder %s205, %s206
    %p217 = scmp.eq.s32.totalorder %s19, 0
    %p218 = por %p216, %p217
    %p219 = scmp.ne.s32.totalorder %s205, %s206
    %p220 = scmp.eq.s32.totalorder %s20, 1
    %p221 = por %p219, %p220
    %p223 = scmp.ne.s32.totalorder %s206, %s222
    %p224 = scmp.eq.s32.totalorder %s20, 0
    %p225 = por %p223, %p224
    %p226 = scmp.le.s32.totalorder 1, %s14
    %p227 = scmp.lt.s32.totalorder %s14, 3
    %p228 = pnand %p226, %p227
    %p229 = pneg %p228
    // Predicated region
    $region9: #{anime4k_forward.1} parent=5 // pred_check
      _
    $region10: #{anime4k_forward.1} parent=5 // pred_check_branch
      %231 = sbr.rel (%p228) target = $region12
    $region11: #{anime4k_forward.1} parent=5 // pred_region
      %s232 = ssub.s32 %s14, 1
      // Predicated region
      $region13: #{anime4k_forward.1} parent=11 // pred_check
        %p233 = pneg %p87
      $region14: #{anime4k_forward.1} parent=11 // pred_check_branch
        %235 = sbr.rel (%p233) target = $region16
      $region15: #{anime4k_forward.1} parent=11 // pred_region
        _
      $region16: #{anime4k_forward.1} parent=11 // pred_fallthru
        _
      // Predicated region
      $region17: #{anime4k_forward.1} parent=11 // pred_check
        %p236 = pneg %p108
      $region18: #{anime4k_forward.1} parent=11 // pred_check_branch
        %238 = sbr.rel (%p236) target = $region20
      $region19: #{anime4k_forward.1} parent=11 // pred_region
        _
      $region20: #{anime4k_forward.1} parent=11 // pred_fallthru
        _
      // Predicated region
      $region21: #{anime4k_forward.1} parent=11 // pred_check
        %p239 = pneg %p129
      $region22: #{anime4k_forward.1} parent=11 // pred_check_branch
        %241 = sbr.rel (%p239) target = $region24
      $region23: #{anime4k_forward.1} parent=11 // pred_region
        _
      $region24: #{anime4k_forward.1} parent=11 // pred_fallthru
        _
      // Predicated region
      $region25: #{anime4k_forward.1} parent=11 // pred_check
        %p242 = pneg %p150
      $region26: #{anime4k_forward.1} parent=11 // pred_check_branch
        %244 = sbr.rel (%p242) target = $region28
      $region27: #{anime4k_forward.1} parent=11 // pred_region
        _
      $region28: #{anime4k_forward.1} parent=11 // pred_fallthru
        _
      // Predicated region
      $region29: #{anime4k_forward.1} parent=11 // pred_check
        %p245 = pneg %p171
      $region30: #{anime4k_forward.1} parent=11 // pred_check_branch
        %247 = sbr.rel (%p245) target = $region32
      $region31: #{anime4k_forward.1} parent=11 // pred_region
        _
      $region32: #{anime4k_forward.1} parent=11 // pred_fallthru
        _
      // Predicated region
      $region33: #{anime4k_forward.1} parent=11 // pred_check
        %p248 = pneg %p192
      $region34: #{anime4k_forward.1} parent=11 // pred_check_branch
        %250 = sbr.rel (%p248) target = $region36
      $region35: #{anime4k_forward.1} parent=11 // pred_region
        _
      $region36: #{anime4k_forward.1} parent=11 // pred_fallthru
        _
    $region12: #{anime4k_forward.1} parent=5 // pred_fallthru
      _
    %p251 = scmp.lt.s32.totalorder %s14, 2
    // Predicated region
    $region37: #{anime4k_forward.1} parent=5 // pred_check
      %p252 = pneg %p251
    $region38: #{anime4k_forward.1} parent=5 // pred_check_branch
      %254 = sbr.rel (%p252) target = $region40
    $region39: #{anime4k_forward.1} parent=5 // pred_region
      // Predicated region
      $region41: #{anime4k_forward.1} parent=39 // pred_check
        %p255 = pneg %p34
      $region42: #{anime4k_forward.1} parent=39 // pred_check_branch
        %257 = sbr.rel (%p255) target = $region44
      $region43: #{anime4k_forward.1} parent=39 // pred_region
        %p258 = scmp.lt.s32.totalorder %s14, 1
        %s259 = scalar_select %p258, %s14, 1
        %s260 = smul.addr %s259, 4
        %s261 = smul.addr %s260, 2
        %s262 = scalar_lea.vmem %s0, %s261
      $region44: #{anime4k_forward.1} parent=39 // pred_fallthru
        _
      // Predicated region
      $region45: #{anime4k_forward.1} parent=39 // pred_check
        %p263 = pneg %p60
      $region46: #{anime4k_forward.1} parent=39 // pred_check_branch
        %265 = sbr.rel (%p263) target = $region48
      $region47: #{anime4k_forward.1} parent=39 // pred_region
        %p266 = scmp.lt.s32.totalorder %s14, 1
        %s267 = scalar_select %p266, %s14, 1
        %s268 = smul.addr %s267, 4
        %s269 = smul.addr %s268, 4
        %s270 = scalar_lea.vmem %s1, %s269
      $region48: #{anime4k_forward.1} parent=39 // pred_fallthru
        _
    $region40: #{anime4k_forward.1} parent=5 // pred_fallthru
      _
    %p271 = scmp.le.s32.totalorder 1, %s14
    %p272 = scmp.lt.s32.totalorder %s14, 3
    %p273 = pnand %p271, %p272
    %p274 = pneg %p273
    // Predicated region
    $region49: #{anime4k_forward.1} parent=5 // pred_check
      _
    $region50: #{anime4k_forward.1} parent=5 // pred_check_branch
      %276 = sbr.rel (%p273) target = $region52
    $region51: #{anime4k_forward.1} parent=5 // pred_region
      %s277 = ssub.s32 %s14, 1
      %p278 = scmp.lt.s32.totalorder %s19, 1
      %s279 = scalar_select %p278, %s19, 1
      %s280 = smul.addr %s279, 4
      %s281 = smul.addr %s280, 2
      %s282 = scalar_lea.vmem %s0, %s281
      %p283 = pneg %p40
      %p284 = pneg %p37
      %p285 = scmp.lt.s32.totalorder %s19, 1
      %s286 = scalar_select %p285, %s19, 1
      %s287 = smul.addr %s286, 4
      %s288 = smul.addr %s287, 4
      %s289 = scalar_lea.vmem %s1, %s288
      %p290 = pneg %p66
      %p291 = pneg %p63
      %p292 = pneg %p87
      %p293 = pneg %p84
      %p294 = pneg %p108
      %p295 = pneg %p105
      %p296 = pneg %p129
      %p297 = pneg %p126
      %p298 = pneg %p150
      %p299 = pneg %p147
      %p300 = pneg %p171
      %p301 = pneg %p168
      %p302 = pneg %p192
      %p303 = pneg %p189
      %p304 = pneg %p218
      %p305 = pneg %p215
      %p306 = scmp.lt.s32.totalorder %s19, 1
      %s307 = scalar_select %p306, %s19, 1
      %s308 = smul.addr %s307, 12
      %s309 = smul.addr %s308, 4
      %s310 = scalar_lea.vmem %s8, %s309
      %p311 = scmp.lt.s32.totalorder %s19, 1
      %s312 = scalar_select %p311, %s19, 1
      %s313 = smul.addr %s312, 4
      %s314 = smul.addr %s313, 2
      %s315 = scalar_lea.vmem %s0, %s314
      %p316 = scmp.lt.s32.totalorder %s19, 1
      %s317 = scalar_select %p316, %s19, 1
      %s318 = smul.addr %s317, 4
      %s319 = smul.addr %s318, 4
      %s320 = scalar_lea.vmem %s1, %s319
      %p321 = scmp.lt.s32.totalorder %s19, 1
      %s322 = scalar_select %p321, %s19, 1
      %s323 = smul.addr %s322, 12
      %s324 = smul.addr %s323, 4
      %s325 = scalar_lea.vmem %s8, %s324
      %v327 = vlaneseq
      %v328 = vand.u32 %v327, 127
      %v329 = vadd.s32 %v328, 128
      %v330 = vadd.s32 %v328, 256
      %v331 = vadd.s32 %v328, 1
      %v332 = vadd.s32 %v329, 1
      %v333 = vadd.s32 %v330, 1
      %vm334 = vcmp.lt.s32.totalorder %v331, 0
      %v335 = vsub.s32 0, %v331
      %v336 = vsel %vm334, %v335, %v331
      %v337 = vand.u32 %v336, 65535
      %v338 = vshrl.u32 %v336, 16
      %v340 = vmul.u32 %v337, 14564
      %v341 = vmul.u32 %v337, 58254
      %v342 = vmul.u32 %v338, 14564
      %v343 = vmul.u32 %v338, 58254
      %v344 = vshll.u32 %v341, 16
      %v345 = vshrl.u32 %v341, 16
      %v346 = vshll.u32 %v342, 16
      %v347 = vshrl.u32 %v342, 16
      %vm348 = vc.u32 %v340, %v344
      %v349 = vsel %vm348, 1, 0
      %v350 = vadd.s32 %v340, %v344
      %v351 = vadd.s32 %v343, %v349
      %vm352 = vc.u32 %v350, %v346
      %v353 = vsel %vm352, 1, 0
      %v354 = vadd.s32 %v350, %v346
      %v355 = vadd.s32 %v351, %v353
      %v356 = vadd.s32 %v355, %v345
      %v357 = vadd.s32 %v356, %v347
      %v358 = vshrl.u32 %v357, 4
      %v359 = vmul.u32 %v358, 18
      %v360 = vsub.s32 %v336, %v359
      %v361 = vsub.s32 0, %v360
      %v362 = vsel %vm334, %v361, %v360
      %vm363 = vcmp.lt.s32.totalorder %v332, 0
      %v364 = vsub.s32 0, %v332
      %v365 = vsel %vm363, %v364, %v332
      %v366 = vand.u32 %v365, 65535
      %v367 = vshrl.u32 %v365, 16
      %v369 = vmul.u32 %v366, 14564
      %v370 = vmul.u32 %v366, 58254
      %v371 = vmul.u32 %v367, 14564
      %v372 = vmul.u32 %v367, 58254
      %v373 = vshll.u32 %v370, 16
      %v374 = vshrl.u32 %v370, 16
      %v375 = vshll.u32 %v371, 16
      %v376 = vshrl.u32 %v371, 16
      %vm377 = vc.u32 %v369, %v373
      %v378 = vsel %vm377, 1, 0
      %v379 = vadd.s32 %v369, %v373
      %v380 = vadd.s32 %v372, %v378
      %vm381 = vc.u32 %v379, %v375
      %v382 = vsel %vm381, 1, 0
      %v383 = vadd.s32 %v379, %v375
      %v384 = vadd.s32 %v380, %v382
      %v385 = vadd.s32 %v384, %v374
      %v386 = vadd.s32 %v385, %v376
      %v387 = vshrl.u32 %v386, 4
      %v388 = vmul.u32 %v387, 18
      %v389 = vsub.s32 %v365, %v388
      %v390 = vsub.s32 0, %v389
      %v391 = vsel %vm363, %v390, %v389
      %vm392 = vcmp.lt.s32.totalorder %v333, 0
      %v393 = vsub.s32 0, %v333
      %v394 = vsel %vm392, %v393, %v333
      %v395 = vand.u32 %v394, 65535
      %v396 = vshrl.u32 %v394, 16
      %v398 = vmul.u32 %v395, 14564
      %v399 = vmul.u32 %v395, 58254
      %v400 = vmul.u32 %v396, 14564
      %v401 = vmul.u32 %v396, 58254
      %v402 = vshll.u32 %v399, 16
      %v403 = vshrl.u32 %v399, 16
      %v404 = vshll.u32 %v400, 16
      %v405 = vshrl.u32 %v400, 16
      %vm406 = vc.u32 %v398, %v402
      %v407 = vsel %vm406, 1, 0
      %v408 = vadd.s32 %v398, %v402
      %v409 = vadd.s32 %v401, %v407
      %vm410 = vc.u32 %v408, %v404
      %v411 = vsel %vm410, 1, 0
      %v412 = vadd.s32 %v408, %v404
      %v413 = vadd.s32 %v409, %v411
      %v414 = vadd.s32 %v413, %v403
      %v415 = vadd.s32 %v414, %v405
      %v416 = vshrl.u32 %v415, 4
      %v417 = vmul.u32 %v416, 18
      %v418 = vsub.s32 %v394, %v417
      %v419 = vsub.s32 0, %v418
      %v420 = vsel %vm392, %v419, %v418
      %vm421 = vcmp.ne.s32.totalorder %v362, 0
      %vm422 = vcmp.ne.s32.totalorder %v391, 0
      %vm423 = vcmp.ne.s32.totalorder %v420, 0
      %vm424 = vcmp.lt.s32.totalorder %v362, 0
      %vm425 = vcmp.lt.s32.totalorder %v391, 0
      %vm426 = vcmp.lt.s32.totalorder %v420, 0
      %vm427 = vmand %vm424, %vm421
      %vm428 = vmand %vm425, %vm422
      %vm429 = vmand %vm426, %vm423
      %v430 = vadd.s32 %v362, 18
      %v431 = vadd.s32 %v391, 18
      %v432 = vadd.s32 %v420, 18
      %v433 = vsel %vm427, %v430, %v362
      %v434 = vsel %vm428, %v431, %v391
      %v435 = vsel %vm429, %v432, %v420
      %vm436 = vcmp.ge.s32.totalorder %v433, 1
      %vm437 = vcmp.ge.s32.totalorder %v434, 1
      %vm438 = vcmp.ge.s32.totalorder %v435, 1
      %vm439 = vcmp.le.s32.totalorder %v433, 16
      %vm440 = vcmp.le.s32.totalorder %v434, 16
      %vm441 = vcmp.le.s32.totalorder %v435, 16
      %vm442 = vmand %vm436, %vm439
      %vm443 = vmand %vm437, %vm440
      %vm444 = vmand %vm438, %vm441
      %v445 = vsel %vm442, 1, 0
      %v446 = vsel %vm443, 1, 0
      %v447 = vsel %vm444, 1, 0
      %v448 = vcvt.s32.f32 %v445
      %v449 = vcvt.s32.f32 %v446
      %v450 = vcvt.s32.f32 %v447
      %v451 = vpack.c.bf16 %v449, %v448
      %v452 = vpack.c.bf16 %v450, %v450
      %453 = vst [vmem:[#allocation2] sm:$0xff] 0
      %454 = vst [vmem:[#allocation2 + $0x8] sm:$0xff] 0
      %455 = vst [vmem:[#allocation2 + $0x10] sm:$0xff] 0
      %456 = vst [vmem:[#allocation2 + $0x18] sm:$0xff] 0
      %457 = vst [vmem:[#allocation2 + $0x20] sm:$0xff] 0
      %458 = vst [vmem:[#allocation2 + $0x28] sm:$0xff] 0
      %459 = vst [vmem:[#allocation3] sm:$0xff] 0
      %460 = vst [vmem:[#allocation3 + $0x8] sm:$0xff] 0
      %461 = vst [vmem:[#allocation3 + $0x10] sm:$0xff] 0
      %462 = vst [vmem:[#allocation3 + $0x18] sm:$0xff] 0
      %463 = vst [vmem:[#allocation3 + $0x20] sm:$0xff] 0
      %464 = vst [vmem:[#allocation3 + $0x28] sm:$0xff] 0
      %465 = vst [vmem:[#allocation5] sm:$0xff] 0.0
      %466 = vst [vmem:[#allocation5 + $0x8] sm:$0xff] 0.0
      %vm467 = vcmask 261120
      %468 = vst.msk [vmem:[#allocation5 + $0x10] sm:$0xff] %vm467, 0.0
      %469 = vst [vmem:[#allocation5 + $0x18] sm:$0xf] 0.0
      %470 = vst [vmem:[#allocation5 + $0x20] sm:$0xf] 0.0
      %vm471 = vcmask 257024
      %472 = vst.msk [vmem:[#allocation5 + $0x28] sm:$0xf] %vm471, 0.0
      %v473 = vld [vmem:[%s2] sm:$0xf]
      %v474 = vld [vmem:[%s2 + $0x4] sm:$0x3]
      %v475 = vld [vmem:[%s3] sm:$0xff]
      %v476 = vld [vmem:[%s3 + $0x8] sm:$0xf]
      %v477 = vld [vmem:[%s315] sm:$0xff]
      %479 = vst [vmem:[#allocation1] ss:$2 sm:$0xff] %v477
      %v480 = vld.sshfl [vmem:[#allocation1] sm:$0xff pattern:$0x75643120]
      %v482 = vld.sshfl [vmem:[#allocation1 + $0x8] sm:$0xff pattern:$0x75643120]
      %484 = vrot.lane.b32.xlu0 %v480, 19
      %v485 = vpop.permute.xlu0 %484
      %486 = vrot.lane.b32.xlu0 %v482, 19
      %v487 = vpop.permute.xlu0 %486
      %v488 = vrot.slane %v485, 4
      %v489 = vrot.slane %v487, 4
      %vm490 = vcmask 1043456
      %v491 = vsel %vm490, %v488, %v489
      %vm492 = vcmask 154624
      %v493 = vsel %vm492, %v485, %v491
      %v494 = vsel %vm492, %v487, %v489
      %vm497 = vcmask 1041408
      %vm498 = vsmask.f32 1280
      %vm499 = vmand %vm497, %vm498
      %vm500 = vcmask 1045508
      %vm501 = vsmask.f32 5376
      %vm502 = vmand %vm500, %vm501
      %vm503 = vmor %vm502, %vm499
      %v504 = vld [vmem:[#allocation4] sm:$0x33]
      %v505 = vsel %vm503, %v493, %v504
      %506 = vst [vmem:[#allocation4] sm:$0x33] %v505
      %vm507 = vcmask 254976
      %vm508 = vmand %vm507, %vm498
      %v509 = vld [vmem:[#allocation4 + $0x8] sm:$0x3]
      %v510 = vsel %vm508, %v494, %v509
      %511 = vst [vmem:[#allocation4 + $0x8] sm:$0x3] %v510
      %v512 = vld [vmem:[%s315] sm:$0xff]
      %514 = vst [vmem:[#allocation1] ss:$2 sm:$0xff] %v512
      %v515 = vld.sshfl [vmem:[#allocation1] sm:$0xff pattern:$0x75643120]
      %v516 = vld.sshfl [vmem:[#allocation1 + $0x8] sm:$0xff pattern:$0x75643120]
      %v517 = vshrl.u32 %v515, 16
      %v519 = vrot.slane %v517, 6
      %v520 = vshll.u32 %v515, 16
      %v522 = vrot.slane %v520, 7
      %v523 = vor.u32 %v519, %v522
      %v524 = vshrl.u32 %v516, 16
      %v526 = vrot.slane %v524, 6
      %v527 = vshll.u32 %v516, 16
      %v529 = vrot.slane %v527, 7
      %v530 = vor.u32 %v526, %v529
      %531 = vrot.lane.b32.xlu0 %v523, 18
      %v532 = vpop.permute.xlu0 %531
      %533 = vrot.lane.b32.xlu0 %v530, 18
      %v534 = vpop.permute.xlu0 %533
      %v535 = vrot.slane %v532, 4
      %v536 = vrot.slane %v534, 4
      %v537 = vsel %vm490, %v535, %v536
      %vm538 = vcmask 146432
      %v539 = vsel %vm538, %v532, %v537
      %v540 = vsel %vm538, %v534, %v536
      %vm543 = vcmask 1042433
      %vm544 = vsmask.f32 7942
      %vm545 = vmand %vm543, %vm544
      %vm546 = vcmask 1046533
      %vm547 = vsmask.f32 7958
      %vm548 = vmand %vm546, %vm547
      %vm549 = vmor %vm548, %vm545
      %v550 = vld [vmem:[#allocation4] sm:$0x66]
      %v551 = vsel %vm549, %v539, %v550
      %552 = vst [vmem:[#allocation4] sm:$0x66] %v551
      %vm553 = vcmask 256001
      %vm554 = vmand %vm553, %vm544
      %v555 = vld [vmem:[#allocation4 + $0x8] sm:$0x6]
      %v556 = vsel %vm554, %v540, %v555
      %557 = vst [vmem:[#allocation4 + $0x8] sm:$0x6] %v556
      %v558 = vld [vmem:[%s315] sm:$0xff]
      %560 = vst [vmem:[#allocation1] ss:$2 sm:$0xff] %v558
      %v561 = vld.sshfl [vmem:[#allocation1] sm:$0xff pattern:$0x75643120]
      %v563 = vld.sshfl [vmem:[#allocation1 + $0x8] sm:$0xff pattern:$0x75643120]
      %v565 = vrot.slane %v561, 5
      %v566 = vrot.slane %v563, 5
      %v567 = vrot.slane %v565, 4
      %v568 = vrot.slane %v566, 4
      %569 = vrot.lane.b32.xlu0 %v565, 17
      %v570 = vpop.permute.xlu0 %569
      %571 = vrot.lane.b32.xlu0 %v566, 17
      %v572 = vpop.permute.xlu0 %571
      %573 = vrot.lane.b32.xlu0 %v567, 17
      %v574 = vpop.permute.xlu0 %573
      %575 = vrot.lane.b32.xlu0 %v568, 17
      %v576 = vpop.permute.xlu0 %575
      %v577 = vrot.slane %v570, 4
      %v578 = vrot.slane %v572, 4
      %v579 = vrot.slane %v574, 4
      %v580 = vrot.slane %v576, 4
      %v581 = vsel %vm490, %v577, %v578
      %vm582 = vcmask 138240
      %v583 = vsel %vm582, %v570, %v581
      %v584 = vsel %vm582, %v572, %v578
      %v585 = vsel %vm490, %v579, %v580
      %v586 = vsel %vm582, %v574, %v585
      %v587 = vsel %vm582, %v576, %v580
      %592 = vst [vmem:[#allocation4] sm:$0x88] %v583
      %vm593 = vcmask 257027
      %594 = vst.msk [vmem:[#allocation4 + $0x8] sm:$0x8] %vm593, %v584
      %vm595 = vcmask 1040384
      %vm596 = vsmask.f32 256
      %vm597 = vmand %vm595, %vm596
      %vm598 = vcmask 1044484
      %vm599 = vsmask.f32 4352
      %vm600 = vmand %vm598, %vm599
      %vm601 = vmor %vm600, %vm597
      %v602 = vld [vmem:[#allocation4 + $0xc] sm:$0x11]
      %v603 = vsel %vm601, %v586, %v602
      %604 = vst [vmem:[#allocation4 + $0xc] sm:$0x11] %v603
      %vm605 = vcmask 253952
      %vm606 = vmand %vm605, %vm596
      %v607 = vld [vmem:[#allocation4 + $0x14] sm:$0x1]
      %v608 = vsel %vm606, %v587, %v607
      %609 = vst [vmem:[#allocation4 + $0x14] sm:$0x1] %v608
      %v610 = vld [vmem:[%s315] sm:$0xff]
      %612 = vst [vmem:[#allocation1] ss:$2 sm:$0xff] %v610
      %v613 = vld.sshfl [vmem:[#allocation1] sm:$0xff pattern:$0x75643120]
      %v614 = vld.sshfl [vmem:[#allocation1 + $0x8] sm:$0xff pattern:$0x75643120]
      %v615 = vshrl.u32 %v613, 16
      %v617 = vrot.slane %v615, 7
      %v618 = vshll.u32 %v613, 16
      %v620 = vor.u32 %v617, %v618
      %v621 = vshrl.u32 %v614, 16
      %v623 = vrot.slane %v621, 7
      %v624 = vshll.u32 %v614, 16
      %v626 = vor.u32 %v623, %v624
      %627 = vrot.lane.b32.xlu0 %v620, 1
      %v628 = vpop.permute.xlu0 %627
      %629 = vrot.lane.b32.xlu0 %v626, 1
      %v630 = vpop.permute.xlu0 %629
      %v631 = vrot.slane %v628, 4
      %v632 = vrot.slane %v630, 4
      %v633 = vsel %vm490, %v631, %v632
      %vm634 = vcmask 7168
      %v635 = vsel %vm634, %v628, %v633
      %v636 = vsel %vm634, %v630, %v632
      %vm639 = vsmask.f32 7938
      %vm640 = vmand %vm497, %vm639
      %vm641 = vsmask.f32 7954
      %vm642 = vmand %vm500, %vm641
      %vm643 = vmor %vm642, %vm640
      %v644 = vld [vmem:[#allocation4 + $0xc] sm:$0x33]
      %v645 = vsel %vm643, %v635, %v644
      %646 = vst [vmem:[#allocation4 + $0xc] sm:$0x33] %v645
      %vm647 = vmand %vm507, %vm639
      %v648 = vld [vmem:[#allocation4 + $0x14] sm:$0x3]
      %v649 = vsel %vm647, %v636, %v648
      %650 = vst [vmem:[#allocation4 + $0x14] sm:$0x3] %v649
      %v651 = vld [vmem:[%s315 + $0x2] sm:$0x3f]
      %s653 = scalar_lea.vmem [#allocation1], 1
      %654 = vst [vmem:[%s653] ss:$2 sm:$0xff] %v651
      %v655 = vld.sshfl [vmem:[#allocation1] sm:$0xff pattern:$0x75643120]
      %v656 = vld.sshfl [vmem:[#allocation1 + $0x8] sm:$0xff pattern:$0x75643120]
      %vm659 = vcmask 1043458
      %vm660 = vsmask.f32 3328
      %vm661 = vmand %vm659, %vm660
      %vm662 = vcmask 1047558
      %vm663 = vsmask.f32 7424
      %vm664 = vmand %vm662, %vm663
      %vm665 = vmor %vm664, %vm661
      %v666 = vld [vmem:[#allocation4 + $0xc] sm:$0xcc]
      %v667 = vsel %vm665, %v655, %v666
      %668 = vst [vmem:[#allocation4 + $0xc] sm:$0xcc] %v667
      %vm669 = vcmask 257026
      %vm670 = vmand %vm669, %vm660
      %v671 = vld [vmem:[#allocation4 + $0x14] sm:$0xc]
      %v672 = vsel %vm670, %v656, %v671
      %673 = vst [vmem:[#allocation4 + $0x14] sm:$0xc] %v672
      %v674 = vld [vmem:[%s315 + $0x2] sm:$0x3f]
      %676 = vst [vmem:[#allocation1] ss:$2 sm:$0xff] %v674
      %v677 = vld.sshfl [vmem:[#allocation1] sm:$0xff pattern:$0x75643120]
      %v678 = vld.sshfl [vmem:[#allocation1 + $0x8] sm:$0xff pattern:$0x75643120]
      %v679 = vshll.u32 %v677, 16
      %v681 = vrot.slane %v679, 5
      %v682 = vshll.u32 %v678, 16
      %v684 = vrot.slane %v682, 5
      %v685 = vshrl.u32 %v677, 16
      %v687 = vrot.slane %v685, 4
      %v688 = vor.u32 %v687, %v681
      %v689 = vrot.slane %v688, 4
      %v690 = vshrl.u32 %v678, 16
      %v692 = vrot.slane %v690, 4
      %v693 = vor.u32 %v692, %v684
      %v694 = vrot.slane %v693, 4
      %695 = vrot.lane.b32.xlu0 %v681, 127
      %v696 = vpop.permute.xlu0 %695
      %697 = vrot.lane.b32.xlu0 %v684, 127
      %v698 = vpop.permute.xlu0 %697
      %699 = vrot.lane.b32.xlu0 %v689, 127
      %v700 = vpop.permute.xlu0 %699
      %701 = vrot.lane.b32.xlu0 %v694, 127
      %v702 = vpop.permute.xlu0 %701
      %v703 = vrot.slane %v696, 4
      %v704 = vrot.slane %v698, 4
      %v705 = vrot.slane %v700, 4
      %v706 = vrot.slane %v702, 4
      %v707 = vsel %vm490, %v703, %v704
      %vm708 = vcmask 1039360
      %v709 = vsel %vm708, %v696, %v707
      %v710 = vsel %vm490, %v705, %v706
      %v711 = vsel %vm708, %v700, %v710
      %vm716 = vcmask 1043459
      %vm717 = vsmask.f32 7950
      %vm718 = vmand %vm716, %vm717
      %vm719 = vcmask 1047559
      %vm720 = vsmask.f32 7966
      %vm721 = vmand %vm719, %vm720
      %vm722 = vmor %vm721, %vm718
      %v723 = vld [vmem:[#allocation4 + $0xc] sm:$0x88]
      %v724 = vsel %vm722, %v709, %v723
      %725 = vst [vmem:[#allocation4 + $0xc] sm:$0x88] %v724
      %vm726 = vcmask 257027
      %vm727 = vmand %vm726, %vm717
      %v728 = vld [vmem:[#allocation4 + $0x14] sm:$0x8]
      %v729 = vsel %vm727, %v698, %v728
      %730 = vst [vmem:[#allocation4 + $0x14] sm:$0x8] %v729
      %731 = vst [vmem:[#allocation4 + $0x18] sm:$0x11] %v711
      %vm732 = vcmask 253952
      %733 = vst.msk [vmem:[#allocation4 + $0x20] sm:$0x1] %vm732, %v702
      %v734 = vld [vmem:[%s315 + $0x2] sm:$0x3f]
      %736 = vst [vmem:[#allocation1] ss:$2 sm:$0xff] %v734
      %v737 = vld.sshfl [vmem:[#allocation1] sm:$0xff pattern:$0x75643120]
      %v739 = vld.sshfl [vmem:[#allocation1 + $0x8] sm:$0xff pattern:$0x75643120]
      %v741 = vrot.slane %v737, 7
      %v742 = vrot.slane %v739, 7
      %743 = vrot.lane.b32.xlu0 %v741, 111
      %v744 = vpop.permute.xlu0 %743
      %745 = vrot.lane.b32.xlu0 %v742, 111
      %v746 = vpop.permute.xlu0 %745
      %v747 = vrot.slane %v744, 4
      %v748 = vrot.slane %v746, 4
      %v749 = vsel %vm490, %v747, %v748
      %vm750 = vcmask 908288
      %v751 = vsel %vm750, %v744, %v749
      %vm754 = vsmask.f32 2304
      %vm755 = vmand %vm543, %vm754
      %vm756 = vsmask.f32 6400
      %vm757 = vmand %vm546, %vm756
      %vm758 = vmor %vm757, %vm755
      %v759 = vld [vmem:[#allocation4 + $0x18] sm:$0x66]
      %v760 = vsel %vm758, %v751, %v759
      %761 = vst [vmem:[#allocation4 + $0x18] sm:$0x66] %v760
      %vm762 = vmand %vm553, %vm754
      %v763 = vld [vmem:[#allocation4 + $0x20] sm:$0x6]
      %v764 = vsel %vm762, %v746, %v763
      %765 = vst [vmem:[#allocation4 + $0x20] sm:$0x6] %v764
      %v766 = vld [vmem:[%s315 + $0x2] sm:$0x3f]
      %768 = vst [vmem:[#allocation1] ss:$2 sm:$0xff] %v766
      %v769 = vld.sshfl [vmem:[#allocation1] sm:$0xff pattern:$0x75643120]
      %v770 = vld.sshfl [vmem:[#allocation1 + $0x8] sm:$0xff pattern:$0x75643120]
      %v771 = vshrl.u32 %v769, 16
      %v773 = vrot.slane %v771, 5
      %v774 = vshll.u32 %v769, 16
      %v776 = vrot.slane %v774, 6
      %v777 = vor.u32 %v773, %v776
      %v778 = vshrl.u32 %v770, 16
      %v780 = vrot.slane %v778, 5
      %v781 = vshll.u32 %v770, 16
      %v783 = vrot.slane %v781, 6
      %v784 = vor.u32 %v780, %v783
      %785 = vrot.lane.b32.xlu0 %v777, 110
      %v786 = vpop.permute.xlu0 %785
      %787 = vrot.lane.b32.xlu0 %v784, 110
      %v788 = vpop.permute.xlu0 %787
      %v789 = vrot.slane %v786, 4
      %v790 = vrot.slane %v788, 4
      %v791 = vsel %vm490, %v789, %v790
      %vm792 = vcmask 900096
      %v793 = vsel %vm792, %v786, %v791
      %vm796 = vsmask.f32 7946
      %vm797 = vmand %vm659, %vm796
      %vm798 = vsmask.f32 7962
      %vm799 = vmand %vm662, %vm798
      %vm800 = vmor %vm799, %vm797
      %v801 = vld [vmem:[#allocation4 + $0x18] sm:$0xcc]
      %v802 = vsel %vm800, %v793, %v801
      %803 = vst [vmem:[#allocation4 + $0x18] sm:$0xcc] %v802
      %vm804 = vmand %vm669, %vm796
      %v805 = vld [vmem:[#allocation4 + $0x20] sm:$0xc]
      %v806 = vsel %vm804, %v788, %v805
      %807 = vst [vmem:[#allocation4 + $0x20] sm:$0xc] %v806
      %v808 = vld [vmem:[%s315 + $0x2] sm:$0x3f]
      %810 = vst [vmem:[#allocation1] ss:$2 sm:$0xff] %v808
      %v811 = vld.sshfl [vmem:[#allocation1] sm:$0xff pattern:$0x75643120]
      %v813 = vld.sshfl [vmem:[#allocation1 + $0x8] sm:$0xff pattern:$0x75643120]
      %815 = vrot.lane.b32.xlu0 %v811, 109
      %v816 = vpop.permute.xlu0 %815
      %817 = vrot.lane.b32.xlu0 %v813, 109
      %v818 = vpop.permute.xlu0 %817
      %v819 = vrot.slane %v816, 4
      %v820 = vrot.slane %v818, 4
      %v821 = vsel %vm490, %v819, %v820
      %vm822 = vcmask 891904
      %v823 = vsel %vm822, %v816, %v821
      %v826 = vld [vmem:[#allocation4 + $0x24] sm:$0x33]
      %v827 = vsel %vm503, %v823, %v826
      %828 = vst [vmem:[#allocation4 + $0x24] sm:$0x33] %v827
      %v829 = vld [vmem:[#allocation4 + $0x2c] sm:$0x3]
      %v830 = vsel %vm508, %v818, %v829
      %831 = vst [vmem:[#allocation4 + $0x2c] sm:$0x3] %v830
      %v832 = vld [vmem:[#allocation4] sm:$0xff]
      %v833 = vld [vmem:[#allocation4 + $0x8] sm:$0xf]
      %v834 = vld [vmem:[#allocation4 + $0xc] sm:$0xff]
      %v835 = vld [vmem:[#allocation4 + $0x14] sm:$0xf]
      %v836 = vld [vmem:[#allocation4 + $0x18] sm:$0xff]
      %v837 = vld [vmem:[#allocation4 + $0x20] sm:$0xf]
      %v838 = vld [vmem:[#allocation4 + $0x24] sm:$0x33]
      %v839 = vld [vmem:[#allocation4 + $0x2c] sm:$0x3]
      %841 = vset.pattern.permute.xlu0 0
      %842 = vperm.xlu0 %841, %v475
      %v843 = vpop.permute.xlu0 %842
      %846 = vset.pattern.permute.xlu0 0
      %847 = vperm.xlu0 %846, %v476
      %v848 = vpop.permute.xlu0 %847
      %v852 = vunpack.c.l.b16 %v473
      %v853 = vunpack.c.l.b16 %v474
      %v854 = vpack.c.b16 %v853, %v852
      %v863 = vunpack.c.l.b16 %v832
      %v864 = vunpack.c.h.b16 %v832
      %v865 = vunpack.c.l.b16 %v833
      %v866 = vunpack.c.l.b16 %v834
      %v867 = vunpack.c.h.b16 %v834
      %v868 = vunpack.c.l.b16 %v835
      %v869 = vunpack.c.l.b16 %v836
      %v870 = vunpack.c.h.b16 %v836
      %v871 = vunpack.c.l.b16 %v837
      %v872 = vunpack.c.l.b16 %v838
      %v873 = vunpack.c.h.b16 %v838
      %v874 = vunpack.c.l.b16 %v839
      %v875 = vpack.c.b16 %v866, %v863
      %v876 = vpack.c.b16 %v867, %v864
      %v877 = vpack.c.b16 %v868, %v865
      %v878 = vpack.c.b16 %v872, %v869
      %v879 = vpack.c.b16 %v873, %v870
      %v880 = vpack.c.b16 %v874, %v871
      %vm884 = vcmask 220160
      %v886 = vsel %vm884, %v854, 0
      %vm888 = vcmask 1044480
      %vm889 = vcmask 1045504
      %v890 = vsel %vm888, 4294967295, 65535
      %v891 = vsel %vm889, %v890, 0
      %v893 = vand.u32 %v878, %v891
      %v896 = vand.u32 %v879, %v891
      %v899 = vand.u32 %v880, %v891
      %901 = vmatpush.bf16.msra.mxu0 0
      %902 = vmatpush.bf16.msra.mxu0 0
      %903 = vmatpush.bf16.msra.mxu0 0
      %904 = vmatpush.bf16.msra.mxu0 0
      %905 = vmatpush.bf16.msra.mxu0 0
      %906 = vmatpush.bf16.msra.mxu0 0
      %907 = vmatpush.bf16.msra.mxu0 %v893
      %908 = vmatpush.bf16.msra.mxu0 %v875
      %909 = vmatmul.bf16.gmra.mxu0 %v886
      %v910 = vpop.f32.mrf.mxu0
      %v911 = vadd.f32 %v843, %v910
      %v912 = vpop.f32.mrf.mxu0
      %v913 = vadd.f32 %v848, %v912
      %914 = vdwg.mxu0
      %915 = vmatpush.bf16.msra.mxu0 0
      %916 = vmatpush.bf16.msra.mxu0 0
      %917 = vmatpush.bf16.msra.mxu0 0
      %918 = vmatpush.bf16.msra.mxu0 0
      %919 = vmatpush.bf16.msra.mxu0 0
      %920 = vmatpush.bf16.msra.mxu0 0
      %921 = vmatpush.bf16.msra.mxu0 %v896
      %922 = vmatpush.bf16.msra.mxu0 %v876
      %923 = vmatmul.bf16.gmra.mxu0 %v886
      %v924 = vpop.f32.mrf.mxu0
      %v925 = vadd.f32 %v843, %v924
      %v926 = vpop.f32.mrf.mxu0
      %v927 = vadd.f32 %v848, %v926
      %928 = vdwg.mxu0
      %929 = vmatpush.bf16.msra.mxu0 0
      %930 = vmatpush.bf16.msra.mxu0 0
      %931 = vmatpush.bf16.msra.mxu0 0
      %932 = vmatpush.bf16.msra.mxu0 0
      %933 = vmatpush.bf16.msra.mxu0 0
      %934 = vmatpush.bf16.msra.mxu0 0
      %935 = vmatpush.bf16.msra.mxu0 %v899
      %936 = vmatpush.bf16.msra.mxu0 %v877
      %937 = vmatmul.bf16.gmra.mxu0 %v886
      %v938 = vpop.f32.mrf.mxu0
      %v939 = vadd.f32 %v843, %v938
      %v940 = vpop.f32.mrf.mxu0
      %v941 = vadd.f32 %v848, %v940
      %942 = vdwg.mxu0
      %v943 = vmax.f32 %v911, 0.0
      %v944 = vmax.f32 %v925, 0.0
      %v945 = vmax.f32 %v939, 0.0
      %v946 = vmax.f32 %v913, 0.0
      %v947 = vmax.f32 %v927, 0.0
      %v948 = vmax.f32 %v941, 0.0
      %v949 = vpack.c.bf16 %v944, %v943
      %v950 = vpack.c.bf16 %v945, %v945
      %v951 = vpack.c.bf16 %v947, %v946
      %v952 = vpack.c.bf16 %v948, %v948
      %v953 = vunpack.c.l.bf16 %v949
      %v954 = vunpack.c.h.bf16 %v949
      %v955 = vunpack.c.l.bf16 %v950
      %v956 = vunpack.c.l.bf16 %v951
      %v957 = vunpack.c.h.bf16 %v951
      %v958 = vunpack.c.l.bf16 %v952
      %v959 = vunpack.c.l.bf16 %v451
      %v960 = vunpack.c.h.bf16 %v451
      %v961 = vunpack.c.l.bf16 %v452
      %v962 = vmul.f32 %v953, %v959
      %v963 = vmul.f32 %v954, %v960
      %v964 = vmul.f32 %v955, %v961
      %v965 = vmul.f32 %v956, %v959
      %v966 = vmul.f32 %v957, %v960
      %v967 = vmul.f32 %v958, %v961
      %v968 = vpack.c.bf16 %v963, %v962
      %v969 = vpack.c.bf16 %v964, %v964
      %v970 = vpack.c.bf16 %v966, %v965
      %v971 = vpack.c.bf16 %v967, %v967
      %v972 = vsub.f32 0.0, %v911
      %v973 = vsub.f32 0.0, %v925
      %v974 = vsub.f32 0.0, %v939
      %v975 = vsub.f32 0.0, %v913
      %v976 = vsub.f32 0.0, %v927
      %v977 = vsub.f32 0.0, %v941
      %v978 = vmax.f32 %v972, 0.0
      %v979 = vmax.f32 %v973, 0.0
      %v980 = vmax.f32 %v974, 0.0
      %v981 = vmax.f32 %v975, 0.0
      %v982 = vmax.f32 %v976, 0.0
      %v983 = vmax.f32 %v977, 0.0
      %v984 = vpack.c.bf16 %v979, %v978
      %v985 = vpack.c.bf16 %v980, %v980
      %v986 = vpack.c.bf16 %v982, %v981
      %v987 = vpack.c.bf16 %v983, %v983
      %v988 = vunpack.c.l.bf16 %v984
      %v989 = vunpack.c.h.bf16 %v984
      %v990 = vunpack.c.l.bf16 %v985
      %v991 = vunpack.c.l.bf16 %v986
      %v992 = vunpack.c.h.bf16 %v986
      %v993 = vunpack.c.l.bf16 %v987
      %v994 = vmul.f32 %v988, %v959
      %v995 = vmul.f32 %v989, %v960
      %v996 = vmul.f32 %v990, %v961
      %v997 = vmul.f32 %v991, %v959
      %v998 = vmul.f32 %v992, %v960
      %v999 = vmul.f32 %v993, %v961
      %v1000 = vpack.c.bf16 %v995, %v994
      %v1001 = vpack.c.bf16 %v996, %v996
      %v1002 = vpack.c.bf16 %v998, %v997
      %v1003 = vpack.c.bf16 %v999, %v999
      %1004 = vst [vmem:[#allocation2 + $0x4] sm:$0xff] %v968
      %1005 = vst.msk [vmem:[#allocation2 + $0xc] sm:$0xf] %vm471, %v969
      %1006 = vst [vmem:[#allocation2 + $0x14] sm:$0x33] %v970
      %vm1007 = vcmask 254976
      %1008 = vst.msk [vmem:[#allocation2 + $0x1c] sm:$0x3] %vm1007, %v971
      %vm1013 = vmor %vm497, %vm500
      %v1014 = vrot.slane %v1000, 6
      %v1015 = vrot.slane %v1001, 6
      %v1016 = vrot.slane %v1014, 4
      %v1017 = vrot.slane %v1002, 6
      %v1018 = vsel %vm1013, %v1016, %v1017
      %v1019 = vrot.slane %v1015, 4
      %v1020 = vrot.slane %v1003, 6
      %v1021 = vsel %vm1013, %v1019, %v1020
      %1026 = vst [vmem:[#allocation2 + $0x14] sm:$0xcc] %v1014
      %vm1027 = vcmask 257026
      %1028 = vst.msk [vmem:[#allocation2 + $0x1c] sm:$0xc] %vm1027, %v1015
      %1029 = vst [vmem:[#allocation2 + $0x24] sm:$0xff] %v1018
      %1030 = vst.msk [vmem:[#allocation2 + $0x2c] sm:$0xf] %vm471, %v1021
      %v1031 = vld [vmem:[%s4] sm:$0xff]
      %v1032 = vld [vmem:[%s4 + $0x8] sm:$0x33]
      %v1033 = vld [vmem:[%s5] sm:$0xff]
      %v1034 = vld [vmem:[%s5 + $0x8] sm:$0xf]
      %v1035 = vld [vmem:[#allocation2] sm:$0xff]
      %v1036 = vld [vmem:[#allocation2 + $0x8] sm:$0xff]
      %v1037 = vld [vmem:[#allocation2 + $0x10] sm:$0xff]
      %v1038 = vld [vmem:[#allocation2 + $0x18] sm:$0xff]
      %v1039 = vld [vmem:[#allocation2 + $0x20] sm:$0xff]
      %v1040 = vld [vmem:[#allocation2 + $0x28] sm:$0xff]
      %1047 = vrot.lane.b32.xlu0 %v1035, 19
      %v1048 = vpop.permute.xlu0 %1047
      %1049 = vrot.lane.b32.xlu0 %v1036, 19
      %v1050 = vpop.permute.xlu0 %1049
      %1051 = vrot.lane.b32.xlu0 %v1037, 19
      %v1052 = vpop.permute.xlu0 %1051
      %1053 = vrot.lane.b32.xlu0 %v1038, 19
      %v1054 = vpop.permute.xlu0 %1053
      %1055 = vrot.lane.b32.xlu0 %v1039, 19
      %v1056 = vpop.permute.xlu0 %1055
      %1057 = vrot.lane.b32.xlu0 %v1040, 19
      %v1058 = vpop.permute.xlu0 %1057
      %v1059 = vrot.slane %v1048, 4
      %v1060 = vrot.slane %v1050, 4
      %v1061 = vrot.slane %v1052, 4
      %v1062 = vrot.slane %v1054, 4
      %v1063 = vrot.slane %v1056, 4
      %v1064 = vrot.slane %v1058, 4
      %v1065 = vsel %vm490, %v1059, %v1060
      %v1066 = vsel %vm492, %v1048, %v1065
      %v1067 = vsel %vm492, %v1050, %v1060
      %v1068 = vsel %vm490, %v1061, %v1062
      %v1069 = vsel %vm492, %v1052, %v1068
      %v1070 = vsel %vm492, %v1054, %v1062
      %v1071 = vsel %vm490, %v1063, %v1064
      %v1072 = vsel %vm492, %v1056, %v1071
      %v1073 = vsel %vm492, %v1058, %v1064
      %1080 = vst [vmem:[#allocation4] sm:$0xff] %v1066
      %1081 = vst.msk [vmem:[#allocation4 + $0x8] sm:$0xf] %vm471, %v1067
      %1082 = vst [vmem:[#allocation4 + $0xc] sm:$0xff] %v1069
      %1083 = vst.msk [vmem:[#allocation4 + $0x14] sm:$0xf] %vm471, %v1070
      %1084 = vst [vmem:[#allocation4 + $0x18] sm:$0xff] %v1072
      %1085 = vst.msk [vmem:[#allocation4 + $0x20] sm:$0xf] %vm471, %v1073
      %v1086 = vld [vmem:[#allocation2] sm:$0xff]
      %v1087 = vld [vmem:[#allocation2 + $0x8] sm:$0xff]
      %v1088 = vld [vmem:[#allocation2 + $0x10] sm:$0xff]
      %v1089 = vld [vmem:[#allocation2 + $0x18] sm:$0xff]
      %v1090 = vld [vmem:[#allocation2 + $0x20] sm:$0xff]
      %v1091 = vld [vmem:[#allocation2 + $0x28] sm:$0xff]
      %1098 = vrot.lane.b32.xlu0 %v1086, 18
      %v1099 = vpop.permute.xlu0 %1098
      %1100 = vrot.lane.b32.xlu0 %v1087, 18
      %v1101 = vpop.permute.xlu0 %1100
      %1102 = vrot.lane.b32.xlu0 %v1088, 18
      %v1103 = vpop.permute.xlu0 %1102
      %1104 = vrot.lane.b32.xlu0 %v1089, 18
      %v1105 = vpop.permute.xlu0 %1104
      %1106 = vrot.lane.b32.xlu0 %v1090, 18
      %v1107 = vpop.permute.xlu0 %1106
      %1108 = vrot.lane.b32.xlu0 %v1091, 18
      %v1109 = vpop.permute.xlu0 %1108
      %v1110 = vrot.slane %v1099, 4
      %v1111 = vrot.slane %v1101, 4
      %v1112 = vrot.slane %v1103, 4
      %v1113 = vrot.slane %v1105, 4
      %v1114 = vrot.slane %v1107, 4
      %v1115 = vrot.slane %v1109, 4
      %v1116 = vsel %vm490, %v1110, %v1111
      %v1117 = vsel %vm538, %v1099, %v1116
      %v1118 = vsel %vm538, %v1101, %v1111
      %v1119 = vsel %vm490, %v1112, %v1113
      %v1120 = vsel %vm538, %v1103, %v1119
      %v1121 = vsel %vm538, %v1105, %v1113
      %v1122 = vsel %vm490, %v1114, %v1115
      %v1123 = vsel %vm538, %v1107, %v1122
      %v1124 = vsel %vm538, %v1109, %v1115
      %1131 = vst [vmem:[#allocation4 + $0x24] sm:$0xff] %v1117
      %1132 = vst.msk [vmem:[#allocation4 + $0x2c] sm:$0xf] %vm471, %v1118
      %1133 = vst [vmem:[#allocation4 + $0x30] sm:$0xff] %v1120
      %1134 = vst.msk [vmem:[#allocation4 + $0x38] sm:$0xf] %vm471, %v1121
      %1135 = vst [vmem:[#allocation4 + $0x3c] sm:$0xff] %v1123
      %1136 = vst.msk [vmem:[#allocation4 + $0x44] sm:$0xf] %vm471, %v1124
      %v1137 = vld [vmem:[#allocation2] sm:$0xff]
      %v1138 = vld [vmem:[#allocation2 + $0x8] sm:$0xff]
      %v1139 = vld [vmem:[#allocation2 + $0x10] sm:$0xff]
      %v1140 = vld [vmem:[#allocation2 + $0x18] sm:$0xff]
      %v1141 = vld [vmem:[#allocation2 + $0x20] sm:$0xff]
      %v1142 = vld [vmem:[#allocation2 + $0x28] sm:$0xff]
      %1149 = vrot.lane.b32.xlu0 %v1137, 17
      %v1150 = vpop.permute.xlu0 %1149
      %1151 = vrot.lane.b32.xlu0 %v1138, 17
      %v1152 = vpop.permute.xlu0 %1151
      %1153 = vrot.lane.b32.xlu0 %v1139, 17
      %v1154 = vpop.permute.xlu0 %1153
      %1155 = vrot.lane.b32.xlu0 %v1140, 17
      %v1156 = vpop.permute.xlu0 %1155
      %1157 = vrot.lane.b32.xlu0 %v1141, 17
      %v1158 = vpop.permute.xlu0 %1157
      %1159 = vrot.lane.b32.xlu0 %v1142, 17
      %v1160 = vpop.permute.xlu0 %1159
      %v1161 = vrot.slane %v1150, 4
      %v1162 = vrot.slane %v1152, 4
      %v1163 = vrot.slane %v1154, 4
      %v1164 = vrot.slane %v1156, 4
      %v1165 = vrot.slane %v1158, 4
      %v1166 = vrot.slane %v1160, 4
      %v1167 = vsel %vm490, %v1161, %v1162
      %v1168 = vsel %vm582, %v1150, %v1167
      %v1169 = vsel %vm582, %v1152, %v1162
      %v1170 = vsel %vm490, %v1163, %v1164
      %v1171 = vsel %vm582, %v1154, %v1170
      %v1172 = vsel %vm582, %v1156, %v1164
      %v1173 = vsel %vm490, %v1165, %v1166
      %v1174 = vsel %vm582, %v1158, %v1173
      %v1175 = vsel %vm582, %v1160, %v1166
      %1182 = vst [vmem:[#allocation4 + $0x48] sm:$0xff] %v1168
      %1183 = vst.msk [vmem:[#allocation4 + $0x50] sm:$0xf] %vm471, %v1169
      %1184 = vst [vmem:[#allocation4 + $0x54] sm:$0xff] %v1171
      %1185 = vst.msk [vmem:[#allocation4 + $0x5c] sm:$0xf] %vm471, %v1172
      %1186 = vst [vmem:[#allocation4 + $0x60] sm:$0xff] %v1174
      %1187 = vst.msk [vmem:[#allocation4 + $0x68] sm:$0xf] %vm471, %v1175
      %v1188 = vld [vmem:[#allocation2] sm:$0xff]
      %v1189 = vld [vmem:[#allocation2 + $0x8] sm:$0xff]
      %v1190 = vld [vmem:[#allocation2 + $0x10] sm:$0xff]
      %v1191 = vld [vmem:[#allocation2 + $0x18] sm:$0xff]
      %v1192 = vld [vmem:[#allocation2 + $0x20] sm:$0xff]
      %v1193 = vld [vmem:[#allocation2 + $0x28] sm:$0xff]
      %1200 = vrot.lane.b32.xlu0 %v1188, 1
      %v1201 = vpop.permute.xlu0 %1200
      %1202 = vrot.lane.b32.xlu0 %v1189, 1
      %v1203 = vpop.permute.xlu0 %1202
      %1204 = vrot.lane.b32.xlu0 %v1190, 1
      %v1205 = vpop.permute.xlu0 %1204
      %1206 = vrot.lane.b32.xlu0 %v1191, 1
      %v1207 = vpop.permute.xlu0 %1206
      %1208 = vrot.lane.b32.xlu0 %v1192, 1
      %v1209 = vpop.permute.xlu0 %1208
      %1210 = vrot.lane.b32.xlu0 %v1193, 1
      %v1211 = vpop.permute.xlu0 %1210
      %v1212 = vrot.slane %v1201, 4
      %v1213 = vrot.slane %v1203, 4
      %v1214 = vrot.slane %v1205, 4
      %v1215 = vrot.slane %v1207, 4
      %v1216 = vrot.slane %v1209, 4
      %v1217 = vrot.slane %v1211, 4
      %v1218 = vsel %vm490, %v1212, %v1213
      %v1219 = vsel %vm634, %v1201, %v1218
      %v1220 = vsel %vm634, %v1203, %v1213
      %v1221 = vsel %vm490, %v1214, %v1215
      %v1222 = vsel %vm634, %v1205, %v1221
      %v1223 = vsel %vm634, %v1207, %v1215
      %v1224 = vsel %vm490, %v1216, %v1217
      %v1225 = vsel %vm634, %v1209, %v1224
      %v1226 = vsel %vm634, %v1211, %v1217
      %1233 = vst [vmem:[#allocation4 + $0x6c] sm:$0xff] %v1219
      %1234 = vst.msk [vmem:[#allocation4 + $0x74] sm:$0xf] %vm471, %v1220
      %1235 = vst [vmem:[#allocation4 + $0x78] sm:$0xff] %v1222
      %1236 = vst.msk [vmem:[#allocation4 + $0x80] sm:$0xf] %vm471, %v1223
      %1237 = vst [vmem:[#allocation4 + $0x84] sm:$0xff] %v1225
      %1238 = vst.msk [vmem:[#allocation4 + $0x8c] sm:$0xf] %vm471, %v1226
      %v1239 = vld [vmem:[#allocation2 + $0x4] sm:$0xff]
      %v1240 = vld [vmem:[#allocation2 + $0xc] sm:$0xf]
      %v1241 = vld [vmem:[#allocation2 + $0x14] sm:$0xff]
      %v1242 = vld [vmem:[#allocation2 + $0x1c] sm:$0xf]
      %v1243 = vld [vmem:[#allocation2 + $0x24] sm:$0xff]
      %v1244 = vld [vmem:[#allocation2 + $0x2c] sm:$0xf]
      %1245 = vst [vmem:[#allocation4 + $0x90] sm:$0xff] %v1239
      %1246 = vst.msk [vmem:[#allocation4 + $0x98] sm:$0xf] %vm471, %v1240
      %1247 = vst [vmem:[#allocation4 + $0x9c] sm:$0xff] %v1241
      %1248 = vst.msk [vmem:[#allocation4 + $0xa4] sm:$0xf] %vm471, %v1242
      %1249 = vst [vmem:[#allocation4 + $0xa8] sm:$0xff] %v1243
      %1250 = vst.msk [vmem:[#allocation4 + $0xb0] sm:$0xf] %vm471, %v1244
      %v1251 = vld [vmem:[#allocation2 + $0x4] sm:$0xff]
      %v1252 = vld [vmem:[#allocation2 + $0xc] sm:$0xf]
      %v1253 = vld [vmem:[#allocation2 + $0x14] sm:$0xff]
      %v1254 = vld [vmem:[#allocation2 + $0x1c] sm:$0xf]
      %v1255 = vld [vmem:[#allocation2 + $0x24] sm:$0xff]
      %v1256 = vld [vmem:[#allocation2 + $0x2c] sm:$0xf]
      %1263 = vrot.lane.b32.xlu0 %v1251, 127
      %v1264 = vpop.permute.xlu0 %1263
      %1265 = vrot.lane.b32.xlu0 %v1252, 127
      %v1266 = vpop.permute.xlu0 %1265
      %1267 = vrot.lane.b32.xlu0 %v1253, 127
      %v1268 = vpop.permute.xlu0 %1267
      %1269 = vrot.lane.b32.xlu0 %v1254, 127
      %v1270 = vpop.permute.xlu0 %1269
      %1271 = vrot.lane.b32.xlu0 %v1255, 127
      %v1272 = vpop.permute.xlu0 %1271
      %1273 = vrot.lane.b32.xlu0 %v1256, 127
      %v1274 = vpop.permute.xlu0 %1273
      %v1275 = vrot.slane %v1264, 4
      %v1276 = vrot.slane %v1266, 4
      %v1277 = vrot.slane %v1268, 4
      %v1278 = vrot.slane %v1270, 4
      %v1279 = vrot.slane %v1272, 4
      %v1280 = vrot.slane %v1274, 4
      %v1281 = vsel %vm490, %v1275, %v1276
      %v1282 = vsel %vm708, %v1264, %v1281
      %v1283 = vsel %vm490, %v1277, %v1278
      %v1284 = vsel %vm708, %v1268, %v1283
      %v1285 = vsel %vm490, %v1279, %v1280
      %v1286 = vsel %vm708, %v1272, %v1285
      %1293 = vst [vmem:[#allocation4 + $0xb4] sm:$0xff] %v1282
      %1294 = vst.msk [vmem:[#allocation4 + $0xbc] sm:$0xf] %vm471, %v1266
      %1295 = vst [vmem:[#allocation4 + $0xc0] sm:$0xff] %v1284
      %1296 = vst.msk [vmem:[#allocation4 + $0xc8] sm:$0xf] %vm471, %v1270
      %1297 = vst [vmem:[#allocation4 + $0xcc] sm:$0xff] %v1286
      %1298 = vst.msk [vmem:[#allocation4 + $0xd4] sm:$0xf] %vm471, %v1274
      %v1299 = vld [vmem:[#allocation2 + $0x4] sm:$0xff]
      %v1300 = vld [vmem:[#allocation2 + $0xc] sm:$0xf]
      %v1301 = vld [vmem:[#allocation2 + $0x14] sm:$0xff]
      %v1302 = vld [vmem:[#allocation2 + $0x1c] sm:$0xf]
      %v1303 = vld [vmem:[#allocation2 + $0x24] sm:$0xff]
      %v1304 = vld [vmem:[#allocation2 + $0x2c] sm:$0xf]
      %1311 = vrot.lane.b32.xlu0 %v1299, 111
      %v1312 = vpop.permute.xlu0 %1311
      %1313 = vrot.lane.b32.xlu0 %v1300, 111
      %v1314 = vpop.permute.xlu0 %1313
      %1315 = vrot.lane.b32.xlu0 %v1301, 111
      %v1316 = vpop.permute.xlu0 %1315
      %1317 = vrot.lane.b32.xlu0 %v1302, 111
      %v1318 = vpop.permute.xlu0 %1317
      %1319 = vrot.lane.b32.xlu0 %v1303, 111
      %v1320 = vpop.permute.xlu0 %1319
      %1321 = vrot.lane.b32.xlu0 %v1304, 111
      %v1322 = vpop.permute.xlu0 %1321
      %v1323 = vrot.slane %v1312, 4
      %v1324 = vrot.slane %v1314, 4
      %v1325 = vrot.slane %v1316, 4
      %v1326 = vrot.slane %v1318, 4
      %v1327 = vrot.slane %v1320, 4
      %v1328 = vrot.slane %v1322, 4
      %v1329 = vsel %vm490, %v1323, %v1324
      %v1330 = vsel %vm750, %v1312, %v1329
      %v1331 = vsel %vm490, %v1325, %v1326
      %v1332 = vsel %vm750, %v1316, %v1331
      %v1333 = vsel %vm490, %v1327, %v1328
      %v1334 = vsel %vm750, %v1320, %v1333
      %1341 = vst [vmem:[#allocation4 + $0xd8] sm:$0xff] %v1330
      %1342 = vst.msk [vmem:[#allocation4 + $0xe0] sm:$0xf] %vm471, %v1314
      %1343 = vst [vmem:[#allocation4 + $0xe4] sm:$0xff] %v1332
      %1344 = vst.msk [vmem:[#allocation4 + $0xec] sm:$0xf] %vm471, %v1318
      %1345 = vst [vmem:[#allocation4 + $0xf0] sm:$0xff] %v1334
      %1346 = vst.msk [vmem:[#allocation4 + $0xf8] sm:$0xf] %vm471, %v1322
      %v1347 = vld [vmem:[#allocation2 + $0x4] sm:$0xff]
      %v1348 = vld [vmem:[#allocation2 + $0xc] sm:$0xf]
      %v1349 = vld [vmem:[#allocation2 + $0x14] sm:$0xff]
      %v1350 = vld [vmem:[#allocation2 + $0x1c] sm:$0xf]
      %v1351 = vld [vmem:[#allocation2 + $0x24] sm:$0xff]
      %v1352 = vld [vmem:[#allocation2 + $0x2c] sm:$0xf]
      %1359 = vrot.lane.b32.xlu0 %v1347, 110
      %v1360 = vpop.permute.xlu0 %1359
      %1361 = vrot.lane.b32.xlu0 %v1348, 110
      %v1362 = vpop.permute.xlu0 %1361
      %1363 = vrot.lane.b32.xlu0 %v1349, 110
      %v1364 = vpop.permute.xlu0 %1363
      %1365 = vrot.lane.b32.xlu0 %v1350, 110
      %v1366 = vpop.permute.xlu0 %1365
      %1367 = vrot.lane.b32.xlu0 %v1351, 110
      %v1368 = vpop.permute.xlu0 %1367
      %1369 = vrot.lane.b32.xlu0 %v1352, 110
      %v1370 = vpop.permute.xlu0 %1369
      %v1371 = vrot.slane %v1360, 4
      %v1372 = vrot.slane %v1362, 4
      %v1373 = vrot.slane %v1364, 4
      %v1374 = vrot.slane %v1366, 4
      %v1375 = vrot.slane %v1368, 4
      %v1376 = vrot.slane %v1370, 4
      %v1377 = vsel %vm490, %v1371, %v1372
      %v1378 = vsel %vm792, %v1360, %v1377
      %v1379 = vsel %vm490, %v1373, %v1374
      %v1380 = vsel %vm792, %v1364, %v1379
      %v1381 = vsel %vm490, %v1375, %v1376
      %v1382 = vsel %vm792, %v1368, %v1381
      %1389 = vst [vmem:[#allocation4 + $0xfc] sm:$0xff] %v1378
      %1390 = vst.msk [vmem:[#allocation4 + $0x104] sm:$0xf] %vm471, %v1362
      %1391 = vst [vmem:[#allocation4 + $0x108] sm:$0xff] %v1380
      %1392 = vst.msk [vmem:[#allocation4 + $0x110] sm:$0xf] %vm471, %v1366
      %1393 = vst [vmem:[#allocation4 + $0x114] sm:$0xff] %v1382
      %1394 = vst.msk [vmem:[#allocation4 + $0x11c] sm:$0xf] %vm471, %v1370
      %v1395 = vld [vmem:[#allocation2 + $0x4] sm:$0xff]
      %v1396 = vld [vmem:[#allocation2 + $0xc] sm:$0xf]
      %v1397 = vld [vmem:[#allocation2 + $0x14] sm:$0xff]
      %v1398 = vld [vmem:[#allocation2 + $0x1c] sm:$0xf]
      %v1399 = vld [vmem:[#allocation2 + $0x24] sm:$0xff]
      %v1400 = vld [vmem:[#allocation2 + $0x2c] sm:$0xf]
      %1407 = vrot.lane.b32.xlu0 %v1395, 109
      %v1408 = vpop.permute.xlu0 %1407
      %1409 = vrot.lane.b32.xlu0 %v1396, 109
      %v1410 = vpop.permute.xlu0 %1409
      %1411 = vrot.lane.b32.xlu0 %v1397, 109
      %v1412 = vpop.permute.xlu0 %1411
      %1413 = vrot.lane.b32.xlu0 %v1398, 109
      %v1414 = vpop.permute.xlu0 %1413
      %1415 = vrot.lane.b32.xlu0 %v1399, 109
      %v1416 = vpop.permute.xlu0 %1415
      %1417 = vrot.lane.b32.xlu0 %v1400, 109
      %v1418 = vpop.permute.xlu0 %1417
      %v1419 = vrot.slane %v1408, 4
      %v1420 = vrot.slane %v1410, 4
      %v1421 = vrot.slane %v1412, 4
      %v1422 = vrot.slane %v1414, 4
      %v1423 = vrot.slane %v1416, 4
      %v1424 = vrot.slane %v1418, 4
      %v1425 = vsel %vm490, %v1419, %v1420
      %v1426 = vsel %vm822, %v1408, %v1425
      %v1427 = vsel %vm490, %v1421, %v1422
      %v1428 = vsel %vm822, %v1412, %v1427
      %v1429 = vsel %vm490, %v1423, %v1424
      %v1430 = vsel %vm822, %v1416, %v1429
      %1437 = vst [vmem:[#allocation4 + $0x120] sm:$0xff] %v1426
      %1438 = vst.msk [vmem:[#allocation4 + $0x128] sm:$0xf] %vm471, %v1410
      %1439 = vst [vmem:[#allocation4 + $0x12c] sm:$0xff] %v1428
      %1440 = vst.msk [vmem:[#allocation4 + $0x134] sm:$0xf] %vm471, %v1414
      %1441 = vst [vmem:[#allocation4 + $0x138] sm:$0xff] %v1430
      %1442 = vst.msk [vmem:[#allocation4 + $0x140] sm:$0xf] %vm471, %v1418
      %v1443 = vld [vmem:[#allocation4] sm:$0xff]
      %v1444 = vld [vmem:[#allocation4 + $0x8] sm:$0xf]
      %v1445 = vld [vmem:[#allocation4 + $0xc] sm:$0xff]
      %v1446 = vld [vmem:[#allocation4 + $0x14] sm:$0xf]
      %v1447 = vld [vmem:[#allocation4 + $0x18] sm:$0xff]
      %v1448 = vld [vmem:[#allocation4 + $0x20] sm:$0xf]
      %v1449 = vld [vmem:[#allocation4 + $0x24] sm:$0xff]
      %v1450 = vld [vmem:[#allocation4 + $0x2c] sm:$0xf]
      %v1451 = vld [vmem:[#allocation4 + $0x30] sm:$0xff]
      %v1452 = vld [vmem:[#allocation4 + $0x38] sm:$0xf]
      %v1453 = vld [vmem:[#allocation4 + $0x3c] sm:$0xff]
      %v1454 = vld [vmem:[#allocation4 + $0x44] sm:$0xf]
      %v1455 = vld [vmem:[#allocation4 + $0x48] sm:$0xff]
      %v1456 = vld [vmem:[#allocation4 + $0x50] sm:$0xf]
      %v1457 = vld [vmem:[#allocation4 + $0x54] sm:$0xff]
      %v1458 = vld [vmem:[#allocation4 + $0x5c] sm:$0xf]
      %v1459 = vld [vmem:[#allocation4 + $0x60] sm:$0xff]
      %v1460 = vld [vmem:[#allocation4 + $0x68] sm:$0xf]
      %v1461 = vld [vmem:[#allocation4 + $0x6c] sm:$0xff]
      %v1462 = vld [vmem:[#allocation4 + $0x74] sm:$0xf]
      %v1463 = vld [vmem:[#allocation4 + $0x78] sm:$0xff]
      %v1464 = vld [vmem:[#allocation4 + $0x80] sm:$0xf]
      %v1465 = vld [vmem:[#allocation4 + $0x84] sm:$0xff]
      %v1466 = vld [vmem:[#allocation4 + $0x8c] sm:$0xf]
      %v1467 = vld [vmem:[#allocation4 + $0x90] sm:$0xff]
      %v1468 = vld [vmem:[#allocation4 + $0x98] sm:$0xf]
      %v1469 = vld [vmem:[#allocation4 + $0x9c] sm:$0xff]
      %v1470 = vld [vmem:[#allocation4 + $0xa4] sm:$0xf]
      %v1471 = vld [vmem:[#allocation4 + $0xa8] sm:$0xff]
      %v1472 = vld [vmem:[#allocation4 + $0xb0] sm:$0xf]
      %v1473 = vld [vmem:[#allocation4 + $0xb4] sm:$0xff]
      %v1474 = vld [vmem:[#allocation4 + $0xbc] sm:$0xf]
      %v1475 = vld [vmem:[#allocation4 + $0xc0] sm:$0xff]
      %v1476 = vld [vmem:[#allocation4 + $0xc8] sm:$0xf]
      %v1477 = vld [vmem:[#allocation4 + $0xcc] sm:$0xff]
      %v1478 = vld [vmem:[#allocation4 + $0xd4] sm:$0xf]
      %v1479 = vld [vmem:[#allocation4 + $0xd8] sm:$0xff]
      %v1480 = vld [vmem:[#allocation4 + $0xe0] sm:$0xf]
      %v1481 = vld [vmem:[#allocation4 + $0xe4] sm:$0xff]
      %v1482 = vld [vmem:[#allocation4 + $0xec] sm:$0xf]
      %v1483 = vld [vmem:[#allocation4 + $0xf0] sm:$0xff]
      %v1484 = vld [vmem:[#allocation4 + $0xf8] sm:$0xf]
      %v1485 = vld [vmem:[#allocation4 + $0xfc] sm:$0xff]
      %v1486 = vld [vmem:[#allocation4 + $0x104] sm:$0xf]
      %v1487 = vld [vmem:[#allocation4 + $0x108] sm:$0xff]
      %v1488 = vld [vmem:[#allocation4 + $0x110] sm:$0xf]
      %v1489 = vld [vmem:[#allocation4 + $0x114] sm:$0xff]
      %v1490 = vld [vmem:[#allocation4 + $0x11c] sm:$0xf]
      %v1491 = vld [vmem:[#allocation4 + $0x120] sm:$0xff]
      %v1492 = vld [vmem:[#allocation4 + $0x128] sm:$0xf]
      %v1493 = vld [vmem:[#allocation4 + $0x12c] sm:$0xff]
      %v1494 = vld [vmem:[#allocation4 + $0x134] sm:$0xf]
      %v1495 = vld [vmem:[#allocation4 + $0x138] sm:$0xff]
      %v1496 = vld [vmem:[#allocation4 + $0x140] sm:$0xf]
      %1498 = vset.pattern.permute.xlu0 0
      %1499 = vperm.xlu0 %1498, %v1033
      %v1500 = vpop.permute.xlu0 %1499
      %1503 = vset.pattern.permute.xlu0 0
      %1504 = vperm.xlu0 %1503, %v1034
      %v1505 = vpop.permute.xlu0 %1504
      %v1509 = vunpack.c.l.b16 %v1031
      %v1510 = vunpack.c.h.b16 %v1031
      %v1511 = vunpack.c.l.b16 %v1032
      %v1512 = vunpack.c.h.b16 %v1032
      %v1513 = vpack.c.b16 %v1511, %v1509
      %v1514 = vpack.c.b16 %v1512, %v1510
      %v1570 = vunpack.c.l.b16 %v1443
      %v1571 = vunpack.c.h.b16 %v1443
      %v1572 = vunpack.c.l.b16 %v1444
      %v1573 = vunpack.c.l.b16 %v1445
      %v1574 = vunpack.c.h.b16 %v1445
      %v1575 = vunpack.c.l.b16 %v1446
      %v1576 = vunpack.c.l.b16 %v1447
      %v1577 = vunpack.c.h.b16 %v1447
      %v1578 = vunpack.c.l.b16 %v1448
      %v1579 = vunpack.c.l.b16 %v1449
      %v1580 = vunpack.c.h.b16 %v1449
      %v1581 = vunpack.c.l.b16 %v1450
      %v1582 = vunpack.c.l.b16 %v1451
      %v1583 = vunpack.c.h.b16 %v1451
      %v1584 = vunpack.c.l.b16 %v1452
      %v1585 = vunpack.c.l.b16 %v1453
      %v1586 = vunpack.c.h.b16 %v1453
      %v1587 = vunpack.c.l.b16 %v1454
      %v1588 = vunpack.c.l.b16 %v1455
      %v1589 = vunpack.c.h.b16 %v1455
      %v1590 = vunpack.c.l.b16 %v1456
      %v1591 = vunpack.c.l.b16 %v1457
      %v1592 = vunpack.c.h.b16 %v1457
      %v1593 = vunpack.c.l.b16 %v1458
      %v1594 = vunpack.c.l.b16 %v1459
      %v1595 = vunpack.c.h.b16 %v1459
      %v1596 = vunpack.c.l.b16 %v1460
      %v1597 = vunpack.c.l.b16 %v1461
      %v1598 = vunpack.c.h.b16 %v1461
      %v1599 = vunpack.c.l.b16 %v1462
      %v1600 = vunpack.c.l.b16 %v1463
      %v1601 = vunpack.c.h.b16 %v1463
      %v1602 = vunpack.c.l.b16 %v1464
      %v1603 = vunpack.c.l.b16 %v1465
      %v1604 = vunpack.c.h.b16 %v1465
      %v1605 = vunpack.c.l.b16 %v1466
      %v1606 = vunpack.c.l.b16 %v1467
      %v1607 = vunpack.c.h.b16 %v1467
      %v1608 = vunpack.c.l.b16 %v1468
      %v1609 = vunpack.c.l.b16 %v1469
      %v1610 = vunpack.c.h.b16 %v1469
      %v1611 = vunpack.c.l.b16 %v1470
      %v1612 = vunpack.c.l.b16 %v1471
      %v1613 = vunpack.c.h.b16 %v1471
      %v1614 = vunpack.c.l.b16 %v1472
      %v1615 = vunpack.c.l.b16 %v1473
      %v1616 = vunpack.c.h.b16 %v1473
      %v1617 = vunpack.c.l.b16 %v1474
      %v1618 = vunpack.c.l.b16 %v1475
      %v1619 = vunpack.c.h.b16 %v1475
      %v1620 = vunpack.c.l.b16 %v1476
      %v1621 = vunpack.c.l.b16 %v1477
      %v1622 = vunpack.c.h.b16 %v1477
      %v1623 = vunpack.c.l.b16 %v1478
      %v1624 = vunpack.c.l.b16 %v1479
      %v1625 = vunpack.c.h.b16 %v1479
      %v1626 = vunpack.c.l.b16 %v1480
      %v1627 = vunpack.c.l.b16 %v1481
      %v1628 = vunpack.c.h.b16 %v1481
      %v1629 = vunpack.c.l.b16 %v1482
      %v1630 = vunpack.c.l.b16 %v1483
      %v1631 = vunpack.c.h.b16 %v1483
      %v1632 = vunpack.c.l.b16 %v1484
      %v1633 = vunpack.c.l.b16 %v1485
      %v1634 = vunpack.c.h.b16 %v1485
      %v1635 = vunpack.c.l.b16 %v1486
      %v1636 = vunpack.c.l.b16 %v1487
      %v1637 = vunpack.c.h.b16 %v1487
      %v1638 = vunpack.c.l.b16 %v1488
      %v1639 = vunpack.c.l.b16 %v1489
      %v1640 = vunpack.c.h.b16 %v1489
      %v1641 = vunpack.c.l.b16 %v1490
      %v1642 = vunpack.c.l.b16 %v1491
      %v1643 = vunpack.c.h.b16 %v1491
      %v1644 = vunpack.c.l.b16 %v1492
      %v1645 = vunpack.c.l.b16 %v1493
      %v1646 = vunpack.c.h.b16 %v1493
      %v1647 = vunpack.c.l.b16 %v1494
      %v1648 = vunpack.c.l.b16 %v1495
      %v1649 = vunpack.c.h.b16 %v1495
      %v1650 = vunpack.c.l.b16 %v1496
      %v1651 = vpack.c.b16 %v1573, %v1570
      %v1652 = vpack.c.b16 %v1574, %v1571
      %v1653 = vpack.c.b16 %v1575, %v1572
      %v1654 = vpack.c.b16 %v1579, %v1576
      %v1655 = vpack.c.b16 %v1580, %v1577
      %v1656 = vpack.c.b16 %v1581, %v1578
      %v1657 = vpack.c.b16 %v1585, %v1582
      %v1658 = vpack.c.b16 %v1586, %v1583
      %v1659 = vpack.c.b16 %v1587, %v1584
      %v1660 = vpack.c.b16 %v1591, %v1588
      %v1661 = vpack.c.b16 %v1592, %v1589
      %v1662 = vpack.c.b16 %v1593, %v1590
      %v1663 = vpack.c.b16 %v1597, %v1594
      %v1664 = vpack.c.b16 %v1598, %v1595
      %v1665 = vpack.c.b16 %v1599, %v1596
      %v1666 = vpack.c.b16 %v1603, %v1600
      %v1667 = vpack.c.b16 %v1604, %v1601
      %v1668 = vpack.c.b16 %v1605, %v1602
      %v1669 = vpack.c.b16 %v1609, %v1606
      %v1670 = vpack.c.b16 %v1610, %v1607
      %v1671 = vpack.c.b16 %v1611, %v1608
      %v1672 = vpack.c.b16 %v1615, %v1612
      %v1673 = vpack.c.b16 %v1616, %v1613
      %v1674 = vpack.c.b16 %v1617, %v1614
      %v1675 = vpack.c.b16 %v1621, %v1618
      %v1676 = vpack.c.b16 %v1622, %v1619
      %v1677 = vpack.c.b16 %v1623, %v1620
      %v1678 = vpack.c.b16 %v1627, %v1624
      %v1679 = vpack.c.b16 %v1628, %v1625
      %v1680 = vpack.c.b16 %v1629, %v1626
      %v1681 = vpack.c.b16 %v1633, %v1630
      %v1682 = vpack.c.b16 %v1634, %v1631
      %v1683 = vpack.c.b16 %v1635, %v1632
      %v1684 = vpack.c.b16 %v1639, %v1636
      %v1685 = vpack.c.b16 %v1640, %v1637
      %v1686 = vpack.c.b16 %v1641, %v1638
      %v1687 = vpack.c.b16 %v1645, %v1642
      %v1688 = vpack.c.b16 %v1646, %v1643
      %v1689 = vpack.c.b16 %v1647, %v1644
      %v1690 = vpack.c.b16 %v1648, %v1648
      %v1691 = vpack.c.b16 %v1649, %v1649
      %v1692 = vpack.c.b16 %v1650, %v1650
      %vm1732 = vcmask 719872
      %v1734 = vsel %vm1732, %v1514, 0
      %vm1736 = vcmask 1043456
      %v1738 = vsel %vm1736, %v1690, 0
      %v1741 = vsel %vm1736, %v1691, 0
      %v1744 = vsel %vm1736, %v1692, 0
      %1746 = vmatpush.bf16.msra.mxu0 %v1672
      %1747 = vmatpush.bf16.msra.mxu0 %v1669
      %1748 = vmatpush.bf16.msra.mxu0 %v1666
      %1749 = vmatpush.bf16.msra.mxu0 %v1663
      %1750 = vmatpush.bf16.msra.mxu0 %v1660
      %1751 = vmatpush.bf16.msra.mxu0 %v1657
      %1752 = vmatpush.bf16.msra.mxu0 %v1654
      %1753 = vmatpush.bf16.msra.mxu0 %v1651
      %1754 = vmatmul.bf16.gmra.mxu0 %v1513
      %v1755 = vpop.f32.mrf.mxu0
      %v1756 = vadd.f32 %v1500, %v1755
      %v1757 = vpop.f32.mrf.mxu0
      %v1758 = vadd.f32 %v1505, %v1757
      %1759 = vdwg.mxu0
      %1760 = vmatpush.bf16.msra.mxu0 0
      %1761 = vmatpush.bf16.msra.mxu0 0
      %1762 = vmatpush.bf16.msra.mxu0 %v1738
      %1763 = vmatpush.bf16.msra.mxu0 %v1687
      %1764 = vmatpush.bf16.msra.mxu0 %v1684
      %1765 = vmatpush.bf16.msra.mxu0 %v1681
      %1766 = vmatpush.bf16.msra.mxu0 %v1678
      %1767 = vmatpush.bf16.msra.mxu0 %v1675
      %1768 = vmatmul.bf16.gmra.mxu0 %v1734
      %v1769 = vpop.f32.mrf.mxu0
      %v1770 = vadd.f32 %v1756, %v1769
      %v1771 = vpop.f32.mrf.mxu0
      %v1772 = vadd.f32 %v1758, %v1771
      %1773 = vdwg.mxu0
      %1774 = vmatpush.bf16.msra.mxu0 %v1673
      %1775 = vmatpush.bf16.msra.mxu0 %v1670
      %1776 = vmatpush.bf16.msra.mxu0 %v1667
      %1777 = vmatpush.bf16.msra.mxu0 %v1664
      %1778 = vmatpush.bf16.msra.mxu0 %v1661
      %1779 = vmatpush.bf16.msra.mxu0 %v1658
      %1780 = vmatpush.bf16.msra.mxu0 %v1655
      %1781 = vmatpush.bf16.msra.mxu0 %v1652
      %1782 = vmatmul.bf16.gmra.mxu0 %v1513
      %v1783 = vpop.f32.mrf.mxu0
      %v1784 = vadd.f32 %v1500, %v1783
      %v1785 = vpop.f32.mrf.mxu0
      %v1786 = vadd.f32 %v1505, %v1785
      %1787 = vdwg.mxu0
      %1788 = vmatpush.bf16.msra.mxu0 0
      %1789 = vmatpush.bf16.msra.mxu0 0
      %1790 = vmatpush.bf16.msra.mxu0 %v1741
      %1791 = vmatpush.bf16.msra.mxu0 %v1688
      %1792 = vmatpush.bf16.msra.mxu0 %v1685
      %1793 = vmatpush.bf16.msra.mxu0 %v1682
      %1794 = vmatpush.bf16.msra.mxu0 %v1679
      %1795 = vmatpush.bf16.msra.mxu0 %v1676
      %1796 = vmatmul.bf16.gmra.mxu0 %v1734
      %v1797 = vpop.f32.mrf.mxu0
      %v1798 = vadd.f32 %v1784, %v1797
      %v1799 = vpop.f32.mrf.mxu0
      %v1800 = vadd.f32 %v1786, %v1799
      %1801 = vdwg.mxu0
      %1802 = vmatpush.bf16.msra.mxu0 %v1674
      %1803 = vmatpush.bf16.msra.mxu0 %v1671
      %1804 = vmatpush.bf16.msra.mxu0 %v1668
      %1805 = vmatpush.bf16.msra.mxu0 %v1665
      %1806 = vmatpush.bf16.msra.mxu0 %v1662
      %1807 = vmatpush.bf16.msra.mxu0 %v1659
      %1808 = vmatpush.bf16.msra.mxu0 %v1656
      %1809 = vmatpush.bf16.msra.mxu0 %v1653
      %1810 = vmatmul.bf16.gmra.mxu0 %v1513
      %v1811 = vpop.f32.mrf.mxu0
      %v1812 = vadd.f32 %v1500, %v1811
      %v1813 = vpop.f32.mrf.mxu0
      %v1814 = vadd.f32 %v1505, %v1813
      %1815 = vdwg.mxu0
      %1816 = vmatpush.bf16.msra.mxu0 0
      %1817 = vmatpush.bf16.msra.mxu0 0
      %1818 = vmatpush.bf16.msra.mxu0 %v1744
      %1819 = vmatpush.bf16.msra.mxu0 %v1689
      %1820 = vmatpush.bf16.msra.mxu0 %v1686
      %1821 = vmatpush.bf16.msra.mxu0 %v1683
      %1822 = vmatpush.bf16.msra.mxu0 %v1680
      %1823 = vmatpush.bf16.msra.mxu0 %v1677
      %1824 = vmatmul.bf16.gmra.mxu0 %v1734
      %v1825 = vpop.f32.mrf.mxu0
      %v1826 = vadd.f32 %v1812, %v1825
      %v1827 = vpop.f32.mrf.mxu0
      %v1828 = vadd.f32 %v1814, %v1827
      %1829 = vdwg.mxu0
      %v1830 = vmax.f32 %v1770, 0.0
      %v1831 = vmax.f32 %v1798, 0.0
      %v1832 = vmax.f32 %v1826, 0.0
      %v1833 = vmax.f32 %v1772, 0.0
      %v1834 = vmax.f32 %v1800, 0.0
      %v1835 = vmax.f32 %v1828, 0.0
      %v1836 = vpack.c.bf16 %v1831, %v1830
      %v1837 = vpack.c.bf16 %v1832, %v1832
      %v1838 = vpack.c.bf16 %v1834, %v1833
      %v1839 = vpack.c.bf16 %v1835, %v1835
      %v1840 = vunpack.c.l.bf16 %v1836
      %v1841 = vunpack.c.h.bf16 %v1836
      %v1842 = vunpack.c.l.bf16 %v1837
      %v1843 = vunpack.c.l.bf16 %v1838
      %v1844 = vunpack.c.h.bf16 %v1838
      %v1845 = vunpack.c.l.bf16 %v1839
      %v1846 = vmul.f32 %v1840, %v959
      %v1847 = vmul.f32 %v1841, %v960
      %v1848 = vmul.f32 %v1842, %v961
      %v1849 = vmul.f32 %v1843, %v959
      %v1850 = vmul.f32 %v1844, %v960
      %v1851 = vmul.f32 %v1845, %v961
      %v1852 = vpack.c.bf16 %v1847, %v1846
      %v1853 = vpack.c.bf16 %v1848, %v1848
      %v1854 = vpack.c.bf16 %v1850, %v1849
      %v1855 = vpack.c.bf16 %v1851, %v1851
      %v1856 = vsub.f32 0.0, %v1770
      %v1857 = vsub.f32 0.0, %v1798
      %v1858 = vsub.f32 0.0, %v1826
      %v1859 = vsub.f32 0.0, %v1772
      %v1860 = vsub.f32 0.0, %v1800
      %v1861 = vsub.f32 0.0, %v1828
      %v1862 = vmax.f32 %v1856, 0.0
      %v1863 = vmax.f32 %v1857, 0.0
      %v1864 = vmax.f32 %v1858, 0.0
      %v1865 = vmax.f32 %v1859, 0.0
      %v1866 = vmax.f32 %v1860, 0.0
      %v1867 = vmax.f32 %v1861, 0.0
      %v1868 = vpack.c.bf16 %v1863, %v1862
      %v1869 = vpack.c.bf16 %v1864, %v1864
      %v1870 = vpack.c.bf16 %v1866, %v1865
      %v1871 = vpack.c.bf16 %v1867, %v1867
      %v1872 = vunpack.c.l.bf16 %v1868
      %v1873 = vunpack.c.h.bf16 %v1868
      %v1874 = vunpack.c.l.bf16 %v1869
      %v1875 = vunpack.c.l.bf16 %v1870
      %v1876 = vunpack.c.h.bf16 %v1870
      %v1877 = vunpack.c.l.bf16 %v1871
      %v1878 = vmul.f32 %v1872, %v959
      %v1879 = vmul.f32 %v1873, %v960
      %v1880 = vmul.f32 %v1874, %v961
      %v1881 = vmul.f32 %v1875, %v959
      %v1882 = vmul.f32 %v1876, %v960
      %v1883 = vmul.f32 %v1877, %v961
      %v1884 = vpack.c.bf16 %v1879, %v1878
      %v1885 = vpack.c.bf16 %v1880, %v1880
      %v1886 = vpack.c.bf16 %v1882, %v1881
      %v1887 = vpack.c.bf16 %v1883, %v1883
      %1888 = vst [vmem:[#allocation3 + $0x4] sm:$0xff] %v1852
      %1889 = vst.msk [vmem:[#allocation3 + $0xc] sm:$0xf] %vm471, %v1853
      %1890 = vst [vmem:[#allocation3 + $0x14] sm:$0x33] %v1854
      %1891 = vst.msk [vmem:[#allocation3 + $0x1c] sm:$0x3] %vm1007, %v1855
      %v1896 = vrot.slane %v1884, 6
      %v1897 = vrot.slane %v1885, 6
      %v1898 = vrot.slane %v1896, 4
      %v1899 = vrot.slane %v1886, 6
      %v1900 = vsel %vm1013, %v1898, %v1899
      %v1901 = vrot.slane %v1897, 4
      %v1902 = vrot.slane %v1887, 6
      %v1903 = vsel %vm1013, %v1901, %v1902
      %1908 = vst [vmem:[#allocation3 + $0x14] sm:$0xcc] %v1896
      %1909 = vst.msk [vmem:[#allocation3 + $0x1c] sm:$0xc] %vm1027, %v1897
      %1910 = vst [vmem:[#allocation3 + $0x24] sm:$0xff] %v1900
      %1911 = vst.msk [vmem:[#allocation3 + $0x2c] sm:$0xf] %vm471, %v1903
      %s1912 = scalar_lea.vmem %s4, 16
      %v1913 = vld [vmem:[%s1912] sm:$0xff]
      %v1914 = vld [vmem:[%s1912 + $0x8] sm:$0x33]
      %s1915 = scalar_lea.vmem %s5, 16
      %v1916 = vld [vmem:[%s1915] sm:$0xff]
      %v1917 = vld [vmem:[%s1915 + $0x8] sm:$0xf]
      %v1918 = vld [vmem:[%s6] sm:$0xf]
      %v1919 = vld [vmem:[%s6 + $0x4] sm:$0x3]
      %v1920 = vld [vmem:[#allocation3] sm:$0xff]
      %v1921 = vld [vmem:[#allocation3 + $0x8] sm:$0xff]
      %v1922 = vld [vmem:[#allocation3 + $0x10] sm:$0xff]
      %v1923 = vld [vmem:[#allocation3 + $0x18] sm:$0xff]
      %v1924 = vld [vmem:[#allocation3 + $0x20] sm:$0xff]
      %v1925 = vld [vmem:[#allocation3 + $0x28] sm:$0xff]
      %1932 = vrot.lane.b32.xlu0 %v1920, 19
      %v1933 = vpop.permute.xlu0 %1932
      %1934 = vrot.lane.b32.xlu0 %v1921, 19
      %v1935 = vpop.permute.xlu0 %1934
      %1936 = vrot.lane.b32.xlu0 %v1922, 19
      %v1937 = vpop.permute.xlu0 %1936
      %1938 = vrot.lane.b32.xlu0 %v1923, 19
      %v1939 = vpop.permute.xlu0 %1938
      %1940 = vrot.lane.b32.xlu0 %v1924, 19
      %v1941 = vpop.permute.xlu0 %1940
      %1942 = vrot.lane.b32.xlu0 %v1925, 19
      %v1943 = vpop.permute.xlu0 %1942
      %v1944 = vrot.slane %v1933, 4
      %v1945 = vrot.slane %v1935, 4
      %v1946 = vrot.slane %v1937, 4
      %v1947 = vrot.slane %v1939, 4
      %v1948 = vrot.slane %v1941, 4
      %v1949 = vrot.slane %v1943, 4
      %v1950 = vsel %vm490, %v1944, %v1945
      %v1951 = vsel %vm492, %v1933, %v1950
      %v1952 = vsel %vm492, %v1935, %v1945
      %v1953 = vsel %vm490, %v1946, %v1947
      %v1954 = vsel %vm492, %v1937, %v1953
      %v1955 = vsel %vm492, %v1939, %v1947
      %v1956 = vsel %vm490, %v1948, %v1949
      %v1957 = vsel %vm492, %v1941, %v1956
      %v1958 = vsel %vm492, %v1943, %v1949
      %1965 = vst [vmem:[#allocation4] sm:$0xff] %v1951
      %1966 = vst.msk [vmem:[#allocation4 + $0x8] sm:$0xf] %vm471, %v1952
      %1967 = vst [vmem:[#allocation4 + $0xc] sm:$0xff] %v1954
      %1968 = vst.msk [vmem:[#allocation4 + $0x14] sm:$0xf] %vm471, %v1955
      %1969 = vst [vmem:[#allocation4 + $0x18] sm:$0xff] %v1957
      %1970 = vst.msk [vmem:[#allocation4 + $0x20] sm:$0xf] %vm471, %v1958
      %v1971 = vld [vmem:[#allocation3] sm:$0xff]
      %v1972 = vld [vmem:[#allocation3 + $0x8] sm:$0xff]
      %v1973 = vld [vmem:[#allocation3 + $0x10] sm:$0xff]
      %v1974 = vld [vmem:[#allocation3 + $0x18] sm:$0xff]
      %v1975 = vld [vmem:[#allocation3 + $0x20] sm:$0xff]
      %v1976 = vld [vmem:[#allocation3 + $0x28] sm:$0xff]
      %1983 = vrot.lane.b32.xlu0 %v1971, 18
      %v1984 = vpop.permute.xlu0 %1983
      %1985 = vrot.lane.b32.xlu0 %v1972, 18
      %v1986 = vpop.permute.xlu0 %1985
      %1987 = vrot.lane.b32.xlu0 %v1973, 18
      %v1988 = vpop.permute.xlu0 %1987
      %1989 = vrot.lane.b32.xlu0 %v1974, 18
      %v1990 = vpop.permute.xlu0 %1989
      %1991 = vrot.lane.b32.xlu0 %v1975, 18
      %v1992 = vpop.permute.xlu0 %1991
      %1993 = vrot.lane.b32.xlu0 %v1976, 18
      %v1994 = vpop.permute.xlu0 %1993
      %v1995 = vrot.slane %v1984, 4
      %v1996 = vrot.slane %v1986, 4
      %v1997 = vrot.slane %v1988, 4
      %v1998 = vrot.slane %v1990, 4
      %v1999 = vrot.slane %v1992, 4
      %v2000 = vrot.slane %v1994, 4
      %v2001 = vsel %vm490, %v1995, %v1996
      %v2002 = vsel %vm538, %v1984, %v2001
      %v2003 = vsel %vm538, %v1986, %v1996
      %v2004 = vsel %vm490, %v1997, %v1998
      %v2005 = vsel %vm538, %v1988, %v2004
      %v2006 = vsel %vm538, %v1990, %v1998
      %v2007 = vsel %vm490, %v1999, %v2000
      %v2008 = vsel %vm538, %v1992, %v2007
      %v2009 = vsel %vm538, %v1994, %v2000
      %2016 = vst [vmem:[#allocation4 + $0x24] sm:$0xff] %v2002
      %2017 = vst.msk [vmem:[#allocation4 + $0x2c] sm:$0xf] %vm471, %v2003
      %2018 = vst [vmem:[#allocation4 + $0x30] sm:$0xff] %v2005
      %2019 = vst.msk [vmem:[#allocation4 + $0x38] sm:$0xf] %vm471, %v2006
      %2020 = vst [vmem:[#allocation4 + $0x3c] sm:$0xff] %v2008
      %2021 = vst.msk [vmem:[#allocation4 + $0x44] sm:$0xf] %vm471, %v2009
      %v2022 = vld [vmem:[#allocation3] sm:$0xff]
      %v2023 = vld [vmem:[#allocation3 + $0x8] sm:$0xff]
      %v2024 = vld [vmem:[#allocation3 + $0x10] sm:$0xff]
      %v2025 = vld [vmem:[#allocation3 + $0x18] sm:$0xff]
      %v2026 = vld [vmem:[#allocation3 + $0x20] sm:$0xff]
      %v2027 = vld [vmem:[#allocation3 + $0x28] sm:$0xff]
      %2034 = vrot.lane.b32.xlu0 %v2022, 17
      %v2035 = vpop.permute.xlu0 %2034
      %2036 = vrot.lane.b32.xlu0 %v2023, 17
      %v2037 = vpop.permute.xlu0 %2036
      %2038 = vrot.lane.b32.xlu0 %v2024, 17
      %v2039 = vpop.permute.xlu0 %2038
      %2040 = vrot.lane.b32.xlu0 %v2025, 17
      %v2041 = vpop.permute.xlu0 %2040
      %2042 = vrot.lane.b32.xlu0 %v2026, 17
      %v2043 = vpop.permute.xlu0 %2042
      %2044 = vrot.lane.b32.xlu0 %v2027, 17
      %v2045 = vpop.permute.xlu0 %2044
      %v2046 = vrot.slane %v2035, 4
      %v2047 = vrot.slane %v2037, 4
      %v2048 = vrot.slane %v2039, 4
      %v2049 = vrot.slane %v2041, 4
      %v2050 = vrot.slane %v2043, 4
      %v2051 = vrot.slane %v2045, 4
      %v2052 = vsel %vm490, %v2046, %v2047
      %v2053 = vsel %vm582, %v2035, %v2052
      %v2054 = vsel %vm582, %v2037, %v2047
      %v2055 = vsel %vm490, %v2048, %v2049
      %v2056 = vsel %vm582, %v2039, %v2055
      %v2057 = vsel %vm582, %v2041, %v2049
      %v2058 = vsel %vm490, %v2050, %v2051
      %v2059 = vsel %vm582, %v2043, %v2058
      %v2060 = vsel %vm582, %v2045, %v2051
      %2067 = vst [vmem:[#allocation4 + $0x48] sm:$0xff] %v2053
      %2068 = vst.msk [vmem:[#allocation4 + $0x50] sm:$0xf] %vm471, %v2054
      %2069 = vst [vmem:[#allocation4 + $0x54] sm:$0xff] %v2056
      %2070 = vst.msk [vmem:[#allocation4 + $0x5c] sm:$0xf] %vm471, %v2057
      %2071 = vst [vmem:[#allocation4 + $0x60] sm:$0xff] %v2059
      %2072 = vst.msk [vmem:[#allocation4 + $0x68] sm:$0xf] %vm471, %v2060
      %v2073 = vld [vmem:[#allocation3] sm:$0xff]
      %v2074 = vld [vmem:[#allocation3 + $0x8] sm:$0xff]
      %v2075 = vld [vmem:[#allocation3 + $0x10] sm:$0xff]
      %v2076 = vld [vmem:[#allocation3 + $0x18] sm:$0xff]
      %v2077 = vld [vmem:[#allocation3 + $0x20] sm:$0xff]
      %v2078 = vld [vmem:[#allocation3 + $0x28] sm:$0xff]
      %2085 = vrot.lane.b32.xlu0 %v2073, 1
      %v2086 = vpop.permute.xlu0 %2085
      %2087 = vrot.lane.b32.xlu0 %v2074, 1
      %v2088 = vpop.permute.xlu0 %2087
      %2089 = vrot.lane.b32.xlu0 %v2075, 1
      %v2090 = vpop.permute.xlu0 %2089
      %2091 = vrot.lane.b32.xlu0 %v2076, 1
      %v2092 = vpop.permute.xlu0 %2091
      %2093 = vrot.lane.b32.xlu0 %v2077, 1
      %v2094 = vpop.permute.xlu0 %2093
      %2095 = vrot.lane.b32.xlu0 %v2078, 1
      %v2096 = vpop.permute.xlu0 %2095
      %v2097 = vrot.slane %v2086, 4
      %v2098 = vrot.slane %v2088, 4
      %v2099 = vrot.slane %v2090, 4
      %v2100 = vrot.slane %v2092, 4
      %v2101 = vrot.slane %v2094, 4
      %v2102 = vrot.slane %v2096, 4
      %v2103 = vsel %vm490, %v2097, %v2098
      %v2104 = vsel %vm634, %v2086, %v2103
      %v2105 = vsel %vm634, %v2088, %v2098
      %v2106 = vsel %vm490, %v2099, %v2100
      %v2107 = vsel %vm634, %v2090, %v2106
      %v2108 = vsel %vm634, %v2092, %v2100
      %v2109 = vsel %vm490, %v2101, %v2102
      %v2110 = vsel %vm634, %v2094, %v2109
      %v2111 = vsel %vm634, %v2096, %v2102
      %2118 = vst [vmem:[#allocation4 + $0x6c] sm:$0xff] %v2104
      %2119 = vst.msk [vmem:[#allocation4 + $0x74] sm:$0xf] %vm471, %v2105
      %2120 = vst [vmem:[#allocation4 + $0x78] sm:$0xff] %v2107
      %2121 = vst.msk [vmem:[#allocation4 + $0x80] sm:$0xf] %vm471, %v2108
      %2122 = vst [vmem:[#allocation4 + $0x84] sm:$0xff] %v2110
      %2123 = vst.msk [vmem:[#allocation4 + $0x8c] sm:$0xf] %vm471, %v2111
      %v2124 = vld [vmem:[#allocation3 + $0x4] sm:$0xff]
      %v2125 = vld [vmem:[#allocation3 + $0xc] sm:$0xf]
      %v2126 = vld [vmem:[#allocation3 + $0x14] sm:$0xff]
      %v2127 = vld [vmem:[#allocation3 + $0x1c] sm:$0xf]
      %v2128 = vld [vmem:[#allocation3 + $0x24] sm:$0xff]
      %v2129 = vld [vmem:[#allocation3 + $0x2c] sm:$0xf]
      %2130 = vst [vmem:[#allocation4 + $0x90] sm:$0xff] %v2124
      %2131 = vst.msk [vmem:[#allocation4 + $0x98] sm:$0xf] %vm471, %v2125
      %2132 = vst [vmem:[#allocation4 + $0x9c] sm:$0xff] %v2126
      %2133 = vst.msk [vmem:[#allocation4 + $0xa4] sm:$0xf] %vm471, %v2127
      %2134 = vst [vmem:[#allocation4 + $0xa8] sm:$0xff] %v2128
      %2135 = vst.msk [vmem:[#allocation4 + $0xb0] sm:$0xf] %vm471, %v2129
      %v2136 = vld [vmem:[#allocation3 + $0x4] sm:$0xff]
      %v2137 = vld [vmem:[#allocation3 + $0xc] sm:$0xf]
      %v2138 = vld [vmem:[#allocation3 + $0x14] sm:$0xff]
      %v2139 = vld [vmem:[#allocation3 + $0x1c] sm:$0xf]
      %v2140 = vld [vmem:[#allocation3 + $0x24] sm:$0xff]
      %v2141 = vld [vmem:[#allocation3 + $0x2c] sm:$0xf]
      %2148 = vrot.lane.b32.xlu0 %v2136, 127
      %v2149 = vpop.permute.xlu0 %2148
      %2150 = vrot.lane.b32.xlu0 %v2137, 127
      %v2151 = vpop.permute.xlu0 %2150
      %2152 = vrot.lane.b32.xlu0 %v2138, 127
      %v2153 = vpop.permute.xlu0 %2152
      %2154 = vrot.lane.b32.xlu0 %v2139, 127
      %v2155 = vpop.permute.xlu0 %2154
      %2156 = vrot.lane.b32.xlu0 %v2140, 127
      %v2157 = vpop.permute.xlu0 %2156
      %2158 = vrot.lane.b32.xlu0 %v2141, 127
      %v2159 = vpop.permute.xlu0 %2158
      %v2160 = vrot.slane %v2149, 4
      %v2161 = vrot.slane %v2151, 4
      %v2162 = vrot.slane %v2153, 4
      %v2163 = vrot.slane %v2155, 4
      %v2164 = vrot.slane %v2157, 4
      %v2165 = vrot.slane %v2159, 4
      %v2166 = vsel %vm490, %v2160, %v2161
      %v2167 = vsel %vm708, %v2149, %v2166
      %v2168 = vsel %vm490, %v2162, %v2163
      %v2169 = vsel %vm708, %v2153, %v2168
      %v2170 = vsel %vm490, %v2164, %v2165
      %v2171 = vsel %vm708, %v2157, %v2170
      %2178 = vst [vmem:[#allocation4 + $0xb4] sm:$0xff] %v2167
      %2179 = vst.msk [vmem:[#allocation4 + $0xbc] sm:$0xf] %vm471, %v2151
      %2180 = vst [vmem:[#allocation4 + $0xc0] sm:$0xff] %v2169
      %2181 = vst.msk [vmem:[#allocation4 + $0xc8] sm:$0xf] %vm471, %v2155
      %2182 = vst [vmem:[#allocation4 + $0xcc] sm:$0xff] %v2171
      %2183 = vst.msk [vmem:[#allocation4 + $0xd4] sm:$0xf] %vm471, %v2159
      %v2184 = vld [vmem:[#allocation3 + $0x4] sm:$0xff]
      %v2185 = vld [vmem:[#allocation3 + $0xc] sm:$0xf]
      %v2186 = vld [vmem:[#allocation3 + $0x14] sm:$0xff]
      %v2187 = vld [vmem:[#allocation3 + $0x1c] sm:$0xf]
      %v2188 = vld [vmem:[#allocation3 + $0x24] sm:$0xff]
      %v2189 = vld [vmem:[#allocation3 + $0x2c] sm:$0xf]
      %2196 = vrot.lane.b32.xlu0 %v2184, 111
      %v2197 = vpop.permute.xlu0 %2196
      %2198 = vrot.lane.b32.xlu0 %v2185, 111
      %v2199 = vpop.permute.xlu0 %2198
      %2200 = vrot.lane.b32.xlu0 %v2186, 111
      %v2201 = vpop.permute.xlu0 %2200
      %2202 = vrot.lane.b32.xlu0 %v2187, 111
      %v2203 = vpop.permute.xlu0 %2202
      %2204 = vrot.lane.b32.xlu0 %v2188, 111
      %v2205 = vpop.permute.xlu0 %2204
      %2206 = vrot.lane.b32.xlu0 %v2189, 111
      %v2207 = vpop.permute.xlu0 %2206
      %v2208 = vrot.slane %v2197, 4
      %v2209 = vrot.slane %v2199, 4
      %v2210 = vrot.slane %v2201, 4
      %v2211 = vrot.slane %v2203, 4
      %v2212 = vrot.slane %v2205, 4
      %v2213 = vrot.slane %v2207, 4
      %v2214 = vsel %vm490, %v2208, %v2209
      %v2215 = vsel %vm750, %v2197, %v2214
      %v2216 = vsel %vm490, %v2210, %v2211
      %v2217 = vsel %vm750, %v2201, %v2216
      %v2218 = vsel %vm490, %v2212, %v2213
      %v2219 = vsel %vm750, %v2205, %v2218
      %2226 = vst [vmem:[#allocation4 + $0xd8] sm:$0xff] %v2215
      %2227 = vst.msk [vmem:[#allocation4 + $0xe0] sm:$0xf] %vm471, %v2199
      %2228 = vst [vmem:[#allocation4 + $0xe4] sm:$0xff] %v2217
      %2229 = vst.msk [vmem:[#allocation4 + $0xec] sm:$0xf] %vm471, %v2203
      %2230 = vst [vmem:[#allocation4 + $0xf0] sm:$0xff] %v2219
      %2231 = vst.msk [vmem:[#allocation4 + $0xf8] sm:$0xf] %vm471, %v2207
      %v2232 = vld [vmem:[#allocation3 + $0x4] sm:$0xff]
      %v2233 = vld [vmem:[#allocation3 + $0xc] sm:$0xf]
      %v2234 = vld [vmem:[#allocation3 + $0x14] sm:$0xff]
      %v2235 = vld [vmem:[#allocation3 + $0x1c] sm:$0xf]
      %v2236 = vld [vmem:[#allocation3 + $0x24] sm:$0xff]
      %v2237 = vld [vmem:[#allocation3 + $0x2c] sm:$0xf]
      %2244 = vrot.lane.b32.xlu0 %v2232, 110
      %v2245 = vpop.permute.xlu0 %2244
      %2246 = vrot.lane.b32.xlu0 %v2233, 110
      %v2247 = vpop.permute.xlu0 %2246
      %2248 = vrot.lane.b32.xlu0 %v2234, 110
      %v2249 = vpop.permute.xlu0 %2248
      %2250 = vrot.lane.b32.xlu0 %v2235, 110
      %v2251 = vpop.permute.xlu0 %2250
      %2252 = vrot.lane.b32.xlu0 %v2236, 110
      %v2253 = vpop.permute.xlu0 %2252
      %2254 = vrot.lane.b32.xlu0 %v2237, 110
      %v2255 = vpop.permute.xlu0 %2254
      %v2256 = vrot.slane %v2245, 4
      %v2257 = vrot.slane %v2247, 4
      %v2258 = vrot.slane %v2249, 4
      %v2259 = vrot.slane %v2251, 4
      %v2260 = vrot.slane %v2253, 4
      %v2261 = vrot.slane %v2255, 4
      %v2262 = vsel %vm490, %v2256, %v2257
      %v2263 = vsel %vm792, %v2245, %v2262
      %v2264 = vsel %vm490, %v2258, %v2259
      %v2265 = vsel %vm792, %v2249, %v2264
      %v2266 = vsel %vm490, %v2260, %v2261
      %v2267 = vsel %vm792, %v2253, %v2266
      %2274 = vst [vmem:[#allocation4 + $0xfc] sm:$0xff] %v2263
      %2275 = vst.msk [vmem:[#allocation4 + $0x104] sm:$0xf] %vm471, %v2247
      %2276 = vst [vmem:[#allocation4 + $0x108] sm:$0xff] %v2265
      %2277 = vst.msk [vmem:[#allocation4 + $0x110] sm:$0xf] %vm471, %v2251
      %2278 = vst [vmem:[#allocation4 + $0x114] sm:$0xff] %v2267
      %2279 = vst.msk [vmem:[#allocation4 + $0x11c] sm:$0xf] %vm471, %v2255
      %v2280 = vld [vmem:[#allocation3 + $0x4] sm:$0xff]
      %v2281 = vld [vmem:[#allocation3 + $0xc] sm:$0xf]
      %v2282 = vld [vmem:[#allocation3 + $0x14] sm:$0xff]
      %v2283 = vld [vmem:[#allocation3 + $0x1c] sm:$0xf]
      %v2284 = vld [vmem:[#allocation3 + $0x24] sm:$0xff]
      %v2285 = vld [vmem:[#allocation3 + $0x2c] sm:$0xf]
      %2292 = vrot.lane.b32.xlu0 %v2280, 109
      %v2293 = vpop.permute.xlu0 %2292
      %2294 = vrot.lane.b32.xlu0 %v2281, 109
      %v2295 = vpop.permute.xlu0 %2294
      %2296 = vrot.lane.b32.xlu0 %v2282, 109
      %v2297 = vpop.permute.xlu0 %2296
      %2298 = vrot.lane.b32.xlu0 %v2283, 109
      %v2299 = vpop.permute.xlu0 %2298
      %2300 = vrot.lane.b32.xlu0 %v2284, 109
      %v2301 = vpop.permute.xlu0 %2300
      %2302 = vrot.lane.b32.xlu0 %v2285, 109
      %v2303 = vpop.permute.xlu0 %2302
      %v2304 = vrot.slane %v2293, 4
      %v2305 = vrot.slane %v2295, 4
      %v2306 = vrot.slane %v2297, 4
      %v2307 = vrot.slane %v2299, 4
      %v2308 = vrot.slane %v2301, 4
      %v2309 = vrot.slane %v2303, 4
      %v2310 = vsel %vm490, %v2304, %v2305
      %v2311 = vsel %vm822, %v2293, %v2310
      %v2312 = vsel %vm490, %v2306, %v2307
      %v2313 = vsel %vm822, %v2297, %v2312
      %v2314 = vsel %vm490, %v2308, %v2309
      %v2315 = vsel %vm822, %v2301, %v2314
      %2322 = vst [vmem:[#allocation4 + $0x120] sm:$0xff] %v2311
      %2323 = vst.msk [vmem:[#allocation4 + $0x128] sm:$0xf] %vm471, %v2295
      %2324 = vst [vmem:[#allocation4 + $0x12c] sm:$0xff] %v2313
      %2325 = vst.msk [vmem:[#allocation4 + $0x134] sm:$0xf] %vm471, %v2299
      %2326 = vst [vmem:[#allocation4 + $0x138] sm:$0xff] %v2315
      %2327 = vst.msk [vmem:[#allocation4 + $0x140] sm:$0xf] %vm471, %v2303
      %v2328 = vld [vmem:[#allocation4] sm:$0xff]
      %v2329 = vld [vmem:[#allocation4 + $0x8] sm:$0xf]
      %v2330 = vld [vmem:[#allocation4 + $0xc] sm:$0xff]
      %v2331 = vld [vmem:[#allocation4 + $0x14] sm:$0xf]
      %v2332 = vld [vmem:[#allocation4 + $0x18] sm:$0xff]
      %v2333 = vld [vmem:[#allocation4 + $0x20] sm:$0xf]
      %v2334 = vld [vmem:[#allocation4 + $0x24] sm:$0xff]
      %v2335 = vld [vmem:[#allocation4 + $0x2c] sm:$0xf]
      %v2336 = vld [vmem:[#allocation4 + $0x30] sm:$0xff]
      %v2337 = vld [vmem:[#allocation4 + $0x38] sm:$0xf]
      %v2338 = vld [vmem:[#allocation4 + $0x3c] sm:$0xff]
      %v2339 = vld [vmem:[#allocation4 + $0x44] sm:$0xf]
      %v2340 = vld [vmem:[#allocation4 + $0x48] sm:$0xff]
      %v2341 = vld [vmem:[#allocation4 + $0x50] sm:$0xf]
      %v2342 = vld [vmem:[#allocation4 + $0x54] sm:$0xff]
      %v2343 = vld [vmem:[#allocation4 + $0x5c] sm:$0xf]
      %v2344 = vld [vmem:[#allocation4 + $0x60] sm:$0xff]
      %v2345 = vld [vmem:[#allocation4 + $0x68] sm:$0xf]
      %v2346 = vld [vmem:[#allocation4 + $0x6c] sm:$0xff]
      %v2347 = vld [vmem:[#allocation4 + $0x74] sm:$0xf]
      %v2348 = vld [vmem:[#allocation4 + $0x78] sm:$0xff]
      %v2349 = vld [vmem:[#allocation4 + $0x80] sm:$0xf]
      %v2350 = vld [vmem:[#allocation4 + $0x84] sm:$0xff]
      %v2351 = vld [vmem:[#allocation4 + $0x8c] sm:$0xf]
      %v2352 = vld [vmem:[#allocation4 + $0x90] sm:$0xff]
      %v2353 = vld [vmem:[#allocation4 + $0x98] sm:$0xf]
      %v2354 = vld [vmem:[#allocation4 + $0x9c] sm:$0xff]
      %v2355 = vld [vmem:[#allocation4 + $0xa4] sm:$0xf]
      %v2356 = vld [vmem:[#allocation4 + $0xa8] sm:$0xff]
      %v2357 = vld [vmem:[#allocation4 + $0xb0] sm:$0xf]
      %v2358 = vld [vmem:[#allocation4 + $0xb4] sm:$0xff]
      %v2359 = vld [vmem:[#allocation4 + $0xbc] sm:$0xf]
      %v2360 = vld [vmem:[#allocation4 + $0xc0] sm:$0xff]
      %v2361 = vld [vmem:[#allocation4 + $0xc8] sm:$0xf]
      %v2362 = vld [vmem:[#allocation4 + $0xcc] sm:$0xff]
      %v2363 = vld [vmem:[#allocation4 + $0xd4] sm:$0xf]
      %v2364 = vld [vmem:[#allocation4 + $0xd8] sm:$0xff]
      %v2365 = vld [vmem:[#allocation4 + $0xe0] sm:$0xf]
      %v2366 = vld [vmem:[#allocation4 + $0xe4] sm:$0xff]
      %v2367 = vld [vmem:[#allocation4 + $0xec] sm:$0xf]
      %v2368 = vld [vmem:[#allocation4 + $0xf0] sm:$0xff]
      %v2369 = vld [vmem:[#allocation4 + $0xf8] sm:$0xf]
      %v2370 = vld [vmem:[#allocation4 + $0xfc] sm:$0xff]
      %v2371 = vld [vmem:[#allocation4 + $0x104] sm:$0xf]
      %v2372 = vld [vmem:[#allocation4 + $0x108] sm:$0xff]
      %v2373 = vld [vmem:[#allocation4 + $0x110] sm:$0xf]
      %v2374 = vld [vmem:[#allocation4 + $0x114] sm:$0xff]
      %v2375 = vld [vmem:[#allocation4 + $0x11c] sm:$0xf]
      %v2376 = vld [vmem:[#allocation4 + $0x120] sm:$0xff]
      %v2377 = vld [vmem:[#allocation4 + $0x128] sm:$0xf]
      %v2378 = vld [vmem:[#allocation4 + $0x12c] sm:$0xff]
      %v2379 = vld [vmem:[#allocation4 + $0x134] sm:$0xf]
      %v2380 = vld [vmem:[#allocation4 + $0x138] sm:$0xff]
      %v2381 = vld [vmem:[#allocation4 + $0x140] sm:$0xf]
      %2383 = vset.pattern.permute.xlu0 0
      %2384 = vperm.xlu0 %2383, %v1916
      %v2385 = vpop.permute.xlu0 %2384
      %2388 = vset.pattern.permute.xlu0 0
      %2389 = vperm.xlu0 %2388, %v1917
      %v2390 = vpop.permute.xlu0 %2389
      %v2394 = vunpack.c.l.b16 %v1913
      %v2395 = vunpack.c.h.b16 %v1913
      %v2396 = vunpack.c.l.b16 %v1914
      %v2397 = vunpack.c.h.b16 %v1914
      %v2398 = vpack.c.b16 %v2396, %v2394
      %v2399 = vpack.c.b16 %v2397, %v2395
      %v2455 = vunpack.c.l.b16 %v2328
      %v2456 = vunpack.c.h.b16 %v2328
      %v2457 = vunpack.c.l.b16 %v2329
      %v2458 = vunpack.c.l.b16 %v2330
      %v2459 = vunpack.c.h.b16 %v2330
      %v2460 = vunpack.c.l.b16 %v2331
      %v2461 = vunpack.c.l.b16 %v2332
      %v2462 = vunpack.c.h.b16 %v2332
      %v2463 = vunpack.c.l.b16 %v2333
      %v2464 = vunpack.c.l.b16 %v2334
      %v2465 = vunpack.c.h.b16 %v2334
      %v2466 = vunpack.c.l.b16 %v2335
      %v2467 = vunpack.c.l.b16 %v2336
      %v2468 = vunpack.c.h.b16 %v2336
      %v2469 = vunpack.c.l.b16 %v2337
      %v2470 = vunpack.c.l.b16 %v2338
      %v2471 = vunpack.c.h.b16 %v2338
      %v2472 = vunpack.c.l.b16 %v2339
      %v2473 = vunpack.c.l.b16 %v2340
      %v2474 = vunpack.c.h.b16 %v2340
      %v2475 = vunpack.c.l.b16 %v2341
      %v2476 = vunpack.c.l.b16 %v2342
      %v2477 = vunpack.c.h.b16 %v2342
      %v2478 = vunpack.c.l.b16 %v2343
      %v2479 = vunpack.c.l.b16 %v2344
      %v2480 = vunpack.c.h.b16 %v2344
      %v2481 = vunpack.c.l.b16 %v2345
      %v2482 = vunpack.c.l.b16 %v2346
      %v2483 = vunpack.c.h.b16 %v2346
      %v2484 = vunpack.c.l.b16 %v2347
      %v2485 = vunpack.c.l.b16 %v2348
      %v2486 = vunpack.c.h.b16 %v2348
      %v2487 = vunpack.c.l.b16 %v2349
      %v2488 = vunpack.c.l.b16 %v2350
      %v2489 = vunpack.c.h.b16 %v2350
      %v2490 = vunpack.c.l.b16 %v2351
      %v2491 = vunpack.c.l.b16 %v2352
      %v2492 = vunpack.c.h.b16 %v2352
      %v2493 = vunpack.c.l.b16 %v2353
      %v2494 = vunpack.c.l.b16 %v2354
      %v2495 = vunpack.c.h.b16 %v2354
      %v2496 = vunpack.c.l.b16 %v2355
      %v2497 = vunpack.c.l.b16 %v2356
      %v2498 = vunpack.c.h.b16 %v2356
      %v2499 = vunpack.c.l.b16 %v2357
      %v2500 = vunpack.c.l.b16 %v2358
      %v2501 = vunpack.c.h.b16 %v2358
      %v2502 = vunpack.c.l.b16 %v2359
      %v2503 = vunpack.c.l.b16 %v2360
      %v2504 = vunpack.c.h.b16 %v2360
      %v2505 = vunpack.c.l.b16 %v2361
      %v2506 = vunpack.c.l.b16 %v2362
      %v2507 = vunpack.c.h.b16 %v2362
      %v2508 = vunpack.c.l.b16 %v2363
      %v2509 = vunpack.c.l.b16 %v2364
      %v2510 = vunpack.c.h.b16 %v2364
      %v2511 = vunpack.c.l.b16 %v2365
      %v2512 = vunpack.c.l.b16 %v2366
      %v2513 = vunpack.c.h.b16 %v2366
      %v2514 = vunpack.c.l.b16 %v2367
      %v2515 = vunpack.c.l.b16 %v2368
      %v2516 = vunpack.c.h.b16 %v2368
      %v2517 = vunpack.c.l.b16 %v2369
      %v2518 = vunpack.c.l.b16 %v2370
      %v2519 = vunpack.c.h.b16 %v2370
      %v2520 = vunpack.c.l.b16 %v2371
      %v2521 = vunpack.c.l.b16 %v2372
      %v2522 = vunpack.c.h.b16 %v2372
      %v2523 = vunpack.c.l.b16 %v2373
      %v2524 = vunpack.c.l.b16 %v2374
      %v2525 = vunpack.c.h.b16 %v2374
      %v2526 = vunpack.c.l.b16 %v2375
      %v2527 = vunpack.c.l.b16 %v2376
      %v2528 = vunpack.c.h.b16 %v2376
      %v2529 = vunpack.c.l.b16 %v2377
      %v2530 = vunpack.c.l.b16 %v2378
      %v2531 = vunpack.c.h.b16 %v2378
      %v2532 = vunpack.c.l.b16 %v2379
      %v2533 = vunpack.c.l.b16 %v2380
      %v2534 = vunpack.c.h.b16 %v2380
      %v2535 = vunpack.c.l.b16 %v2381
      %v2536 = vpack.c.b16 %v2458, %v2455
      %v2537 = vpack.c.b16 %v2459, %v2456
      %v2538 = vpack.c.b16 %v2460, %v2457
      %v2539 = vpack.c.b16 %v2464, %v2461
      %v2540 = vpack.c.b16 %v2465, %v2462
      %v2541 = vpack.c.b16 %v2466, %v2463
      %v2542 = vpack.c.b16 %v2470, %v2467
      %v2543 = vpack.c.b16 %v2471, %v2468
      %v2544 = vpack.c.b16 %v2472, %v2469
      %v2545 = vpack.c.b16 %v2476, %v2473
      %v2546 = vpack.c.b16 %v2477, %v2474
      %v2547 = vpack.c.b16 %v2478, %v2475
      %v2548 = vpack.c.b16 %v2482, %v2479
      %v2549 = vpack.c.b16 %v2483, %v2480
      %v2550 = vpack.c.b16 %v2484, %v2481
      %v2551 = vpack.c.b16 %v2488, %v2485
      %v2552 = vpack.c.b16 %v2489, %v2486
      %v2553 = vpack.c.b16 %v2490, %v2487
      %v2554 = vpack.c.b16 %v2494, %v2491
      %v2555 = vpack.c.b16 %v2495, %v2492
      %v2556 = vpack.c.b16 %v2496, %v2493
      %v2557 = vpack.c.b16 %v2500, %v2497
      %v2558 = vpack.c.b16 %v2501, %v2498
      %v2559 = vpack.c.b16 %v2502, %v2499
      %v2560 = vpack.c.b16 %v2506, %v2503
      %v2561 = vpack.c.b16 %v2507, %v2504
      %v2562 = vpack.c.b16 %v2508, %v2505
      %v2563 = vpack.c.b16 %v2512, %v2509
      %v2564 = vpack.c.b16 %v2513, %v2510
      %v2565 = vpack.c.b16 %v2514, %v2511
      %v2566 = vpack.c.b16 %v2518, %v2515
      %v2567 = vpack.c.b16 %v2519, %v2516
      %v2568 = vpack.c.b16 %v2520, %v2517
      %v2569 = vpack.c.b16 %v2524, %v2521
      %v2570 = vpack.c.b16 %v2525, %v2522
      %v2571 = vpack.c.b16 %v2526, %v2523
      %v2572 = vpack.c.b16 %v2530, %v2527
      %v2573 = vpack.c.b16 %v2531, %v2528
      %v2574 = vpack.c.b16 %v2532, %v2529
      %v2575 = vpack.c.b16 %v2533, %v2533
      %v2576 = vpack.c.b16 %v2534, %v2534
      %v2577 = vpack.c.b16 %v2535, %v2535
      %v2618 = vsel %vm1732, %v2399, 0
      %v2621 = vsel %vm1736, %v2575, 0
      %v2624 = vsel %vm1736, %v2576, 0
      %v2627 = vsel %vm1736, %v2577, 0
      %2629 = vmatpush.bf16.msra.mxu0 %v2557
      %2630 = vmatpush.bf16.msra.mxu0 %v2554
      %2631 = vmatpush.bf16.msra.mxu0 %v2551
      %2632 = vmatpush.bf16.msra.mxu0 %v2548
      %2633 = vmatpush.bf16.msra.mxu0 %v2545
      %2634 = vmatpush.bf16.msra.mxu0 %v2542
      %2635 = vmatpush.bf16.msra.mxu0 %v2539
      %2636 = vmatpush.bf16.msra.mxu0 %v2536
      %2637 = vmatmul.bf16.gmra.mxu0 %v2398
      %v2638 = vpop.f32.mrf.mxu0
      %v2639 = vadd.f32 %v2385, %v2638
      %v2640 = vpop.f32.mrf.mxu0
      %v2641 = vadd.f32 %v2390, %v2640
      %2642 = vdwg.mxu0
      %2643 = vmatpush.bf16.msra.mxu0 0
      %2644 = vmatpush.bf16.msra.mxu0 0
      %2645 = vmatpush.bf16.msra.mxu0 %v2621
      %2646 = vmatpush.bf16.msra.mxu0 %v2572
      %2647 = vmatpush.bf16.msra.mxu0 %v2569
      %2648 = vmatpush.bf16.msra.mxu0 %v2566
      %2649 = vmatpush.bf16.msra.mxu0 %v2563
      %2650 = vmatpush.bf16.msra.mxu0 %v2560
      %2651 = vmatmul.bf16.gmra.mxu0 %v2618
      %v2652 = vpop.f32.mrf.mxu0
      %v2653 = vadd.f32 %v2639, %v2652
      %v2654 = vpop.f32.mrf.mxu0
      %v2655 = vadd.f32 %v2641, %v2654
      %2656 = vdwg.mxu0
      %2657 = vmatpush.bf16.msra.mxu0 %v2558
      %2658 = vmatpush.bf16.msra.mxu0 %v2555
      %2659 = vmatpush.bf16.msra.mxu0 %v2552
      %2660 = vmatpush.bf16.msra.mxu0 %v2549
      %2661 = vmatpush.bf16.msra.mxu0 %v2546
      %2662 = vmatpush.bf16.msra.mxu0 %v2543
      %2663 = vmatpush.bf16.msra.mxu0 %v2540
      %2664 = vmatpush.bf16.msra.mxu0 %v2537
      %2665 = vmatmul.bf16.gmra.mxu0 %v2398
      %v2666 = vpop.f32.mrf.mxu0
      %v2667 = vadd.f32 %v2385, %v2666
      %v2668 = vpop.f32.mrf.mxu0
      %v2669 = vadd.f32 %v2390, %v2668
      %2670 = vdwg.mxu0
      %2671 = vmatpush.bf16.msra.mxu0 0
      %2672 = vmatpush.bf16.msra.mxu0 0
      %2673 = vmatpush.bf16.msra.mxu0 %v2624
      %2674 = vmatpush.bf16.msra.mxu0 %v2573
      %2675 = vmatpush.bf16.msra.mxu0 %v2570
      %2676 = vmatpush.bf16.msra.mxu0 %v2567
      %2677 = vmatpush.bf16.msra.mxu0 %v2564
      %2678 = vmatpush.bf16.msra.mxu0 %v2561
      %2679 = vmatmul.bf16.gmra.mxu0 %v2618
      %v2680 = vpop.f32.mrf.mxu0
      %v2681 = vadd.f32 %v2667, %v2680
      %v2682 = vpop.f32.mrf.mxu0
      %v2683 = vadd.f32 %v2669, %v2682
      %2684 = vdwg.mxu0
      %2685 = vmatpush.bf16.msra.mxu0 %v2559
      %2686 = vmatpush.bf16.msra.mxu0 %v2556
      %2687 = vmatpush.bf16.msra.mxu0 %v2553
      %2688 = vmatpush.bf16.msra.mxu0 %v2550
      %2689 = vmatpush.bf16.msra.mxu0 %v2547
      %2690 = vmatpush.bf16.msra.mxu0 %v2544
      %2691 = vmatpush.bf16.msra.mxu0 %v2541
      %2692 = vmatpush.bf16.msra.mxu0 %v2538
      %2693 = vmatmul.bf16.gmra.mxu0 %v2398
      %v2694 = vpop.f32.mrf.mxu0
      %v2695 = vadd.f32 %v2385, %v2694
      %v2696 = vpop.f32.mrf.mxu0
      %v2697 = vadd.f32 %v2390, %v2696
      %2698 = vdwg.mxu0
      %2699 = vmatpush.bf16.msra.mxu0 0
      %2700 = vmatpush.bf16.msra.mxu0 0
      %2701 = vmatpush.bf16.msra.mxu0 %v2627
      %2702 = vmatpush.bf16.msra.mxu0 %v2574
      %2703 = vmatpush.bf16.msra.mxu0 %v2571
      %2704 = vmatpush.bf16.msra.mxu0 %v2568
      %2705 = vmatpush.bf16.msra.mxu0 %v2565
      %2706 = vmatpush.bf16.msra.mxu0 %v2562
      %2707 = vmatmul.bf16.gmra.mxu0 %v2618
      %v2708 = vpop.f32.mrf.mxu0
      %v2709 = vadd.f32 %v2695, %v2708
      %v2710 = vpop.f32.mrf.mxu0
      %v2711 = vadd.f32 %v2697, %v2710
      %2712 = vdwg.mxu0
      %v2713 = vmax.f32 %v2653, 0.0
      %v2714 = vmax.f32 %v2681, 0.0
      %v2715 = vmax.f32 %v2709, 0.0
      %v2716 = vmax.f32 %v2655, 0.0
      %v2717 = vmax.f32 %v2683, 0.0
      %v2718 = vmax.f32 %v2711, 0.0
      %v2719 = vpack.c.bf16 %v2714, %v2713
      %v2720 = vpack.c.bf16 %v2715, %v2715
      %v2721 = vpack.c.bf16 %v2717, %v2716
      %v2722 = vpack.c.bf16 %v2718, %v2718
      %v2723 = vunpack.c.l.bf16 %v2719
      %v2724 = vunpack.c.h.bf16 %v2719
      %v2725 = vunpack.c.l.bf16 %v2720
      %v2726 = vunpack.c.l.bf16 %v2721
      %v2727 = vunpack.c.h.bf16 %v2721
      %v2728 = vunpack.c.l.bf16 %v2722
      %v2729 = vmul.f32 %v2723, %v959
      %v2730 = vmul.f32 %v2724, %v960
      %v2731 = vmul.f32 %v2725, %v961
      %v2732 = vmul.f32 %v2726, %v959
      %v2733 = vmul.f32 %v2727, %v960
      %v2734 = vmul.f32 %v2728, %v961
      %v2735 = vpack.c.bf16 %v2730, %v2729
      %v2736 = vpack.c.bf16 %v2731, %v2731
      %v2737 = vpack.c.bf16 %v2733, %v2732
      %v2738 = vpack.c.bf16 %v2734, %v2734
      %v2739 = vsub.f32 0.0, %v2653
      %v2740 = vsub.f32 0.0, %v2681
      %v2741 = vsub.f32 0.0, %v2709
      %v2742 = vsub.f32 0.0, %v2655
      %v2743 = vsub.f32 0.0, %v2683
      %v2744 = vsub.f32 0.0, %v2711
      %v2745 = vmax.f32 %v2739, 0.0
      %v2746 = vmax.f32 %v2740, 0.0
      %v2747 = vmax.f32 %v2741, 0.0
      %v2748 = vmax.f32 %v2742, 0.0
      %v2749 = vmax.f32 %v2743, 0.0
      %v2750 = vmax.f32 %v2744, 0.0
      %v2751 = vpack.c.bf16 %v2746, %v2745
      %v2752 = vpack.c.bf16 %v2747, %v2747
      %v2753 = vpack.c.bf16 %v2749, %v2748
      %v2754 = vpack.c.bf16 %v2750, %v2750
      %v2755 = vunpack.c.l.bf16 %v2751
      %v2756 = vunpack.c.h.bf16 %v2751
      %v2757 = vunpack.c.l.bf16 %v2752
      %v2758 = vunpack.c.l.bf16 %v2753
      %v2759 = vunpack.c.h.bf16 %v2753
      %v2760 = vunpack.c.l.bf16 %v2754
      %v2761 = vmul.f32 %v2755, %v959
      %v2762 = vmul.f32 %v2756, %v960
      %v2763 = vmul.f32 %v2757, %v961
      %v2764 = vmul.f32 %v2758, %v959
      %v2765 = vmul.f32 %v2759, %v960
      %v2766 = vmul.f32 %v2760, %v961
      %v2767 = vpack.c.bf16 %v2762, %v2761
      %v2768 = vpack.c.bf16 %v2763, %v2763
      %v2769 = vpack.c.bf16 %v2765, %v2764
      %v2770 = vpack.c.bf16 %v2766, %v2766
      %2771 = vst [vmem:[#allocation2 + $0x4] sm:$0xff] %v2735
      %2772 = vst.msk [vmem:[#allocation2 + $0xc] sm:$0xf] %vm471, %v2736
      %2773 = vst [vmem:[#allocation2 + $0x14] sm:$0x33] %v2737
      %2774 = vst.msk [vmem:[#allocation2 + $0x1c] sm:$0x3] %vm1007, %v2738
      %v2779 = vrot.slane %v2767, 6
      %v2780 = vrot.slane %v2768, 6
      %v2781 = vrot.slane %v2779, 4
      %v2782 = vrot.slane %v2769, 6
      %v2783 = vsel %vm1013, %v2781, %v2782
      %v2784 = vrot.slane %v2780, 4
      %v2785 = vrot.slane %v2770, 6
      %v2786 = vsel %vm1013, %v2784, %v2785
      %2791 = vst [vmem:[#allocation2 + $0x14] sm:$0xcc] %v2779
      %2792 = vst.msk [vmem:[#allocation2 + $0x1c] sm:$0xc] %vm1027, %v2780
      %2793 = vst [vmem:[#allocation2 + $0x24] sm:$0xff] %v2783
      %2794 = vst.msk [vmem:[#allocation2 + $0x2c] sm:$0xf] %vm471, %v2786
      %v2797 = vunpack.c.l.b16 %v1918
      %v2798 = vunpack.c.l.b16 %v1919
      %v2799 = vpack.c.b16 %v2798, %v2797
      %2800 = vrot.lane.b32.xlu0 %v2799, 116
      %v2801 = vpop.permute.xlu0 %2800
      %v2802 = vunpack.c.l.b16 %v2767
      %v2803 = vunpack.c.h.b16 %v2767
      %v2804 = vunpack.c.l.b16 %v2768
      %v2805 = vunpack.c.l.b16 %v2769
      %v2806 = vunpack.c.h.b16 %v2769
      %v2807 = vunpack.c.l.b16 %v2770
      %v2808 = vpack.c.b16 %v2805, %v2802
      %v2809 = vpack.c.b16 %v2806, %v2803
      %v2810 = vpack.c.b16 %v2807, %v2804
      %vm2811 = vcmask 97280
      %v2813 = vsel %vm2811, %v2801, 0
      %v2816 = vsel %vm889, %v2808, 0
      %v2819 = vsel %vm889, %v2809, 0
      %v2822 = vsel %vm889, %v2810, 0
      %2824 = vmatpush.bf16.msra.mxu0 0
      %2825 = vmatpush.bf16.msra.mxu0 0
      %2826 = vmatpush.bf16.msra.mxu0 0
      %2827 = vmatpush.bf16.msra.mxu0 0
      %2828 = vmatpush.bf16.msra.mxu0 0
      %2829 = vmatpush.bf16.msra.mxu0 0
      %2830 = vmatpush.bf16.msra.mxu0 0
      %2831 = vmatpush.bf16.msra.mxu0 %v2816
      %2832 = vmatmul.bf16.gmra.mxu0 %v2813
      %v2833 = vpop.f32.mrf.mxu0
      %v2834 = vadd.f32 0.0, %v2833
      %v2835 = vpop.f32.mrf.mxu0
      %v2836 = vadd.f32 0.0, %v2835
      %2837 = vdwg.mxu0
      %2838 = vmatpush.bf16.msra.mxu0 0
      %2839 = vmatpush.bf16.msra.mxu0 0
      %2840 = vmatpush.bf16.msra.mxu0 0
      %2841 = vmatpush.bf16.msra.mxu0 0
      %2842 = vmatpush.bf16.msra.mxu0 0
      %2843 = vmatpush.bf16.msra.mxu0 0
      %2844 = vmatpush.bf16.msra.mxu0 0
      %2845 = vmatpush.bf16.msra.mxu0 %v2819
      %2846 = vmatmul.bf16.gmra.mxu0 %v2813
      %v2847 = vpop.f32.mrf.mxu0
      %v2848 = vadd.f32 0.0, %v2847
      %v2849 = vpop.f32.mrf.mxu0
      %v2850 = vadd.f32 0.0, %v2849
      %2851 = vdwg.mxu0
      %2852 = vmatpush.bf16.msra.mxu0 0
      %2853 = vmatpush.bf16.msra.mxu0 0
      %2854 = vmatpush.bf16.msra.mxu0 0
      %2855 = vmatpush.bf16.msra.mxu0 0
      %2856 = vmatpush.bf16.msra.mxu0 0
      %2857 = vmatpush.bf16.msra.mxu0 0
      %2858 = vmatpush.bf16.msra.mxu0 0
      %2859 = vmatpush.bf16.msra.mxu0 %v2822
      %2860 = vmatmul.bf16.gmra.mxu0 %v2813
      %v2861 = vpop.f32.mrf.mxu0
      %v2862 = vadd.f32 0.0, %v2861
      %v2863 = vpop.f32.mrf.mxu0
      %v2864 = vadd.f32 0.0, %v2863
      %2865 = vdwg.mxu0
      %v2870 = vunpack.c.l.b16 %v2735
      %v2871 = vunpack.c.h.b16 %v2735
      %v2872 = vunpack.c.l.b16 %v2736
      %v2873 = vunpack.c.l.b16 %v2737
      %v2874 = vunpack.c.h.b16 %v2737
      %v2875 = vunpack.c.l.b16 %v2738
      %v2876 = vpack.c.b16 %v2873, %v2870
      %v2877 = vpack.c.b16 %v2874, %v2871
      %v2878 = vpack.c.b16 %v2875, %v2872
      %v2880 = vsel %vm2811, %v2799, 0
      %v2883 = vsel %vm889, %v2876, 0
      %v2886 = vsel %vm889, %v2877, 0
      %v2889 = vsel %vm889, %v2878, 0
      %2891 = vmatpush.bf16.msra.mxu0 0
      %2892 = vmatpush.bf16.msra.mxu0 0
      %2893 = vmatpush.bf16.msra.mxu0 0
      %2894 = vmatpush.bf16.msra.mxu0 0
      %2895 = vmatpush.bf16.msra.mxu0 0
      %2896 = vmatpush.bf16.msra.mxu0 0
      %2897 = vmatpush.bf16.msra.mxu0 0
      %2898 = vmatpush.bf16.msra.mxu0 %v2883
      %2899 = vmatmul.bf16.gmra.mxu0 %v2880
      %v2900 = vpop.f32.mrf.mxu0
      %v2901 = vadd.f32 %v2834, %v2900
      %v2902 = vpop.f32.mrf.mxu0
      %v2903 = vadd.f32 %v2836, %v2902
      %2904 = vdwg.mxu0
      %2905 = vmatpush.bf16.msra.mxu0 0
      %2906 = vmatpush.bf16.msra.mxu0 0
      %2907 = vmatpush.bf16.msra.mxu0 0
      %2908 = vmatpush.bf16.msra.mxu0 0
      %2909 = vmatpush.bf16.msra.mxu0 0
      %2910 = vmatpush.bf16.msra.mxu0 0
      %2911 = vmatpush.bf16.msra.mxu0 0
      %2912 = vmatpush.bf16.msra.mxu0 %v2886
      %2913 = vmatmul.bf16.gmra.mxu0 %v2880
      %v2914 = vpop.f32.mrf.mxu0
      %v2915 = vadd.f32 %v2848, %v2914
      %v2916 = vpop.f32.mrf.mxu0
      %v2917 = vadd.f32 %v2850, %v2916
      %2918 = vdwg.mxu0
      %2919 = vmatpush.bf16.msra.mxu0 0
      %2920 = vmatpush.bf16.msra.mxu0 0
      %2921 = vmatpush.bf16.msra.mxu0 0
      %2922 = vmatpush.bf16.msra.mxu0 0
      %2923 = vmatpush.bf16.msra.mxu0 0
      %2924 = vmatpush.bf16.msra.mxu0 0
      %2925 = vmatpush.bf16.msra.mxu0 0
      %2926 = vmatpush.bf16.msra.mxu0 %v2889
      %2927 = vmatmul.bf16.gmra.mxu0 %v2880
      %v2928 = vpop.f32.mrf.mxu0
      %v2929 = vadd.f32 %v2862, %v2928
      %v2930 = vpop.f32.mrf.mxu0
      %v2931 = vadd.f32 %v2864, %v2930
      %2932 = vdwg.mxu0
      %v2933 = vld [vmem:[#allocation5] sm:$0xff]
      %v2934 = vld [vmem:[#allocation5 + $0x8] sm:$0xff]
      %v2935 = vld [vmem:[#allocation5 + $0x10] sm:$0xff]
      %v2936 = vld [vmem:[#allocation5 + $0x18] sm:$0xf]
      %v2937 = vld [vmem:[#allocation5 + $0x20] sm:$0xf]
      %v2938 = vld [vmem:[#allocation5 + $0x28] sm:$0xf]
      %v2939 = vadd.f32 %v2933, %v2901
      %v2940 = vadd.f32 %v2934, %v2915
      %v2941 = vadd.f32 %v2935, %v2929
      %v2942 = vadd.f32 %v2936, %v2903
      %v2943 = vadd.f32 %v2937, %v2917
      %v2944 = vadd.f32 %v2938, %v2931
      %2945 = vst [vmem:[#allocation5] sm:$0xff] %v2939
      %2946 = vst [vmem:[#allocation5 + $0x8] sm:$0xff] %v2940
      %2947 = vst.msk [vmem:[#allocation5 + $0x10] sm:$0xff] %vm467, %v2941
      %2948 = vst [vmem:[#allocation5 + $0x18] sm:$0xf] %v2942
      %2949 = vst [vmem:[#allocation5 + $0x20] sm:$0xf] %v2943
      %2950 = vst.msk [vmem:[#allocation5 + $0x28] sm:$0xf] %vm471, %v2944
      %s2951 = scalar_lea.vmem %s4, 32
      %v2952 = vld [vmem:[%s2951] sm:$0xff]
      %v2953 = vld [vmem:[%s2951 + $0x8] sm:$0x33]
      %s2954 = scalar_lea.vmem %s5, 32
      %v2955 = vld [vmem:[%s2954] sm:$0xff]
      %v2956 = vld [vmem:[%s2954 + $0x8] sm:$0xf]
      %s2957 = scalar_lea.vmem %s6, 8
      %v2958 = vld [vmem:[%s2957] sm:$0xf]
      %v2959 = vld [vmem:[%s2957 + $0x4] sm:$0x3]
      %v2960 = vld [vmem:[#allocation2] sm:$0xff]
      %v2961 = vld [vmem:[#allocation2 + $0x8] sm:$0xff]
      %v2962 = vld [vmem:[#allocation2 + $0x10] sm:$0xff]
      %v2963 = vld [vmem:[#allocation2 + $0x18] sm:$0xff]
      %v2964 = vld [vmem:[#allocation2 + $0x20] sm:$0xff]
      %v2965 = vld [vmem:[#allocation2 + $0x28] sm:$0xff]
      %2972 = vrot.lane.b32.xlu0 %v2960, 19
      %v2973 = vpop.permute.xlu0 %2972
      %2974 = vrot.lane.b32.xlu0 %v2961, 19
      %v2975 = vpop.permute.xlu0 %2974
      %2976 = vrot.lane.b32.xlu0 %v2962, 19
      %v2977 = vpop.permute.xlu0 %2976
      %2978 = vrot.lane.b32.xlu0 %v2963, 19
      %v2979 = vpop.permute.xlu0 %2978
      %2980 = vrot.lane.b32.xlu0 %v2964, 19
      %v2981 = vpop.permute.xlu0 %2980
      %2982 = vrot.lane.b32.xlu0 %v2965, 19
      %v2983 = vpop.permute.xlu0 %2982
      %v2984 = vrot.slane %v2973, 4
      %v2985 = vrot.slane %v2975, 4
      %v2986 = vrot.slane %v2977, 4
      %v2987 = vrot.slane %v2979, 4
      %v2988 = vrot.slane %v2981, 4
      %v2989 = vrot.slane %v2983, 4
      %v2990 = vsel %vm490, %v2984, %v2985
      %v2991 = vsel %vm492, %v2973, %v2990
      %v2992 = vsel %vm492, %v2975, %v2985
      %v2993 = vsel %vm490, %v2986, %v2987
      %v2994 = vsel %vm492, %v2977, %v2993
      %v2995 = vsel %vm492, %v2979, %v2987
      %v2996 = vsel %vm490, %v2988, %v2989
      %v2997 = vsel %vm492, %v2981, %v2996
      %v2998 = vsel %vm492, %v2983, %v2989
      %3005 = vst [vmem:[#allocation4] sm:$0xff] %v2991
      %3006 = vst.msk [vmem:[#allocation4 + $0x8] sm:$0xf] %vm471, %v2992
      %3007 = vst [vmem:[#allocation4 + $0xc] sm:$0xff] %v2994
      %3008 = vst.msk [vmem:[#allocation4 + $0x14] sm:$0xf] %vm471, %v2995
      %3009 = vst [vmem:[#allocation4 + $0x18] sm:$0xff] %v2997
      %3010 = vst.msk [vmem:[#allocation4 + $0x20] sm:$0xf] %vm471, %v2998
      %v3011 = vld [vmem:[#allocation2] sm:$0xff]
      %v3012 = vld [vmem:[#allocation2 + $0x8] sm:$0xff]
      %v3013 = vld [vmem:[#allocation2 + $0x10] sm:$0xff]
      %v3014 = vld [vmem:[#allocation2 + $0x18] sm:$0xff]
      %v3015 = vld [vmem:[#allocation2 + $0x20] sm:$0xff]
      %v3016 = vld [vmem:[#allocation2 + $0x28] sm:$0xff]
      %3023 = vrot.lane.b32.xlu0 %v3011, 18
      %v3024 = vpop.permute.xlu0 %3023
      %3025 = vrot.lane.b32.xlu0 %v3012, 18
      %v3026 = vpop.permute.xlu0 %3025
      %3027 = vrot.lane.b32.xlu0 %v3013, 18
      %v3028 = vpop.permute.xlu0 %3027
      %3029 = vrot.lane.b32.xlu0 %v3014, 18
      %v3030 = vpop.permute.xlu0 %3029
      %3031 = vrot.lane.b32.xlu0 %v3015, 18
      %v3032 = vpop.permute.xlu0 %3031
      %3033 = vrot.lane.b32.xlu0 %v3016, 18
      %v3034 = vpop.permute.xlu0 %3033
      %v3035 = vrot.slane %v3024, 4
      %v3036 = vrot.slane %v3026, 4
      %v3037 = vrot.slane %v3028, 4
      %v3038 = vrot.slane %v3030, 4
      %v3039 = vrot.slane %v3032, 4
      %v3040 = vrot.slane %v3034, 4
      %v3041 = vsel %vm490, %v3035, %v3036
      %v3042 = vsel %vm538, %v3024, %v3041
      %v3043 = vsel %vm538, %v3026, %v3036
      %v3044 = vsel %vm490, %v3037, %v3038
      %v3045 = vsel %vm538, %v3028, %v3044
      %v3046 = vsel %vm538, %v3030, %v3038
      %v3047 = vsel %vm490, %v3039, %v3040
      %v3048 = vsel %vm538, %v3032, %v3047
      %v3049 = vsel %vm538, %v3034, %v3040
      %3056 = vst [vmem:[#allocation4 + $0x24] sm:$0xff] %v3042
      %3057 = vst.msk [vmem:[#allocation4 + $0x2c] sm:$0xf] %vm471, %v3043
      %3058 = vst [vmem:[#allocation4 + $0x30] sm:$0xff] %v3045
      %3059 = vst.msk [vmem:[#allocation4 + $0x38] sm:$0xf] %vm471, %v3046
      %3060 = vst [vmem:[#allocation4 + $0x3c] sm:$0xff] %v3048
      %3061 = vst.msk [vmem:[#allocation4 + $0x44] sm:$0xf] %vm471, %v3049
      %v3062 = vld [vmem:[#allocation2] sm:$0xff]
      %v3063 = vld [vmem:[#allocation2 + $0x8] sm:$0xff]
      %v3064 = vld [vmem:[#allocation2 + $0x10] sm:$0xff]
      %v3065 = vld [vmem:[#allocation2 + $0x18] sm:$0xff]
      %v3066 = vld [vmem:[#allocation2 + $0x20] sm:$0xff]
      %v3067 = vld [vmem:[#allocation2 + $0x28] sm:$0xff]
      %3074 = vrot.lane.b32.xlu0 %v3062, 17
      %v3075 = vpop.permute.xlu0 %3074
      %3076 = vrot.lane.b32.xlu0 %v3063, 17
      %v3077 = vpop.permute.xlu0 %3076
      %3078 = vrot.lane.b32.xlu0 %v3064, 17
      %v3079 = vpop.permute.xlu0 %3078
      %3080 = vrot.lane.b32.xlu0 %v3065, 17
      %v3081 = vpop.permute.xlu0 %3080
      %3082 = vrot.lane.b32.xlu0 %v3066, 17
      %v3083 = vpop.permute.xlu0 %3082
      %3084 = vrot.lane.b32.xlu0 %v3067, 17
      %v3085 = vpop.permute.xlu0 %3084
      %v3086 = vrot.slane %v3075, 4
      %v3087 = vrot.slane %v3077, 4
      %v3088 = vrot.slane %v3079, 4
      %v3089 = vrot.slane %v3081, 4
      %v3090 = vrot.slane %v3083, 4
      %v3091 = vrot.slane %v3085, 4
      %v3092 = vsel %vm490, %v3086, %v3087
      %v3093 = vsel %vm582, %v3075, %v3092
      %v3094 = vsel %vm582, %v3077, %v3087
      %v3095 = vsel %vm490, %v3088, %v3089
      %v3096 = vsel %vm582, %v3079, %v3095
      %v3097 = vsel %vm582, %v3081, %v3089
      %v3098 = vsel %vm490, %v3090, %v3091
      %v3099 = vsel %vm582, %v3083, %v3098
      %v3100 = vsel %vm582, %v3085, %v3091
      %3107 = vst [vmem:[#allocation4 + $0x48] sm:$0xff] %v3093
      %3108 = vst.msk [vmem:[#allocation4 + $0x50] sm:$0xf] %vm471, %v3094
      %3109 = vst [vmem:[#allocation4 + $0x54] sm:$0xff] %v3096
      %3110 = vst.msk [vmem:[#allocation4 + $0x5c] sm:$0xf] %vm471, %v3097
      %3111 = vst [vmem:[#allocation4 + $0x60] sm:$0xff] %v3099
      %3112 = vst.msk [vmem:[#allocation4 + $0x68] sm:$0xf] %vm471, %v3100
      %v3113 = vld [vmem:[#allocation2] sm:$0xff]
      %v3114 = vld [vmem:[#allocation2 + $0x8] sm:$0xff]
      %v3115 = vld [vmem:[#allocation2 + $0x10] sm:$0xff]
      %v3116 = vld [vmem:[#allocation2 + $0x18] sm:$0xff]
      %v3117 = vld [vmem:[#allocation2 + $0x20] sm:$0xff]
      %v3118 = vld [vmem:[#allocation2 + $0x28] sm:$0xff]
      %3125 = vrot.lane.b32.xlu0 %v3113, 1
      %v3126 = vpop.permute.xlu0 %3125
      %3127 = vrot.lane.b32.xlu0 %v3114, 1
      %v3128 = vpop.permute.xlu0 %3127
      %3129 = vrot.lane.b32.xlu0 %v3115, 1
      %v3130 = vpop.permute.xlu0 %3129
      %3131 = vrot.lane.b32.xlu0 %v3116, 1
      %v3132 = vpop.permute.xlu0 %3131
      %3133 = vrot.lane.b32.xlu0 %v3117, 1
      %v3134 = vpop.permute.xlu0 %3133
      %3135 = vrot.lane.b32.xlu0 %v3118, 1
      %v3136 = vpop.permute.xlu0 %3135
      %v3137 = vrot.slane %v3126, 4
      %v3138 = vrot.slane %v3128, 4
      %v3139 = vrot.slane %v3130, 4
      %v3140 = vrot.slane %v3132, 4
      %v3141 = vrot.slane %v3134, 4
      %v3142 = vrot.slane %v3136, 4
      %v3143 = vsel %vm490, %v3137, %v3138
      %v3144 = vsel %vm634, %v3126, %v3143
      %v3145 = vsel %vm634, %v3128, %v3138
      %v3146 = vsel %vm490, %v3139, %v3140
      %v3147 = vsel %vm634, %v3130, %v3146
      %v3148 = vsel %vm634, %v3132, %v3140
      %v3149 = vsel %vm490, %v3141, %v3142
      %v3150 = vsel %vm634, %v3134, %v3149
      %v3151 = vsel %vm634, %v3136, %v3142
      %3158 = vst [vmem:[#allocation4 + $0x6c] sm:$0xff] %v3144
      %3159 = vst.msk [vmem:[#allocation4 + $0x74] sm:$0xf] %vm471, %v3145
      %3160 = vst [vmem:[#allocation4 + $0x78] sm:$0xff] %v3147
      %3161 = vst.msk [vmem:[#allocation4 + $0x80] sm:$0xf] %vm471, %v3148
      %3162 = vst [vmem:[#allocation4 + $0x84] sm:$0xff] %v3150
      %3163 = vst.msk [vmem:[#allocation4 + $0x8c] sm:$0xf] %vm471, %v3151
      %v3164 = vld [vmem:[#allocation2 + $0x4] sm:$0xff]
      %v3165 = vld [vmem:[#allocation2 + $0xc] sm:$0xf]
      %v3166 = vld [vmem:[#allocation2 + $0x14] sm:$0xff]
      %v3167 = vld [vmem:[#allocation2 + $0x1c] sm:$0xf]
      %v3168 = vld [vmem:[#allocation2 + $0x24] sm:$0xff]
      %v3169 = vld [vmem:[#allocation2 + $0x2c] sm:$0xf]
      %3170 = vst [vmem:[#allocation4 + $0x90] sm:$0xff] %v3164
      %3171 = vst.msk [vmem:[#allocation4 + $0x98] sm:$0xf] %vm471, %v3165
      %3172 = vst [vmem:[#allocation4 + $0x9c] sm:$0xff] %v3166
      %3173 = vst.msk [vmem:[#allocation4 + $0xa4] sm:$0xf] %vm471, %v3167
      %3174 = vst [vmem:[#allocation4 + $0xa8] sm:$0xff] %v3168
      %3175 = vst.msk [vmem:[#allocation4 + $0xb0] sm:$0xf] %vm471, %v3169
      %v3176 = vld [vmem:[#allocation2 + $0x4] sm:$0xff]
      %v3177 = vld [vmem:[#allocation2 + $0xc] sm:$0xf]
      %v3178 = vld [vmem:[#allocation2 + $0x14] sm:$0xff]
      %v3179 = vld [vmem:[#allocation2 + $0x1c] sm:$0xf]
      %v3180 = vld [vmem:[#allocation2 + $0x24] sm:$0xff]
      %v3181 = vld [vmem:[#allocation2 + $0x2c] sm:$0xf]
      %3188 = vrot.lane.b32.xlu0 %v3176, 127
      %v3189 = vpop.permute.xlu0 %3188
      %3190 = vrot.lane.b32.xlu0 %v3177, 127
      %v3191 = vpop.permute.xlu0 %3190
      %3192 = vrot.lane.b32.xlu0 %v3178, 127
      %v3193 = vpop.permute.xlu0 %3192
      %3194 = vrot.lane.b32.xlu0 %v3179, 127
      %v3195 = vpop.permute.xlu0 %3194
      %3196 = vrot.lane.b32.xlu0 %v3180, 127
      %v3197 = vpop.permute.xlu0 %3196
      %3198 = vrot.lane.b32.xlu0 %v3181, 127
      %v3199 = vpop.permute.xlu0 %3198
      %v3200 = vrot.slane %v3189, 4
      %v3201 = vrot.slane %v3191, 4
      %v3202 = vrot.slane %v3193, 4
      %v3203 = vrot.slane %v3195, 4
      %v3204 = vrot.slane %v3197, 4
      %v3205 = vrot.slane %v3199, 4
      %v3206 = vsel %vm490, %v3200, %v3201
      %v3207 = vsel %vm708, %v3189, %v3206
      %v3208 = vsel %vm490, %v3202, %v3203
      %v3209 = vsel %vm708, %v3193, %v3208
      %v3210 = vsel %vm490, %v3204, %v3205
      %v3211 = vsel %vm708, %v3197, %v3210
      %3218 = vst [vmem:[#allocation4 + $0xb4] sm:$0xff] %v3207
      %3219 = vst.msk [vmem:[#allocation4 + $0xbc] sm:$0xf] %vm471, %v3191
      %3220 = vst [vmem:[#allocation4 + $0xc0] sm:$0xff] %v3209
      %3221 = vst.msk [vmem:[#allocation4 + $0xc8] sm:$0xf] %vm471, %v3195
      %3222 = vst [vmem:[#allocation4 + $0xcc] sm:$0xff] %v3211
      %3223 = vst.msk [vmem:[#allocation4 + $0xd4] sm:$0xf] %vm471, %v3199
      %v3224 = vld [vmem:[#allocation2 + $0x4] sm:$0xff]
      %v3225 = vld [vmem:[#allocation2 + $0xc] sm:$0xf]
      %v3226 = vld [vmem:[#allocation2 + $0x14] sm:$0xff]
      %v3227 = vld [vmem:[#allocation2 + $0x1c] sm:$0xf]
      %v3228 = vld [vmem:[#allocation2 + $0x24] sm:$0xff]
      %v3229 = vld [vmem:[#allocation2 + $0x2c] sm:$0xf]
      %3236 = vrot.lane.b32.xlu0 %v3224, 111
      %v3237 = vpop.permute.xlu0 %3236
      %3238 = vrot.lane.b32.xlu0 %v3225, 111
      %v3239 = vpop.permute.xlu0 %3238
      %3240 = vrot.lane.b32.xlu0 %v3226, 111
      %v3241 = vpop.permute.xlu0 %3240
      %3242 = vrot.lane.b32.xlu0 %v3227, 111
      %v3243 = vpop.permute.xlu0 %3242
      %3244 = vrot.lane.b32.xlu0 %v3228, 111
      %v3245 = vpop.permute.xlu0 %3244
      %3246 = vrot.lane.b32.xlu0 %v3229, 111
      %v3247 = vpop.permute.xlu0 %3246
      %v3248 = vrot.slane %v3237, 4
      %v3249 = vrot.slane %v3239, 4
      %v3250 = vrot.slane %v3241, 4
      %v3251 = vrot.slane %v3243, 4
      %v3252 = vrot.slane %v3245, 4
      %v3253 = vrot.slane %v3247, 4
      %v3254 = vsel %vm490, %v3248, %v3249
      %v3255 = vsel %vm750, %v3237, %v3254
      %v3256 = vsel %vm490, %v3250, %v3251
      %v3257 = vsel %vm750, %v3241, %v3256
      %v3258 = vsel %vm490, %v3252, %v3253
      %v3259 = vsel %vm750, %v3245, %v3258
      %3266 = vst [vmem:[#allocation4 + $0xd8] sm:$0xff] %v3255
      %3267 = vst.msk [vmem:[#allocation4 + $0xe0] sm:$0xf] %vm471, %v3239
      %3268 = vst [vmem:[#allocation4 + $0xe4] sm:$0xff] %v3257
      %3269 = vst.msk [vmem:[#allocation4 + $0xec] sm:$0xf] %vm471, %v3243
      %3270 = vst [vmem:[#allocation4 + $0xf0] sm:$0xff] %v3259
      %3271 = vst.msk [vmem:[#allocation4 + $0xf8] sm:$0xf] %vm471, %v3247
      %v3272 = vld [vmem:[#allocation2 + $0x4] sm:$0xff]
      %v3273 = vld [vmem:[#allocation2 + $0xc] sm:$0xf]
      %v3274 = vld [vmem:[#allocation2 + $0x14] sm:$0xff]
      %v3275 = vld [vmem:[#allocation2 + $0x1c] sm:$0xf]
      %v3276 = vld [vmem:[#allocation2 + $0x24] sm:$0xff]
      %v3277 = vld [vmem:[#allocation2 + $0x2c] sm:$0xf]
      %3284 = vrot.lane.b32.xlu0 %v3272, 110
      %v3285 = vpop.permute.xlu0 %3284
      %3286 = vrot.lane.b32.xlu0 %v3273, 110
      %v3287 = vpop.permute.xlu0 %3286
      %3288 = vrot.lane.b32.xlu0 %v3274, 110
      %v3289 = vpop.permute.xlu0 %3288
      %3290 = vrot.lane.b32.xlu0 %v3275, 110
      %v3291 = vpop.permute.xlu0 %3290
      %3292 = vrot.lane.b32.xlu0 %v3276, 110
      %v3293 = vpop.permute.xlu0 %3292
      %3294 = vrot.lane.b32.xlu0 %v3277, 110
      %v3295 = vpop.permute.xlu0 %3294
      %v3296 = vrot.slane %v3285, 4
      %v3297 = vrot.slane %v3287, 4
      %v3298 = vrot.slane %v3289, 4
      %v3299 = vrot.slane %v3291, 4
      %v3300 = vrot.slane %v3293, 4
      %v3301 = vrot.slane %v3295, 4
      %v3302 = vsel %vm490, %v3296, %v3297
      %v3303 = vsel %vm792, %v3285, %v3302
      %v3304 = vsel %vm490, %v3298, %v3299
      %v3305 = vsel %vm792, %v3289, %v3304
      %v3306 = vsel %vm490, %v3300, %v3301
      %v3307 = vsel %vm792, %v3293, %v3306
      %3314 = vst [vmem:[#allocation4 + $0xfc] sm:$0xff] %v3303
      %3315 = vst.msk [vmem:[#allocation4 + $0x104] sm:$0xf] %vm471, %v3287
      %3316 = vst [vmem:[#allocation4 + $0x108] sm:$0xff] %v3305
      %3317 = vst.msk [vmem:[#allocation4 + $0x110] sm:$0xf] %vm471, %v3291
      %3318 = vst [vmem:[#allocation4 + $0x114] sm:$0xff] %v3307
      %3319 = vst.msk [vmem:[#allocation4 + $0x11c] sm:$0xf] %vm471, %v3295
      %v3320 = vld [vmem:[#allocation2 + $0x4] sm:$0xff]
      %v3321 = vld [vmem:[#allocation2 + $0xc] sm:$0xf]
      %v3322 = vld [vmem:[#allocation2 + $0x14] sm:$0xff]
      %v3323 = vld [vmem:[#allocation2 + $0x1c] sm:$0xf]
      %v3324 = vld [vmem:[#allocation2 + $0x24] sm:$0xff]
      %v3325 = vld [vmem:[#allocation2 + $0x2c] sm:$0xf]
      %3332 = vrot.lane.b32.xlu0 %v3320, 109
      %v3333 = vpop.permute.xlu0 %3332
      %3334 = vrot.lane.b32.xlu0 %v3321, 109
      %v3335 = vpop.permute.xlu0 %3334
      %3336 = vrot.lane.b32.xlu0 %v3322, 109
      %v3337 = vpop.permute.xlu0 %3336
      %3338 = vrot.lane.b32.xlu0 %v3323, 109
      %v3339 = vpop.permute.xlu0 %3338
      %3340 = vrot.lane.b32.xlu0 %v3324, 109
      %v3341 = vpop.permute.xlu0 %3340
      %3342 = vrot.lane.b32.xlu0 %v3325, 109
      %v3343 = vpop.permute.xlu0 %3342
      %v3344 = vrot.slane %v3333, 4
      %v3345 = vrot.slane %v3335, 4
      %v3346 = vrot.slane %v3337, 4
      %v3347 = vrot.slane %v3339, 4
      %v3348 = vrot.slane %v3341, 4
      %v3349 = vrot.slane %v3343, 4
      %v3350 = vsel %vm490, %v3344, %v3345
      %v3351 = vsel %vm822, %v3333, %v3350
      %v3352 = vsel %vm490, %v3346, %v3347
      %v3353 = vsel %vm822, %v3337, %v3352
      %v3354 = vsel %vm490, %v3348, %v3349
      %v3355 = vsel %vm822, %v3341, %v3354
      %3362 = vst [vmem:[#allocation4 + $0x120] sm:$0xff] %v3351
      %3363 = vst.msk [vmem:[#allocation4 + $0x128] sm:$0xf] %vm471, %v3335
      %3364 = vst [vmem:[#allocation4 + $0x12c] sm:$0xff] %v3353
      %3365 = vst.msk [vmem:[#allocation4 + $0x134] sm:$0xf] %vm471, %v3339
      %3366 = vst [vmem:[#allocation4 + $0x138] sm:$0xff] %v3355
      %3367 = vst.msk [vmem:[#allocation4 + $0x140] sm:$0xf] %vm471, %v3343
      %v3368 = vld [vmem:[#allocation4] sm:$0xff]
      %v3369 = vld [vmem:[#allocation4 + $0x8] sm:$0xf]
      %v3370 = vld [vmem:[#allocation4 + $0xc] sm:$0xff]
      %v3371 = vld [vmem:[#allocation4 + $0x14] sm:$0xf]
      %v3372 = vld [vmem:[#allocation4 + $0x18] sm:$0xff]
      %v3373 = vld [vmem:[#allocation4 + $0x20] sm:$0xf]
      %v3374 = vld [vmem:[#allocation4 + $0x24] sm:$0xff]
      %v3375 = vld [vmem:[#allocation4 + $0x2c] sm:$0xf]
      %v3376 = vld [vmem:[#allocation4 + $0x30] sm:$0xff]
      %v3377 = vld [vmem:[#allocation4 + $0x38] sm:$0xf]
      %v3378 = vld [vmem:[#allocation4 + $0x3c] sm:$0xff]
      %v3379 = vld [vmem:[#allocation4 + $0x44] sm:$0xf]
      %v3380 = vld [vmem:[#allocation4 + $0x48] sm:$0xff]
      %v3381 = vld [vmem:[#allocation4 + $0x50] sm:$0xf]
      %v3382 = vld [vmem:[#allocation4 + $0x54] sm:$0xff]
      %v3383 = vld [vmem:[#allocation4 + $0x5c] sm:$0xf]
      %v3384 = vld [vmem:[#allocation4 + $0x60] sm:$0xff]
      %v3385 = vld [vmem:[#allocation4 + $0x68] sm:$0xf]
      %v3386 = vld [vmem:[#allocation4 + $0x6c] sm:$0xff]
      %v3387 = vld [vmem:[#allocation4 + $0x74] sm:$0xf]
      %v3388 = vld [vmem:[#allocation4 + $0x78] sm:$0xff]
      %v3389 = vld [vmem:[#allocation4 + $0x80] sm:$0xf]
      %v3390 = vld [vmem:[#allocation4 + $0x84] sm:$0xff]
      %v3391 = vld [vmem:[#allocation4 + $0x8c] sm:$0xf]
      %v3392 = vld [vmem:[#allocation4 + $0x90] sm:$0xff]
      %v3393 = vld [vmem:[#allocation4 + $0x98] sm:$0xf]
      %v3394 = vld [vmem:[#allocation4 + $0x9c] sm:$0xff]
      %v3395 = vld [vmem:[#allocation4 + $0xa4] sm:$0xf]
      %v3396 = vld [vmem:[#allocation4 + $0xa8] sm:$0xff]
      %v3397 = vld [vmem:[#allocation4 + $0xb0] sm:$0xf]
      %v3398 = vld [vmem:[#allocation4 + $0xb4] sm:$0xff]
      %v3399 = vld [vmem:[#allocation4 + $0xbc] sm:$0xf]
      %v3400 = vld [vmem:[#allocation4 + $0xc0] sm:$0xff]
      %v3401 = vld [vmem:[#allocation4 + $0xc8] sm:$0xf]
      %v3402 = vld [vmem:[#allocation4 + $0xcc] sm:$0xff]
      %v3403 = vld [vmem:[#allocation4 + $0xd4] sm:$0xf]
      %v3404 = vld [vmem:[#allocation4 + $0xd8] sm:$0xff]
      %v3405 = vld [vmem:[#allocation4 + $0xe0] sm:$0xf]
      %v3406 = vld [vmem:[#allocation4 + $0xe4] sm:$0xff]
      %v3407 = vld [vmem:[#allocation4 + $0xec] sm:$0xf]
      %v3408 = vld [vmem:[#allocation4 + $0xf0] sm:$0xff]
      %v3409 = vld [vmem:[#allocation4 + $0xf8] sm:$0xf]
      %v3410 = vld [vmem:[#allocation4 + $0xfc] sm:$0xff]
      %v3411 = vld [vmem:[#allocation4 + $0x104] sm:$0xf]
      %v3412 = vld [vmem:[#allocation4 + $0x108] sm:$0xff]
      %v3413 = vld [vmem:[#allocation4 + $0x110] sm:$0xf]
      %v3414 = vld [vmem:[#allocation4 + $0x114] sm:$0xff]
      %v3415 = vld [vmem:[#allocation4 + $0x11c] sm:$0xf]
      %v3416 = vld [vmem:[#allocation4 + $0x120] sm:$0xff]
      %v3417 = vld [vmem:[#allocation4 + $0x128] sm:$0xf]
      %v3418 = vld [vmem:[#allocation4 + $0x12c] sm:$0xff]
      %v3419 = vld [vmem:[#allocation4 + $0x134] sm:$0xf]
      %v3420 = vld [vmem:[#allocation4 + $0x138] sm:$0xff]
      %v3421 = vld [vmem:[#allocation4 + $0x140] sm:$0xf]
      %3423 = vset.pattern.permute.xlu0 0
      %3424 = vperm.xlu0 %3423, %v2955
      %v3425 = vpop.permute.xlu0 %3424
      %3428 = vset.pattern.permute.xlu0 0
      %3429 = vperm.xlu0 %3428, %v2956
      %v3430 = vpop.permute.xlu0 %3429
      %v3434 = vunpack.c.l.b16 %v2952
      %v3435 = vunpack.c.h.b16 %v2952
      %v3436 = vunpack.c.l.b16 %v2953
      %v3437 = vunpack.c.h.b16 %v2953
      %v3438 = vpack.c.b16 %v3436, %v3434
      %v3439 = vpack.c.b16 %v3437, %v3435
      %v3495 = vunpack.c.l.b16 %v3368
      %v3496 = vunpack.c.h.b16 %v3368
      %v3497 = vunpack.c.l.b16 %v3369
      %v3498 = vunpack.c.l.b16 %v3370
      %v3499 = vunpack.c.h.b16 %v3370
      %v3500 = vunpack.c.l.b16 %v3371
      %v3501 = vunpack.c.l.b16 %v3372
      %v3502 = vunpack.c.h.b16 %v3372
      %v3503 = vunpack.c.l.b16 %v3373
      %v3504 = vunpack.c.l.b16 %v3374
      %v3505 = vunpack.c.h.b16 %v3374
      %v3506 = vunpack.c.l.b16 %v3375
      %v3507 = vunpack.c.l.b16 %v3376
      %v3508 = vunpack.c.h.b16 %v3376
      %v3509 = vunpack.c.l.b16 %v3377
      %v3510 = vunpack.c.l.b16 %v3378
      %v3511 = vunpack.c.h.b16 %v3378
      %v3512 = vunpack.c.l.b16 %v3379
      %v3513 = vunpack.c.l.b16 %v3380
      %v3514 = vunpack.c.h.b16 %v3380
      %v3515 = vunpack.c.l.b16 %v3381
      %v3516 = vunpack.c.l.b16 %v3382
      %v3517 = vunpack.c.h.b16 %v3382
      %v3518 = vunpack.c.l.b16 %v3383
      %v3519 = vunpack.c.l.b16 %v3384
      %v3520 = vunpack.c.h.b16 %v3384
      %v3521 = vunpack.c.l.b16 %v3385
      %v3522 = vunpack.c.l.b16 %v3386
      %v3523 = vunpack.c.h.b16 %v3386
      %v3524 = vunpack.c.l.b16 %v3387
      %v3525 = vunpack.c.l.b16 %v3388
      %v3526 = vunpack.c.h.b16 %v3388
      %v3527 = vunpack.c.l.b16 %v3389
      %v3528 = vunpack.c.l.b16 %v3390
      %v3529 = vunpack.c.h.b16 %v3390
      %v3530 = vunpack.c.l.b16 %v3391
      %v3531 = vunpack.c.l.b16 %v3392
      %v3532 = vunpack.c.h.b16 %v3392
      %v3533 = vunpack.c.l.b16 %v3393
      %v3534 = vunpack.c.l.b16 %v3394
      %v3535 = vunpack.c.h.b16 %v3394
      %v3536 = vunpack.c.l.b16 %v3395
      %v3537 = vunpack.c.l.b16 %v3396
      %v3538 = vunpack.c.h.b16 %v3396
      %v3539 = vunpack.c.l.b16 %v3397
      %v3540 = vunpack.c.l.b16 %v3398
      %v3541 = vunpack.c.h.b16 %v3398
      %v3542 = vunpack.c.l.b16 %v3399
      %v3543 = vunpack.c.l.b16 %v3400
      %v3544 = vunpack.c.h.b16 %v3400
      %v3545 = vunpack.c.l.b16 %v3401
      %v3546 = vunpack.c.l.b16 %v3402
      %v3547 = vunpack.c.h.b16 %v3402
      %v3548 = vunpack.c.l.b16 %v3403
      %v3549 = vunpack.c.l.b16 %v3404
      %v3550 = vunpack.c.h.b16 %v3404
      %v3551 = vunpack.c.l.b16 %v3405
      %v3552 = vunpack.c.l.b16 %v3406
      %v3553 = vunpack.c.h.b16 %v3406
      %v3554 = vunpack.c.l.b16 %v3407
      %v3555 = vunpack.c.l.b16 %v3408
      %v3556 = vunpack.c.h.b16 %v3408
      %v3557 = vunpack.c.l.b16 %v3409
      %v3558 = vunpack.c.l.b16 %v3410
      %v3559 = vunpack.c.h.b16 %v3410
      %v3560 = vunpack.c.l.b16 %v3411
      %v3561 = vunpack.c.l.b16 %v3412
      %v3562 = vunpack.c.h.b16 %v3412
      %v3563 = vunpack.c.l.b16 %v3413
      %v3564 = vunpack.c.l.b16 %v3414
      %v3565 = vunpack.c.h.b16 %v3414
      %v3566 = vunpack.c.l.b16 %v3415
      %v3567 = vunpack.c.l.b16 %v3416
      %v3568 = vunpack.c.h.b16 %v3416
      %v3569 = vunpack.c.l.b16 %v3417
      %v3570 = vunpack.c.l.b16 %v3418
      %v3571 = vunpack.c.h.b16 %v3418
      %v3572 = vunpack.c.l.b16 %v3419
      %v3573 = vunpack.c.l.b16 %v3420
      %v3574 = vunpack.c.h.b16 %v3420
      %v3575 = vunpack.c.l.b16 %v3421
      %v3576 = vpack.c.b16 %v3498, %v3495
      %v3577 = vpack.c.b16 %v3499, %v3496
      %v3578 = vpack.c.b16 %v3500, %v3497
      %v3579 = vpack.c.b16 %v3504, %v3501
      %v3580 = vpack.c.b16 %v3505, %v3502
      %v3581 = vpack.c.b16 %v3506, %v3503
      %v3582 = vpack.c.b16 %v3510, %v3507
      %v3583 = vpack.c.b16 %v3511, %v3508
      %v3584 = vpack.c.b16 %v3512, %v3509
      %v3585 = vpack.c.b16 %v3516, %v3513
      %v3586 = vpack.c.b16 %v3517, %v3514
      %v3587 = vpack.c.b16 %v3518, %v3515
      %v3588 = vpack.c.b16 %v3522, %v3519
      %v3589 = vpack.c.b16 %v3523, %v3520
      %v3590 = vpack.c.b16 %v3524, %v3521
      %v3591 = vpack.c.b16 %v3528, %v3525
      %v3592 = vpack.c.b16 %v3529, %v3526
      %v3593 = vpack.c.b16 %v3530, %v3527
      %v3594 = vpack.c.b16 %v3534, %v3531
      %v3595 = vpack.c.b16 %v3535, %v3532
      %v3596 = vpack.c.b16 %v3536, %v3533
      %v3597 = vpack.c.b16 %v3540, %v3537
      %v3598 = vpack.c.b16 %v3541, %v3538
      %v3599 = vpack.c.b16 %v3542, %v3539
      %v3600 = vpack.c.b16 %v3546, %v3543
      %v3601 = vpack.c.b16 %v3547, %v3544
      %v3602 = vpack.c.b16 %v3548, %v3545
      %v3603 = vpack.c.b16 %v3552, %v3549
      %v3604 = vpack.c.b16 %v3553, %v3550
      %v3605 = vpack.c.b16 %v3554, %v3551
      %v3606 = vpack.c.b16 %v3558, %v3555
      %v3607 = vpack.c.b16 %v3559, %v3556
      %v3608 = vpack.c.b16 %v3560, %v3557
      %v3609 = vpack.c.b16 %v3564, %v3561
      %v3610 = vpack.c.b16 %v3565, %v3562
      %v3611 = vpack.c.b16 %v3566, %v3563
      %v3612 = vpack.c.b16 %v3570, %v3567
      %v3613 = vpack.c.b16 %v3571, %v3568
      %v3614 = vpack.c.b16 %v3572, %v3569
      %v3615 = vpack.c.b16 %v3573, %v3573
      %v3616 = vpack.c.b16 %v3574, %v3574
      %v3617 = vpack.c.b16 %v3575, %v3575
      %v3658 = vsel %vm1732, %v3439, 0
      %v3661 = vsel %vm1736, %v3615, 0
      %v3664 = vsel %vm1736, %v3616, 0
      %v3667 = vsel %vm1736, %v3617, 0
      %3669 = vmatpush.bf16.msra.mxu0 %v3597
      %3670 = vmatpush.bf16.msra.mxu0 %v3594
      %3671 = vmatpush.bf16.msra.mxu0 %v3591
      %3672 = vmatpush.bf16.msra.mxu0 %v3588
      %3673 = vmatpush.bf16.msra.mxu0 %v3585
      %3674 = vmatpush.bf16.msra.mxu0 %v3582
      %3675 = vmatpush.bf16.msra.mxu0 %v3579
      %3676 = vmatpush.bf16.msra.mxu0 %v3576
      %3677 = vmatmul.bf16.gmra.mxu0 %v3438
      %v3678 = vpop.f32.mrf.mxu0
      %v3679 = vadd.f32 %v3425, %v3678
      %v3680 = vpop.f32.mrf.mxu0
      %v3681 = vadd.f32 %v3430, %v3680
      %3682 = vdwg.mxu0
      %3683 = vmatpush.bf16.msra.mxu0 0
      %3684 = vmatpush.bf16.msra.mxu0 0
      %3685 = vmatpush.bf16.msra.mxu0 %v3661
      %3686 = vmatpush.bf16.msra.mxu0 %v3612
      %3687 = vmatpush.bf16.msra.mxu0 %v3609
      %3688 = vmatpush.bf16.msra.mxu0 %v3606
      %3689 = vmatpush.bf16.msra.mxu0 %v3603
      %3690 = vmatpush.bf16.msra.mxu0 %v3600
      %3691 = vmatmul.bf16.gmra.mxu0 %v3658
      %v3692 = vpop.f32.mrf.mxu0
      %v3693 = vadd.f32 %v3679, %v3692
      %v3694 = vpop.f32.mrf.mxu0
      %v3695 = vadd.f32 %v3681, %v3694
      %3696 = vdwg.mxu0
      %3697 = vmatpush.bf16.msra.mxu0 %v3598
      %3698 = vmatpush.bf16.msra.mxu0 %v3595
      %3699 = vmatpush.bf16.msra.mxu0 %v3592
      %3700 = vmatpush.bf16.msra.mxu0 %v3589
      %3701 = vmatpush.bf16.msra.mxu0 %v3586
      %3702 = vmatpush.bf16.msra.mxu0 %v3583
      %3703 = vmatpush.bf16.msra.mxu0 %v3580
      %3704 = vmatpush.bf16.msra.mxu0 %v3577
      %3705 = vmatmul.bf16.gmra.mxu0 %v3438
      %v3706 = vpop.f32.mrf.mxu0
      %v3707 = vadd.f32 %v3425, %v3706
      %v3708 = vpop.f32.mrf.mxu0
      %v3709 = vadd.f32 %v3430, %v3708
      %3710 = vdwg.mxu0
      %3711 = vmatpush.bf16.msra.mxu0 0
      %3712 = vmatpush.bf16.msra.mxu0 0
      %3713 = vmatpush.bf16.msra.mxu0 %v3664
      %3714 = vmatpush.bf16.msra.mxu0 %v3613
      %3715 = vmatpush.bf16.msra.mxu0 %v3610
      %3716 = vmatpush.bf16.msra.mxu0 %v3607
      %3717 = vmatpush.bf16.msra.mxu0 %v3604
      %3718 = vmatpush.bf16.msra.mxu0 %v3601
      %3719 = vmatmul.bf16.gmra.mxu0 %v3658
      %v3720 = vpop.f32.mrf.mxu0
      %v3721 = vadd.f32 %v3707, %v3720
      %v3722 = vpop.f32.mrf.mxu0
      %v3723 = vadd.f32 %v3709, %v3722
      %3724 = vdwg.mxu0
      %3725 = vmatpush.bf16.msra.mxu0 %v3599
      %3726 = vmatpush.bf16.msra.mxu0 %v3596
      %3727 = vmatpush.bf16.msra.mxu0 %v3593
      %3728 = vmatpush.bf16.msra.mxu0 %v3590
      %3729 = vmatpush.bf16.msra.mxu0 %v3587
      %3730 = vmatpush.bf16.msra.mxu0 %v3584
      %3731 = vmatpush.bf16.msra.mxu0 %v3581
      %3732 = vmatpush.bf16.msra.mxu0 %v3578
      %3733 = vmatmul.bf16.gmra.mxu0 %v3438
      %v3734 = vpop.f32.mrf.mxu0
      %v3735 = vadd.f32 %v3425, %v3734
      %v3736 = vpop.f32.mrf.mxu0
      %v3737 = vadd.f32 %v3430, %v3736
      %3738 = vdwg.mxu0
      %3739 = vmatpush.bf16.msra.mxu0 0
      %3740 = vmatpush.bf16.msra.mxu0 0
      %3741 = vmatpush.bf16.msra.mxu0 %v3667
      %3742 = vmatpush.bf16.msra.mxu0 %v3614
      %3743 = vmatpush.bf16.msra.mxu0 %v3611
      %3744 = vmatpush.bf16.msra.mxu0 %v3608
      %3745 = vmatpush.bf16.msra.mxu0 %v3605
      %3746 = vmatpush.bf16.msra.mxu0 %v3602
      %3747 = vmatmul.bf16.gmra.mxu0 %v3658
      %v3748 = vpop.f32.mrf.mxu0
      %v3749 = vadd.f32 %v3735, %v3748
      %v3750 = vpop.f32.mrf.mxu0
      %v3751 = vadd.f32 %v3737, %v3750
      %3752 = vdwg.mxu0
      %v3753 = vmax.f32 %v3693, 0.0
      %v3754 = vmax.f32 %v3721, 0.0
      %v3755 = vmax.f32 %v3749, 0.0
      %v3756 = vmax.f32 %v3695, 0.0
      %v3757 = vmax.f32 %v3723, 0.0
      %v3758 = vmax.f32 %v3751, 0.0
      %v3759 = vpack.c.bf16 %v3754, %v3753
      %v3760 = vpack.c.bf16 %v3755, %v3755
      %v3761 = vpack.c.bf16 %v3757, %v3756
      %v3762 = vpack.c.bf16 %v3758, %v3758
      %v3763 = vunpack.c.l.bf16 %v3759
      %v3764 = vunpack.c.h.bf16 %v3759
      %v3765 = vunpack.c.l.bf16 %v3760
      %v3766 = vunpack.c.l.bf16 %v3761
      %v3767 = vunpack.c.h.bf16 %v3761
      %v3768 = vunpack.c.l.bf16 %v3762
      %v3769 = vmul.f32 %v3763, %v959
      %v3770 = vmul.f32 %v3764, %v960
      %v3771 = vmul.f32 %v3765, %v961
      %v3772 = vmul.f32 %v3766, %v959
      %v3773 = vmul.f32 %v3767, %v960
      %v3774 = vmul.f32 %v3768, %v961
      %v3775 = vpack.c.bf16 %v3770, %v3769
      %v3776 = vpack.c.bf16 %v3771, %v3771
      %v3777 = vpack.c.bf16 %v3773, %v3772
      %v3778 = vpack.c.bf16 %v3774, %v3774
      %v3779 = vsub.f32 0.0, %v3693
      %v3780 = vsub.f32 0.0, %v3721
      %v3781 = vsub.f32 0.0, %v3749
      %v3782 = vsub.f32 0.0, %v3695
      %v3783 = vsub.f32 0.0, %v3723
      %v3784 = vsub.f32 0.0, %v3751
      %v3785 = vmax.f32 %v3779, 0.0
      %v3786 = vmax.f32 %v3780, 0.0
      %v3787 = vmax.f32 %v3781, 0.0
      %v3788 = vmax.f32 %v3782, 0.0
      %v3789 = vmax.f32 %v3783, 0.0
      %v3790 = vmax.f32 %v3784, 0.0
      %v3791 = vpack.c.bf16 %v3786, %v3785
      %v3792 = vpack.c.bf16 %v3787, %v3787
      %v3793 = vpack.c.bf16 %v3789, %v3788
      %v3794 = vpack.c.bf16 %v3790, %v3790
      %v3795 = vunpack.c.l.bf16 %v3791
      %v3796 = vunpack.c.h.bf16 %v3791
      %v3797 = vunpack.c.l.bf16 %v3792
      %v3798 = vunpack.c.l.bf16 %v3793
      %v3799 = vunpack.c.h.bf16 %v3793
      %v3800 = vunpack.c.l.bf16 %v3794
      %v3801 = vmul.f32 %v3795, %v959
      %v3802 = vmul.f32 %v3796, %v960
      %v3803 = vmul.f32 %v3797, %v961
      %v3804 = vmul.f32 %v3798, %v959
      %v3805 = vmul.f32 %v3799, %v960
      %v3806 = vmul.f32 %v3800, %v961
      %v3807 = vpack.c.bf16 %v3802, %v3801
      %v3808 = vpack.c.bf16 %v3803, %v3803
      %v3809 = vpack.c.bf16 %v3805, %v3804
      %v3810 = vpack.c.bf16 %v3806, %v3806
      %3811 = vst [vmem:[#allocation3 + $0x4] sm:$0xff] %v3775
      %3812 = vst.msk [vmem:[#allocation3 + $0xc] sm:$0xf] %vm471, %v3776
      %3813 = vst [vmem:[#allocation3 + $0x14] sm:$0x33] %v3777
      %3814 = vst.msk [vmem:[#allocation3 + $0x1c] sm:$0x3] %vm1007, %v3778
      %v3819 = vrot.slane %v3807, 6
      %v3820 = vrot.slane %v3808, 6
      %v3821 = vrot.slane %v3819, 4
      %v3822 = vrot.slane %v3809, 6
      %v3823 = vsel %vm1013, %v3821, %v3822
      %v3824 = vrot.slane %v3820, 4
      %v3825 = vrot.slane %v3810, 6
      %v3826 = vsel %vm1013, %v3824, %v3825
      %3831 = vst [vmem:[#allocation3 + $0x14] sm:$0xcc] %v3819
      %3832 = vst.msk [vmem:[#allocation3 + $0x1c] sm:$0xc] %vm1027, %v3820
      %3833 = vst [vmem:[#allocation3 + $0x24] sm:$0xff] %v3823
      %3834 = vst.msk [vmem:[#allocation3 + $0x2c] sm:$0xf] %vm471, %v3826
      %v3837 = vunpack.c.l.b16 %v2958
      %v3838 = vunpack.c.l.b16 %v2959
      %v3839 = vpack.c.b16 %v3838, %v3837
      %3840 = vrot.lane.b32.xlu0 %v3839, 116
      %v3841 = vpop.permute.xlu0 %3840
      %v3842 = vunpack.c.l.b16 %v3807
      %v3843 = vunpack.c.h.b16 %v3807
      %v3844 = vunpack.c.l.b16 %v3808
      %v3845 = vunpack.c.l.b16 %v3809
      %v3846 = vunpack.c.h.b16 %v3809
      %v3847 = vunpack.c.l.b16 %v3810
      %v3848 = vpack.c.b16 %v3845, %v3842
      %v3849 = vpack.c.b16 %v3846, %v3843
      %v3850 = vpack.c.b16 %v3847, %v3844
      %v3852 = vsel %vm2811, %v3841, 0
      %v3855 = vsel %vm889, %v3848, 0
      %v3858 = vsel %vm889, %v3849, 0
      %v3861 = vsel %vm889, %v3850, 0
      %3863 = vmatpush.bf16.msra.mxu0 0
      %3864 = vmatpush.bf16.msra.mxu0 0
      %3865 = vmatpush.bf16.msra.mxu0 0
      %3866 = vmatpush.bf16.msra.mxu0 0
      %3867 = vmatpush.bf16.msra.mxu0 0
      %3868 = vmatpush.bf16.msra.mxu0 0
      %3869 = vmatpush.bf16.msra.mxu0 0
      %3870 = vmatpush.bf16.msra.mxu0 %v3855
      %3871 = vmatmul.bf16.gmra.mxu0 %v3852
      %v3872 = vpop.f32.mrf.mxu0
      %v3873 = vadd.f32 0.0, %v3872
      %v3874 = vpop.f32.mrf.mxu0
      %v3875 = vadd.f32 0.0, %v3874
      %3876 = vdwg.mxu0
      %3877 = vmatpush.bf16.msra.mxu0 0
      %3878 = vmatpush.bf16.msra.mxu0 0
      %3879 = vmatpush.bf16.msra.mxu0 0
      %3880 = vmatpush.bf16.msra.mxu0 0
      %3881 = vmatpush.bf16.msra.mxu0 0
      %3882 = vmatpush.bf16.msra.mxu0 0
      %3883 = vmatpush.bf16.msra.mxu0 0
      %3884 = vmatpush.bf16.msra.mxu0 %v3858
      %3885 = vmatmul.bf16.gmra.mxu0 %v3852
      %v3886 = vpop.f32.mrf.mxu0
      %v3887 = vadd.f32 0.0, %v3886
      %v3888 = vpop.f32.mrf.mxu0
      %v3889 = vadd.f32 0.0, %v3888
      %3890 = vdwg.mxu0
      %3891 = vmatpush.bf16.msra.mxu0 0
      %3892 = vmatpush.bf16.msra.mxu0 0
      %3893 = vmatpush.bf16.msra.mxu0 0
      %3894 = vmatpush.bf16.msra.mxu0 0
      %3895 = vmatpush.bf16.msra.mxu0 0
      %3896 = vmatpush.bf16.msra.mxu0 0
      %3897 = vmatpush.bf16.msra.mxu0 0
      %3898 = vmatpush.bf16.msra.mxu0 %v3861
      %3899 = vmatmul.bf16.gmra.mxu0 %v3852
      %v3900 = vpop.f32.mrf.mxu0
      %v3901 = vadd.f32 0.0, %v3900
      %v3902 = vpop.f32.mrf.mxu0
      %v3903 = vadd.f32 0.0, %v3902
      %3904 = vdwg.mxu0
      %v3909 = vunpack.c.l.b16 %v3775
      %v3910 = vunpack.c.h.b16 %v3775
      %v3911 = vunpack.c.l.b16 %v3776
      %v3912 = vunpack.c.l.b16 %v3777
      %v3913 = vunpack.c.h.b16 %v3777
      %v3914 = vunpack.c.l.b16 %v3778
      %v3915 = vpack.c.b16 %v3912, %v3909
      %v3916 = vpack.c.b16 %v3913, %v3910
      %v3917 = vpack.c.b16 %v3914, %v3911
      %v3919 = vsel %vm2811, %v3839, 0
      %v3922 = vsel %vm889, %v3915, 0
      %v3925 = vsel %vm889, %v3916, 0
      %v3928 = vsel %vm889, %v3917, 0
      %3930 = vmatpush.bf16.msra.mxu0 0
      %3931 = vmatpush.bf16.msra.mxu0 0
      %3932 = vmatpush.bf16.msra.mxu0 0
      %3933 = vmatpush.bf16.msra.mxu0 0
      %3934 = vmatpush.bf16.msra.mxu0 0
      %3935 = vmatpush.bf16.msra.mxu0 0
      %3936 = vmatpush.bf16.msra.mxu0 0
      %3937 = vmatpush.bf16.msra.mxu0 %v3922
      %3938 = vmatmul.bf16.gmra.mxu0 %v3919
      %v3939 = vpop.f32.mrf.mxu0
      %v3940 = vadd.f32 %v3873, %v3939
      %v3941 = vpop.f32.mrf.mxu0
      %v3942 = vadd.f32 %v3875, %v3941
      %3943 = vdwg.mxu0
      %3944 = vmatpush.bf16.msra.mxu0 0
      %3945 = vmatpush.bf16.msra.mxu0 0
      %3946 = vmatpush.bf16.msra.mxu0 0
      %3947 = vmatpush.bf16.msra.mxu0 0
      %3948 = vmatpush.bf16.msra.mxu0 0
      %3949 = vmatpush.bf16.msra.mxu0 0
      %3950 = vmatpush.bf16.msra.mxu0 0
      %3951 = vmatpush.bf16.msra.mxu0 %v3925
      %3952 = vmatmul.bf16.gmra.mxu0 %v3919
      %v3953 = vpop.f32.mrf.mxu0
      %v3954 = vadd.f32 %v3887, %v3953
      %v3955 = vpop.f32.mrf.mxu0
      %v3956 = vadd.f32 %v3889, %v3955
      %3957 = vdwg.mxu0
      %3958 = vmatpush.bf16.msra.mxu0 0
      %3959 = vmatpush.bf16.msra.mxu0 0
      %3960 = vmatpush.bf16.msra.mxu0 0
      %3961 = vmatpush.bf16.msra.mxu0 0
      %3962 = vmatpush.bf16.msra.mxu0 0
      %3963 = vmatpush.bf16.msra.mxu0 0
      %3964 = vmatpush.bf16.msra.mxu0 0
      %3965 = vmatpush.bf16.msra.mxu0 %v3928
      %3966 = vmatmul.bf16.gmra.mxu0 %v3919
      %v3967 = vpop.f32.mrf.mxu0
      %v3968 = vadd.f32 %v3901, %v3967
      %v3969 = vpop.f32.mrf.mxu0
      %v3970 = vadd.f32 %v3903, %v3969
      %3971 = vdwg.mxu0
      %v3972 = vld [vmem:[#allocation5] sm:$0xff]
      %v3973 = vld [vmem:[#allocation5 + $0x8] sm:$0xff]
      %v3974 = vld [vmem:[#allocation5 + $0x10] sm:$0xff]
      %v3975 = vld [vmem:[#allocation5 + $0x18] sm:$0xf]
      %v3976 = vld [vmem:[#allocation5 + $0x20] sm:$0xf]
      %v3977 = vld [vmem:[#allocation5 + $0x28] sm:$0xf]
      %v3978 = vadd.f32 %v3972, %v3940
      %v3979 = vadd.f32 %v3973, %v3954
      %v3980 = vadd.f32 %v3974, %v3968
      %v3981 = vadd.f32 %v3975, %v3942
      %v3982 = vadd.f32 %v3976, %v3956
      %v3983 = vadd.f32 %v3977, %v3970
      %3984 = vst [vmem:[#allocation5] sm:$0xff] %v3978
      %3985 = vst [vmem:[#allocation5 + $0x8] sm:$0xff] %v3979
      %3986 = vst.msk [vmem:[#allocation5 + $0x10] sm:$0xff] %vm467, %v3980
      %3987 = vst [vmem:[#allocation5 + $0x18] sm:$0xf] %v3981
      %3988 = vst [vmem:[#allocation5 + $0x20] sm:$0xf] %v3982
      %3989 = vst.msk [vmem:[#allocation5 + $0x28] sm:$0xf] %vm471, %v3983
      %s3990 = scalar_lea.vmem %s4, 48
      %v3991 = vld [vmem:[%s3990] sm:$0xff]
      %v3992 = vld [vmem:[%s3990 + $0x8] sm:$0x33]
      %s3993 = scalar_lea.vmem %s5, 48
      %v3994 = vld [vmem:[%s3993] sm:$0xff]
      %v3995 = vld [vmem:[%s3993 + $0x8] sm:$0xf]
      %s3996 = scalar_lea.vmem %s6, 16
      %v3997 = vld [vmem:[%s3996] sm:$0xf]
      %v3998 = vld [vmem:[%s3996 + $0x4] sm:$0x3]
      %v3999 = vld [vmem:[#allocation3] sm:$0xff]
      %v4000 = vld [vmem:[#allocation3 + $0x8] sm:$0xff]
      %v4001 = vld [vmem:[#allocation3 + $0x10] sm:$0xff]
      %v4002 = vld [vmem:[#allocation3 + $0x18] sm:$0xff]
      %v4003 = vld [vmem:[#allocation3 + $0x20] sm:$0xff]
      %v4004 = vld [vmem:[#allocation3 + $0x28] sm:$0xff]
      %4011 = vrot.lane.b32.xlu0 %v3999, 19
      %v4012 = vpop.permute.xlu0 %4011
      %4013 = vrot.lane.b32.xlu0 %v4000, 19
      %v4014 = vpop.permute.xlu0 %4013
      %4015 = vrot.lane.b32.xlu0 %v4001, 19
      %v4016 = vpop.permute.xlu0 %4015
      %4017 = vrot.lane.b32.xlu0 %v4002, 19
      %v4018 = vpop.permute.xlu0 %4017
      %4019 = vrot.lane.b32.xlu0 %v4003, 19
      %v4020 = vpop.permute.xlu0 %4019
      %4021 = vrot.lane.b32.xlu0 %v4004, 19
      %v4022 = vpop.permute.xlu0 %4021
      %v4023 = vrot.slane %v4012, 4
      %v4024 = vrot.slane %v4014, 4
      %v4025 = vrot.slane %v4016, 4
      %v4026 = vrot.slane %v4018, 4
      %v4027 = vrot.slane %v4020, 4
      %v4028 = vrot.slane %v4022, 4
      %v4029 = vsel %vm490, %v4023, %v4024
      %v4030 = vsel %vm492, %v4012, %v4029
      %v4031 = vsel %vm492, %v4014, %v4024
      %v4032 = vsel %vm490, %v4025, %v4026
      %v4033 = vsel %vm492, %v4016, %v4032
      %v4034 = vsel %vm492, %v4018, %v4026
      %v4035 = vsel %vm490, %v4027, %v4028
      %v4036 = vsel %vm492, %v4020, %v4035
      %v4037 = vsel %vm492, %v4022, %v4028
      %4044 = vst [vmem:[#allocation4] sm:$0xff] %v4030
      %4045 = vst.msk [vmem:[#allocation4 + $0x8] sm:$0xf] %vm471, %v4031
      %4046 = vst [vmem:[#allocation4 + $0xc] sm:$0xff] %v4033
      %4047 = vst.msk [vmem:[#allocation4 + $0x14] sm:$0xf] %vm471, %v4034
      %4048 = vst [vmem:[#allocation4 + $0x18] sm:$0xff] %v4036
      %4049 = vst.msk [vmem:[#allocation4 + $0x20] sm:$0xf] %vm471, %v4037
      %v4050 = vld [vmem:[#allocation3] sm:$0xff]
      %v4051 = vld [vmem:[#allocation3 + $0x8] sm:$0xff]
      %v4052 = vld [vmem:[#allocation3 + $0x10] sm:$0xff]
      %v4053 = vld [vmem:[#allocation3 + $0x18] sm:$0xff]
      %v4054 = vld [vmem:[#allocation3 + $0x20] sm:$0xff]
      %v4055 = vld [vmem:[#allocation3 + $0x28] sm:$0xff]
      %4062 = vrot.lane.b32.xlu0 %v4050, 18
      %v4063 = vpop.permute.xlu0 %4062
      %4064 = vrot.lane.b32.xlu0 %v4051, 18
      %v4065 = vpop.permute.xlu0 %4064
      %4066 = vrot.lane.b32.xlu0 %v4052, 18
      %v4067 = vpop.permute.xlu0 %4066
      %4068 = vrot.lane.b32.xlu0 %v4053, 18
      %v4069 = vpop.permute.xlu0 %4068
      %4070 = vrot.lane.b32.xlu0 %v4054, 18
      %v4071 = vpop.permute.xlu0 %4070
      %4072 = vrot.lane.b32.xlu0 %v4055, 18
      %v4073 = vpop.permute.xlu0 %4072
      %v4074 = vrot.slane %v4063, 4
      %v4075 = vrot.slane %v4065, 4
      %v4076 = vrot.slane %v4067, 4
      %v4077 = vrot.slane %v4069, 4
      %v4078 = vrot.slane %v4071, 4
      %v4079 = vrot.slane %v4073, 4
      %v4080 = vsel %vm490, %v4074, %v4075
      %v4081 = vsel %vm538, %v4063, %v4080
      %v4082 = vsel %vm538, %v4065, %v4075
      %v4083 = vsel %vm490, %v4076, %v4077
      %v4084 = vsel %vm538, %v4067, %v4083
      %v4085 = vsel %vm538, %v4069, %v4077
      %v4086 = vsel %vm490, %v4078, %v4079
      %v4087 = vsel %vm538, %v4071, %v4086
      %v4088 = vsel %vm538, %v4073, %v4079
      %4095 = vst [vmem:[#allocation4 + $0x24] sm:$0xff] %v4081
      %4096 = vst.msk [vmem:[#allocation4 + $0x2c] sm:$0xf] %vm471, %v4082
      %4097 = vst [vmem:[#allocation4 + $0x30] sm:$0xff] %v4084
      %4098 = vst.msk [vmem:[#allocation4 + $0x38] sm:$0xf] %vm471, %v4085
      %4099 = vst [vmem:[#allocation4 + $0x3c] sm:$0xff] %v4087
      %4100 = vst.msk [vmem:[#allocation4 + $0x44] sm:$0xf] %vm471, %v4088
      %v4101 = vld [vmem:[#allocation3] sm:$0xff]
      %v4102 = vld [vmem:[#allocation3 + $0x8] sm:$0xff]
      %v4103 = vld [vmem:[#allocation3 + $0x10] sm:$0xff]
      %v4104 = vld [vmem:[#allocation3 + $0x18] sm:$0xff]
      %v4105 = vld [vmem:[#allocation3 + $0x20] sm:$0xff]
      %v4106 = vld [vmem:[#allocation3 + $0x28] sm:$0xff]
      %4113 = vrot.lane.b32.xlu0 %v4101, 17
      %v4114 = vpop.permute.xlu0 %4113
      %4115 = vrot.lane.b32.xlu0 %v4102, 17
      %v4116 = vpop.permute.xlu0 %4115
      %4117 = vrot.lane.b32.xlu0 %v4103, 17
      %v4118 = vpop.permute.xlu0 %4117
      %4119 = vrot.lane.b32.xlu0 %v4104, 17
      %v4120 = vpop.permute.xlu0 %4119
      %4121 = vrot.lane.b32.xlu0 %v4105, 17
      %v4122 = vpop.permute.xlu0 %4121
      %4123 = vrot.lane.b32.xlu0 %v4106, 17
      %v4124 = vpop.permute.xlu0 %4123
      %v4125 = vrot.slane %v4114, 4
      %v4126 = vrot.slane %v4116, 4
      %v4127 = vrot.slane %v4118, 4
      %v4128 = vrot.slane %v4120, 4
      %v4129 = vrot.slane %v4122, 4
      %v4130 = vrot.slane %v4124, 4
      %v4131 = vsel %vm490, %v4125, %v4126
      %v4132 = vsel %vm582, %v4114, %v4131
      %v4133 = vsel %vm582, %v4116, %v4126
      %v4134 = vsel %vm490, %v4127, %v4128
      %v4135 = vsel %vm582, %v4118, %v4134
      %v4136 = vsel %vm582, %v4120, %v4128
      %v4137 = vsel %vm490, %v4129, %v4130
      %v4138 = vsel %vm582, %v4122, %v4137
      %v4139 = vsel %vm582, %v4124, %v4130
      %4146 = vst [vmem:[#allocation4 + $0x48] sm:$0xff] %v4132
      %4147 = vst.msk [vmem:[#allocation4 + $0x50] sm:$0xf] %vm471, %v4133
      %4148 = vst [vmem:[#allocation4 + $0x54] sm:$0xff] %v4135
      %4149 = vst.msk [vmem:[#allocation4 + $0x5c] sm:$0xf] %vm471, %v4136
      %4150 = vst [vmem:[#allocation4 + $0x60] sm:$0xff] %v4138
      %4151 = vst.msk [vmem:[#allocation4 + $0x68] sm:$0xf] %vm471, %v4139
      %v4152 = vld [vmem:[#allocation3] sm:$0xff]
      %v4153 = vld [vmem:[#allocation3 + $0x8] sm:$0xff]
      %v4154 = vld [vmem:[#allocation3 + $0x10] sm:$0xff]
      %v4155 = vld [vmem:[#allocation3 + $0x18] sm:$0xff]
      %v4156 = vld [vmem:[#allocation3 + $0x20] sm:$0xff]
      %v4157 = vld [vmem:[#allocation3 + $0x28] sm:$0xff]
      %4164 = vrot.lane.b32.xlu0 %v4152, 1
      %v4165 = vpop.permute.xlu0 %4164
      %4166 = vrot.lane.b32.xlu0 %v4153, 1
      %v4167 = vpop.permute.xlu0 %4166
      %4168 = vrot.lane.b32.xlu0 %v4154, 1
      %v4169 = vpop.permute.xlu0 %4168
      %4170 = vrot.lane.b32.xlu0 %v4155, 1
      %v4171 = vpop.permute.xlu0 %4170
      %4172 = vrot.lane.b32.xlu0 %v4156, 1
      %v4173 = vpop.permute.xlu0 %4172
      %4174 = vrot.lane.b32.xlu0 %v4157, 1
      %v4175 = vpop.permute.xlu0 %4174
      %v4176 = vrot.slane %v4165, 4
      %v4177 = vrot.slane %v4167, 4
      %v4178 = vrot.slane %v4169, 4
      %v4179 = vrot.slane %v4171, 4
      %v4180 = vrot.slane %v4173, 4
      %v4181 = vrot.slane %v4175, 4
      %v4182 = vsel %vm490, %v4176, %v4177
      %v4183 = vsel %vm634, %v4165, %v4182
      %v4184 = vsel %vm634, %v4167, %v4177
      %v4185 = vsel %vm490, %v4178, %v4179
      %v4186 = vsel %vm634, %v4169, %v4185
      %v4187 = vsel %vm634, %v4171, %v4179
      %v4188 = vsel %vm490, %v4180, %v4181
      %v4189 = vsel %vm634, %v4173, %v4188
      %v4190 = vsel %vm634, %v4175, %v4181
      %4197 = vst [vmem:[#allocation4 + $0x6c] sm:$0xff] %v4183
      %4198 = vst.msk [vmem:[#allocation4 + $0x74] sm:$0xf] %vm471, %v4184
      %4199 = vst [vmem:[#allocation4 + $0x78] sm:$0xff] %v4186
      %4200 = vst.msk [vmem:[#allocation4 + $0x80] sm:$0xf] %vm471, %v4187
      %4201 = vst [vmem:[#allocation4 + $0x84] sm:$0xff] %v4189
      %4202 = vst.msk [vmem:[#allocation4 + $0x8c] sm:$0xf] %vm471, %v4190
      %v4203 = vld [vmem:[#allocation3 + $0x4] sm:$0xff]
      %v4204 = vld [vmem:[#allocation3 + $0xc] sm:$0xf]
      %v4205 = vld [vmem:[#allocation3 + $0x14] sm:$0xff]
      %v4206 = vld [vmem:[#allocation3 + $0x1c] sm:$0xf]
      %v4207 = vld [vmem:[#allocation3 + $0x24] sm:$0xff]
      %v4208 = vld [vmem:[#allocation3 + $0x2c] sm:$0xf]
      %4209 = vst [vmem:[#allocation4 + $0x90] sm:$0xff] %v4203
      %4210 = vst.msk [vmem:[#allocation4 + $0x98] sm:$0xf] %vm471, %v4204
      %4211 = vst [vmem:[#allocation4 + $0x9c] sm:$0xff] %v4205
      %4212 = vst.msk [vmem:[#allocation4 + $0xa4] sm:$0xf] %vm471, %v4206
      %4213 = vst [vmem:[#allocation4 + $0xa8] sm:$0xff] %v4207
      %4214 = vst.msk [vmem:[#allocation4 + $0xb0] sm:$0xf] %vm471, %v4208
      %v4215 = vld [vmem:[#allocation3 + $0x4] sm:$0xff]
      %v4216 = vld [vmem:[#allocation3 + $0xc] sm:$0xf]
      %v4217 = vld [vmem:[#allocation3 + $0x14] sm:$0xff]
      %v4218 = vld [vmem:[#allocation3 + $0x1c] sm:$0xf]
      %v4219 = vld [vmem:[#allocation3 + $0x24] sm:$0xff]
      %v4220 = vld [vmem:[#allocation3 + $0x2c] sm:$0xf]
      %4227 = vrot.lane.b32.xlu0 %v4215, 127
      %v4228 = vpop.permute.xlu0 %4227
      %4229 = vrot.lane.b32.xlu0 %v4216, 127
      %v4230 = vpop.permute.xlu0 %4229
      %4231 = vrot.lane.b32.xlu0 %v4217, 127
      %v4232 = vpop.permute.xlu0 %4231
      %4233 = vrot.lane.b32.xlu0 %v4218, 127
      %v4234 = vpop.permute.xlu0 %4233
      %4235 = vrot.lane.b32.xlu0 %v4219, 127
      %v4236 = vpop.permute.xlu0 %4235
      %4237 = vrot.lane.b32.xlu0 %v4220, 127
      %v4238 = vpop.permute.xlu0 %4237
      %v4239 = vrot.slane %v4228, 4
      %v4240 = vrot.slane %v4230, 4
      %v4241 = vrot.slane %v4232, 4
      %v4242 = vrot.slane %v4234, 4
      %v4243 = vrot.slane %v4236, 4
      %v4244 = vrot.slane %v4238, 4
      %v4245 = vsel %vm490, %v4239, %v4240
      %v4246 = vsel %vm708, %v4228, %v4245
      %v4247 = vsel %vm490, %v4241, %v4242
      %v4248 = vsel %vm708, %v4232, %v4247
      %v4249 = vsel %vm490, %v4243, %v4244
      %v4250 = vsel %vm708, %v4236, %v4249
      %4257 = vst [vmem:[#allocation4 + $0xb4] sm:$0xff] %v4246
      %4258 = vst.msk [vmem:[#allocation4 + $0xbc] sm:$0xf] %vm471, %v4230
      %4259 = vst [vmem:[#allocation4 + $0xc0] sm:$0xff] %v4248
      %4260 = vst.msk [vmem:[#allocation4 + $0xc8] sm:$0xf] %vm471, %v4234
      %4261 = vst [vmem:[#allocation4 + $0xcc] sm:$0xff] %v4250
      %4262 = vst.msk [vmem:[#allocation4 + $0xd4] sm:$0xf] %vm471, %v4238
      %v4263 = vld [vmem:[#allocation3 + $0x4] sm:$0xff]
      %v4264 = vld [vmem:[#allocation3 + $0xc] sm:$0xf]
      %v4265 = vld [vmem:[#allocation3 + $0x14] sm:$0xff]
      %v4266 = vld [vmem:[#allocation3 + $0x1c] sm:$0xf]
      %v4267 = vld [vmem:[#allocation3 + $0x24] sm:$0xff]
      %v4268 = vld [vmem:[#allocation3 + $0x2c] sm:$0xf]
      %4275 = vrot.lane.b32.xlu0 %v4263, 111
      %v4276 = vpop.permute.xlu0 %4275
      %4277 = vrot.lane.b32.xlu0 %v4264, 111
      %v4278 = vpop.permute.xlu0 %4277
      %4279 = vrot.lane.b32.xlu0 %v4265, 111
      %v4280 = vpop.permute.xlu0 %4279
      %4281 = vrot.lane.b32.xlu0 %v4266, 111
      %v4282 = vpop.permute.xlu0 %4281
      %4283 = vrot.lane.b32.xlu0 %v4267, 111
      %v4284 = vpop.permute.xlu0 %4283
      %4285 = vrot.lane.b32.xlu0 %v4268, 111
      %v4286 = vpop.permute.xlu0 %4285
      %v4287 = vrot.slane %v4276, 4
      %v4288 = vrot.slane %v4278, 4
      %v4289 = vrot.slane %v4280, 4
      %v4290 = vrot.slane %v4282, 4
      %v4291 = vrot.slane %v4284, 4
      %v4292 = vrot.slane %v4286, 4
      %v4293 = vsel %vm490, %v4287, %v4288
      %v4294 = vsel %vm750, %v4276, %v4293
      %v4295 = vsel %vm490, %v4289, %v4290
      %v4296 = vsel %vm750, %v4280, %v4295
      %v4297 = vsel %vm490, %v4291, %v4292
      %v4298 = vsel %vm750, %v4284, %v4297
      %4305 = vst [vmem:[#allocation4 + $0xd8] sm:$0xff] %v4294
      %4306 = vst.msk [vmem:[#allocation4 + $0xe0] sm:$0xf] %vm471, %v4278
      %4307 = vst [vmem:[#allocation4 + $0xe4] sm:$0xff] %v4296
      %4308 = vst.msk [vmem:[#allocation4 + $0xec] sm:$0xf] %vm471, %v4282
      %4309 = vst [vmem:[#allocation4 + $0xf0] sm:$0xff] %v4298
      %4310 = vst.msk [vmem:[#allocation4 + $0xf8] sm:$0xf] %vm471, %v4286
      %v4311 = vld [vmem:[#allocation3 + $0x4] sm:$0xff]
      %v4312 = vld [vmem:[#allocation3 + $0xc] sm:$0xf]
      %v4313 = vld [vmem:[#allocation3 + $0x14] sm:$0xff]
      %v4314 = vld [vmem:[#allocation3 + $0x1c] sm:$0xf]
      %v4315 = vld [vmem:[#allocation3 + $0x24] sm:$0xff]
      %v4316 = vld [vmem:[#allocation3 + $0x2c] sm:$0xf]
      %4323 = vrot.lane.b32.xlu0 %v4311, 110
      %v4324 = vpop.permute.xlu0 %4323
      %4325 = vrot.lane.b32.xlu0 %v4312, 110
      %v4326 = vpop.permute.xlu0 %4325
      %4327 = vrot.lane.b32.xlu0 %v4313, 110
      %v4328 = vpop.permute.xlu0 %4327
      %4329 = vrot.lane.b32.xlu0 %v4314, 110
      %v4330 = vpop.permute.xlu0 %4329
      %4331 = vrot.lane.b32.xlu0 %v4315, 110
      %v4332 = vpop.permute.xlu0 %4331
      %4333 = vrot.lane.b32.xlu0 %v4316, 110
      %v4334 = vpop.permute.xlu0 %4333
      %v4335 = vrot.slane %v4324, 4
      %v4336 = vrot.slane %v4326, 4
      %v4337 = vrot.slane %v4328, 4
      %v4338 = vrot.slane %v4330, 4
      %v4339 = vrot.slane %v4332, 4
      %v4340 = vrot.slane %v4334, 4
      %v4341 = vsel %vm490, %v4335, %v4336
      %v4342 = vsel %vm792, %v4324, %v4341
      %v4343 = vsel %vm490, %v4337, %v4338
      %v4344 = vsel %vm792, %v4328, %v4343
      %v4345 = vsel %vm490, %v4339, %v4340
      %v4346 = vsel %vm792, %v4332, %v4345
      %4353 = vst [vmem:[#allocation4 + $0xfc] sm:$0xff] %v4342
      %4354 = vst.msk [vmem:[#allocation4 + $0x104] sm:$0xf] %vm471, %v4326
      %4355 = vst [vmem:[#allocation4 + $0x108] sm:$0xff] %v4344
      %4356 = vst.msk [vmem:[#allocation4 + $0x110] sm:$0xf] %vm471, %v4330
      %4357 = vst [vmem:[#allocation4 + $0x114] sm:$0xff] %v4346
      %4358 = vst.msk [vmem:[#allocation4 + $0x11c] sm:$0xf] %vm471, %v4334
      %v4359 = vld [vmem:[#allocation3 + $0x4] sm:$0xff]
      %v4360 = vld [vmem:[#allocation3 + $0xc] sm:$0xf]
      %v4361 = vld [vmem:[#allocation3 + $0x14] sm:$0xff]
      %v4362 = vld [vmem:[#allocation3 + $0x1c] sm:$0xf]
      %v4363 = vld [vmem:[#allocation3 + $0x24] sm:$0xff]
      %v4364 = vld [vmem:[#allocation3 + $0x2c] sm:$0xf]
      %4371 = vrot.lane.b32.xlu0 %v4359, 109
      %v4372 = vpop.permute.xlu0 %4371
      %4373 = vrot.lane.b32.xlu0 %v4360, 109
      %v4374 = vpop.permute.xlu0 %4373
      %4375 = vrot.lane.b32.xlu0 %v4361, 109
      %v4376 = vpop.permute.xlu0 %4375
      %4377 = vrot.lane.b32.xlu0 %v4362, 109
      %v4378 = vpop.permute.xlu0 %4377
      %4379 = vrot.lane.b32.xlu0 %v4363, 109
      %v4380 = vpop.permute.xlu0 %4379
      %4381 = vrot.lane.b32.xlu0 %v4364, 109
      %v4382 = vpop.permute.xlu0 %4381
      %v4383 = vrot.slane %v4372, 4
      %v4384 = vrot.slane %v4374, 4
      %v4385 = vrot.slane %v4376, 4
      %v4386 = vrot.slane %v4378, 4
      %v4387 = vrot.slane %v4380, 4
      %v4388 = vrot.slane %v4382, 4
      %v4389 = vsel %vm490, %v4383, %v4384
      %v4390 = vsel %vm822, %v4372, %v4389
      %v4391 = vsel %vm490, %v4385, %v4386
      %v4392 = vsel %vm822, %v4376, %v4391
      %v4393 = vsel %vm490, %v4387, %v4388
      %v4394 = vsel %vm822, %v4380, %v4393
      %4401 = vst [vmem:[#allocation4 + $0x120] sm:$0xff] %v4390
      %4402 = vst.msk [vmem:[#allocation4 + $0x128] sm:$0xf] %vm471, %v4374
      %4403 = vst [vmem:[#allocation4 + $0x12c] sm:$0xff] %v4392
      %4404 = vst.msk [vmem:[#allocation4 + $0x134] sm:$0xf] %vm471, %v4378
      %4405 = vst [vmem:[#allocation4 + $0x138] sm:$0xff] %v4394
      %4406 = vst.msk [vmem:[#allocation4 + $0x140] sm:$0xf] %vm471, %v4382
      %v4407 = vld [vmem:[#allocation4] sm:$0xff]
      %v4408 = vld [vmem:[#allocation4 + $0x8] sm:$0xf]
      %v4409 = vld [vmem:[#allocation4 + $0xc] sm:$0xff]
      %v4410 = vld [vmem:[#allocation4 + $0x14] sm:$0xf]
      %v4411 = vld [vmem:[#allocation4 + $0x18] sm:$0xff]
      %v4412 = vld [vmem:[#allocation4 + $0x20] sm:$0xf]
      %v4413 = vld [vmem:[#allocation4 + $0x24] sm:$0xff]
      %v4414 = vld [vmem:[#allocation4 + $0x2c] sm:$0xf]
      %v4415 = vld [vmem:[#allocation4 + $0x30] sm:$0xff]
      %v4416 = vld [vmem:[#allocation4 + $0x38] sm:$0xf]
      %v4417 = vld [vmem:[#allocation4 + $0x3c] sm:$0xff]
      %v4418 = vld [vmem:[#allocation4 + $0x44] sm:$0xf]
      %v4419 = vld [vmem:[#allocation4 + $0x48] sm:$0xff]
      %v4420 = vld [vmem:[#allocation4 + $0x50] sm:$0xf]
      %v4421 = vld [vmem:[#allocation4 + $0x54] sm:$0xff]
      %v4422 = vld [vmem:[#allocation4 + $0x5c] sm:$0xf]
      %v4423 = vld [vmem:[#allocation4 + $0x60] sm:$0xff]
      %v4424 = vld [vmem:[#allocation4 + $0x68] sm:$0xf]
      %v4425 = vld [vmem:[#allocation4 + $0x6c] sm:$0xff]
      %v4426 = vld [vmem:[#allocation4 + $0x74] sm:$0xf]
      %v4427 = vld [vmem:[#allocation4 + $0x78] sm:$0xff]
      %v4428 = vld [vmem:[#allocation4 + $0x80] sm:$0xf]
      %v4429 = vld [vmem:[#allocation4 + $0x84] sm:$0xff]
      %v4430 = vld [vmem:[#allocation4 + $0x8c] sm:$0xf]
      %v4431 = vld [vmem:[#allocation4 + $0x90] sm:$0xff]
      %v4432 = vld [vmem:[#allocation4 + $0x98] sm:$0xf]
      %v4433 = vld [vmem:[#allocation4 + $0x9c] sm:$0xff]
      %v4434 = vld [vmem:[#allocation4 + $0xa4] sm:$0xf]
      %v4435 = vld [vmem:[#allocation4 + $0xa8] sm:$0xff]
      %v4436 = vld [vmem:[#allocation4 + $0xb0] sm:$0xf]
      %v4437 = vld [vmem:[#allocation4 + $0xb4] sm:$0xff]
      %v4438 = vld [vmem:[#allocation4 + $0xbc] sm:$0xf]
      %v4439 = vld [vmem:[#allocation4 + $0xc0] sm:$0xff]
      %v4440 = vld [vmem:[#allocation4 + $0xc8] sm:$0xf]
      %v4441 = vld [vmem:[#allocation4 + $0xcc] sm:$0xff]
      %v4442 = vld [vmem:[#allocation4 + $0xd4] sm:$0xf]
      %v4443 = vld [vmem:[#allocation4 + $0xd8] sm:$0xff]
      %v4444 = vld [vmem:[#allocation4 + $0xe0] sm:$0xf]
      %v4445 = vld [vmem:[#allocation4 + $0xe4] sm:$0xff]
      %v4446 = vld [vmem:[#allocation4 + $0xec] sm:$0xf]
      %v4447 = vld [vmem:[#allocation4 + $0xf0] sm:$0xff]
      %v4448 = vld [vmem:[#allocation4 + $0xf8] sm:$0xf]
      %v4449 = vld [vmem:[#allocation4 + $0xfc] sm:$0xff]
      %v4450 = vld [vmem:[#allocation4 + $0x104] sm:$0xf]
      %v4451 = vld [vmem:[#allocation4 + $0x108] sm:$0xff]
      %v4452 = vld [vmem:[#allocation4 + $0x110] sm:$0xf]
      %v4453 = vld [vmem:[#allocation4 + $0x114] sm:$0xff]
      %v4454 = vld [vmem:[#allocation4 + $0x11c] sm:$0xf]
      %v4455 = vld [vmem:[#allocation4 + $0x120] sm:$0xff]
      %v4456 = vld [vmem:[#allocation4 + $0x128] sm:$0xf]
      %v4457 = vld [vmem:[#allocation4 + $0x12c] sm:$0xff]
      %v4458 = vld [vmem:[#allocation4 + $0x134] sm:$0xf]
      %v4459 = vld [vmem:[#allocation4 + $0x138] sm:$0xff]
      %v4460 = vld [vmem:[#allocation4 + $0x140] sm:$0xf]
      %4462 = vset.pattern.permute.xlu0 0
      %4463 = vperm.xlu0 %4462, %v3994
      %v4464 = vpop.permute.xlu0 %4463
      %4467 = vset.pattern.permute.xlu0 0
      %4468 = vperm.xlu0 %4467, %v3995
      %v4469 = vpop.permute.xlu0 %4468
      %v4473 = vunpack.c.l.b16 %v3991
      %v4474 = vunpack.c.h.b16 %v3991
      %v4475 = vunpack.c.l.b16 %v3992
      %v4476 = vunpack.c.h.b16 %v3992
      %v4477 = vpack.c.b16 %v4475, %v4473
      %v4478 = vpack.c.b16 %v4476, %v4474
      %v4534 = vunpack.c.l.b16 %v4407
      %v4535 = vunpack.c.h.b16 %v4407
      %v4536 = vunpack.c.l.b16 %v4408
      %v4537 = vunpack.c.l.b16 %v4409
      %v4538 = vunpack.c.h.b16 %v4409
      %v4539 = vunpack.c.l.b16 %v4410
      %v4540 = vunpack.c.l.b16 %v4411
      %v4541 = vunpack.c.h.b16 %v4411
      %v4542 = vunpack.c.l.b16 %v4412
      %v4543 = vunpack.c.l.b16 %v4413
      %v4544 = vunpack.c.h.b16 %v4413
      %v4545 = vunpack.c.l.b16 %v4414
      %v4546 = vunpack.c.l.b16 %v4415
      %v4547 = vunpack.c.h.b16 %v4415
      %v4548 = vunpack.c.l.b16 %v4416
      %v4549 = vunpack.c.l.b16 %v4417
      %v4550 = vunpack.c.h.b16 %v4417
      %v4551 = vunpack.c.l.b16 %v4418
      %v4552 = vunpack.c.l.b16 %v4419
      %v4553 = vunpack.c.h.b16 %v4419
      %v4554 = vunpack.c.l.b16 %v4420
      %v4555 = vunpack.c.l.b16 %v4421
      %v4556 = vunpack.c.h.b16 %v4421
      %v4557 = vunpack.c.l.b16 %v4422
      %v4558 = vunpack.c.l.b16 %v4423
      %v4559 = vunpack.c.h.b16 %v4423
      %v4560 = vunpack.c.l.b16 %v4424
      %v4561 = vunpack.c.l.b16 %v4425
      %v4562 = vunpack.c.h.b16 %v4425
      %v4563 = vunpack.c.l.b16 %v4426
      %v4564 = vunpack.c.l.b16 %v4427
      %v4565 = vunpack.c.h.b16 %v4427
      %v4566 = vunpack.c.l.b16 %v4428
      %v4567 = vunpack.c.l.b16 %v4429
      %v4568 = vunpack.c.h.b16 %v4429
      %v4569 = vunpack.c.l.b16 %v4430
      %v4570 = vunpack.c.l.b16 %v4431
      %v4571 = vunpack.c.h.b16 %v4431
      %v4572 = vunpack.c.l.b16 %v4432
      %v4573 = vunpack.c.l.b16 %v4433
      %v4574 = vunpack.c.h.b16 %v4433
      %v4575 = vunpack.c.l.b16 %v4434
      %v4576 = vunpack.c.l.b16 %v4435
      %v4577 = vunpack.c.h.b16 %v4435
      %v4578 = vunpack.c.l.b16 %v4436
      %v4579 = vunpack.c.l.b16 %v4437
      %v4580 = vunpack.c.h.b16 %v4437
      %v4581 = vunpack.c.l.b16 %v4438
      %v4582 = vunpack.c.l.b16 %v4439
      %v4583 = vunpack.c.h.b16 %v4439
      %v4584 = vunpack.c.l.b16 %v4440
      %v4585 = vunpack.c.l.b16 %v4441
      %v4586 = vunpack.c.h.b16 %v4441
      %v4587 = vunpack.c.l.b16 %v4442
      %v4588 = vunpack.c.l.b16 %v4443
      %v4589 = vunpack.c.h.b16 %v4443
      %v4590 = vunpack.c.l.b16 %v4444
      %v4591 = vunpack.c.l.b16 %v4445
      %v4592 = vunpack.c.h.b16 %v4445
      %v4593 = vunpack.c.l.b16 %v4446
      %v4594 = vunpack.c.l.b16 %v4447
      %v4595 = vunpack.c.h.b16 %v4447
      %v4596 = vunpack.c.l.b16 %v4448
      %v4597 = vunpack.c.l.b16 %v4449
      %v4598 = vunpack.c.h.b16 %v4449
      %v4599 = vunpack.c.l.b16 %v4450
      %v4600 = vunpack.c.l.b16 %v4451
      %v4601 = vunpack.c.h.b16 %v4451
      %v4602 = vunpack.c.l.b16 %v4452
      %v4603 = vunpack.c.l.b16 %v4453
      %v4604 = vunpack.c.h.b16 %v4453
      %v4605 = vunpack.c.l.b16 %v4454
      %v4606 = vunpack.c.l.b16 %v4455
      %v4607 = vunpack.c.h.b16 %v4455
      %v4608 = vunpack.c.l.b16 %v4456
      %v4609 = vunpack.c.l.b16 %v4457
      %v4610 = vunpack.c.h.b16 %v4457
      %v4611 = vunpack.c.l.b16 %v4458
      %v4612 = vunpack.c.l.b16 %v4459
      %v4613 = vunpack.c.h.b16 %v4459
      %v4614 = vunpack.c.l.b16 %v4460
      %v4615 = vpack.c.b16 %v4537, %v4534
      %v4616 = vpack.c.b16 %v4538, %v4535
      %v4617 = vpack.c.b16 %v4539, %v4536
      %v4618 = vpack.c.b16 %v4543, %v4540
      %v4619 = vpack.c.b16 %v4544, %v4541
      %v4620 = vpack.c.b16 %v4545, %v4542
      %v4621 = vpack.c.b16 %v4549, %v4546
      %v4622 = vpack.c.b16 %v4550, %v4547
      %v4623 = vpack.c.b16 %v4551, %v4548
      %v4624 = vpack.c.b16 %v4555, %v4552
      %v4625 = vpack.c.b16 %v4556, %v4553
      %v4626 = vpack.c.b16 %v4557, %v4554
      %v4627 = vpack.c.b16 %v4561, %v4558
      %v4628 = vpack.c.b16 %v4562, %v4559
      %v4629 = vpack.c.b16 %v4563, %v4560
      %v4630 = vpack.c.b16 %v4567, %v4564
      %v4631 = vpack.c.b16 %v4568, %v4565
      %v4632 = vpack.c.b16 %v4569, %v4566
      %v4633 = vpack.c.b16 %v4573, %v4570
      %v4634 = vpack.c.b16 %v4574, %v4571
      %v4635 = vpack.c.b16 %v4575, %v4572
      %v4636 = vpack.c.b16 %v4579, %v4576
      %v4637 = vpack.c.b16 %v4580, %v4577
      %v4638 = vpack.c.b16 %v4581, %v4578
      %v4639 = vpack.c.b16 %v4585, %v4582
      %v4640 = vpack.c.b16 %v4586, %v4583
      %v4641 = vpack.c.b16 %v4587, %v4584
      %v4642 = vpack.c.b16 %v4591, %v4588
      %v4643 = vpack.c.b16 %v4592, %v4589
      %v4644 = vpack.c.b16 %v4593, %v4590
      %v4645 = vpack.c.b16 %v4597, %v4594
      %v4646 = vpack.c.b16 %v4598, %v4595
      %v4647 = vpack.c.b16 %v4599, %v4596
      %v4648 = vpack.c.b16 %v4603, %v4600
      %v4649 = vpack.c.b16 %v4604, %v4601
      %v4650 = vpack.c.b16 %v4605, %v4602
      %v4651 = vpack.c.b16 %v4609, %v4606
      %v4652 = vpack.c.b16 %v4610, %v4607
      %v4653 = vpack.c.b16 %v4611, %v4608
      %v4654 = vpack.c.b16 %v4612, %v4612
      %v4655 = vpack.c.b16 %v4613, %v4613
      %v4656 = vpack.c.b16 %v4614, %v4614
      %v4697 = vsel %vm1732, %v4478, 0
      %v4700 = vsel %vm1736, %v4654, 0
      %v4703 = vsel %vm1736, %v4655, 0
      %v4706 = vsel %vm1736, %v4656, 0
      %4708 = vmatpush.bf16.msra.mxu0 %v4636
      %4709 = vmatpush.bf16.msra.mxu0 %v4633
      %4710 = vmatpush.bf16.msra.mxu0 %v4630
      %4711 = vmatpush.bf16.msra.mxu0 %v4627
      %4712 = vmatpush.bf16.msra.mxu0 %v4624
      %4713 = vmatpush.bf16.msra.mxu0 %v4621
      %4714 = vmatpush.bf16.msra.mxu0 %v4618
      %4715 = vmatpush.bf16.msra.mxu0 %v4615
      %4716 = vmatmul.bf16.gmra.mxu0 %v4477
      %v4717 = vpop.f32.mrf.mxu0
      %v4718 = vadd.f32 %v4464, %v4717
      %v4719 = vpop.f32.mrf.mxu0
      %v4720 = vadd.f32 %v4469, %v4719
      %4721 = vdwg.mxu0
      %4722 = vmatpush.bf16.msra.mxu0 0
      %4723 = vmatpush.bf16.msra.mxu0 0
      %4724 = vmatpush.bf16.msra.mxu0 %v4700
      %4725 = vmatpush.bf16.msra.mxu0 %v4651
      %4726 = vmatpush.bf16.msra.mxu0 %v4648
      %4727 = vmatpush.bf16.msra.mxu0 %v4645
      %4728 = vmatpush.bf16.msra.mxu0 %v4642
      %4729 = vmatpush.bf16.msra.mxu0 %v4639
      %4730 = vmatmul.bf16.gmra.mxu0 %v4697
      %v4731 = vpop.f32.mrf.mxu0
      %v4732 = vadd.f32 %v4718, %v4731
      %v4733 = vpop.f32.mrf.mxu0
      %v4734 = vadd.f32 %v4720, %v4733
      %4735 = vdwg.mxu0
      %4736 = vmatpush.bf16.msra.mxu0 %v4637
      %4737 = vmatpush.bf16.msra.mxu0 %v4634
      %4738 = vmatpush.bf16.msra.mxu0 %v4631
      %4739 = vmatpush.bf16.msra.mxu0 %v4628
      %4740 = vmatpush.bf16.msra.mxu0 %v4625
      %4741 = vmatpush.bf16.msra.mxu0 %v4622
      %4742 = vmatpush.bf16.msra.mxu0 %v4619
      %4743 = vmatpush.bf16.msra.mxu0 %v4616
      %4744 = vmatmul.bf16.gmra.mxu0 %v4477
      %v4745 = vpop.f32.mrf.mxu0
      %v4746 = vadd.f32 %v4464, %v4745
      %v4747 = vpop.f32.mrf.mxu0
      %v4748 = vadd.f32 %v4469, %v4747
      %4749 = vdwg.mxu0
      %4750 = vmatpush.bf16.msra.mxu0 0
      %4751 = vmatpush.bf16.msra.mxu0 0
      %4752 = vmatpush.bf16.msra.mxu0 %v4703
      %4753 = vmatpush.bf16.msra.mxu0 %v4652
      %4754 = vmatpush.bf16.msra.mxu0 %v4649
      %4755 = vmatpush.bf16.msra.mxu0 %v4646
      %4756 = vmatpush.bf16.msra.mxu0 %v4643
      %4757 = vmatpush.bf16.msra.mxu0 %v4640
      %4758 = vmatmul.bf16.gmra.mxu0 %v4697
      %v4759 = vpop.f32.mrf.mxu0
      %v4760 = vadd.f32 %v4746, %v4759
      %v4761 = vpop.f32.mrf.mxu0
      %v4762 = vadd.f32 %v4748, %v4761
      %4763 = vdwg.mxu0
      %4764 = vmatpush.bf16.msra.mxu0 %v4638
      %4765 = vmatpush.bf16.msra.mxu0 %v4635
      %4766 = vmatpush.bf16.msra.mxu0 %v4632
      %4767 = vmatpush.bf16.msra.mxu0 %v4629
      %4768 = vmatpush.bf16.msra.mxu0 %v4626
      %4769 = vmatpush.bf16.msra.mxu0 %v4623
      %4770 = vmatpush.bf16.msra.mxu0 %v4620
      %4771 = vmatpush.bf16.msra.mxu0 %v4617
      %4772 = vmatmul.bf16.gmra.mxu0 %v4477
      %v4773 = vpop.f32.mrf.mxu0
      %v4774 = vadd.f32 %v4464, %v4773
      %v4775 = vpop.f32.mrf.mxu0
      %v4776 = vadd.f32 %v4469, %v4775
      %4777 = vdwg.mxu0
      %4778 = vmatpush.bf16.msra.mxu0 0
      %4779 = vmatpush.bf16.msra.mxu0 0
      %4780 = vmatpush.bf16.msra.mxu0 %v4706
      %4781 = vmatpush.bf16.msra.mxu0 %v4653
      %4782 = vmatpush.bf16.msra.mxu0 %v4650
      %4783 = vmatpush.bf16.msra.mxu0 %v4647
      %4784 = vmatpush.bf16.msra.mxu0 %v4644
      %4785 = vmatpush.bf16.msra.mxu0 %v4641
      %4786 = vmatmul.bf16.gmra.mxu0 %v4697
      %v4787 = vpop.f32.mrf.mxu0
      %v4788 = vadd.f32 %v4774, %v4787
      %v4789 = vpop.f32.mrf.mxu0
      %v4790 = vadd.f32 %v4776, %v4789
      %4791 = vdwg.mxu0
      %v4792 = vmax.f32 %v4732, 0.0
      %v4793 = vmax.f32 %v4760, 0.0
      %v4794 = vmax.f32 %v4788, 0.0
      %v4795 = vmax.f32 %v4734, 0.0
      %v4796 = vmax.f32 %v4762, 0.0
      %v4797 = vmax.f32 %v4790, 0.0
      %v4798 = vpack.c.bf16 %v4793, %v4792
      %v4799 = vpack.c.bf16 %v4794, %v4794
      %v4800 = vpack.c.bf16 %v4796, %v4795
      %v4801 = vpack.c.bf16 %v4797, %v4797
      %v4802 = vunpack.c.l.bf16 %v4798
      %v4803 = vunpack.c.h.bf16 %v4798
      %v4804 = vunpack.c.l.bf16 %v4799
      %v4805 = vunpack.c.l.bf16 %v4800
      %v4806 = vunpack.c.h.bf16 %v4800
      %v4807 = vunpack.c.l.bf16 %v4801
      %v4808 = vmul.f32 %v4802, %v959
      %v4809 = vmul.f32 %v4803, %v960
      %v4810 = vmul.f32 %v4804, %v961
      %v4811 = vmul.f32 %v4805, %v959
      %v4812 = vmul.f32 %v4806, %v960
      %v4813 = vmul.f32 %v4807, %v961
      %v4814 = vpack.c.bf16 %v4809, %v4808
      %v4815 = vpack.c.bf16 %v4810, %v4810
      %v4816 = vpack.c.bf16 %v4812, %v4811
      %v4817 = vpack.c.bf16 %v4813, %v4813
      %v4818 = vsub.f32 0.0, %v4732
      %v4819 = vsub.f32 0.0, %v4760
      %v4820 = vsub.f32 0.0, %v4788
      %v4821 = vsub.f32 0.0, %v4734
      %v4822 = vsub.f32 0.0, %v4762
      %v4823 = vsub.f32 0.0, %v4790
      %v4824 = vmax.f32 %v4818, 0.0
      %v4825 = vmax.f32 %v4819, 0.0
      %v4826 = vmax.f32 %v4820, 0.0
      %v4827 = vmax.f32 %v4821, 0.0
      %v4828 = vmax.f32 %v4822, 0.0
      %v4829 = vmax.f32 %v4823, 0.0
      %v4830 = vpack.c.bf16 %v4825, %v4824
      %v4831 = vpack.c.bf16 %v4826, %v4826
      %v4832 = vpack.c.bf16 %v4828, %v4827
      %v4833 = vpack.c.bf16 %v4829, %v4829
      %v4834 = vunpack.c.l.bf16 %v4830
      %v4835 = vunpack.c.h.bf16 %v4830
      %v4836 = vunpack.c.l.bf16 %v4831
      %v4837 = vunpack.c.l.bf16 %v4832
      %v4838 = vunpack.c.h.bf16 %v4832
      %v4839 = vunpack.c.l.bf16 %v4833
      %v4840 = vmul.f32 %v4834, %v959
      %v4841 = vmul.f32 %v4835, %v960
      %v4842 = vmul.f32 %v4836, %v961
      %v4843 = vmul.f32 %v4837, %v959
      %v4844 = vmul.f32 %v4838, %v960
      %v4845 = vmul.f32 %v4839, %v961
      %v4846 = vpack.c.bf16 %v4841, %v4840
      %v4847 = vpack.c.bf16 %v4842, %v4842
      %v4848 = vpack.c.bf16 %v4844, %v4843
      %v4849 = vpack.c.bf16 %v4845, %v4845
      %4850 = vst [vmem:[#allocation2 + $0x4] sm:$0xff] %v4814
      %4851 = vst.msk [vmem:[#allocation2 + $0xc] sm:$0xf] %vm471, %v4815
      %4852 = vst [vmem:[#allocation2 + $0x14] sm:$0x33] %v4816
      %4853 = vst.msk [vmem:[#allocation2 + $0x1c] sm:$0x3] %vm1007, %v4817
      %v4858 = vrot.slane %v4846, 6
      %v4859 = vrot.slane %v4847, 6
      %v4860 = vrot.slane %v4858, 4
      %v4861 = vrot.slane %v4848, 6
      %v4862 = vsel %vm1013, %v4860, %v4861
      %v4863 = vrot.slane %v4859, 4
      %v4864 = vrot.slane %v4849, 6
      %v4865 = vsel %vm1013, %v4863, %v4864
      %4870 = vst [vmem:[#allocation2 + $0x14] sm:$0xcc] %v4858
      %4871 = vst.msk [vmem:[#allocation2 + $0x1c] sm:$0xc] %vm1027, %v4859
      %4872 = vst [vmem:[#allocation2 + $0x24] sm:$0xff] %v4862
      %4873 = vst.msk [vmem:[#allocation2 + $0x2c] sm:$0xf] %vm471, %v4865
      %v4876 = vunpack.c.l.b16 %v3997
      %v4877 = vunpack.c.l.b16 %v3998
      %v4878 = vpack.c.b16 %v4877, %v4876
      %4879 = vrot.lane.b32.xlu0 %v4878, 116
      %v4880 = vpop.permute.xlu0 %4879
      %v4881 = vunpack.c.l.b16 %v4846
      %v4882 = vunpack.c.h.b16 %v4846
      %v4883 = vunpack.c.l.b16 %v4847
      %v4884 = vunpack.c.l.b16 %v4848
      %v4885 = vunpack.c.h.b16 %v4848
      %v4886 = vunpack.c.l.b16 %v4849
      %v4887 = vpack.c.b16 %v4884, %v4881
      %v4888 = vpack.c.b16 %v4885, %v4882
      %v4889 = vpack.c.b16 %v4886, %v4883
      %v4891 = vsel %vm2811, %v4880, 0
      %v4894 = vsel %vm889, %v4887, 0
      %v4897 = vsel %vm889, %v4888, 0
      %v4900 = vsel %vm889, %v4889, 0
      %4902 = vmatpush.bf16.msra.mxu0 0
      %4903 = vmatpush.bf16.msra.mxu0 0
      %4904 = vmatpush.bf16.msra.mxu0 0
      %4905 = vmatpush.bf16.msra.mxu0 0
      %4906 = vmatpush.bf16.msra.mxu0 0
      %4907 = vmatpush.bf16.msra.mxu0 0
      %4908 = vmatpush.bf16.msra.mxu0 0
      %4909 = vmatpush.bf16.msra.mxu0 %v4894
      %4910 = vmatmul.bf16.gmra.mxu0 %v4891
      %v4911 = vpop.f32.mrf.mxu0
      %v4912 = vadd.f32 0.0, %v4911
      %v4913 = vpop.f32.mrf.mxu0
      %v4914 = vadd.f32 0.0, %v4913
      %4915 = vdwg.mxu0
      %4916 = vmatpush.bf16.msra.mxu0 0
      %4917 = vmatpush.bf16.msra.mxu0 0
      %4918 = vmatpush.bf16.msra.mxu0 0
      %4919 = vmatpush.bf16.msra.mxu0 0
      %4920 = vmatpush.bf16.msra.mxu0 0
      %4921 = vmatpush.bf16.msra.mxu0 0
      %4922 = vmatpush.bf16.msra.mxu0 0
      %4923 = vmatpush.bf16.msra.mxu0 %v4897
      %4924 = vmatmul.bf16.gmra.mxu0 %v4891
      %v4925 = vpop.f32.mrf.mxu0
      %v4926 = vadd.f32 0.0, %v4925
      %v4927 = vpop.f32.mrf.mxu0
      %v4928 = vadd.f32 0.0, %v4927
      %4929 = vdwg.mxu0
      %4930 = vmatpush.bf16.msra.mxu0 0
      %4931 = vmatpush.bf16.msra.mxu0 0
      %4932 = vmatpush.bf16.msra.mxu0 0
      %4933 = vmatpush.bf16.msra.mxu0 0
      %4934 = vmatpush.bf16.msra.mxu0 0
      %4935 = vmatpush.bf16.msra.mxu0 0
      %4936 = vmatpush.bf16.msra.mxu0 0
      %4937 = vmatpush.bf16.msra.mxu0 %v4900
      %4938 = vmatmul.bf16.gmra.mxu0 %v4891
      %v4939 = vpop.f32.mrf.mxu0
      %v4940 = vadd.f32 0.0, %v4939
      %v4941 = vpop.f32.mrf.mxu0
      %v4942 = vadd.f32 0.0, %v4941
      %4943 = vdwg.mxu0
      %v4948 = vunpack.c.l.b16 %v4814
      %v4949 = vunpack.c.h.b16 %v4814
      %v4950 = vunpack.c.l.b16 %v4815
      %v4951 = vunpack.c.l.b16 %v4816
      %v4952 = vunpack.c.h.b16 %v4816
      %v4953 = vunpack.c.l.b16 %v4817
      %v4954 = vpack.c.b16 %v4951, %v4948
      %v4955 = vpack.c.b16 %v4952, %v4949
      %v4956 = vpack.c.b16 %v4953, %v4950
      %v4958 = vsel %vm2811, %v4878, 0
      %v4961 = vsel %vm889, %v4954, 0
      %v4964 = vsel %vm889, %v4955, 0
      %v4967 = vsel %vm889, %v4956, 0
      %4969 = vmatpush.bf16.msra.mxu0 0
      %4970 = vmatpush.bf16.msra.mxu0 0
      %4971 = vmatpush.bf16.msra.mxu0 0
      %4972 = vmatpush.bf16.msra.mxu0 0
      %4973 = vmatpush.bf16.msra.mxu0 0
      %4974 = vmatpush.bf16.msra.mxu0 0
      %4975 = vmatpush.bf16.msra.mxu0 0
      %4976 = vmatpush.bf16.msra.mxu0 %v4961
      %4977 = vmatmul.bf16.gmra.mxu0 %v4958
      %v4978 = vpop.f32.mrf.mxu0
      %v4979 = vadd.f32 %v4912, %v4978
      %v4980 = vpop.f32.mrf.mxu0
      %v4981 = vadd.f32 %v4914, %v4980
      %4982 = vdwg.mxu0
      %4983 = vmatpush.bf16.msra.mxu0 0
      %4984 = vmatpush.bf16.msra.mxu0 0
      %4985 = vmatpush.bf16.msra.mxu0 0
      %4986 = vmatpush.bf16.msra.mxu0 0
      %4987 = vmatpush.bf16.msra.mxu0 0
      %4988 = vmatpush.bf16.msra.mxu0 0
      %4989 = vmatpush.bf16.msra.mxu0 0
      %4990 = vmatpush.bf16.msra.mxu0 %v4964
      %4991 = vmatmul.bf16.gmra.mxu0 %v4958
      %v4992 = vpop.f32.mrf.mxu0
      %v4993 = vadd.f32 %v4926, %v4992
      %v4994 = vpop.f32.mrf.mxu0
      %v4995 = vadd.f32 %v4928, %v4994
      %4996 = vdwg.mxu0
      %4997 = vmatpush.bf16.msra.mxu0 0
      %4998 = vmatpush.bf16.msra.mxu0 0
      %4999 = vmatpush.bf16.msra.mxu0 0
      %5000 = vmatpush.bf16.msra.mxu0 0
      %5001 = vmatpush.bf16.msra.mxu0 0
      %5002 = vmatpush.bf16.msra.mxu0 0
      %5003 = vmatpush.bf16.msra.mxu0 0
      %5004 = vmatpush.bf16.msra.mxu0 %v4967
      %5005 = vmatmul.bf16.gmra.mxu0 %v4958
      %v5006 = vpop.f32.mrf.mxu0
      %v5007 = vadd.f32 %v4940, %v5006
      %v5008 = vpop.f32.mrf.mxu0
      %v5009 = vadd.f32 %v4942, %v5008
      %5010 = vdwg.mxu0
      %v5011 = vld [vmem:[#allocation5] sm:$0xff]
      %v5012 = vld [vmem:[#allocation5 + $0x8] sm:$0xff]
      %v5013 = vld [vmem:[#allocation5 + $0x10] sm:$0xff]
      %v5014 = vld [vmem:[#allocation5 + $0x18] sm:$0xf]
      %v5015 = vld [vmem:[#allocation5 + $0x20] sm:$0xf]
      %v5016 = vld [vmem:[#allocation5 + $0x28] sm:$0xf]
      %v5017 = vadd.f32 %v5011, %v4979
      %v5018 = vadd.f32 %v5012, %v4993
      %v5019 = vadd.f32 %v5013, %v5007
      %v5020 = vadd.f32 %v5014, %v4981
      %v5021 = vadd.f32 %v5015, %v4995
      %v5022 = vadd.f32 %v5016, %v5009
      %5023 = vst [vmem:[#allocation5] sm:$0xff] %v5017
      %5024 = vst [vmem:[#allocation5 + $0x8] sm:$0xff] %v5018
      %5025 = vst.msk [vmem:[#allocation5 + $0x10] sm:$0xff] %vm467, %v5019
      %5026 = vst [vmem:[#allocation5 + $0x18] sm:$0xf] %v5020
      %5027 = vst [vmem:[#allocation5 + $0x20] sm:$0xf] %v5021
      %5028 = vst.msk [vmem:[#allocation5 + $0x28] sm:$0xf] %vm471, %v5022
      %s5029 = scalar_lea.vmem %s4, 64
      %v5030 = vld [vmem:[%s5029] sm:$0xff]
      %v5031 = vld [vmem:[%s5029 + $0x8] sm:$0x33]
      %s5032 = scalar_lea.vmem %s5, 64
      %v5033 = vld [vmem:[%s5032] sm:$0xff]
      %v5034 = vld [vmem:[%s5032 + $0x8] sm:$0xf]
      %s5035 = scalar_lea.vmem %s6, 24
      %v5036 = vld [vmem:[%s5035] sm:$0xf]
      %v5037 = vld [vmem:[%s5035 + $0x4] sm:$0x3]
      %v5038 = vld [vmem:[#allocation2] sm:$0xff]
      %v5039 = vld [vmem:[#allocation2 + $0x8] sm:$0xff]
      %v5040 = vld [vmem:[#allocation2 + $0x10] sm:$0xff]
      %v5041 = vld [vmem:[#allocation2 + $0x18] sm:$0xff]
      %v5042 = vld [vmem:[#allocation2 + $0x20] sm:$0xff]
      %v5043 = vld [vmem:[#allocation2 + $0x28] sm:$0xff]
      %5050 = vrot.lane.b32.xlu0 %v5038, 19
      %v5051 = vpop.permute.xlu0 %5050
      %5052 = vrot.lane.b32.xlu0 %v5039, 19
      %v5053 = vpop.permute.xlu0 %5052
      %5054 = vrot.lane.b32.xlu0 %v5040, 19
      %v5055 = vpop.permute.xlu0 %5054
      %5056 = vrot.lane.b32.xlu0 %v5041, 19
      %v5057 = vpop.permute.xlu0 %5056
      %5058 = vrot.lane.b32.xlu0 %v5042, 19
      %v5059 = vpop.permute.xlu0 %5058
      %5060 = vrot.lane.b32.xlu0 %v5043, 19
      %v5061 = vpop.permute.xlu0 %5060
      %v5062 = vrot.slane %v5051, 4
      %v5063 = vrot.slane %v5053, 4
      %v5064 = vrot.slane %v5055, 4
      %v5065 = vrot.slane %v5057, 4
      %v5066 = vrot.slane %v5059, 4
      %v5067 = vrot.slane %v5061, 4
      %v5068 = vsel %vm490, %v5062, %v5063
      %v5069 = vsel %vm492, %v5051, %v5068
      %v5070 = vsel %vm492, %v5053, %v5063
      %v5071 = vsel %vm490, %v5064, %v5065
      %v5072 = vsel %vm492, %v5055, %v5071
      %v5073 = vsel %vm492, %v5057, %v5065
      %v5074 = vsel %vm490, %v5066, %v5067
      %v5075 = vsel %vm492, %v5059, %v5074
      %v5076 = vsel %vm492, %v5061, %v5067
      %5083 = vst [vmem:[#allocation4] sm:$0xff] %v5069
      %5084 = vst.msk [vmem:[#allocation4 + $0x8] sm:$0xf] %vm471, %v5070
      %5085 = vst [vmem:[#allocation4 + $0xc] sm:$0xff] %v5072
      %5086 = vst.msk [vmem:[#allocation4 + $0x14] sm:$0xf] %vm471, %v5073
      %5087 = vst [vmem:[#allocation4 + $0x18] sm:$0xff] %v5075
      %5088 = vst.msk [vmem:[#allocation4 + $0x20] sm:$0xf] %vm471, %v5076
      %v5089 = vld [vmem:[#allocation2] sm:$0xff]
      %v5090 = vld [vmem:[#allocation2 + $0x8] sm:$0xff]
      %v5091 = vld [vmem:[#allocation2 + $0x10] sm:$0xff]
      %v5092 = vld [vmem:[#allocation2 + $0x18] sm:$0xff]
      %v5093 = vld [vmem:[#allocation2 + $0x20] sm:$0xff]
      %v5094 = vld [vmem:[#allocation2 + $0x28] sm:$0xff]
      %5101 = vrot.lane.b32.xlu0 %v5089, 18
      %v5102 = vpop.permute.xlu0 %5101
      %5103 = vrot.lane.b32.xlu0 %v5090, 18
      %v5104 = vpop.permute.xlu0 %5103
      %5105 = vrot.lane.b32.xlu0 %v5091, 18
      %v5106 = vpop.permute.xlu0 %5105
      %5107 = vrot.lane.b32.xlu0 %v5092, 18
      %v5108 = vpop.permute.xlu0 %5107
      %5109 = vrot.lane.b32.xlu0 %v5093, 18
      %v5110 = vpop.permute.xlu0 %5109
      %5111 = vrot.lane.b32.xlu0 %v5094, 18
      %v5112 = vpop.permute.xlu0 %5111
      %v5113 = vrot.slane %v5102, 4
      %v5114 = vrot.slane %v5104, 4
      %v5115 = vrot.slane %v5106, 4
      %v5116 = vrot.slane %v5108, 4
      %v5117 = vrot.slane %v5110, 4
      %v5118 = vrot.slane %v5112, 4
      %v5119 = vsel %vm490, %v5113, %v5114
      %v5120 = vsel %vm538, %v5102, %v5119
      %v5121 = vsel %vm538, %v5104, %v5114
      %v5122 = vsel %vm490, %v5115, %v5116
      %v5123 = vsel %vm538, %v5106, %v5122
      %v5124 = vsel %vm538, %v5108, %v5116
      %v5125 = vsel %vm490, %v5117, %v5118
      %v5126 = vsel %vm538, %v5110, %v5125
      %v5127 = vsel %vm538, %v5112, %v5118
      %5134 = vst [vmem:[#allocation4 + $0x24] sm:$0xff] %v5120
      %5135 = vst.msk [vmem:[#allocation4 + $0x2c] sm:$0xf] %vm471, %v5121
      %5136 = vst [vmem:[#allocation4 + $0x30] sm:$0xff] %v5123
      %5137 = vst.msk [vmem:[#allocation4 + $0x38] sm:$0xf] %vm471, %v5124
      %5138 = vst [vmem:[#allocation4 + $0x3c] sm:$0xff] %v5126
      %5139 = vst.msk [vmem:[#allocation4 + $0x44] sm:$0xf] %vm471, %v5127
      %v5140 = vld [vmem:[#allocation2] sm:$0xff]
      %v5141 = vld [vmem:[#allocation2 + $0x8] sm:$0xff]
      %v5142 = vld [vmem:[#allocation2 + $0x10] sm:$0xff]
      %v5143 = vld [vmem:[#allocation2 + $0x18] sm:$0xff]
      %v5144 = vld [vmem:[#allocation2 + $0x20] sm:$0xff]
      %v5145 = vld [vmem:[#allocation2 + $0x28] sm:$0xff]
      %5152 = vrot.lane.b32.xlu0 %v5140, 17
      %v5153 = vpop.permute.xlu0 %5152
      %5154 = vrot.lane.b32.xlu0 %v5141, 17
      %v5155 = vpop.permute.xlu0 %5154
      %5156 = vrot.lane.b32.xlu0 %v5142, 17
      %v5157 = vpop.permute.xlu0 %5156
      %5158 = vrot.lane.b32.xlu0 %v5143, 17
      %v5159 = vpop.permute.xlu0 %5158
      %5160 = vrot.lane.b32.xlu0 %v5144, 17
      %v5161 = vpop.permute.xlu0 %5160
      %5162 = vrot.lane.b32.xlu0 %v5145, 17
      %v5163 = vpop.permute.xlu0 %5162
      %v5164 = vrot.slane %v5153, 4
      %v5165 = vrot.slane %v5155, 4
      %v5166 = vrot.slane %v5157, 4
      %v5167 = vrot.slane %v5159, 4
      %v5168 = vrot.slane %v5161, 4
      %v5169 = vrot.slane %v5163, 4
      %v5170 = vsel %vm490, %v5164, %v5165
      %v5171 = vsel %vm582, %v5153, %v5170
      %v5172 = vsel %vm582, %v5155, %v5165
      %v5173 = vsel %vm490, %v5166, %v5167
      %v5174 = vsel %vm582, %v5157, %v5173
      %v5175 = vsel %vm582, %v5159, %v5167
      %v5176 = vsel %vm490, %v5168, %v5169
      %v5177 = vsel %vm582, %v5161, %v5176
      %v5178 = vsel %vm582, %v5163, %v5169
      %5185 = vst [vmem:[#allocation4 + $0x48] sm:$0xff] %v5171
      %5186 = vst.msk [vmem:[#allocation4 + $0x50] sm:$0xf] %vm471, %v5172
      %5187 = vst [vmem:[#allocation4 + $0x54] sm:$0xff] %v5174
      %5188 = vst.msk [vmem:[#allocation4 + $0x5c] sm:$0xf] %vm471, %v5175
      %5189 = vst [vmem:[#allocation4 + $0x60] sm:$0xff] %v5177
      %5190 = vst.msk [vmem:[#allocation4 + $0x68] sm:$0xf] %vm471, %v5178
      %v5191 = vld [vmem:[#allocation2] sm:$0xff]
      %v5192 = vld [vmem:[#allocation2 + $0x8] sm:$0xff]
      %v5193 = vld [vmem:[#allocation2 + $0x10] sm:$0xff]
      %v5194 = vld [vmem:[#allocation2 + $0x18] sm:$0xff]
      %v5195 = vld [vmem:[#allocation2 + $0x20] sm:$0xff]
      %v5196 = vld [vmem:[#allocation2 + $0x28] sm:$0xff]
      %5203 = vrot.lane.b32.xlu0 %v5191, 1
      %v5204 = vpop.permute.xlu0 %5203
      %5205 = vrot.lane.b32.xlu0 %v5192, 1
      %v5206 = vpop.permute.xlu0 %5205
      %5207 = vrot.lane.b32.xlu0 %v5193, 1
      %v5208 = vpop.permute.xlu0 %5207
      %5209 = vrot.lane.b32.xlu0 %v5194, 1
      %v5210 = vpop.permute.xlu0 %5209
      %5211 = vrot.lane.b32.xlu0 %v5195, 1
      %v5212 = vpop.permute.xlu0 %5211
      %5213 = vrot.lane.b32.xlu0 %v5196, 1
      %v5214 = vpop.permute.xlu0 %5213
      %v5215 = vrot.slane %v5204, 4
      %v5216 = vrot.slane %v5206, 4
      %v5217 = vrot.slane %v5208, 4
      %v5218 = vrot.slane %v5210, 4
      %v5219 = vrot.slane %v5212, 4
      %v5220 = vrot.slane %v5214, 4
      %v5221 = vsel %vm490, %v5215, %v5216
      %v5222 = vsel %vm634, %v5204, %v5221
      %v5223 = vsel %vm634, %v5206, %v5216
      %v5224 = vsel %vm490, %v5217, %v5218
      %v5225 = vsel %vm634, %v5208, %v5224
      %v5226 = vsel %vm634, %v5210, %v5218
      %v5227 = vsel %vm490, %v5219, %v5220
      %v5228 = vsel %vm634, %v5212, %v5227
      %v5229 = vsel %vm634, %v5214, %v5220
      %5236 = vst [vmem:[#allocation4 + $0x6c] sm:$0xff] %v5222
      %5237 = vst.msk [vmem:[#allocation4 + $0x74] sm:$0xf] %vm471, %v5223
      %5238 = vst [vmem:[#allocation4 + $0x78] sm:$0xff] %v5225
      %5239 = vst.msk [vmem:[#allocation4 + $0x80] sm:$0xf] %vm471, %v5226
      %5240 = vst [vmem:[#allocation4 + $0x84] sm:$0xff] %v5228
      %5241 = vst.msk [vmem:[#allocation4 + $0x8c] sm:$0xf] %vm471, %v5229
      %v5242 = vld [vmem:[#allocation2 + $0x4] sm:$0xff]
      %v5243 = vld [vmem:[#allocation2 + $0xc] sm:$0xf]
      %v5244 = vld [vmem:[#allocation2 + $0x14] sm:$0xff]
      %v5245 = vld [vmem:[#allocation2 + $0x1c] sm:$0xf]
      %v5246 = vld [vmem:[#allocation2 + $0x24] sm:$0xff]
      %v5247 = vld [vmem:[#allocation2 + $0x2c] sm:$0xf]
      %5248 = vst [vmem:[#allocation4 + $0x90] sm:$0xff] %v5242
      %5249 = vst.msk [vmem:[#allocation4 + $0x98] sm:$0xf] %vm471, %v5243
      %5250 = vst [vmem:[#allocation4 + $0x9c] sm:$0xff] %v5244
      %5251 = vst.msk [vmem:[#allocation4 + $0xa4] sm:$0xf] %vm471, %v5245
      %5252 = vst [vmem:[#allocation4 + $0xa8] sm:$0xff] %v5246
      %5253 = vst.msk [vmem:[#allocation4 + $0xb0] sm:$0xf] %vm471, %v5247
      %v5254 = vld [vmem:[#allocation2 + $0x4] sm:$0xff]
      %v5255 = vld [vmem:[#allocation2 + $0xc] sm:$0xf]
      %v5256 = vld [vmem:[#allocation2 + $0x14] sm:$0xff]
      %v5257 = vld [vmem:[#allocation2 + $0x1c] sm:$0xf]
      %v5258 = vld [vmem:[#allocation2 + $0x24] sm:$0xff]
      %v5259 = vld [vmem:[#allocation2 + $0x2c] sm:$0xf]
      %5266 = vrot.lane.b32.xlu0 %v5254, 127
      %v5267 = vpop.permute.xlu0 %5266
      %5268 = vrot.lane.b32.xlu0 %v5255, 127
      %v5269 = vpop.permute.xlu0 %5268
      %5270 = vrot.lane.b32.xlu0 %v5256, 127
      %v5271 = vpop.permute.xlu0 %5270
      %5272 = vrot.lane.b32.xlu0 %v5257, 127
      %v5273 = vpop.permute.xlu0 %5272
      %5274 = vrot.lane.b32.xlu0 %v5258, 127
      %v5275 = vpop.permute.xlu0 %5274
      %5276 = vrot.lane.b32.xlu0 %v5259, 127
      %v5277 = vpop.permute.xlu0 %5276
      %v5278 = vrot.slane %v5267, 4
      %v5279 = vrot.slane %v5269, 4
      %v5280 = vrot.slane %v5271, 4
      %v5281 = vrot.slane %v5273, 4
      %v5282 = vrot.slane %v5275, 4
      %v5283 = vrot.slane %v5277, 4
      %v5284 = vsel %vm490, %v5278, %v5279
      %v5285 = vsel %vm708, %v5267, %v5284
      %v5286 = vsel %vm490, %v5280, %v5281
      %v5287 = vsel %vm708, %v5271, %v5286
      %v5288 = vsel %vm490, %v5282, %v5283
      %v5289 = vsel %vm708, %v5275, %v5288
      %5296 = vst [vmem:[#allocation4 + $0xb4] sm:$0xff] %v5285
      %5297 = vst.msk [vmem:[#allocation4 + $0xbc] sm:$0xf] %vm471, %v5269
      %5298 = vst [vmem:[#allocation4 + $0xc0] sm:$0xff] %v5287
      %5299 = vst.msk [vmem:[#allocation4 + $0xc8] sm:$0xf] %vm471, %v5273
      %5300 = vst [vmem:[#allocation4 + $0xcc] sm:$0xff] %v5289
      %5301 = vst.msk [vmem:[#allocation4 + $0xd4] sm:$0xf] %vm471, %v5277
      %v5302 = vld [vmem:[#allocation2 + $0x4] sm:$0xff]
      %v5303 = vld [vmem:[#allocation2 + $0xc] sm:$0xf]
      %v5304 = vld [vmem:[#allocation2 + $0x14] sm:$0xff]
      %v5305 = vld [vmem:[#allocation2 + $0x1c] sm:$0xf]
      %v5306 = vld [vmem:[#allocation2 + $0x24] sm:$0xff]
      %v5307 = vld [vmem:[#allocation2 + $0x2c] sm:$0xf]
      %5314 = vrot.lane.b32.xlu0 %v5302, 111
      %v5315 = vpop.permute.xlu0 %5314
      %5316 = vrot.lane.b32.xlu0 %v5303, 111
      %v5317 = vpop.permute.xlu0 %5316
      %5318 = vrot.lane.b32.xlu0 %v5304, 111
      %v5319 = vpop.permute.xlu0 %5318
      %5320 = vrot.lane.b32.xlu0 %v5305, 111
      %v5321 = vpop.permute.xlu0 %5320
      %5322 = vrot.lane.b32.xlu0 %v5306, 111
      %v5323 = vpop.permute.xlu0 %5322
      %5324 = vrot.lane.b32.xlu0 %v5307, 111
      %v5325 = vpop.permute.xlu0 %5324
      %v5326 = vrot.slane %v5315, 4
      %v5327 = vrot.slane %v5317, 4
      %v5328 = vrot.slane %v5319, 4
      %v5329 = vrot.slane %v5321, 4
      %v5330 = vrot.slane %v5323, 4
      %v5331 = vrot.slane %v5325, 4
      %v5332 = vsel %vm490, %v5326, %v5327
      %v5333 = vsel %vm750, %v5315, %v5332
      %v5334 = vsel %vm490, %v5328, %v5329
      %v5335 = vsel %vm750, %v5319, %v5334
      %v5336 = vsel %vm490, %v5330, %v5331
      %v5337 = vsel %vm750, %v5323, %v5336
      %5344 = vst [vmem:[#allocation4 + $0xd8] sm:$0xff] %v5333
      %5345 = vst.msk [vmem:[#allocation4 + $0xe0] sm:$0xf] %vm471, %v5317
      %5346 = vst [vmem:[#allocation4 + $0xe4] sm:$0xff] %v5335
      %5347 = vst.msk [vmem:[#allocation4 + $0xec] sm:$0xf] %vm471, %v5321
      %5348 = vst [vmem:[#allocation4 + $0xf0] sm:$0xff] %v5337
      %5349 = vst.msk [vmem:[#allocation4 + $0xf8] sm:$0xf] %vm471, %v5325
      %v5350 = vld [vmem:[#allocation2 + $0x4] sm:$0xff]
      %v5351 = vld [vmem:[#allocation2 + $0xc] sm:$0xf]
      %v5352 = vld [vmem:[#allocation2 + $0x14] sm:$0xff]
      %v5353 = vld [vmem:[#allocation2 + $0x1c] sm:$0xf]
      %v5354 = vld [vmem:[#allocation2 + $0x24] sm:$0xff]
      %v5355 = vld [vmem:[#allocation2 + $0x2c] sm:$0xf]
      %5362 = vrot.lane.b32.xlu0 %v5350, 110
      %v5363 = vpop.permute.xlu0 %5362
      %5364 = vrot.lane.b32.xlu0 %v5351, 110
      %v5365 = vpop.permute.xlu0 %5364
      %5366 = vrot.lane.b32.xlu0 %v5352, 110
      %v5367 = vpop.permute.xlu0 %5366
      %5368 = vrot.lane.b32.xlu0 %v5353, 110
      %v5369 = vpop.permute.xlu0 %5368
      %5370 = vrot.lane.b32.xlu0 %v5354, 110
      %v5371 = vpop.permute.xlu0 %5370
      %5372 = vrot.lane.b32.xlu0 %v5355, 110
      %v5373 = vpop.permute.xlu0 %5372
      %v5374 = vrot.slane %v5363, 4
      %v5375 = vrot.slane %v5365, 4
      %v5376 = vrot.slane %v5367, 4
      %v5377 = vrot.slane %v5369, 4
      %v5378 = vrot.slane %v5371, 4
      %v5379 = vrot.slane %v5373, 4
      %v5380 = vsel %vm490, %v5374, %v5375
      %v5381 = vsel %vm792, %v5363, %v5380
      %v5382 = vsel %vm490, %v5376, %v5377
      %v5383 = vsel %vm792, %v5367, %v5382
      %v5384 = vsel %vm490, %v5378, %v5379
      %v5385 = vsel %vm792, %v5371, %v5384
      %5392 = vst [vmem:[#allocation4 + $0xfc] sm:$0xff] %v5381
      %5393 = vst.msk [vmem:[#allocation4 + $0x104] sm:$0xf] %vm471, %v5365
      %5394 = vst [vmem:[#allocation4 + $0x108] sm:$0xff] %v5383
      %5395 = vst.msk [vmem:[#allocation4 + $0x110] sm:$0xf] %vm471, %v5369
      %5396 = vst [vmem:[#allocation4 + $0x114] sm:$0xff] %v5385
      %5397 = vst.msk [vmem:[#allocation4 + $0x11c] sm:$0xf] %vm471, %v5373
      %v5398 = vld [vmem:[#allocation2 + $0x4] sm:$0xff]
      %v5399 = vld [vmem:[#allocation2 + $0xc] sm:$0xf]
      %v5400 = vld [vmem:[#allocation2 + $0x14] sm:$0xff]
      %v5401 = vld [vmem:[#allocation2 + $0x1c] sm:$0xf]
      %v5402 = vld [vmem:[#allocation2 + $0x24] sm:$0xff]
      %v5403 = vld [vmem:[#allocation2 + $0x2c] sm:$0xf]
      %5410 = vrot.lane.b32.xlu0 %v5398, 109
      %v5411 = vpop.permute.xlu0 %5410
      %5412 = vrot.lane.b32.xlu0 %v5399, 109
      %v5413 = vpop.permute.xlu0 %5412
      %5414 = vrot.lane.b32.xlu0 %v5400, 109
      %v5415 = vpop.permute.xlu0 %5414
      %5416 = vrot.lane.b32.xlu0 %v5401, 109
      %v5417 = vpop.permute.xlu0 %5416
      %5418 = vrot.lane.b32.xlu0 %v5402, 109
      %v5419 = vpop.permute.xlu0 %5418
      %5420 = vrot.lane.b32.xlu0 %v5403, 109
      %v5421 = vpop.permute.xlu0 %5420
      %v5422 = vrot.slane %v5411, 4
      %v5423 = vrot.slane %v5413, 4
      %v5424 = vrot.slane %v5415, 4
      %v5425 = vrot.slane %v5417, 4
      %v5426 = vrot.slane %v5419, 4
      %v5427 = vrot.slane %v5421, 4
      %v5428 = vsel %vm490, %v5422, %v5423
      %v5429 = vsel %vm822, %v5411, %v5428
      %v5430 = vsel %vm490, %v5424, %v5425
      %v5431 = vsel %vm822, %v5415, %v5430
      %v5432 = vsel %vm490, %v5426, %v5427
      %v5433 = vsel %vm822, %v5419, %v5432
      %5440 = vst [vmem:[#allocation4 + $0x120] sm:$0xff] %v5429
      %5441 = vst.msk [vmem:[#allocation4 + $0x128] sm:$0xf] %vm471, %v5413
      %5442 = vst [vmem:[#allocation4 + $0x12c] sm:$0xff] %v5431
      %5443 = vst.msk [vmem:[#allocation4 + $0x134] sm:$0xf] %vm471, %v5417
      %5444 = vst [vmem:[#allocation4 + $0x138] sm:$0xff] %v5433
      %5445 = vst.msk [vmem:[#allocation4 + $0x140] sm:$0xf] %vm471, %v5421
      %v5446 = vld [vmem:[#allocation4] sm:$0xff]
      %v5447 = vld [vmem:[#allocation4 + $0x8] sm:$0xf]
      %v5448 = vld [vmem:[#allocation4 + $0xc] sm:$0xff]
      %v5449 = vld [vmem:[#allocation4 + $0x14] sm:$0xf]
      %v5450 = vld [vmem:[#allocation4 + $0x18] sm:$0xff]
      %v5451 = vld [vmem:[#allocation4 + $0x20] sm:$0xf]
      %v5452 = vld [vmem:[#allocation4 + $0x24] sm:$0xff]
      %v5453 = vld [vmem:[#allocation4 + $0x2c] sm:$0xf]
      %v5454 = vld [vmem:[#allocation4 + $0x30] sm:$0xff]
      %v5455 = vld [vmem:[#allocation4 + $0x38] sm:$0xf]
      %v5456 = vld [vmem:[#allocation4 + $0x3c] sm:$0xff]
      %v5457 = vld [vmem:[#allocation4 + $0x44] sm:$0xf]
      %v5458 = vld [vmem:[#allocation4 + $0x48] sm:$0xff]
      %v5459 = vld [vmem:[#allocation4 + $0x50] sm:$0xf]
      %v5460 = vld [vmem:[#allocation4 + $0x54] sm:$0xff]
      %v5461 = vld [vmem:[#allocation4 + $0x5c] sm:$0xf]
      %v5462 = vld [vmem:[#allocation4 + $0x60] sm:$0xff]
      %v5463 = vld [vmem:[#allocation4 + $0x68] sm:$0xf]
      %v5464 = vld [vmem:[#allocation4 + $0x6c] sm:$0xff]
      %v5465 = vld [vmem:[#allocation4 + $0x74] sm:$0xf]
      %v5466 = vld [vmem:[#allocation4 + $0x78] sm:$0xff]
      %v5467 = vld [vmem:[#allocation4 + $0x80] sm:$0xf]
      %v5468 = vld [vmem:[#allocation4 + $0x84] sm:$0xff]
      %v5469 = vld [vmem:[#allocation4 + $0x8c] sm:$0xf]
      %v5470 = vld [vmem:[#allocation4 + $0x90] sm:$0xff]
      %v5471 = vld [vmem:[#allocation4 + $0x98] sm:$0xf]
      %v5472 = vld [vmem:[#allocation4 + $0x9c] sm:$0xff]
      %v5473 = vld [vmem:[#allocation4 + $0xa4] sm:$0xf]
      %v5474 = vld [vmem:[#allocation4 + $0xa8] sm:$0xff]
      %v5475 = vld [vmem:[#allocation4 + $0xb0] sm:$0xf]
      %v5476 = vld [vmem:[#allocation4 + $0xb4] sm:$0xff]
      %v5477 = vld [vmem:[#allocation4 + $0xbc] sm:$0xf]
      %v5478 = vld [vmem:[#allocation4 + $0xc0] sm:$0xff]
      %v5479 = vld [vmem:[#allocation4 + $0xc8] sm:$0xf]
      %v5480 = vld [vmem:[#allocation4 + $0xcc] sm:$0xff]
      %v5481 = vld [vmem:[#allocation4 + $0xd4] sm:$0xf]
      %v5482 = vld [vmem:[#allocation4 + $0xd8] sm:$0xff]
      %v5483 = vld [vmem:[#allocation4 + $0xe0] sm:$0xf]
      %v5484 = vld [vmem:[#allocation4 + $0xe4] sm:$0xff]
      %v5485 = vld [vmem:[#allocation4 + $0xec] sm:$0xf]
      %v5486 = vld [vmem:[#allocation4 + $0xf0] sm:$0xff]
      %v5487 = vld [vmem:[#allocation4 + $0xf8] sm:$0xf]
      %v5488 = vld [vmem:[#allocation4 + $0xfc] sm:$0xff]
      %v5489 = vld [vmem:[#allocation4 + $0x104] sm:$0xf]
      %v5490 = vld [vmem:[#allocation4 + $0x108] sm:$0xff]
      %v5491 = vld [vmem:[#allocation4 + $0x110] sm:$0xf]
      %v5492 = vld [vmem:[#allocation4 + $0x114] sm:$0xff]
      %v5493 = vld [vmem:[#allocation4 + $0x11c] sm:$0xf]
      %v5494 = vld [vmem:[#allocation4 + $0x120] sm:$0xff]
      %v5495 = vld [vmem:[#allocation4 + $0x128] sm:$0xf]
      %v5496 = vld [vmem:[#allocation4 + $0x12c] sm:$0xff]
      %v5497 = vld [vmem:[#allocation4 + $0x134] sm:$0xf]
      %v5498 = vld [vmem:[#allocation4 + $0x138] sm:$0xff]
      %v5499 = vld [vmem:[#allocation4 + $0x140] sm:$0xf]
      %5501 = vset.pattern.permute.xlu0 0
      %5502 = vperm.xlu0 %5501, %v5033
      %v5503 = vpop.permute.xlu0 %5502
      %5506 = vset.pattern.permute.xlu0 0
      %5507 = vperm.xlu0 %5506, %v5034
      %v5508 = vpop.permute.xlu0 %5507
      %v5512 = vunpack.c.l.b16 %v5030
      %v5513 = vunpack.c.h.b16 %v5030
      %v5514 = vunpack.c.l.b16 %v5031
      %v5515 = vunpack.c.h.b16 %v5031
      %v5516 = vpack.c.b16 %v5514, %v5512
      %v5517 = vpack.c.b16 %v5515, %v5513
      %v5573 = vunpack.c.l.b16 %v5446
      %v5574 = vunpack.c.h.b16 %v5446
      %v5575 = vunpack.c.l.b16 %v5447
      %v5576 = vunpack.c.l.b16 %v5448
      %v5577 = vunpack.c.h.b16 %v5448
      %v5578 = vunpack.c.l.b16 %v5449
      %v5579 = vunpack.c.l.b16 %v5450
      %v5580 = vunpack.c.h.b16 %v5450
      %v5581 = vunpack.c.l.b16 %v5451
      %v5582 = vunpack.c.l.b16 %v5452
      %v5583 = vunpack.c.h.b16 %v5452
      %v5584 = vunpack.c.l.b16 %v5453
      %v5585 = vunpack.c.l.b16 %v5454
      %v5586 = vunpack.c.h.b16 %v5454
      %v5587 = vunpack.c.l.b16 %v5455
      %v5588 = vunpack.c.l.b16 %v5456
      %v5589 = vunpack.c.h.b16 %v5456
      %v5590 = vunpack.c.l.b16 %v5457
      %v5591 = vunpack.c.l.b16 %v5458
      %v5592 = vunpack.c.h.b16 %v5458
      %v5593 = vunpack.c.l.b16 %v5459
      %v5594 = vunpack.c.l.b16 %v5460
      %v5595 = vunpack.c.h.b16 %v5460
      %v5596 = vunpack.c.l.b16 %v5461
      %v5597 = vunpack.c.l.b16 %v5462
      %v5598 = vunpack.c.h.b16 %v5462
      %v5599 = vunpack.c.l.b16 %v5463
      %v5600 = vunpack.c.l.b16 %v5464
      %v5601 = vunpack.c.h.b16 %v5464
      %v5602 = vunpack.c.l.b16 %v5465
      %v5603 = vunpack.c.l.b16 %v5466
      %v5604 = vunpack.c.h.b16 %v5466
      %v5605 = vunpack.c.l.b16 %v5467
      %v5606 = vunpack.c.l.b16 %v5468
      %v5607 = vunpack.c.h.b16 %v5468
      %v5608 = vunpack.c.l.b16 %v5469
      %v5609 = vunpack.c.l.b16 %v5470
      %v5610 = vunpack.c.h.b16 %v5470
      %v5611 = vunpack.c.l.b16 %v5471
      %v5612 = vunpack.c.l.b16 %v5472
      %v5613 = vunpack.c.h.b16 %v5472
      %v5614 = vunpack.c.l.b16 %v5473
      %v5615 = vunpack.c.l.b16 %v5474
      %v5616 = vunpack.c.h.b16 %v5474
      %v5617 = vunpack.c.l.b16 %v5475
      %v5618 = vunpack.c.l.b16 %v5476
      %v5619 = vunpack.c.h.b16 %v5476
      %v5620 = vunpack.c.l.b16 %v5477
      %v5621 = vunpack.c.l.b16 %v5478
      %v5622 = vunpack.c.h.b16 %v5478
      %v5623 = vunpack.c.l.b16 %v5479
      %v5624 = vunpack.c.l.b16 %v5480
      %v5625 = vunpack.c.h.b16 %v5480
      %v5626 = vunpack.c.l.b16 %v5481
      %v5627 = vunpack.c.l.b16 %v5482
      %v5628 = vunpack.c.h.b16 %v5482
      %v5629 = vunpack.c.l.b16 %v5483
      %v5630 = vunpack.c.l.b16 %v5484
      %v5631 = vunpack.c.h.b16 %v5484
      %v5632 = vunpack.c.l.b16 %v5485
      %v5633 = vunpack.c.l.b16 %v5486
      %v5634 = vunpack.c.h.b16 %v5486
      %v5635 = vunpack.c.l.b16 %v5487
      %v5636 = vunpack.c.l.b16 %v5488
      %v5637 = vunpack.c.h.b16 %v5488
      %v5638 = vunpack.c.l.b16 %v5489
      %v5639 = vunpack.c.l.b16 %v5490
      %v5640 = vunpack.c.h.b16 %v5490
      %v5641 = vunpack.c.l.b16 %v5491
      %v5642 = vunpack.c.l.b16 %v5492
      %v5643 = vunpack.c.h.b16 %v5492
      %v5644 = vunpack.c.l.b16 %v5493
      %v5645 = vunpack.c.l.b16 %v5494
      %v5646 = vunpack.c.h.b16 %v5494
      %v5647 = vunpack.c.l.b16 %v5495
      %v5648 = vunpack.c.l.b16 %v5496
      %v5649 = vunpack.c.h.b16 %v5496
      %v5650 = vunpack.c.l.b16 %v5497
      %v5651 = vunpack.c.l.b16 %v5498
      %v5652 = vunpack.c.h.b16 %v5498
      %v5653 = vunpack.c.l.b16 %v5499
      %v5654 = vpack.c.b16 %v5576, %v5573
      %v5655 = vpack.c.b16 %v5577, %v5574
      %v5656 = vpack.c.b16 %v5578, %v5575
      %v5657 = vpack.c.b16 %v5582, %v5579
      %v5658 = vpack.c.b16 %v5583, %v5580
      %v5659 = vpack.c.b16 %v5584, %v5581
      %v5660 = vpack.c.b16 %v5588, %v5585
      %v5661 = vpack.c.b16 %v5589, %v5586
      %v5662 = vpack.c.b16 %v5590, %v5587
      %v5663 = vpack.c.b16 %v5594, %v5591
      %v5664 = vpack.c.b16 %v5595, %v5592
      %v5665 = vpack.c.b16 %v5596, %v5593
      %v5666 = vpack.c.b16 %v5600, %v5597
      %v5667 = vpack.c.b16 %v5601, %v5598
      %v5668 = vpack.c.b16 %v5602, %v5599
      %v5669 = vpack.c.b16 %v5606, %v5603
      %v5670 = vpack.c.b16 %v5607, %v5604
      %v5671 = vpack.c.b16 %v5608, %v5605
      %v5672 = vpack.c.b16 %v5612, %v5609
      %v5673 = vpack.c.b16 %v5613, %v5610
      %v5674 = vpack.c.b16 %v5614, %v5611
      %v5675 = vpack.c.b16 %v5618, %v5615
      %v5676 = vpack.c.b16 %v5619, %v5616
      %v5677 = vpack.c.b16 %v5620, %v5617
      %v5678 = vpack.c.b16 %v5624, %v5621
      %v5679 = vpack.c.b16 %v5625, %v5622
      %v5680 = vpack.c.b16 %v5626, %v5623
      %v5681 = vpack.c.b16 %v5630, %v5627
      %v5682 = vpack.c.b16 %v5631, %v5628
      %v5683 = vpack.c.b16 %v5632, %v5629
      %v5684 = vpack.c.b16 %v5636, %v5633
      %v5685 = vpack.c.b16 %v5637, %v5634
      %v5686 = vpack.c.b16 %v5638, %v5635
      %v5687 = vpack.c.b16 %v5642, %v5639
      %v5688 = vpack.c.b16 %v5643, %v5640
      %v5689 = vpack.c.b16 %v5644, %v5641
      %v5690 = vpack.c.b16 %v5648, %v5645
      %v5691 = vpack.c.b16 %v5649, %v5646
      %v5692 = vpack.c.b16 %v5650, %v5647
      %v5693 = vpack.c.b16 %v5651, %v5651
      %v5694 = vpack.c.b16 %v5652, %v5652
      %v5695 = vpack.c.b16 %v5653, %v5653
      %v5736 = vsel %vm1732, %v5517, 0
      %v5739 = vsel %vm1736, %v5693, 0
      %v5742 = vsel %vm1736, %v5694, 0
      %v5745 = vsel %vm1736, %v5695, 0
      %5747 = vmatpush.bf16.msra.mxu0 %v5675
      %5748 = vmatpush.bf16.msra.mxu0 %v5672
      %5749 = vmatpush.bf16.msra.mxu0 %v5669
      %5750 = vmatpush.bf16.msra.mxu0 %v5666
      %5751 = vmatpush.bf16.msra.mxu0 %v5663
      %5752 = vmatpush.bf16.msra.mxu0 %v5660
      %5753 = vmatpush.bf16.msra.mxu0 %v5657
      %5754 = vmatpush.bf16.msra.mxu0 %v5654
      %5755 = vmatmul.bf16.gmra.mxu0 %v5516
      %v5756 = vpop.f32.mrf.mxu0
      %v5757 = vadd.f32 %v5503, %v5756
      %v5758 = vpop.f32.mrf.mxu0
      %v5759 = vadd.f32 %v5508, %v5758
      %5760 = vdwg.mxu0
      %5761 = vmatpush.bf16.msra.mxu0 0
      %5762 = vmatpush.bf16.msra.mxu0 0
      %5763 = vmatpush.bf16.msra.mxu0 %v5739
      %5764 = vmatpush.bf16.msra.mxu0 %v5690
      %5765 = vmatpush.bf16.msra.mxu0 %v5687
      %5766 = vmatpush.bf16.msra.mxu0 %v5684
      %5767 = vmatpush.bf16.msra.mxu0 %v5681
      %5768 = vmatpush.bf16.msra.mxu0 %v5678
      %5769 = vmatmul.bf16.gmra.mxu0 %v5736
      %v5770 = vpop.f32.mrf.mxu0
      %v5771 = vadd.f32 %v5757, %v5770
      %v5772 = vpop.f32.mrf.mxu0
      %v5773 = vadd.f32 %v5759, %v5772
      %5774 = vdwg.mxu0
      %5775 = vmatpush.bf16.msra.mxu0 %v5676
      %5776 = vmatpush.bf16.msra.mxu0 %v5673
      %5777 = vmatpush.bf16.msra.mxu0 %v5670
      %5778 = vmatpush.bf16.msra.mxu0 %v5667
      %5779 = vmatpush.bf16.msra.mxu0 %v5664
      %5780 = vmatpush.bf16.msra.mxu0 %v5661
      %5781 = vmatpush.bf16.msra.mxu0 %v5658
      %5782 = vmatpush.bf16.msra.mxu0 %v5655
      %5783 = vmatmul.bf16.gmra.mxu0 %v5516
      %v5784 = vpop.f32.mrf.mxu0
      %v5785 = vadd.f32 %v5503, %v5784
      %v5786 = vpop.f32.mrf.mxu0
      %v5787 = vadd.f32 %v5508, %v5786
      %5788 = vdwg.mxu0
      %5789 = vmatpush.bf16.msra.mxu0 0
      %5790 = vmatpush.bf16.msra.mxu0 0
      %5791 = vmatpush.bf16.msra.mxu0 %v5742
      %5792 = vmatpush.bf16.msra.mxu0 %v5691
      %5793 = vmatpush.bf16.msra.mxu0 %v5688
      %5794 = vmatpush.bf16.msra.mxu0 %v5685
      %5795 = vmatpush.bf16.msra.mxu0 %v5682
      %5796 = vmatpush.bf16.msra.mxu0 %v5679
      %5797 = vmatmul.bf16.gmra.mxu0 %v5736
      %v5798 = vpop.f32.mrf.mxu0
      %v5799 = vadd.f32 %v5785, %v5798
      %v5800 = vpop.f32.mrf.mxu0
      %v5801 = vadd.f32 %v5787, %v5800
      %5802 = vdwg.mxu0
      %5803 = vmatpush.bf16.msra.mxu0 %v5677
      %5804 = vmatpush.bf16.msra.mxu0 %v5674
      %5805 = vmatpush.bf16.msra.mxu0 %v5671
      %5806 = vmatpush.bf16.msra.mxu0 %v5668
      %5807 = vmatpush.bf16.msra.mxu0 %v5665
      %5808 = vmatpush.bf16.msra.mxu0 %v5662
      %5809 = vmatpush.bf16.msra.mxu0 %v5659
      %5810 = vmatpush.bf16.msra.mxu0 %v5656
      %5811 = vmatmul.bf16.gmra.mxu0 %v5516
      %v5812 = vpop.f32.mrf.mxu0
      %v5813 = vadd.f32 %v5503, %v5812
      %v5814 = vpop.f32.mrf.mxu0
      %v5815 = vadd.f32 %v5508, %v5814
      %5816 = vdwg.mxu0
      %5817 = vmatpush.bf16.msra.mxu0 0
      %5818 = vmatpush.bf16.msra.mxu0 0
      %5819 = vmatpush.bf16.msra.mxu0 %v5745
      %5820 = vmatpush.bf16.msra.mxu0 %v5692
      %5821 = vmatpush.bf16.msra.mxu0 %v5689
      %5822 = vmatpush.bf16.msra.mxu0 %v5686
      %5823 = vmatpush.bf16.msra.mxu0 %v5683
      %5824 = vmatpush.bf16.msra.mxu0 %v5680
      %5825 = vmatmul.bf16.gmra.mxu0 %v5736
      %v5826 = vpop.f32.mrf.mxu0
      %v5827 = vadd.f32 %v5813, %v5826
      %v5828 = vpop.f32.mrf.mxu0
      %v5829 = vadd.f32 %v5815, %v5828
      %5830 = vdwg.mxu0
      %v5831 = vmax.f32 %v5771, 0.0
      %v5832 = vmax.f32 %v5799, 0.0
      %v5833 = vmax.f32 %v5827, 0.0
      %v5834 = vmax.f32 %v5773, 0.0
      %v5835 = vmax.f32 %v5801, 0.0
      %v5836 = vmax.f32 %v5829, 0.0
      %v5837 = vpack.c.bf16 %v5832, %v5831
      %v5838 = vpack.c.bf16 %v5833, %v5833
      %v5839 = vpack.c.bf16 %v5835, %v5834
      %v5840 = vpack.c.bf16 %v5836, %v5836
      %v5841 = vunpack.c.l.bf16 %v5837
      %v5842 = vunpack.c.h.bf16 %v5837
      %v5843 = vunpack.c.l.bf16 %v5838
      %v5844 = vunpack.c.l.bf16 %v5839
      %v5845 = vunpack.c.h.bf16 %v5839
      %v5846 = vunpack.c.l.bf16 %v5840
      %v5847 = vmul.f32 %v5841, %v959
      %v5848 = vmul.f32 %v5842, %v960
      %v5849 = vmul.f32 %v5843, %v961
      %v5850 = vmul.f32 %v5844, %v959
      %v5851 = vmul.f32 %v5845, %v960
      %v5852 = vmul.f32 %v5846, %v961
      %v5853 = vpack.c.bf16 %v5848, %v5847
      %v5854 = vpack.c.bf16 %v5849, %v5849
      %v5855 = vpack.c.bf16 %v5851, %v5850
      %v5856 = vpack.c.bf16 %v5852, %v5852
      %v5857 = vsub.f32 0.0, %v5771
      %v5858 = vsub.f32 0.0, %v5799
      %v5859 = vsub.f32 0.0, %v5827
      %v5860 = vsub.f32 0.0, %v5773
      %v5861 = vsub.f32 0.0, %v5801
      %v5862 = vsub.f32 0.0, %v5829
      %v5863 = vmax.f32 %v5857, 0.0
      %v5864 = vmax.f32 %v5858, 0.0
      %v5865 = vmax.f32 %v5859, 0.0
      %v5866 = vmax.f32 %v5860, 0.0
      %v5867 = vmax.f32 %v5861, 0.0
      %v5868 = vmax.f32 %v5862, 0.0
      %v5869 = vpack.c.bf16 %v5864, %v5863
      %v5870 = vpack.c.bf16 %v5865, %v5865
      %v5871 = vpack.c.bf16 %v5867, %v5866
      %v5872 = vpack.c.bf16 %v5868, %v5868
      %v5873 = vunpack.c.l.bf16 %v5869
      %v5874 = vunpack.c.h.bf16 %v5869
      %v5875 = vunpack.c.l.bf16 %v5870
      %v5876 = vunpack.c.l.bf16 %v5871
      %v5877 = vunpack.c.h.bf16 %v5871
      %v5878 = vunpack.c.l.bf16 %v5872
      %v5879 = vmul.f32 %v5873, %v959
      %v5880 = vmul.f32 %v5874, %v960
      %v5881 = vmul.f32 %v5875, %v961
      %v5882 = vmul.f32 %v5876, %v959
      %v5883 = vmul.f32 %v5877, %v960
      %v5884 = vmul.f32 %v5878, %v961
      %v5885 = vpack.c.bf16 %v5880, %v5879
      %v5886 = vpack.c.bf16 %v5881, %v5881
      %v5887 = vpack.c.bf16 %v5883, %v5882
      %v5888 = vpack.c.bf16 %v5884, %v5884
      %5889 = vst [vmem:[#allocation3 + $0x4] sm:$0xff] %v5853
      %5890 = vst.msk [vmem:[#allocation3 + $0xc] sm:$0xf] %vm471, %v5854
      %5891 = vst [vmem:[#allocation3 + $0x14] sm:$0x33] %v5855
      %5892 = vst.msk [vmem:[#allocation3 + $0x1c] sm:$0x3] %vm1007, %v5856
      %v5897 = vrot.slane %v5885, 6
      %v5898 = vrot.slane %v5886, 6
      %v5899 = vrot.slane %v5897, 4
      %v5900 = vrot.slane %v5887, 6
      %v5901 = vsel %vm1013, %v5899, %v5900
      %v5902 = vrot.slane %v5898, 4
      %v5903 = vrot.slane %v5888, 6
      %v5904 = vsel %vm1013, %v5902, %v5903
      %5909 = vst [vmem:[#allocation3 + $0x14] sm:$0xcc] %v5897
      %5910 = vst.msk [vmem:[#allocation3 + $0x1c] sm:$0xc] %vm1027, %v5898
      %5911 = vst [vmem:[#allocation3 + $0x24] sm:$0xff] %v5901
      %5912 = vst.msk [vmem:[#allocation3 + $0x2c] sm:$0xf] %vm471, %v5904
      %v5915 = vunpack.c.l.b16 %v5036
      %v5916 = vunpack.c.l.b16 %v5037
      %v5917 = vpack.c.b16 %v5916, %v5915
      %5918 = vrot.lane.b32.xlu0 %v5917, 116
      %v5919 = vpop.permute.xlu0 %5918
      %v5920 = vunpack.c.l.b16 %v5885
      %v5921 = vunpack.c.h.b16 %v5885
      %v5922 = vunpack.c.l.b16 %v5886
      %v5923 = vunpack.c.l.b16 %v5887
      %v5924 = vunpack.c.h.b16 %v5887
      %v5925 = vunpack.c.l.b16 %v5888
      %v5926 = vpack.c.b16 %v5923, %v5920
      %v5927 = vpack.c.b16 %v5924, %v5921
      %v5928 = vpack.c.b16 %v5925, %v5922
      %v5930 = vsel %vm2811, %v5919, 0
      %v5933 = vsel %vm889, %v5926, 0
      %v5936 = vsel %vm889, %v5927, 0
      %v5939 = vsel %vm889, %v5928, 0
      %5941 = vmatpush.bf16.msra.mxu0 0
      %5942 = vmatpush.bf16.msra.mxu0 0
      %5943 = vmatpush.bf16.msra.mxu0 0
      %5944 = vmatpush.bf16.msra.mxu0 0
      %5945 = vmatpush.bf16.msra.mxu0 0
      %5946 = vmatpush.bf16.msra.mxu0 0
      %5947 = vmatpush.bf16.msra.mxu0 0
      %5948 = vmatpush.bf16.msra.mxu0 %v5933
      %5949 = vmatmul.bf16.gmra.mxu0 %v5930
      %v5950 = vpop.f32.mrf.mxu0
      %v5951 = vadd.f32 0.0, %v5950
      %v5952 = vpop.f32.mrf.mxu0
      %v5953 = vadd.f32 0.0, %v5952
      %5954 = vdwg.mxu0
      %5955 = vmatpush.bf16.msra.mxu0 0
      %5956 = vmatpush.bf16.msra.mxu0 0
      %5957 = vmatpush.bf16.msra.mxu0 0
      %5958 = vmatpush.bf16.msra.mxu0 0
      %5959 = vmatpush.bf16.msra.mxu0 0
      %5960 = vmatpush.bf16.msra.mxu0 0
      %5961 = vmatpush.bf16.msra.mxu0 0
      %5962 = vmatpush.bf16.msra.mxu0 %v5936
      %5963 = vmatmul.bf16.gmra.mxu0 %v5930
      %v5964 = vpop.f32.mrf.mxu0
      %v5965 = vadd.f32 0.0, %v5964
      %v5966 = vpop.f32.mrf.mxu0
      %v5967 = vadd.f32 0.0, %v5966
      %5968 = vdwg.mxu0
      %5969 = vmatpush.bf16.msra.mxu0 0
      %5970 = vmatpush.bf16.msra.mxu0 0
      %5971 = vmatpush.bf16.msra.mxu0 0
      %5972 = vmatpush.bf16.msra.mxu0 0
      %5973 = vmatpush.bf16.msra.mxu0 0
      %5974 = vmatpush.bf16.msra.mxu0 0
      %5975 = vmatpush.bf16.msra.mxu0 0
      %5976 = vmatpush.bf16.msra.mxu0 %v5939
      %5977 = vmatmul.bf16.gmra.mxu0 %v5930
      %v5978 = vpop.f32.mrf.mxu0
      %v5979 = vadd.f32 0.0, %v5978
      %v5980 = vpop.f32.mrf.mxu0
      %v5981 = vadd.f32 0.0, %v5980
      %5982 = vdwg.mxu0
      %v5987 = vunpack.c.l.b16 %v5853
      %v5988 = vunpack.c.h.b16 %v5853
      %v5989 = vunpack.c.l.b16 %v5854
      %v5990 = vunpack.c.l.b16 %v5855
      %v5991 = vunpack.c.h.b16 %v5855
      %v5992 = vunpack.c.l.b16 %v5856
      %v5993 = vpack.c.b16 %v5990, %v5987
      %v5994 = vpack.c.b16 %v5991, %v5988
      %v5995 = vpack.c.b16 %v5992, %v5989
      %v5997 = vsel %vm2811, %v5917, 0
      %v6000 = vsel %vm889, %v5993, 0
      %v6003 = vsel %vm889, %v5994, 0
      %v6006 = vsel %vm889, %v5995, 0
      %6008 = vmatpush.bf16.msra.mxu0 0
      %6009 = vmatpush.bf16.msra.mxu0 0
      %6010 = vmatpush.bf16.msra.mxu0 0
      %6011 = vmatpush.bf16.msra.mxu0 0
      %6012 = vmatpush.bf16.msra.mxu0 0
      %6013 = vmatpush.bf16.msra.mxu0 0
      %6014 = vmatpush.bf16.msra.mxu0 0
      %6015 = vmatpush.bf16.msra.mxu0 %v6000
      %6016 = vmatmul.bf16.gmra.mxu0 %v5997
      %v6017 = vpop.f32.mrf.mxu0
      %v6018 = vadd.f32 %v5951, %v6017
      %v6019 = vpop.f32.mrf.mxu0
      %v6020 = vadd.f32 %v5953, %v6019
      %6021 = vdwg.mxu0
      %6022 = vmatpush.bf16.msra.mxu0 0
      %6023 = vmatpush.bf16.msra.mxu0 0
      %6024 = vmatpush.bf16.msra.mxu0 0
      %6025 = vmatpush.bf16.msra.mxu0 0
      %6026 = vmatpush.bf16.msra.mxu0 0
      %6027 = vmatpush.bf16.msra.mxu0 0
      %6028 = vmatpush.bf16.msra.mxu0 0
      %6029 = vmatpush.bf16.msra.mxu0 %v6003
      %6030 = vmatmul.bf16.gmra.mxu0 %v5997
      %v6031 = vpop.f32.mrf.mxu0
      %v6032 = vadd.f32 %v5965, %v6031
      %v6033 = vpop.f32.mrf.mxu0
      %v6034 = vadd.f32 %v5967, %v6033
      %6035 = vdwg.mxu0
      %6036 = vmatpush.bf16.msra.mxu0 0
      %6037 = vmatpush.bf16.msra.mxu0 0
      %6038 = vmatpush.bf16.msra.mxu0 0
      %6039 = vmatpush.bf16.msra.mxu0 0
      %6040 = vmatpush.bf16.msra.mxu0 0
      %6041 = vmatpush.bf16.msra.mxu0 0
      %6042 = vmatpush.bf16.msra.mxu0 0
      %6043 = vmatpush.bf16.msra.mxu0 %v6006
      %6044 = vmatmul.bf16.gmra.mxu0 %v5997
      %v6045 = vpop.f32.mrf.mxu0
      %v6046 = vadd.f32 %v5979, %v6045
      %v6047 = vpop.f32.mrf.mxu0
      %v6048 = vadd.f32 %v5981, %v6047
      %6049 = vdwg.mxu0
      %v6050 = vld [vmem:[#allocation5] sm:$0xff]
      %v6051 = vld [vmem:[#allocation5 + $0x8] sm:$0xff]
      %v6052 = vld [vmem:[#allocation5 + $0x10] sm:$0xff]
      %v6053 = vld [vmem:[#allocation5 + $0x18] sm:$0xf]
      %v6054 = vld [vmem:[#allocation5 + $0x20] sm:$0xf]
      %v6055 = vld [vmem:[#allocation5 + $0x28] sm:$0xf]
      %v6056 = vadd.f32 %v6050, %v6018
      %v6057 = vadd.f32 %v6051, %v6032
      %v6058 = vadd.f32 %v6052, %v6046
      %v6059 = vadd.f32 %v6053, %v6020
      %v6060 = vadd.f32 %v6054, %v6034
      %v6061 = vadd.f32 %v6055, %v6048
      %6062 = vst [vmem:[#allocation5] sm:$0xff] %v6056
      %6063 = vst [vmem:[#allocation5 + $0x8] sm:$0xff] %v6057
      %6064 = vst.msk [vmem:[#allocation5 + $0x10] sm:$0xff] %vm467, %v6058
      %6065 = vst [vmem:[#allocation5 + $0x18] sm:$0xf] %v6059
      %6066 = vst [vmem:[#allocation5 + $0x20] sm:$0xf] %v6060
      %6067 = vst.msk [vmem:[#allocation5 + $0x28] sm:$0xf] %vm471, %v6061
      %s6068 = scalar_lea.vmem %s4, 80
      %v6069 = vld [vmem:[%s6068] sm:$0xff]
      %v6070 = vld [vmem:[%s6068 + $0x8] sm:$0x33]
      %s6071 = scalar_lea.vmem %s5, 80
      %v6072 = vld [vmem:[%s6071] sm:$0xff]
      %v6073 = vld [vmem:[%s6071 + $0x8] sm:$0xf]
      %s6074 = scalar_lea.vmem %s6, 32
      %v6075 = vld [vmem:[%s6074] sm:$0xf]
      %v6076 = vld [vmem:[%s6074 + $0x4] sm:$0x3]
      %v6077 = vld [vmem:[#allocation3] sm:$0xff]
      %v6078 = vld [vmem:[#allocation3 + $0x8] sm:$0xff]
      %v6079 = vld [vmem:[#allocation3 + $0x10] sm:$0xff]
      %v6080 = vld [vmem:[#allocation3 + $0x18] sm:$0xff]
      %v6081 = vld [vmem:[#allocation3 + $0x20] sm:$0xff]
      %v6082 = vld [vmem:[#allocation3 + $0x28] sm:$0xff]
      %6089 = vrot.lane.b32.xlu0 %v6077, 19
      %v6090 = vpop.permute.xlu0 %6089
      %6091 = vrot.lane.b32.xlu0 %v6078, 19
      %v6092 = vpop.permute.xlu0 %6091
      %6093 = vrot.lane.b32.xlu0 %v6079, 19
      %v6094 = vpop.permute.xlu0 %6093
      %6095 = vrot.lane.b32.xlu0 %v6080, 19
      %v6096 = vpop.permute.xlu0 %6095
      %6097 = vrot.lane.b32.xlu0 %v6081, 19
      %v6098 = vpop.permute.xlu0 %6097
      %6099 = vrot.lane.b32.xlu0 %v6082, 19
      %v6100 = vpop.permute.xlu0 %6099
      %v6101 = vrot.slane %v6090, 4
      %v6102 = vrot.slane %v6092, 4
      %v6103 = vrot.slane %v6094, 4
      %v6104 = vrot.slane %v6096, 4
      %v6105 = vrot.slane %v6098, 4
      %v6106 = vrot.slane %v6100, 4
      %v6107 = vsel %vm490, %v6101, %v6102
      %v6108 = vsel %vm492, %v6090, %v6107
      %v6109 = vsel %vm492, %v6092, %v6102
      %v6110 = vsel %vm490, %v6103, %v6104
      %v6111 = vsel %vm492, %v6094, %v6110
      %v6112 = vsel %vm492, %v6096, %v6104
      %v6113 = vsel %vm490, %v6105, %v6106
      %v6114 = vsel %vm492, %v6098, %v6113
      %v6115 = vsel %vm492, %v6100, %v6106
      %6122 = vst [vmem:[#allocation4] sm:$0xff] %v6108
      %6123 = vst.msk [vmem:[#allocation4 + $0x8] sm:$0xf] %vm471, %v6109
      %6124 = vst [vmem:[#allocation4 + $0xc] sm:$0xff] %v6111
      %6125 = vst.msk [vmem:[#allocation4 + $0x14] sm:$0xf] %vm471, %v6112
      %6126 = vst [vmem:[#allocation4 + $0x18] sm:$0xff] %v6114
      %6127 = vst.msk [vmem:[#allocation4 + $0x20] sm:$0xf] %vm471, %v6115
      %v6128 = vld [vmem:[#allocation3] sm:$0xff]
      %v6129 = vld [vmem:[#allocation3 + $0x8] sm:$0xff]
      %v6130 = vld [vmem:[#allocation3 + $0x10] sm:$0xff]
      %v6131 = vld [vmem:[#allocation3 + $0x18] sm:$0xff]
      %v6132 = vld [vmem:[#allocation3 + $0x20] sm:$0xff]
      %v6133 = vld [vmem:[#allocation3 + $0x28] sm:$0xff]
      %6140 = vrot.lane.b32.xlu0 %v6128, 18
      %v6141 = vpop.permute.xlu0 %6140
      %6142 = vrot.lane.b32.xlu0 %v6129, 18
      %v6143 = vpop.permute.xlu0 %6142
      %6144 = vrot.lane.b32.xlu0 %v6130, 18
      %v6145 = vpop.permute.xlu0 %6144
      %6146 = vrot.lane.b32.xlu0 %v6131, 18
      %v6147 = vpop.permute.xlu0 %6146
      %6148 = vrot.lane.b32.xlu0 %v6132, 18
      %v6149 = vpop.permute.xlu0 %6148
      %6150 = vrot.lane.b32.xlu0 %v6133, 18
      %v6151 = vpop.permute.xlu0 %6150
      %v6152 = vrot.slane %v6141, 4
      %v6153 = vrot.slane %v6143, 4
      %v6154 = vrot.slane %v6145, 4
      %v6155 = vrot.slane %v6147, 4
      %v6156 = vrot.slane %v6149, 4
      %v6157 = vrot.slane %v6151, 4
      %v6158 = vsel %vm490, %v6152, %v6153
      %v6159 = vsel %vm538, %v6141, %v6158
      %v6160 = vsel %vm538, %v6143, %v6153
      %v6161 = vsel %vm490, %v6154, %v6155
      %v6162 = vsel %vm538, %v6145, %v6161
      %v6163 = vsel %vm538, %v6147, %v6155
      %v6164 = vsel %vm490, %v6156, %v6157
      %v6165 = vsel %vm538, %v6149, %v6164
      %v6166 = vsel %vm538, %v6151, %v6157
      %6173 = vst [vmem:[#allocation4 + $0x24] sm:$0xff] %v6159
      %6174 = vst.msk [vmem:[#allocation4 + $0x2c] sm:$0xf] %vm471, %v6160
      %6175 = vst [vmem:[#allocation4 + $0x30] sm:$0xff] %v6162
      %6176 = vst.msk [vmem:[#allocation4 + $0x38] sm:$0xf] %vm471, %v6163
      %6177 = vst [vmem:[#allocation4 + $0x3c] sm:$0xff] %v6165
      %6178 = vst.msk [vmem:[#allocation4 + $0x44] sm:$0xf] %vm471, %v6166
      %v6179 = vld [vmem:[#allocation3] sm:$0xff]
      %v6180 = vld [vmem:[#allocation3 + $0x8] sm:$0xff]
      %v6181 = vld [vmem:[#allocation3 + $0x10] sm:$0xff]
      %v6182 = vld [vmem:[#allocation3 + $0x18] sm:$0xff]
      %v6183 = vld [vmem:[#allocation3 + $0x20] sm:$0xff]
      %v6184 = vld [vmem:[#allocation3 + $0x28] sm:$0xff]
      %6191 = vrot.lane.b32.xlu0 %v6179, 17
      %v6192 = vpop.permute.xlu0 %6191
      %6193 = vrot.lane.b32.xlu0 %v6180, 17
      %v6194 = vpop.permute.xlu0 %6193
      %6195 = vrot.lane.b32.xlu0 %v6181, 17
      %v6196 = vpop.permute.xlu0 %6195
      %6197 = vrot.lane.b32.xlu0 %v6182, 17
      %v6198 = vpop.permute.xlu0 %6197
      %6199 = vrot.lane.b32.xlu0 %v6183, 17
      %v6200 = vpop.permute.xlu0 %6199
      %6201 = vrot.lane.b32.xlu0 %v6184, 17
      %v6202 = vpop.permute.xlu0 %6201
      %v6203 = vrot.slane %v6192, 4
      %v6204 = vrot.slane %v6194, 4
      %v6205 = vrot.slane %v6196, 4
      %v6206 = vrot.slane %v6198, 4
      %v6207 = vrot.slane %v6200, 4
      %v6208 = vrot.slane %v6202, 4
      %v6209 = vsel %vm490, %v6203, %v6204
      %v6210 = vsel %vm582, %v6192, %v6209
      %v6211 = vsel %vm582, %v6194, %v6204
      %v6212 = vsel %vm490, %v6205, %v6206
      %v6213 = vsel %vm582, %v6196, %v6212
      %v6214 = vsel %vm582, %v6198, %v6206
      %v6215 = vsel %vm490, %v6207, %v6208
      %v6216 = vsel %vm582, %v6200, %v6215
      %v6217 = vsel %vm582, %v6202, %v6208
      %6224 = vst [vmem:[#allocation4 + $0x48] sm:$0xff] %v6210
      %6225 = vst.msk [vmem:[#allocation4 + $0x50] sm:$0xf] %vm471, %v6211
      %6226 = vst [vmem:[#allocation4 + $0x54] sm:$0xff] %v6213
      %6227 = vst.msk [vmem:[#allocation4 + $0x5c] sm:$0xf] %vm471, %v6214
      %6228 = vst [vmem:[#allocation4 + $0x60] sm:$0xff] %v6216
      %6229 = vst.msk [vmem:[#allocation4 + $0x68] sm:$0xf] %vm471, %v6217
      %v6230 = vld [vmem:[#allocation3] sm:$0xff]
      %v6231 = vld [vmem:[#allocation3 + $0x8] sm:$0xff]
      %v6232 = vld [vmem:[#allocation3 + $0x10] sm:$0xff]
      %v6233 = vld [vmem:[#allocation3 + $0x18] sm:$0xff]
      %v6234 = vld [vmem:[#allocation3 + $0x20] sm:$0xff]
      %v6235 = vld [vmem:[#allocation3 + $0x28] sm:$0xff]
      %6242 = vrot.lane.b32.xlu0 %v6230, 1
      %v6243 = vpop.permute.xlu0 %6242
      %6244 = vrot.lane.b32.xlu0 %v6231, 1
      %v6245 = vpop.permute.xlu0 %6244
      %6246 = vrot.lane.b32.xlu0 %v6232, 1
      %v6247 = vpop.permute.xlu0 %6246
      %6248 = vrot.lane.b32.xlu0 %v6233, 1
      %v6249 = vpop.permute.xlu0 %6248
      %6250 = vrot.lane.b32.xlu0 %v6234, 1
      %v6251 = vpop.permute.xlu0 %6250
      %6252 = vrot.lane.b32.xlu0 %v6235, 1
      %v6253 = vpop.permute.xlu0 %6252
      %v6254 = vrot.slane %v6243, 4
      %v6255 = vrot.slane %v6245, 4
      %v6256 = vrot.slane %v6247, 4
      %v6257 = vrot.slane %v6249, 4
      %v6258 = vrot.slane %v6251, 4
      %v6259 = vrot.slane %v6253, 4
      %v6260 = vsel %vm490, %v6254, %v6255
      %v6261 = vsel %vm634, %v6243, %v6260
      %v6262 = vsel %vm634, %v6245, %v6255
      %v6263 = vsel %vm490, %v6256, %v6257
      %v6264 = vsel %vm634, %v6247, %v6263
      %v6265 = vsel %vm634, %v6249, %v6257
      %v6266 = vsel %vm490, %v6258, %v6259
      %v6267 = vsel %vm634, %v6251, %v6266
      %v6268 = vsel %vm634, %v6253, %v6259
      %6275 = vst [vmem:[#allocation4 + $0x6c] sm:$0xff] %v6261
      %6276 = vst.msk [vmem:[#allocation4 + $0x74] sm:$0xf] %vm471, %v6262
      %6277 = vst [vmem:[#allocation4 + $0x78] sm:$0xff] %v6264
      %6278 = vst.msk [vmem:[#allocation4 + $0x80] sm:$0xf] %vm471, %v6265
      %6279 = vst [vmem:[#allocation4 + $0x84] sm:$0xff] %v6267
      %6280 = vst.msk [vmem:[#allocation4 + $0x8c] sm:$0xf] %vm471, %v6268
      %v6281 = vld [vmem:[#allocation3 + $0x4] sm:$0xff]
      %v6282 = vld [vmem:[#allocation3 + $0xc] sm:$0xf]
      %v6283 = vld [vmem:[#allocation3 + $0x14] sm:$0xff]
      %v6284 = vld [vmem:[#allocation3 + $0x1c] sm:$0xf]
      %v6285 = vld [vmem:[#allocation3 + $0x24] sm:$0xff]
      %v6286 = vld [vmem:[#allocation3 + $0x2c] sm:$0xf]
      %6287 = vst [vmem:[#allocation4 + $0x90] sm:$0xff] %v6281
      %6288 = vst.msk [vmem:[#allocation4 + $0x98] sm:$0xf] %vm471, %v6282
      %6289 = vst [vmem:[#allocation4 + $0x9c] sm:$0xff] %v6283
      %6290 = vst.msk [vmem:[#allocation4 + $0xa4] sm:$0xf] %vm471, %v6284
      %6291 = vst [vmem:[#allocation4 + $0xa8] sm:$0xff] %v6285
      %6292 = vst.msk [vmem:[#allocation4 + $0xb0] sm:$0xf] %vm471, %v6286
      %v6293 = vld [vmem:[#allocation3 + $0x4] sm:$0xff]
      %v6294 = vld [vmem:[#allocation3 + $0xc] sm:$0xf]
      %v6295 = vld [vmem:[#allocation3 + $0x14] sm:$0xff]
      %v6296 = vld [vmem:[#allocation3 + $0x1c] sm:$0xf]
      %v6297 = vld [vmem:[#allocation3 + $0x24] sm:$0xff]
      %v6298 = vld [vmem:[#allocation3 + $0x2c] sm:$0xf]
      %6305 = vrot.lane.b32.xlu0 %v6293, 127
      %v6306 = vpop.permute.xlu0 %6305
      %6307 = vrot.lane.b32.xlu0 %v6294, 127
      %v6308 = vpop.permute.xlu0 %6307
      %6309 = vrot.lane.b32.xlu0 %v6295, 127
      %v6310 = vpop.permute.xlu0 %6309
      %6311 = vrot.lane.b32.xlu0 %v6296, 127
      %v6312 = vpop.permute.xlu0 %6311
      %6313 = vrot.lane.b32.xlu0 %v6297, 127
      %v6314 = vpop.permute.xlu0 %6313
      %6315 = vrot.lane.b32.xlu0 %v6298, 127
      %v6316 = vpop.permute.xlu0 %6315
      %v6317 = vrot.slane %v6306, 4
      %v6318 = vrot.slane %v6308, 4
      %v6319 = vrot.slane %v6310, 4
      %v6320 = vrot.slane %v6312, 4
      %v6321 = vrot.slane %v6314, 4
      %v6322 = vrot.slane %v6316, 4
      %v6323 = vsel %vm490, %v6317, %v6318
      %v6324 = vsel %vm708, %v6306, %v6323
      %v6325 = vsel %vm490, %v6319, %v6320
      %v6326 = vsel %vm708, %v6310, %v6325
      %v6327 = vsel %vm490, %v6321, %v6322
      %v6328 = vsel %vm708, %v6314, %v6327
      %6335 = vst [vmem:[#allocation4 + $0xb4] sm:$0xff] %v6324
      %6336 = vst.msk [vmem:[#allocation4 + $0xbc] sm:$0xf] %vm471, %v6308
      %6337 = vst [vmem:[#allocation4 + $0xc0] sm:$0xff] %v6326
      %6338 = vst.msk [vmem:[#allocation4 + $0xc8] sm:$0xf] %vm471, %v6312
      %6339 = vst [vmem:[#allocation4 + $0xcc] sm:$0xff] %v6328
      %6340 = vst.msk [vmem:[#allocation4 + $0xd4] sm:$0xf] %vm471, %v6316
      %v6341 = vld [vmem:[#allocation3 + $0x4] sm:$0xff]
      %v6342 = vld [vmem:[#allocation3 + $0xc] sm:$0xf]
      %v6343 = vld [vmem:[#allocation3 + $0x14] sm:$0xff]
      %v6344 = vld [vmem:[#allocation3 + $0x1c] sm:$0xf]
      %v6345 = vld [vmem:[#allocation3 + $0x24] sm:$0xff]
      %v6346 = vld [vmem:[#allocation3 + $0x2c] sm:$0xf]
      %6353 = vrot.lane.b32.xlu0 %v6341, 111
      %v6354 = vpop.permute.xlu0 %6353
      %6355 = vrot.lane.b32.xlu0 %v6342, 111
      %v6356 = vpop.permute.xlu0 %6355
      %6357 = vrot.lane.b32.xlu0 %v6343, 111
      %v6358 = vpop.permute.xlu0 %6357
      %6359 = vrot.lane.b32.xlu0 %v6344, 111
      %v6360 = vpop.permute.xlu0 %6359
      %6361 = vrot.lane.b32.xlu0 %v6345, 111
      %v6362 = vpop.permute.xlu0 %6361
      %6363 = vrot.lane.b32.xlu0 %v6346, 111
      %v6364 = vpop.permute.xlu0 %6363
      %v6365 = vrot.slane %v6354, 4
      %v6366 = vrot.slane %v6356, 4
      %v6367 = vrot.slane %v6358, 4
      %v6368 = vrot.slane %v6360, 4
      %v6369 = vrot.slane %v6362, 4
      %v6370 = vrot.slane %v6364, 4
      %v6371 = vsel %vm490, %v6365, %v6366
      %v6372 = vsel %vm750, %v6354, %v6371
      %v6373 = vsel %vm490, %v6367, %v6368
      %v6374 = vsel %vm750, %v6358, %v6373
      %v6375 = vsel %vm490, %v6369, %v6370
      %v6376 = vsel %vm750, %v6362, %v6375
      %6383 = vst [vmem:[#allocation4 + $0xd8] sm:$0xff] %v6372
      %6384 = vst.msk [vmem:[#allocation4 + $0xe0] sm:$0xf] %vm471, %v6356
      %6385 = vst [vmem:[#allocation4 + $0xe4] sm:$0xff] %v6374
      %6386 = vst.msk [vmem:[#allocation4 + $0xec] sm:$0xf] %vm471, %v6360
      %6387 = vst [vmem:[#allocation4 + $0xf0] sm:$0xff] %v6376
      %6388 = vst.msk [vmem:[#allocation4 + $0xf8] sm:$0xf] %vm471, %v6364
      %v6389 = vld [vmem:[#allocation3 + $0x4] sm:$0xff]
      %v6390 = vld [vmem:[#allocation3 + $0xc] sm:$0xf]
      %v6391 = vld [vmem:[#allocation3 + $0x14] sm:$0xff]
      %v6392 = vld [vmem:[#allocation3 + $0x1c] sm:$0xf]
      %v6393 = vld [vmem:[#allocation3 + $0x24] sm:$0xff]
      %v6394 = vld [vmem:[#allocation3 + $0x2c] sm:$0xf]
      %6401 = vrot.lane.b32.xlu0 %v6389, 110
      %v6402 = vpop.permute.xlu0 %6401
      %6403 = vrot.lane.b32.xlu0 %v6390, 110
      %v6404 = vpop.permute.xlu0 %6403
      %6405 = vrot.lane.b32.xlu0 %v6391, 110
      %v6406 = vpop.permute.xlu0 %6405
      %6407 = vrot.lane.b32.xlu0 %v6392, 110
      %v6408 = vpop.permute.xlu0 %6407
      %6409 = vrot.lane.b32.xlu0 %v6393, 110
      %v6410 = vpop.permute.xlu0 %6409
      %6411 = vrot.lane.b32.xlu0 %v6394, 110
      %v6412 = vpop.permute.xlu0 %6411
      %v6413 = vrot.slane %v6402, 4
      %v6414 = vrot.slane %v6404, 4
      %v6415 = vrot.slane %v6406, 4
      %v6416 = vrot.slane %v6408, 4
      %v6417 = vrot.slane %v6410, 4
      %v6418 = vrot.slane %v6412, 4
      %v6419 = vsel %vm490, %v6413, %v6414
      %v6420 = vsel %vm792, %v6402, %v6419
      %v6421 = vsel %vm490, %v6415, %v6416
      %v6422 = vsel %vm792, %v6406, %v6421
      %v6423 = vsel %vm490, %v6417, %v6418
      %v6424 = vsel %vm792, %v6410, %v6423
      %6431 = vst [vmem:[#allocation4 + $0xfc] sm:$0xff] %v6420
      %6432 = vst.msk [vmem:[#allocation4 + $0x104] sm:$0xf] %vm471, %v6404
      %6433 = vst [vmem:[#allocation4 + $0x108] sm:$0xff] %v6422
      %6434 = vst.msk [vmem:[#allocation4 + $0x110] sm:$0xf] %vm471, %v6408
      %6435 = vst [vmem:[#allocation4 + $0x114] sm:$0xff] %v6424
      %6436 = vst.msk [vmem:[#allocation4 + $0x11c] sm:$0xf] %vm471, %v6412
      %v6437 = vld [vmem:[#allocation3 + $0x4] sm:$0xff]
      %v6438 = vld [vmem:[#allocation3 + $0xc] sm:$0xf]
      %v6439 = vld [vmem:[#allocation3 + $0x14] sm:$0xff]
      %v6440 = vld [vmem:[#allocation3 + $0x1c] sm:$0xf]
      %v6441 = vld [vmem:[#allocation3 + $0x24] sm:$0xff]
      %v6442 = vld [vmem:[#allocation3 + $0x2c] sm:$0xf]
      %6449 = vrot.lane.b32.xlu0 %v6437, 109
      %v6450 = vpop.permute.xlu0 %6449
      %6451 = vrot.lane.b32.xlu0 %v6438, 109
      %v6452 = vpop.permute.xlu0 %6451
      %6453 = vrot.lane.b32.xlu0 %v6439, 109
      %v6454 = vpop.permute.xlu0 %6453
      %6455 = vrot.lane.b32.xlu0 %v6440, 109
      %v6456 = vpop.permute.xlu0 %6455
      %6457 = vrot.lane.b32.xlu0 %v6441, 109
      %v6458 = vpop.permute.xlu0 %6457
      %6459 = vrot.lane.b32.xlu0 %v6442, 109
      %v6460 = vpop.permute.xlu0 %6459
      %v6461 = vrot.slane %v6450, 4
      %v6462 = vrot.slane %v6452, 4
      %v6463 = vrot.slane %v6454, 4
      %v6464 = vrot.slane %v6456, 4
      %v6465 = vrot.slane %v6458, 4
      %v6466 = vrot.slane %v6460, 4
      %v6467 = vsel %vm490, %v6461, %v6462
      %v6468 = vsel %vm822, %v6450, %v6467
      %v6469 = vsel %vm490, %v6463, %v6464
      %v6470 = vsel %vm822, %v6454, %v6469
      %v6471 = vsel %vm490, %v6465, %v6466
      %v6472 = vsel %vm822, %v6458, %v6471
      %6479 = vst [vmem:[#allocation4 + $0x120] sm:$0xff] %v6468
      %6480 = vst.msk [vmem:[#allocation4 + $0x128] sm:$0xf] %vm471, %v6452
      %6481 = vst [vmem:[#allocation4 + $0x12c] sm:$0xff] %v6470
      %6482 = vst.msk [vmem:[#allocation4 + $0x134] sm:$0xf] %vm471, %v6456
      %6483 = vst [vmem:[#allocation4 + $0x138] sm:$0xff] %v6472
      %6484 = vst.msk [vmem:[#allocation4 + $0x140] sm:$0xf] %vm471, %v6460
      %v6485 = vld [vmem:[#allocation4] sm:$0xff]
      %v6486 = vld [vmem:[#allocation4 + $0x8] sm:$0xf]
      %v6487 = vld [vmem:[#allocation4 + $0xc] sm:$0xff]
      %v6488 = vld [vmem:[#allocation4 + $0x14] sm:$0xf]
      %v6489 = vld [vmem:[#allocation4 + $0x18] sm:$0xff]
      %v6490 = vld [vmem:[#allocation4 + $0x20] sm:$0xf]
      %v6491 = vld [vmem:[#allocation4 + $0x24] sm:$0xff]
      %v6492 = vld [vmem:[#allocation4 + $0x2c] sm:$0xf]
      %v6493 = vld [vmem:[#allocation4 + $0x30] sm:$0xff]
      %v6494 = vld [vmem:[#allocation4 + $0x38] sm:$0xf]
      %v6495 = vld [vmem:[#allocation4 + $0x3c] sm:$0xff]
      %v6496 = vld [vmem:[#allocation4 + $0x44] sm:$0xf]
      %v6497 = vld [vmem:[#allocation4 + $0x48] sm:$0xff]
      %v6498 = vld [vmem:[#allocation4 + $0x50] sm:$0xf]
      %v6499 = vld [vmem:[#allocation4 + $0x54] sm:$0xff]
      %v6500 = vld [vmem:[#allocation4 + $0x5c] sm:$0xf]
      %v6501 = vld [vmem:[#allocation4 + $0x60] sm:$0xff]
      %v6502 = vld [vmem:[#allocation4 + $0x68] sm:$0xf]
      %v6503 = vld [vmem:[#allocation4 + $0x6c] sm:$0xff]
      %v6504 = vld [vmem:[#allocation4 + $0x74] sm:$0xf]
      %v6505 = vld [vmem:[#allocation4 + $0x78] sm:$0xff]
      %v6506 = vld [vmem:[#allocation4 + $0x80] sm:$0xf]
      %v6507 = vld [vmem:[#allocation4 + $0x84] sm:$0xff]
      %v6508 = vld [vmem:[#allocation4 + $0x8c] sm:$0xf]
      %v6509 = vld [vmem:[#allocation4 + $0x90] sm:$0xff]
      %v6510 = vld [vmem:[#allocation4 + $0x98] sm:$0xf]
      %v6511 = vld [vmem:[#allocation4 + $0x9c] sm:$0xff]
      %v6512 = vld [vmem:[#allocation4 + $0xa4] sm:$0xf]
      %v6513 = vld [vmem:[#allocation4 + $0xa8] sm:$0xff]
      %v6514 = vld [vmem:[#allocation4 + $0xb0] sm:$0xf]
      %v6515 = vld [vmem:[#allocation4 + $0xb4] sm:$0xff]
      %v6516 = vld [vmem:[#allocation4 + $0xbc] sm:$0xf]
      %v6517 = vld [vmem:[#allocation4 + $0xc0] sm:$0xff]
      %v6518 = vld [vmem:[#allocation4 + $0xc8] sm:$0xf]
      %v6519 = vld [vmem:[#allocation4 + $0xcc] sm:$0xff]
      %v6520 = vld [vmem:[#allocation4 + $0xd4] sm:$0xf]
      %v6521 = vld [vmem:[#allocation4 + $0xd8] sm:$0xff]
      %v6522 = vld [vmem:[#allocation4 + $0xe0] sm:$0xf]
      %v6523 = vld [vmem:[#allocation4 + $0xe4] sm:$0xff]
      %v6524 = vld [vmem:[#allocation4 + $0xec] sm:$0xf]
      %v6525 = vld [vmem:[#allocation4 + $0xf0] sm:$0xff]
      %v6526 = vld [vmem:[#allocation4 + $0xf8] sm:$0xf]
      %v6527 = vld [vmem:[#allocation4 + $0xfc] sm:$0xff]
      %v6528 = vld [vmem:[#allocation4 + $0x104] sm:$0xf]
      %v6529 = vld [vmem:[#allocation4 + $0x108] sm:$0xff]
      %v6530 = vld [vmem:[#allocation4 + $0x110] sm:$0xf]
      %v6531 = vld [vmem:[#allocation4 + $0x114] sm:$0xff]
      %v6532 = vld [vmem:[#allocation4 + $0x11c] sm:$0xf]
      %v6533 = vld [vmem:[#allocation4 + $0x120] sm:$0xff]
      %v6534 = vld [vmem:[#allocation4 + $0x128] sm:$0xf]
      %v6535 = vld [vmem:[#allocation4 + $0x12c] sm:$0xff]
      %v6536 = vld [vmem:[#allocation4 + $0x134] sm:$0xf]
      %v6537 = vld [vmem:[#allocation4 + $0x138] sm:$0xff]
      %v6538 = vld [vmem:[#allocation4 + $0x140] sm:$0xf]
      %6540 = vset.pattern.permute.xlu0 0
      %6541 = vperm.xlu0 %6540, %v6072
      %v6542 = vpop.permute.xlu0 %6541
      %6545 = vset.pattern.permute.xlu0 0
      %6546 = vperm.xlu0 %6545, %v6073
      %v6547 = vpop.permute.xlu0 %6546
      %v6551 = vunpack.c.l.b16 %v6069
      %v6552 = vunpack.c.h.b16 %v6069
      %v6553 = vunpack.c.l.b16 %v6070
      %v6554 = vunpack.c.h.b16 %v6070
      %v6555 = vpack.c.b16 %v6553, %v6551
      %v6556 = vpack.c.b16 %v6554, %v6552
      %v6612 = vunpack.c.l.b16 %v6485
      %v6613 = vunpack.c.h.b16 %v6485
      %v6614 = vunpack.c.l.b16 %v6486
      %v6615 = vunpack.c.l.b16 %v6487
      %v6616 = vunpack.c.h.b16 %v6487
      %v6617 = vunpack.c.l.b16 %v6488
      %v6618 = vunpack.c.l.b16 %v6489
      %v6619 = vunpack.c.h.b16 %v6489
      %v6620 = vunpack.c.l.b16 %v6490
      %v6621 = vunpack.c.l.b16 %v6491
      %v6622 = vunpack.c.h.b16 %v6491
      %v6623 = vunpack.c.l.b16 %v6492
      %v6624 = vunpack.c.l.b16 %v6493
      %v6625 = vunpack.c.h.b16 %v6493
      %v6626 = vunpack.c.l.b16 %v6494
      %v6627 = vunpack.c.l.b16 %v6495
      %v6628 = vunpack.c.h.b16 %v6495
      %v6629 = vunpack.c.l.b16 %v6496
      %v6630 = vunpack.c.l.b16 %v6497
      %v6631 = vunpack.c.h.b16 %v6497
      %v6632 = vunpack.c.l.b16 %v6498
      %v6633 = vunpack.c.l.b16 %v6499
      %v6634 = vunpack.c.h.b16 %v6499
      %v6635 = vunpack.c.l.b16 %v6500
      %v6636 = vunpack.c.l.b16 %v6501
      %v6637 = vunpack.c.h.b16 %v6501
      %v6638 = vunpack.c.l.b16 %v6502
      %v6639 = vunpack.c.l.b16 %v6503
      %v6640 = vunpack.c.h.b16 %v6503
      %v6641 = vunpack.c.l.b16 %v6504
      %v6642 = vunpack.c.l.b16 %v6505
      %v6643 = vunpack.c.h.b16 %v6505
      %v6644 = vunpack.c.l.b16 %v6506
      %v6645 = vunpack.c.l.b16 %v6507
      %v6646 = vunpack.c.h.b16 %v6507
      %v6647 = vunpack.c.l.b16 %v6508
      %v6648 = vunpack.c.l.b16 %v6509
      %v6649 = vunpack.c.h.b16 %v6509
      %v6650 = vunpack.c.l.b16 %v6510
      %v6651 = vunpack.c.l.b16 %v6511
      %v6652 = vunpack.c.h.b16 %v6511
      %v6653 = vunpack.c.l.b16 %v6512
      %v6654 = vunpack.c.l.b16 %v6513
      %v6655 = vunpack.c.h.b16 %v6513
      %v6656 = vunpack.c.l.b16 %v6514
      %v6657 = vunpack.c.l.b16 %v6515
      %v6658 = vunpack.c.h.b16 %v6515
      %v6659 = vunpack.c.l.b16 %v6516
      %v6660 = vunpack.c.l.b16 %v6517
      %v6661 = vunpack.c.h.b16 %v6517
      %v6662 = vunpack.c.l.b16 %v6518
      %v6663 = vunpack.c.l.b16 %v6519
      %v6664 = vunpack.c.h.b16 %v6519
      %v6665 = vunpack.c.l.b16 %v6520
      %v6666 = vunpack.c.l.b16 %v6521
      %v6667 = vunpack.c.h.b16 %v6521
      %v6668 = vunpack.c.l.b16 %v6522
      %v6669 = vunpack.c.l.b16 %v6523
      %v6670 = vunpack.c.h.b16 %v6523
      %v6671 = vunpack.c.l.b16 %v6524
      %v6672 = vunpack.c.l.b16 %v6525
      %v6673 = vunpack.c.h.b16 %v6525
      %v6674 = vunpack.c.l.b16 %v6526
      %v6675 = vunpack.c.l.b16 %v6527
      %v6676 = vunpack.c.h.b16 %v6527
      %v6677 = vunpack.c.l.b16 %v6528
      %v6678 = vunpack.c.l.b16 %v6529
      %v6679 = vunpack.c.h.b16 %v6529
      %v6680 = vunpack.c.l.b16 %v6530
      %v6681 = vunpack.c.l.b16 %v6531
      %v6682 = vunpack.c.h.b16 %v6531
      %v6683 = vunpack.c.l.b16 %v6532
      %v6684 = vunpack.c.l.b16 %v6533
      %v6685 = vunpack.c.h.b16 %v6533
      %v6686 = vunpack.c.l.b16 %v6534
      %v6687 = vunpack.c.l.b16 %v6535
      %v6688 = vunpack.c.h.b16 %v6535
      %v6689 = vunpack.c.l.b16 %v6536
      %v6690 = vunpack.c.l.b16 %v6537
      %v6691 = vunpack.c.h.b16 %v6537
      %v6692 = vunpack.c.l.b16 %v6538
      %v6693 = vpack.c.b16 %v6615, %v6612
      %v6694 = vpack.c.b16 %v6616, %v6613
      %v6695 = vpack.c.b16 %v6617, %v6614
      %v6696 = vpack.c.b16 %v6621, %v6618
      %v6697 = vpack.c.b16 %v6622, %v6619
      %v6698 = vpack.c.b16 %v6623, %v6620
      %v6699 = vpack.c.b16 %v6627, %v6624
      %v6700 = vpack.c.b16 %v6628, %v6625
      %v6701 = vpack.c.b16 %v6629, %v6626
      %v6702 = vpack.c.b16 %v6633, %v6630
      %v6703 = vpack.c.b16 %v6634, %v6631
      %v6704 = vpack.c.b16 %v6635, %v6632
      %v6705 = vpack.c.b16 %v6639, %v6636
      %v6706 = vpack.c.b16 %v6640, %v6637
      %v6707 = vpack.c.b16 %v6641, %v6638
      %v6708 = vpack.c.b16 %v6645, %v6642
      %v6709 = vpack.c.b16 %v6646, %v6643
      %v6710 = vpack.c.b16 %v6647, %v6644
      %v6711 = vpack.c.b16 %v6651, %v6648
      %v6712 = vpack.c.b16 %v6652, %v6649
      %v6713 = vpack.c.b16 %v6653, %v6650
      %v6714 = vpack.c.b16 %v6657, %v6654
      %v6715 = vpack.c.b16 %v6658, %v6655
      %v6716 = vpack.c.b16 %v6659, %v6656
      %v6717 = vpack.c.b16 %v6663, %v6660
      %v6718 = vpack.c.b16 %v6664, %v6661
      %v6719 = vpack.c.b16 %v6665, %v6662
      %v6720 = vpack.c.b16 %v6669, %v6666
      %v6721 = vpack.c.b16 %v6670, %v6667
      %v6722 = vpack.c.b16 %v6671, %v6668
      %v6723 = vpack.c.b16 %v6675, %v6672
      %v6724 = vpack.c.b16 %v6676, %v6673
      %v6725 = vpack.c.b16 %v6677, %v6674
      %v6726 = vpack.c.b16 %v6681, %v6678
      %v6727 = vpack.c.b16 %v6682, %v6679
      %v6728 = vpack.c.b16 %v6683, %v6680
      %v6729 = vpack.c.b16 %v6687, %v6684
      %v6730 = vpack.c.b16 %v6688, %v6685
      %v6731 = vpack.c.b16 %v6689, %v6686
      %v6732 = vpack.c.b16 %v6690, %v6690
      %v6733 = vpack.c.b16 %v6691, %v6691
      %v6734 = vpack.c.b16 %v6692, %v6692
      %v6775 = vsel %vm1732, %v6556, 0
      %v6778 = vsel %vm1736, %v6732, 0
      %v6781 = vsel %vm1736, %v6733, 0
      %v6784 = vsel %vm1736, %v6734, 0
      %6786 = vmatpush.bf16.msra.mxu0 %v6714
      %6787 = vmatpush.bf16.msra.mxu0 %v6711
      %6788 = vmatpush.bf16.msra.mxu0 %v6708
      %6789 = vmatpush.bf16.msra.mxu0 %v6705
      %6790 = vmatpush.bf16.msra.mxu0 %v6702
      %6791 = vmatpush.bf16.msra.mxu0 %v6699
      %6792 = vmatpush.bf16.msra.mxu0 %v6696
      %6793 = vmatpush.bf16.msra.mxu0 %v6693
      %6794 = vmatmul.bf16.gmra.mxu0 %v6555
      %v6795 = vpop.f32.mrf.mxu0
      %v6796 = vadd.f32 %v6542, %v6795
      %v6797 = vpop.f32.mrf.mxu0
      %v6798 = vadd.f32 %v6547, %v6797
      %6799 = vdwg.mxu0
      %6800 = vmatpush.bf16.msra.mxu0 0
      %6801 = vmatpush.bf16.msra.mxu0 0
      %6802 = vmatpush.bf16.msra.mxu0 %v6778
      %6803 = vmatpush.bf16.msra.mxu0 %v6729
      %6804 = vmatpush.bf16.msra.mxu0 %v6726
      %6805 = vmatpush.bf16.msra.mxu0 %v6723
      %6806 = vmatpush.bf16.msra.mxu0 %v6720
      %6807 = vmatpush.bf16.msra.mxu0 %v6717
      %6808 = vmatmul.bf16.gmra.mxu0 %v6775
      %v6809 = vpop.f32.mrf.mxu0
      %v6810 = vadd.f32 %v6796, %v6809
      %v6811 = vpop.f32.mrf.mxu0
      %v6812 = vadd.f32 %v6798, %v6811
      %6813 = vdwg.mxu0
      %6814 = vmatpush.bf16.msra.mxu0 %v6715
      %6815 = vmatpush.bf16.msra.mxu0 %v6712
      %6816 = vmatpush.bf16.msra.mxu0 %v6709
      %6817 = vmatpush.bf16.msra.mxu0 %v6706
      %6818 = vmatpush.bf16.msra.mxu0 %v6703
      %6819 = vmatpush.bf16.msra.mxu0 %v6700
      %6820 = vmatpush.bf16.msra.mxu0 %v6697
      %6821 = vmatpush.bf16.msra.mxu0 %v6694
      %6822 = vmatmul.bf16.gmra.mxu0 %v6555
      %v6823 = vpop.f32.mrf.mxu0
      %v6824 = vadd.f32 %v6542, %v6823
      %v6825 = vpop.f32.mrf.mxu0
      %v6826 = vadd.f32 %v6547, %v6825
      %6827 = vdwg.mxu0
      %6828 = vmatpush.bf16.msra.mxu0 0
      %6829 = vmatpush.bf16.msra.mxu0 0
      %6830 = vmatpush.bf16.msra.mxu0 %v6781
      %6831 = vmatpush.bf16.msra.mxu0 %v6730
      %6832 = vmatpush.bf16.msra.mxu0 %v6727
      %6833 = vmatpush.bf16.msra.mxu0 %v6724
      %6834 = vmatpush.bf16.msra.mxu0 %v6721
      %6835 = vmatpush.bf16.msra.mxu0 %v6718
      %6836 = vmatmul.bf16.gmra.mxu0 %v6775
      %v6837 = vpop.f32.mrf.mxu0
      %v6838 = vadd.f32 %v6824, %v6837
      %v6839 = vpop.f32.mrf.mxu0
      %v6840 = vadd.f32 %v6826, %v6839
      %6841 = vdwg.mxu0
      %6842 = vmatpush.bf16.msra.mxu0 %v6716
      %6843 = vmatpush.bf16.msra.mxu0 %v6713
      %6844 = vmatpush.bf16.msra.mxu0 %v6710
      %6845 = vmatpush.bf16.msra.mxu0 %v6707
      %6846 = vmatpush.bf16.msra.mxu0 %v6704
      %6847 = vmatpush.bf16.msra.mxu0 %v6701
      %6848 = vmatpush.bf16.msra.mxu0 %v6698
      %6849 = vmatpush.bf16.msra.mxu0 %v6695
      %6850 = vmatmul.bf16.gmra.mxu0 %v6555
      %v6851 = vpop.f32.mrf.mxu0
      %v6852 = vadd.f32 %v6542, %v6851
      %v6853 = vpop.f32.mrf.mxu0
      %v6854 = vadd.f32 %v6547, %v6853
      %6855 = vdwg.mxu0
      %6856 = vmatpush.bf16.msra.mxu0 0
      %6857 = vmatpush.bf16.msra.mxu0 0
      %6858 = vmatpush.bf16.msra.mxu0 %v6784
      %6859 = vmatpush.bf16.msra.mxu0 %v6731
      %6860 = vmatpush.bf16.msra.mxu0 %v6728
      %6861 = vmatpush.bf16.msra.mxu0 %v6725
      %6862 = vmatpush.bf16.msra.mxu0 %v6722
      %6863 = vmatpush.bf16.msra.mxu0 %v6719
      %6864 = vmatmul.bf16.gmra.mxu0 %v6775
      %v6865 = vpop.f32.mrf.mxu0
      %v6866 = vadd.f32 %v6852, %v6865
      %v6867 = vpop.f32.mrf.mxu0
      %v6868 = vadd.f32 %v6854, %v6867
      %6869 = vdwg.mxu0
      %v6870 = vmax.f32 %v6810, 0.0
      %v6871 = vmax.f32 %v6838, 0.0
      %v6872 = vmax.f32 %v6866, 0.0
      %v6873 = vmax.f32 %v6812, 0.0
      %v6874 = vmax.f32 %v6840, 0.0
      %v6875 = vmax.f32 %v6868, 0.0
      %v6876 = vpack.c.bf16 %v6871, %v6870
      %v6877 = vpack.c.bf16 %v6872, %v6872
      %v6878 = vpack.c.bf16 %v6874, %v6873
      %v6879 = vpack.c.bf16 %v6875, %v6875
      %v6880 = vunpack.c.l.bf16 %v6876
      %v6881 = vunpack.c.h.bf16 %v6876
      %v6882 = vunpack.c.l.bf16 %v6877
      %v6883 = vunpack.c.l.bf16 %v6878
      %v6884 = vunpack.c.h.bf16 %v6878
      %v6885 = vunpack.c.l.bf16 %v6879
      %v6886 = vmul.f32 %v6880, %v959
      %v6887 = vmul.f32 %v6881, %v960
      %v6888 = vmul.f32 %v6882, %v961
      %v6889 = vmul.f32 %v6883, %v959
      %v6890 = vmul.f32 %v6884, %v960
      %v6891 = vmul.f32 %v6885, %v961
      %v6892 = vpack.c.bf16 %v6887, %v6886
      %v6893 = vpack.c.bf16 %v6888, %v6888
      %v6894 = vpack.c.bf16 %v6890, %v6889
      %v6895 = vpack.c.bf16 %v6891, %v6891
      %v6896 = vsub.f32 0.0, %v6810
      %v6897 = vsub.f32 0.0, %v6838
      %v6898 = vsub.f32 0.0, %v6866
      %v6899 = vsub.f32 0.0, %v6812
      %v6900 = vsub.f32 0.0, %v6840
      %v6901 = vsub.f32 0.0, %v6868
      %v6902 = vmax.f32 %v6896, 0.0
      %v6903 = vmax.f32 %v6897, 0.0
      %v6904 = vmax.f32 %v6898, 0.0
      %v6905 = vmax.f32 %v6899, 0.0
      %v6906 = vmax.f32 %v6900, 0.0
      %v6907 = vmax.f32 %v6901, 0.0
      %v6908 = vpack.c.bf16 %v6903, %v6902
      %v6909 = vpack.c.bf16 %v6904, %v6904
      %v6910 = vpack.c.bf16 %v6906, %v6905
      %v6911 = vpack.c.bf16 %v6907, %v6907
      %v6912 = vunpack.c.l.bf16 %v6908
      %v6913 = vunpack.c.h.bf16 %v6908
      %v6914 = vunpack.c.l.bf16 %v6909
      %v6915 = vunpack.c.l.bf16 %v6910
      %v6916 = vunpack.c.h.bf16 %v6910
      %v6917 = vunpack.c.l.bf16 %v6911
      %v6918 = vmul.f32 %v6912, %v959
      %v6919 = vmul.f32 %v6913, %v960
      %v6920 = vmul.f32 %v6914, %v961
      %v6921 = vmul.f32 %v6915, %v959
      %v6922 = vmul.f32 %v6916, %v960
      %v6923 = vmul.f32 %v6917, %v961
      %v6924 = vpack.c.bf16 %v6919, %v6918
      %v6925 = vpack.c.bf16 %v6920, %v6920
      %v6926 = vpack.c.bf16 %v6922, %v6921
      %v6927 = vpack.c.bf16 %v6923, %v6923
      %6928 = vst [vmem:[#allocation2 + $0x4] sm:$0xff] %v6892
      %6929 = vst.msk [vmem:[#allocation2 + $0xc] sm:$0xf] %vm471, %v6893
      %6930 = vst [vmem:[#allocation2 + $0x14] sm:$0x33] %v6894
      %6931 = vst.msk [vmem:[#allocation2 + $0x1c] sm:$0x3] %vm1007, %v6895
      %v6936 = vrot.slane %v6924, 6
      %v6937 = vrot.slane %v6925, 6
      %v6938 = vrot.slane %v6936, 4
      %v6939 = vrot.slane %v6926, 6
      %v6940 = vsel %vm1013, %v6938, %v6939
      %v6941 = vrot.slane %v6937, 4
      %v6942 = vrot.slane %v6927, 6
      %v6943 = vsel %vm1013, %v6941, %v6942
      %6948 = vst [vmem:[#allocation2 + $0x14] sm:$0xcc] %v6936
      %6949 = vst.msk [vmem:[#allocation2 + $0x1c] sm:$0xc] %vm1027, %v6937
      %6950 = vst [vmem:[#allocation2 + $0x24] sm:$0xff] %v6940
      %6951 = vst.msk [vmem:[#allocation2 + $0x2c] sm:$0xf] %vm471, %v6943
      %v6954 = vunpack.c.l.b16 %v6075
      %v6955 = vunpack.c.l.b16 %v6076
      %v6956 = vpack.c.b16 %v6955, %v6954
      %6957 = vrot.lane.b32.xlu0 %v6956, 116
      %v6958 = vpop.permute.xlu0 %6957
      %v6959 = vunpack.c.l.b16 %v6924
      %v6960 = vunpack.c.h.b16 %v6924
      %v6961 = vunpack.c.l.b16 %v6925
      %v6962 = vunpack.c.l.b16 %v6926
      %v6963 = vunpack.c.h.b16 %v6926
      %v6964 = vunpack.c.l.b16 %v6927
      %v6965 = vpack.c.b16 %v6962, %v6959
      %v6966 = vpack.c.b16 %v6963, %v6960
      %v6967 = vpack.c.b16 %v6964, %v6961
      %v6969 = vsel %vm2811, %v6958, 0
      %v6972 = vsel %vm889, %v6965, 0
      %v6975 = vsel %vm889, %v6966, 0
      %v6978 = vsel %vm889, %v6967, 0
      %6980 = vmatpush.bf16.msra.mxu0 0
      %6981 = vmatpush.bf16.msra.mxu0 0
      %6982 = vmatpush.bf16.msra.mxu0 0
      %6983 = vmatpush.bf16.msra.mxu0 0
      %6984 = vmatpush.bf16.msra.mxu0 0
      %6985 = vmatpush.bf16.msra.mxu0 0
      %6986 = vmatpush.bf16.msra.mxu0 0
      %6987 = vmatpush.bf16.msra.mxu0 %v6972
      %6988 = vmatmul.bf16.gmra.mxu0 %v6969
      %v6989 = vpop.f32.mrf.mxu0
      %v6990 = vadd.f32 0.0, %v6989
      %v6991 = vpop.f32.mrf.mxu0
      %v6992 = vadd.f32 0.0, %v6991
      %6993 = vdwg.mxu0
      %6994 = vmatpush.bf16.msra.mxu0 0
      %6995 = vmatpush.bf16.msra.mxu0 0
      %6996 = vmatpush.bf16.msra.mxu0 0
      %6997 = vmatpush.bf16.msra.mxu0 0
      %6998 = vmatpush.bf16.msra.mxu0 0
      %6999 = vmatpush.bf16.msra.mxu0 0
      %7000 = vmatpush.bf16.msra.mxu0 0
      %7001 = vmatpush.bf16.msra.mxu0 %v6975
      %7002 = vmatmul.bf16.gmra.mxu0 %v6969
      %v7003 = vpop.f32.mrf.mxu0
      %v7004 = vadd.f32 0.0, %v7003
      %v7005 = vpop.f32.mrf.mxu0
      %v7006 = vadd.f32 0.0, %v7005
      %7007 = vdwg.mxu0
      %7008 = vmatpush.bf16.msra.mxu0 0
      %7009 = vmatpush.bf16.msra.mxu0 0
      %7010 = vmatpush.bf16.msra.mxu0 0
      %7011 = vmatpush.bf16.msra.mxu0 0
      %7012 = vmatpush.bf16.msra.mxu0 0
      %7013 = vmatpush.bf16.msra.mxu0 0
      %7014 = vmatpush.bf16.msra.mxu0 0
      %7015 = vmatpush.bf16.msra.mxu0 %v6978
      %7016 = vmatmul.bf16.gmra.mxu0 %v6969
      %v7017 = vpop.f32.mrf.mxu0
      %v7018 = vadd.f32 0.0, %v7017
      %v7019 = vpop.f32.mrf.mxu0
      %v7020 = vadd.f32 0.0, %v7019
      %7021 = vdwg.mxu0
      %v7026 = vunpack.c.l.b16 %v6892
      %v7027 = vunpack.c.h.b16 %v6892
      %v7028 = vunpack.c.l.b16 %v6893
      %v7029 = vunpack.c.l.b16 %v6894
      %v7030 = vunpack.c.h.b16 %v6894
      %v7031 = vunpack.c.l.b16 %v6895
      %v7032 = vpack.c.b16 %v7029, %v7026
      %v7033 = vpack.c.b16 %v7030, %v7027
      %v7034 = vpack.c.b16 %v7031, %v7028
      %v7036 = vsel %vm2811, %v6956, 0
      %v7039 = vsel %vm889, %v7032, 0
      %v7042 = vsel %vm889, %v7033, 0
      %v7045 = vsel %vm889, %v7034, 0
      %7047 = vmatpush.bf16.msra.mxu0 0
      %7048 = vmatpush.bf16.msra.mxu0 0
      %7049 = vmatpush.bf16.msra.mxu0 0
      %7050 = vmatpush.bf16.msra.mxu0 0
      %7051 = vmatpush.bf16.msra.mxu0 0
      %7052 = vmatpush.bf16.msra.mxu0 0
      %7053 = vmatpush.bf16.msra.mxu0 0
      %7054 = vmatpush.bf16.msra.mxu0 %v7039
      %7055 = vmatmul.bf16.gmra.mxu0 %v7036
      %v7056 = vpop.f32.mrf.mxu0
      %v7057 = vadd.f32 %v6990, %v7056
      %v7058 = vpop.f32.mrf.mxu0
      %v7059 = vadd.f32 %v6992, %v7058
      %7060 = vdwg.mxu0
      %7061 = vmatpush.bf16.msra.mxu0 0
      %7062 = vmatpush.bf16.msra.mxu0 0
      %7063 = vmatpush.bf16.msra.mxu0 0
      %7064 = vmatpush.bf16.msra.mxu0 0
      %7065 = vmatpush.bf16.msra.mxu0 0
      %7066 = vmatpush.bf16.msra.mxu0 0
      %7067 = vmatpush.bf16.msra.mxu0 0
      %7068 = vmatpush.bf16.msra.mxu0 %v7042
      %7069 = vmatmul.bf16.gmra.mxu0 %v7036
      %v7070 = vpop.f32.mrf.mxu0
      %v7071 = vadd.f32 %v7004, %v7070
      %v7072 = vpop.f32.mrf.mxu0
      %v7073 = vadd.f32 %v7006, %v7072
      %7074 = vdwg.mxu0
      %7075 = vmatpush.bf16.msra.mxu0 0
      %7076 = vmatpush.bf16.msra.mxu0 0
      %7077 = vmatpush.bf16.msra.mxu0 0
      %7078 = vmatpush.bf16.msra.mxu0 0
      %7079 = vmatpush.bf16.msra.mxu0 0
      %7080 = vmatpush.bf16.msra.mxu0 0
      %7081 = vmatpush.bf16.msra.mxu0 0
      %7082 = vmatpush.bf16.msra.mxu0 %v7045
      %7083 = vmatmul.bf16.gmra.mxu0 %v7036
      %v7084 = vpop.f32.mrf.mxu0
      %v7085 = vadd.f32 %v7018, %v7084
      %v7086 = vpop.f32.mrf.mxu0
      %v7087 = vadd.f32 %v7020, %v7086
      %7088 = vdwg.mxu0
      %v7089 = vld [vmem:[#allocation5] sm:$0xff]
      %v7090 = vld [vmem:[#allocation5 + $0x8] sm:$0xff]
      %v7091 = vld [vmem:[#allocation5 + $0x10] sm:$0xff]
      %v7092 = vld [vmem:[#allocation5 + $0x18] sm:$0xf]
      %v7093 = vld [vmem:[#allocation5 + $0x20] sm:$0xf]
      %v7094 = vld [vmem:[#allocation5 + $0x28] sm:$0xf]
      %v7095 = vadd.f32 %v7089, %v7057
      %v7096 = vadd.f32 %v7090, %v7071
      %v7097 = vadd.f32 %v7091, %v7085
      %v7098 = vadd.f32 %v7092, %v7059
      %v7099 = vadd.f32 %v7093, %v7073
      %v7100 = vadd.f32 %v7094, %v7087
      %7101 = vst [vmem:[#allocation5] sm:$0xff] %v7095
      %7102 = vst [vmem:[#allocation5 + $0x8] sm:$0xff] %v7096
      %7103 = vst.msk [vmem:[#allocation5 + $0x10] sm:$0xff] %vm467, %v7097
      %7104 = vst [vmem:[#allocation5 + $0x18] sm:$0xf] %v7098
      %7105 = vst [vmem:[#allocation5 + $0x20] sm:$0xf] %v7099
      %7106 = vst.msk [vmem:[#allocation5 + $0x28] sm:$0xf] %vm471, %v7100
      %v7107 = vld [vmem:[#allocation5] sm:$0xff]
      %v7108 = vld [vmem:[#allocation5 + $0x8] sm:$0xff]
      %v7109 = vld [vmem:[#allocation5 + $0x10] sm:$0xff]
      %v7110 = vld [vmem:[#allocation5 + $0x18] sm:$0xf]
      %v7111 = vld [vmem:[#allocation5 + $0x20] sm:$0xf]
      %v7112 = vld [vmem:[#allocation5 + $0x28] sm:$0xf]
      %v7113 = vld [vmem:[%s7] sm:$0xff]
      %v7114 = vld [vmem:[%s7 + $0x8] sm:$0xf]
      %7116 = vset.pattern.permute.xlu0 0
      %7117 = vperm.xlu0 %7116, %v7113
      %v7118 = vpop.permute.xlu0 %7117
      %7121 = vset.pattern.permute.xlu0 0
      %7122 = vperm.xlu0 %7121, %v7114
      %v7123 = vpop.permute.xlu0 %7122
      %v7125 = vadd.f32 %v7107, %v7118
      %v7126 = vadd.f32 %v7108, %v7118
      %v7127 = vadd.f32 %v7109, %v7118
      %v7128 = vadd.f32 %v7110, %v7123
      %v7129 = vadd.f32 %v7111, %v7123
      %v7130 = vadd.f32 %v7112, %v7123
      %v7131 = vld [vmem:[%s320] sm:$0x77]
      %v7132 = vld [vmem:[%s320 + $0x8] sm:$0x77]
      %v7133 = vmul.f32 %v7131, 0.0625
      %v7134 = vmul.f32 %v7132, 0.0625
      %v7135 = vadd.f32 %v7133, 0.0
      %v7136 = vadd.f32 %v7134, 0.0
      %v7137 = vmul.f32 %v7131, 0.1875
      %v7138 = vmul.f32 %v7132, 0.1875
      %7141 = vrot.lane.b32.xlu0 %v7137, 127
      %v7142 = vpop.permute.xlu0 %7141
      %7143 = vrot.lane.b32.xlu0 %v7138, 127
      %v7144 = vpop.permute.xlu0 %7143
      %v7145 = vrot.slane %v7142, 4
      %v7146 = vrot.slane %v7144, 4
      %v7147 = vsel %vm1736, %v7145, %v7146
      %vm7148 = vcmask 1039360
      %v7149 = vsel %vm7148, %v7142, %v7147
      %v7150 = vsel %vm7148, %v7144, %v7146
      %v7153 = vadd.f32 %v7135, %v7149
      %v7154 = vadd.f32 %v7136, %v7150
      %7155 = vrot.lane.b32.xlu0 %v7137, 110
      %v7156 = vpop.permute.xlu0 %7155
      %7157 = vrot.lane.b32.xlu0 %v7138, 110
      %v7158 = vpop.permute.xlu0 %7157
      %v7159 = vrot.slane %v7156, 4
      %v7160 = vrot.slane %v7158, 4
      %v7161 = vsel %vm1736, %v7159, %v7160
      %vm7162 = vcmask 900096
      %v7163 = vsel %vm7162, %v7156, %v7161
      %v7164 = vsel %vm7162, %v7158, %v7160
      %v7167 = vadd.f32 %v7153, %v7163
      %v7168 = vadd.f32 %v7154, %v7164
      %v7171 = vrot.slane %v7131, 4
      %v7172 = vrot.slane %v7132, 4
      %v7173 = vsel %vm1736, %v7171, %v7172
      %v7176 = vmul.f32 %v7173, 0.5625
      %v7177 = vmul.f32 %v7172, 0.5625
      %7180 = vrot.lane.b32.xlu0 %v7176, 109
      %v7181 = vpop.permute.xlu0 %7180
      %7182 = vrot.lane.b32.xlu0 %v7177, 109
      %v7183 = vpop.permute.xlu0 %7182
      %v7184 = vrot.slane %v7181, 4
      %v7185 = vrot.slane %v7183, 4
      %vm7186 = vcmask 891904
      %v7187 = vsel %vm7186, %v7184, %v7181
      %v7188 = vsel %vm1736, %v7184, %v7185
      %v7189 = vsel %vm7186, %v7188, %v7183
      %v7192 = vadd.f32 %v7167, %v7187
      %v7193 = vadd.f32 %v7168, %v7189
      %7196 = vst [vmem:[#allocation1] ss:$2 sm:$0xff] %v7192
      %s7197 = scalar_lea.vmem [#allocation1], 16
      %7198 = vst [vmem:[%s7197] ss:$2 sm:$0xff] %v7193
      %v7199 = vld.sshfl [vmem:[#allocation1] sm:$0xff pattern:$0x75316420]
      %v7200 = vld.sshfl [vmem:[#allocation1 + $0x8] sm:$0xff pattern:$0x75316420]
      %v7201 = vld.sshfl [vmem:[#allocation1 + $0x10] sm:$0xff pattern:$0x75316420]
      %v7202 = vld.sshfl [vmem:[#allocation1 + $0x18] sm:$0xff pattern:$0x75316420]
      %7203 = vrot.lane.b32.xlu0 %v7199, 19
      %v7204 = vpop.permute.xlu0 %7203
      %7205 = vrot.lane.b32.xlu0 %v7200, 19
      %v7206 = vpop.permute.xlu0 %7205
      %7207 = vrot.lane.b32.xlu0 %v7201, 19
      %v7208 = vpop.permute.xlu0 %7207
      %7209 = vrot.lane.b32.xlu0 %v7202, 19
      %v7210 = vpop.permute.xlu0 %7209
      %vm7211 = vcmask 154624
      %v7212 = vsel %vm7211, %v7204, %v7206
      %v7213 = vsel %vm7211, %v7206, %v7208
      %v7214 = vsel %vm7211, %v7208, %v7210
      %v7218 = vadd.f32 %v7125, %v7212
      %v7219 = vadd.f32 %v7126, %v7213
      %v7220 = vadd.f32 %v7127, %v7214
      %v7221 = vmax.f32 %v7218, 0.0
      %v7222 = vmax.f32 %v7219, 0.0
      %v7223 = vmax.f32 %v7220, 0.0
      %v7224 = vmin.f32 %v7221, 1.0
      %v7225 = vmin.f32 %v7222, 1.0
      %v7226 = vmin.f32 %v7223, 1.0
      %v7229 = vrot.slane %v7225, 4
      %v7230 = vsel %vm1736, %v7224, %v7229
      %7232 = vst [vmem:[%s325] sm:$0x77] %v7230
      %vm7233 = vcmask 256000
      %7234 = vst.msk [vmem:[%s325 + $0x8] sm:$0x7] %vm7233, %v7226
      %v7235 = vadd.f32 %v7137, 0.0
      %v7236 = vadd.f32 %v7138, 0.0
      %7239 = vrot.lane.b32.xlu0 %v7133, 127
      %v7240 = vpop.permute.xlu0 %7239
      %7241 = vrot.lane.b32.xlu0 %v7134, 127
      %v7242 = vpop.permute.xlu0 %7241
      %v7243 = vrot.slane %v7240, 4
      %v7244 = vrot.slane %v7242, 4
      %v7245 = vsel %vm1736, %v7243, %v7244
      %v7246 = vsel %vm7148, %v7240, %v7245
      %v7247 = vsel %vm7148, %v7242, %v7244
      %v7250 = vadd.f32 %v7235, %v7246
      %v7251 = vadd.f32 %v7236, %v7247
      %7252 = vrot.lane.b32.xlu0 %v7176, 110
      %v7253 = vpop.permute.xlu0 %7252
      %7254 = vrot.lane.b32.xlu0 %v7177, 110
      %v7255 = vpop.permute.xlu0 %7254
      %v7256 = vrot.slane %v7253, 4
      %v7257 = vrot.slane %v7255, 4
      %v7258 = vsel %vm7162, %v7256, %v7253
      %v7259 = vsel %vm1736, %v7256, %v7257
      %v7260 = vsel %vm7162, %v7259, %v7255
      %v7263 = vadd.f32 %v7250, %v7258
      %v7264 = vadd.f32 %v7251, %v7260
      %7265 = vrot.lane.b32.xlu0 %v7131, 127
      %v7266 = vpop.permute.xlu0 %7265
      %7267 = vrot.lane.b32.xlu0 %v7132, 127
      %v7268 = vpop.permute.xlu0 %7267
      %v7269 = vrot.slane %v7266, 4
      %v7270 = vrot.slane %v7268, 4
      %v7271 = vsel %vm1736, %v7269, %v7270
      %v7272 = vsel %vm7148, %v7271, %v7268
      %v7275 = vmul.f32 %v7272, 0.1875
      %v7276 = vmul.f32 %v7270, 0.1875
      %7279 = vrot.lane.b32.xlu0 %v7275, 110
      %v7280 = vpop.permute.xlu0 %7279
      %7281 = vrot.lane.b32.xlu0 %v7276, 110
      %v7282 = vpop.permute.xlu0 %7281
      %v7283 = vrot.slane %v7280, 4
      %v7284 = vrot.slane %v7282, 4
      %v7285 = vsel %vm7162, %v7283, %v7280
      %v7286 = vsel %vm1736, %v7283, %v7284
      %v7287 = vsel %vm7162, %v7286, %v7282
      %v7290 = vadd.f32 %v7263, %v7285
      %v7291 = vadd.f32 %v7264, %v7287
      %7294 = vst [vmem:[#allocation1] ss:$2 sm:$0xff] %v7290
      %s7295 = scalar_lea.vmem [#allocation1], 16
      %7296 = vst [vmem:[%s7295] ss:$2 sm:$0xff] %v7291
      %v7297 = vld.sshfl [vmem:[#allocation1] sm:$0xff pattern:$0x75316420]
      %v7298 = vld.sshfl [vmem:[#allocation1 + $0x8] sm:$0xff pattern:$0x75316420]
      %v7299 = vld.sshfl [vmem:[#allocation1 + $0x10] sm:$0xff pattern:$0x75316420]
      %v7300 = vld.sshfl [vmem:[#allocation1 + $0x18] sm:$0xff pattern:$0x75316420]
      %v7301 = vrot.slane %v7297, 5
      %v7302 = vrot.slane %v7298, 5
      %v7303 = vrot.slane %v7299, 5
      %v7304 = vrot.slane %v7300, 5
      %7305 = vrot.lane.b32.xlu0 %v7301, 18
      %v7306 = vpop.permute.xlu0 %7305
      %7307 = vrot.lane.b32.xlu0 %v7302, 18
      %v7308 = vpop.permute.xlu0 %7307
      %7309 = vrot.lane.b32.xlu0 %v7303, 18
      %v7310 = vpop.permute.xlu0 %7309
      %7311 = vrot.lane.b32.xlu0 %v7304, 18
      %v7312 = vpop.permute.xlu0 %7311
      %vm7313 = vcmask 146432
      %v7314 = vsel %vm7313, %v7306, %v7308
      %v7315 = vsel %vm7313, %v7308, %v7310
      %v7316 = vsel %vm7313, %v7310, %v7312
      %v7320 = vadd.f32 %v7125, %v7314
      %v7321 = vadd.f32 %v7126, %v7315
      %v7322 = vadd.f32 %v7127, %v7316
      %v7323 = vmax.f32 %v7320, 0.0
      %v7324 = vmax.f32 %v7321, 0.0
      %v7325 = vmax.f32 %v7322, 0.0
      %v7326 = vmin.f32 %v7323, 1.0
      %v7327 = vmin.f32 %v7324, 1.0
      %v7328 = vmin.f32 %v7325, 1.0
      %v7332 = vrot.slane %v7327, 4
      %v7333 = vsel %vm1736, %v7326, %v7332
      %v7334 = vsel %vm1736, %v7332, %v7326
      %v7335 = vrot.slane %v7334, 4
      %v7336 = vrot.slane %v7328, 4
      %vm7337 = vcmask 1040384
      %vm7338 = vcmask 1044484
      %vm7339 = vmor %vm7337, %vm7338
      %v7340 = vrot.slane %v7333, 7
      %v7341 = vrot.slane %v7340, 4
      %v7342 = vrot.slane %v7335, 7
      %v7343 = vsel %vm7339, %v7341, %v7342
      %v7344 = vrot.slane %v7328, 7
      %v7345 = vrot.slane %v7344, 4
      %v7346 = vrot.slane %v7336, 7
      %v7347 = vsel %vm7339, %v7345, %v7346
      %s7350 = scalar_lea.vmem %s325, 12
      %7351 = vst [vmem:[%s7350] sm:$0x77] %v7343
      %7352 = vst.msk [vmem:[%s7350 + $0x8] sm:$0x7] %vm7233, %v7347
      %7353 = vrot.lane.b32.xlu0 %v7176, 127
      %v7354 = vpop.permute.xlu0 %7353
      %7355 = vrot.lane.b32.xlu0 %v7177, 127
      %v7356 = vpop.permute.xlu0 %7355
      %v7357 = vrot.slane %v7354, 4
      %v7358 = vrot.slane %v7356, 4
      %v7359 = vsel %vm7148, %v7357, %v7354
      %v7360 = vsel %vm1736, %v7357, %v7358
      %v7361 = vsel %vm7148, %v7360, %v7356
      %v7364 = vadd.f32 %v7235, %v7359
      %v7365 = vadd.f32 %v7236, %v7361
      %7366 = vrot.lane.b32.xlu0 %v7131, 111
      %v7367 = vpop.permute.xlu0 %7366
      %7368 = vrot.lane.b32.xlu0 %v7132, 111
      %v7369 = vpop.permute.xlu0 %7368
      %v7370 = vrot.slane %v7367, 4
      %v7371 = vrot.slane %v7369, 4
      %v7372 = vsel %vm1736, %v7370, %v7371
      %vm7373 = vcmask 908288
      %v7374 = vsel %vm7373, %v7372, %v7369
      %v7377 = vmul.f32 %v7374, 0.0625
      %v7378 = vmul.f32 %v7371, 0.0625
      %7381 = vrot.lane.b32.xlu0 %v7377, 127
      %v7382 = vpop.permute.xlu0 %7381
      %7383 = vrot.lane.b32.xlu0 %v7378, 127
      %v7384 = vpop.permute.xlu0 %7383
      %v7385 = vrot.slane %v7382, 4
      %v7386 = vrot.slane %v7384, 4
      %v7387 = vsel %vm7148, %v7385, %v7382
      %v7388 = vsel %vm1736, %v7385, %v7386
      %v7389 = vsel %vm7148, %v7388, %v7384
      %v7392 = vadd.f32 %v7364, %v7387
      %v7393 = vadd.f32 %v7365, %v7389
      %7394 = vrot.lane.b32.xlu0 %v7131, 110
      %v7395 = vpop.permute.xlu0 %7394
      %7396 = vrot.lane.b32.xlu0 %v7132, 110
      %v7397 = vpop.permute.xlu0 %7396
      %v7398 = vrot.slane %v7395, 4
      %v7399 = vrot.slane %v7397, 4
      %v7400 = vsel %vm1736, %v7398, %v7399
      %v7401 = vsel %vm7162, %v7400, %v7397
      %v7404 = vmul.f32 %v7401, 0.1875
      %v7405 = vmul.f32 %v7399, 0.1875
      %7408 = vrot.lane.b32.xlu0 %v7404, 127
      %v7409 = vpop.permute.xlu0 %7408
      %7410 = vrot.lane.b32.xlu0 %v7405, 127
      %v7411 = vpop.permute.xlu0 %7410
      %v7412 = vrot.slane %v7409, 4
      %v7413 = vrot.slane %v7411, 4
      %v7414 = vsel %vm7148, %v7412, %v7409
      %v7415 = vsel %vm1736, %v7412, %v7413
      %v7416 = vsel %vm7148, %v7415, %v7411
      %v7419 = vadd.f32 %v7392, %v7414
      %v7420 = vadd.f32 %v7393, %v7416
      %7423 = vst [vmem:[#allocation1] ss:$2 sm:$0xff] %v7419
      %s7424 = scalar_lea.vmem [#allocation1], 16
      %7425 = vst [vmem:[%s7424] ss:$2 sm:$0xff] %v7420
      %v7426 = vld.sshfl [vmem:[#allocation1] sm:$0xff pattern:$0x75316420]
      %v7427 = vld.sshfl [vmem:[#allocation1 + $0x8] sm:$0xff pattern:$0x75316420]
      %v7428 = vld.sshfl [vmem:[#allocation1 + $0x10] sm:$0xff pattern:$0x75316420]
      %v7429 = vld.sshfl [vmem:[#allocation1 + $0x18] sm:$0xff pattern:$0x75316420]
      %v7430 = vrot.slane %v7426, 2
      %v7431 = vrot.slane %v7427, 2
      %v7432 = vrot.slane %v7428, 2
      %v7433 = vrot.slane %v7429, 2
      %7434 = vrot.lane.b32.xlu0 %v7430, 1
      %v7435 = vpop.permute.xlu0 %7434
      %7436 = vrot.lane.b32.xlu0 %v7431, 1
      %v7437 = vpop.permute.xlu0 %7436
      %7438 = vrot.lane.b32.xlu0 %v7432, 1
      %v7439 = vpop.permute.xlu0 %7438
      %7440 = vrot.lane.b32.xlu0 %v7433, 1
      %v7441 = vpop.permute.xlu0 %7440
      %vm7442 = vcmask 7168
      %v7443 = vsel %vm7442, %v7435, %v7437
      %v7444 = vsel %vm7442, %v7437, %v7439
      %v7445 = vsel %vm7442, %v7439, %v7441
      %v7449 = vadd.f32 %v7125, %v7443
      %v7450 = vadd.f32 %v7126, %v7444
      %v7451 = vadd.f32 %v7127, %v7445
      %v7452 = vadd.f32 %v7128, %v7443
      %v7453 = vadd.f32 %v7129, %v7444
      %v7454 = vadd.f32 %v7130, %v7445
      %v7455 = vmax.f32 %v7449, 0.0
      %v7456 = vmax.f32 %v7450, 0.0
      %v7457 = vmax.f32 %v7451, 0.0
      %v7458 = vmax.f32 %v7452, 0.0
      %v7459 = vmax.f32 %v7453, 0.0
      %v7460 = vmax.f32 %v7454, 0.0
      %v7461 = vmin.f32 %v7455, 1.0
      %v7462 = vmin.f32 %v7456, 1.0
      %v7463 = vmin.f32 %v7457, 1.0
      %v7464 = vmin.f32 %v7458, 1.0
      %v7465 = vmin.f32 %v7459, 1.0
      %v7466 = vmin.f32 %v7460, 1.0
      %7473 = vst.sshfl [vmem:[#allocation1] sm:$0xff pattern:$0x75316420] %v7461
      %7474 = vst.sshfl [vmem:[#allocation1 + $0x8] sm:$0xff pattern:$0x75316420] %v7462
      %7475 = vst.sshfl [vmem:[#allocation1 + $0x10] sm:$0xff pattern:$0x75316420] %v7463
      %7476 = vst.sshfl [vmem:[#allocation1 + $0x20] sm:$0xff pattern:$0x75316420] %v7464
      %7477 = vst.sshfl [vmem:[#allocation1 + $0x28] sm:$0xff pattern:$0x75316420] %v7465
      %7478 = vst.sshfl [vmem:[#allocation1 + $0x30] sm:$0xff pattern:$0x75316420] %v7466
      %s7479 = scalar_lea.vmem [#allocation1], 1
      %v7480 = vld [vmem:[%s7479] ss:$2 sm:$0xff]
      %s7481 = scalar_lea.vmem [#allocation1], 17
      %v7482 = vld [vmem:[%s7481] ss:$2 sm:$0xff]
      %s7483 = scalar_lea.vmem [#allocation1], 32
      %v7484 = vld [vmem:[%s7483] ss:$2 sm:$0xff]
      %s7485 = scalar_lea.vmem [#allocation1], 48
      %v7486 = vld [vmem:[%s7485] ss:$2 sm:$0xff]
      %vm7487 = vcmask 1041408
      %vm7488 = vcmask 1045508
      %vm7489 = vmor %vm7487, %vm7488
      %v7490 = vrot.slane %v7480, 6
      %v7491 = vrot.slane %v7490, 4
      %v7492 = vrot.slane %v7484, 6
      %v7493 = vsel %vm7489, %v7491, %v7492
      %v7494 = vrot.slane %v7482, 6
      %v7495 = vrot.slane %v7494, 4
      %v7496 = vrot.slane %v7486, 6
      %v7497 = vsel %vm7489, %v7495, %v7496
      %s7500 = scalar_lea.vmem %s325, 24
      %7501 = vst [vmem:[%s7500] sm:$0x77] %v7493
      %7502 = vst.msk [vmem:[%s7500 + $0x8] sm:$0x7] %vm7233, %v7497
      %v7503 = vadd.f32 %v7176, 0.0
      %v7504 = vadd.f32 %v7177, 0.0
      %v7505 = vadd.f32 %v7503, %v7275
      %v7506 = vadd.f32 %v7504, %v7276
      %v7507 = vadd.f32 %v7505, %v7404
      %v7508 = vadd.f32 %v7506, %v7405
      %7509 = vrot.lane.b32.xlu0 %v7131, 109
      %v7510 = vpop.permute.xlu0 %7509
      %7511 = vrot.lane.b32.xlu0 %v7132, 109
      %v7512 = vpop.permute.xlu0 %7511
      %v7513 = vrot.slane %v7510, 4
      %v7514 = vrot.slane %v7512, 4
      %v7515 = vsel %vm1736, %v7513, %v7514
      %v7516 = vsel %vm7186, %v7515, %v7512
      %v7519 = vmul.f32 %v7516, 0.0625
      %v7520 = vmul.f32 %v7514, 0.0625
      %v7521 = vadd.f32 %v7507, %v7519
      %v7522 = vadd.f32 %v7508, %v7520
      %7525 = vst [vmem:[#allocation1] ss:$2 sm:$0xff] %v7521
      %s7526 = scalar_lea.vmem [#allocation1], 16
      %7527 = vst [vmem:[%s7526] ss:$2 sm:$0xff] %v7522
      %v7528 = vld.sshfl [vmem:[#allocation1] sm:$0xff pattern:$0x75316420]
      %v7529 = vld.sshfl [vmem:[#allocation1 + $0x8] sm:$0xff pattern:$0x75316420]
      %v7530 = vld.sshfl [vmem:[#allocation1 + $0x10] sm:$0xff pattern:$0x75316420]
      %v7531 = vrot.slane %v7528, 7
      %v7532 = vrot.slane %v7529, 7
      %v7533 = vrot.slane %v7530, 7
      %v7537 = vadd.f32 %v7128, %v7531
      %v7538 = vadd.f32 %v7129, %v7532
      %v7539 = vadd.f32 %v7130, %v7533
      %v7540 = vmax.f32 %v7537, 0.0
      %v7541 = vmax.f32 %v7538, 0.0
      %v7542 = vmax.f32 %v7539, 0.0
      %v7543 = vmin.f32 %v7540, 1.0
      %v7544 = vmin.f32 %v7541, 1.0
      %v7545 = vmin.f32 %v7542, 1.0
      %v7549 = vrot.slane %v7544, 4
      %v7550 = vsel %vm1736, %v7543, %v7549
      %v7551 = vrot.slane %v7550, 5
      %v7552 = vrot.slane %v7551, 4
      %v7553 = vrot.slane %v7545, 5
      %v7554 = vrot.slane %v7553, 4
      %s7557 = scalar_lea.vmem %s325, 36
      %7558 = vst [vmem:[%s7557] sm:$0x77] %v7552
      %7559 = vst.msk [vmem:[%s7557 + $0x8] sm:$0x7] %vm7233, %v7554
      %p7560 = scmp.lt.s32.totalorder %s19, 1
      %s7561 = scalar_select %p7560, %s19, 1
      %s7562 = smul.addr %s7561, 12
      %s7563 = smul.addr %s7562, 4
      %s7564 = scalar_lea.vmem %s8, %s7563
      // Predicated region
      $region53: #{anime4k_forward.1} parent=51 // pred_check
        %p7565 = pneg %p215
      $region54: #{anime4k_forward.1} parent=51 // pred_check_branch
        %7567 = sbr.rel (%p7565) target = $region56
      $region55: #{anime4k_forward.1} parent=51 // pred_region
        _
      $region56: #{anime4k_forward.1} parent=51 // pred_fallthru
        _
    $region52: #{anime4k_forward.1} parent=5 // pred_fallthru
      _
    %p7568 = scmp.le.s32.totalorder 2, %s14
    // Predicated region
    $region57: #{anime4k_forward.1} parent=5 // pred_check
      %p7569 = pneg %p7568
    $region58: #{anime4k_forward.1} parent=5 // pred_check_branch
      %7571 = sbr.rel (%p7569) target = $region60
    $region59: #{anime4k_forward.1} parent=5 // pred_region
      %s7572 = ssub.s32 %s14, 2
      // Predicated region
      $region61: #{anime4k_forward.1} parent=59 // pred_check
        %p7573 = pneg %p221
      $region62: #{anime4k_forward.1} parent=59 // pred_check_branch
        %7575 = sbr.rel (%p7573) target = $region64
      $region63: #{anime4k_forward.1} parent=59 // pred_region
        %p7576 = scmp.lt.s32.totalorder %s20, 1
        %s7577 = scalar_select %p7576, %s20, 1
        %s7578 = smul.addr %s7577, 12
        %s7579 = smul.addr %s7578, 4
        %s7580 = scalar_lea.vmem %s8, %s7579
      $region64: #{anime4k_forward.1} parent=59 // pred_fallthru
        _
    $region60: #{anime4k_forward.1} parent=5 // pred_fallthru
      _
  $region6: #{anime4k_forward.1} parent=0 // loop_footer
    %s18 = sadd.s32 1, %s14
  $region7: #{anime4k_forward.1} parent=0 // loop_footer_branch
    %13 = sbr.rel target = $region3
  $region8: #{anime4k_forward.1} parent=0 // loop_exit
    _

</llo_original>
